<compile_context>
chip_gen: v7x
topology: tpu7x:2x2x1
jax: 0.10.0
libtpu: 0.0.40
codegen_flags: <defaults>
</compile_context>

<pallas_src>
import math
import functools

import jax
import jax.numpy as jnp
from jax import lax
from jax.experimental import pallas as pl
from jax.experimental.pallas import tpu as pltpu

NEG_INF = -1e18  # matches masked_fill(-1e18) in the PyTorch MultiHeadedAttention


# ----------------------------- in-kernel helpers -----------------------------

def _layer_norm(x, gamma, beta, eps=1e-6):
    # OpenNMT modules.LayerNorm: a_2*(x-mean)/(std+eps)+b_2, std unbiased (ddof=1)
    d = x.shape[-1]
    mean = jnp.mean(x, axis=-1, keepdims=True)
    var = jnp.sum((x - mean) ** 2, axis=-1, keepdims=True) / (d - 1)
    return gamma * (x - mean) / (jnp.sqrt(var) + eps) + beta


def _mha(q_bf, kv_bf, batch, tq, tk, heads, dk,
         wq, bq, wkv, bkv, wo, bo, bias, want_attn):
    """Multi-head attention on a tile of `batch` sequences.

    q_bf:  [batch*tq, D] bf16 (already layer-normed queries)
    kv_bf: [batch*tk, D] bf16 (key/value source rows)
    wq:    [D, D]  bf16  (1/sqrt(dk) already folded in)
    wkv:   [D, 2D] bf16  (K columns then V columns)
    wo:    [D, D]  bf16
    bq:    [1, D] f32 (scaled);  bkv: [1, 2D] f32;  bo: [1, D] f32
    bias:  additive mask bias, [batch, tq, tk] f32 (NEG_INF where masked)
    Returns (out [batch*tq, D] f32, head-0 attention [batch, tq, tk] f32 or None).
    """
    d = heads * dk
    # Full-width fused projections (lane-dense N = D / 2D, full MXU width).
    q = jnp.dot(q_bf, wq, preferred_element_type=jnp.float32) + bq      # [Mq, D]
    kv = jnp.dot(kv_bf, wkv, preferred_element_type=jnp.float32) + bkv  # [Mkv, 2D]

    q3 = q.astype(jnp.bfloat16).reshape(batch, tq, d)
    k3 = kv[:, :d].astype(jnp.bfloat16).reshape(batch, tk, d)
    v3 = kv[:, d:].astype(jnp.bfloat16).reshape(batch, tk, d)

    ctx_heads = []
    attn0 = None
    # Static unroll over heads: only the (inherently dk-deep) score/context
    # einsums remain per-head; all projection matmuls are done above at full width.
    for h in range(heads):
        sl = slice(h * dk, (h + 1) * dk)
        s = jnp.einsum('bqd,bkd->bqk', q3[:, :, sl], k3[:, :, sl],
                       preferred_element_type=jnp.float32)      # [batch, tq, tk]
        s = s + bias                                            # hoisted mask bias
        s = s - jnp.max(s, axis=-1, keepdims=True)
        e = jnp.exp(s)
        p = e * pl.reciprocal(jnp.sum(e, axis=-1, keepdims=True), approx=True)
        if want_attn and h == 0:
            attn0 = p                                           # f32, head 0
        ctx_heads.append(jnp.einsum('bqk,bkd->bqd', p.astype(jnp.bfloat16),
                                    v3[:, :, sl],
                                    preferred_element_type=jnp.float32))
    # Lane-dense [M, D] context -> single full-width output projection (K = D).
    ctx = jnp.concatenate(ctx_heads, axis=-1).reshape(batch * tq, d)
    out = jnp.dot(ctx.astype(jnp.bfloat16), wo,
                  preferred_element_type=jnp.float32) + bo
    return out, attn0


# ------------------------------- Pallas kernel --------------------------------

def decoder_layer_kernel(x_ref, mem_ref, tgt_pad_ref, src_pad_ref,
                         wq_s_ref, wkv_s_ref, wo_s_ref,
                         wq_c_ref, wkv_c_ref, wo_c_ref,
                         vecs_ref, bkv_s_ref, bkv_c_ref,
                         w1_ref, b1_ref, w2_ref,
                         out_ref, attn_ref, allinp_ref, *, heads):
    bb, t, d = x_ref.shape            # batch tile, target length, model dim
    s_len = mem_ref.shape[1]          # source length
    dk = d // heads
    m = bb * t

    # Flatten the batch tile so every projection / FFN matmul sees M = bb*t rows.
    x = x_ref[...].reshape(m, d)                          # f32
    mem_bf = mem_ref[...].reshape(bb * s_len, d)          # already bf16

    vecs = vecs_ref[...]                                  # [11, D] f32
    ln1_g, ln1_b = vecs[0:1], vecs[1:2]
    ln2_g, ln2_b = vecs[2:3], vecs[3:4]
    ff_g, ff_b = vecs[4:5], vecs[5:6]
    bq_s, bo_s = vecs[6:7], vecs[7:8]
    bq_c, bo_c = vecs[8:9], vecs[9:10]
    ff_b2 = vecs[10:11]

    # Rebuild attention masks in-kernel from pad rows (no [B,T,T]/[B,T,S] DMA) and
    # turn them into additive biases ONCE (hoisted out of the per-head loops).
    q_idx = lax.broadcasted_iota(jnp.int32, (1, t, t), 1)
    k_idx = lax.broadcasted_iota(jnp.int32, (1, t, t), 2)
    causal = k_idx > q_idx                                          # [1, T, T]
    dec_mask = jnp.logical_or(causal, tgt_pad_ref[...] > 0.5)       # [bb, T, T]
    dec_bias = jnp.where(dec_mask, NEG_INF, 0.0)                    # [bb, T, T] f32
    src_bias = jnp.broadcast_to(
        jnp.where(src_pad_ref[...] > 0.5, NEG_INF, 0.0), (bb, t, s_len))

    # --- layer_norm1 ; all_input == input_norm (previous_input is None) ---
    input_norm = _layer_norm(x, ln1_g, ln1_b)
    allinp_ref[...] = input_norm.reshape(bb, t, d)
    xn_bf = input_norm.astype(jnp.bfloat16)

    # --- masked multi-head self-attention (+ residual; dropout == identity) ---
    self_out, _ = _mha(xn_bf, xn_bf, bb, t, t, heads, dk,
                       wq_s_ref[...], bq_s, wkv_s_ref[...], bkv_s_ref[...],
                       wo_s_ref[...], bo_s, dec_bias, False)
    query = self_out + x

    # --- context attention over encoder memory ---
    query_norm = _layer_norm(query, ln2_g, ln2_b)
    mid, top_attn = _mha(query_norm.astype(jnp.bfloat16), mem_bf,
                         bb, t, s_len, heads, dk,
                         wq_c_ref[...], bq_c, wkv_c_ref[...], bkv_c_ref[...],
                         wo_c_ref[...], bo_c, src_bias, True)
    attn_ref[...] = top_attn                                        # head 0, f32

    # --- PositionwiseFeedForward(mid + query) ---
    ff_in = mid + query
    ff_norm = _layer_norm(ff_in, ff_g, ff_b)
    inter = jnp.maximum(
        jnp.dot(ff_norm.astype(jnp.bfloat16), w1_ref[...],
                preferred_element_type=jnp.float32) + b1_ref[...], 0.0)
    out = jnp.dot(inter.astype(jnp.bfloat16), w2_ref[...],
                  preferred_element_type=jnp.float32) + ff_b2 + ff_in
    out_ref[...] = out.reshape(bb, t, d)


# ------------------------------- Pallas wrapper --------------------------------

def _default_block_b(B, T, S, D, vmem_limit_bytes):
    """Largest divisor of B whose double-buffered per-step blocks fit ~half the
    VMEM budget, while keeping grid length >= 2 (so v7x's two TCs both get work)."""
    per_b = 2 * (T * D * 4          # decoder inputs (f32, double-buffered)
                 + S * D * 2        # encoder memory (bf16)
                 + 2 * T * D * 4    # out + all_input (f32)
                 + T * S * 4)       # attn (f32)
    per_b += T * T * 4 + T * S * 4  # in-kernel mask-bias / score temps (rough)
    budget = max(1, int(vmem_limit_bytes * 0.5))
    bb = 1
    for cand in range(1, B + 1):
        if B % cand != 0:
            continue
        if cand * per_b <= budget and (B // cand) >= min(2, B):
            bb = cand
    return bb


def transformer_decoder_layer(inputs, memory_bank, src_pad, tgt_pad, packed, heads,
                              block_b=None, vmem_limit_bytes=64 * 1024 * 1024,
                              single_buffer_weights=True):
    """inputs [B,T,D] f32, memory_bank [B,S,D] f32, src_pad [B,S], tgt_pad [B,T]
    (1.0 where the token is padding). Returns (output [B,T,D], attn [B,T,S],
    all_input [B,T,D]) — same as TransformerDecoderLayer.forward with
    previous_input=None (the [B,T,T]/[B,T,S] masks are rebuilt in-kernel).

    vmem_limit_bytes defaults to 64 MiB (v7x physical VMEM per TC); on v5e/v6e
    (128 MiB parts) raise it and/or pass a larger block_b for bigger batch tiles."""
    B, T, D = inputs.shape
    S = memory_bank.shape[1]
    H = packed["w1"].shape[1]
    bb = _default_block_b(B, T, S, D, vmem_limit_bytes) if block_b is None else block_b
    assert D % heads == 0 and B % bb == 0

    tgt_pad3 = tgt_pad.reshape(B, 1, T).astype(jnp.float32)
    src_pad3 = src_pad.reshape(B, 1, S).astype(jnp.float32)
    mem_bf = memory_bank.astype(jnp.bfloat16)   # only consumed in bf16: halves its DMA

    kernel = functools.partial(decoder_layer_kernel, heads=heads)
    bmap = lambda b: (b, 0, 0)
    c2 = lambda b: (0, 0)

    def build(weight_mode):
        def wspec(shape):
            if weight_mode is None:
                return pl.BlockSpec(shape, c2)
            return pl.BlockSpec(shape, c2, pipeline_mode=weight_mode)

        return pl.pallas_call(
            kernel,
            out_shape=(jax.ShapeDtypeStruct((B, T, D), jnp.float32),
                       jax.ShapeDtypeStruct((B, T, S), jnp.float32),
                       jax.ShapeDtypeStruct((B, T, D), jnp.float32)),
            grid_spec=pltpu.PrefetchScalarGridSpec(
                num_scalar_prefetch=0,
                grid=(B // bb,),
                in_specs=[
                    pl.BlockSpec((bb, T, D), bmap),   # decoder inputs (f32)
                    pl.BlockSpec((bb, S, D), bmap),   # encoder memory (bf16)
                    pl.BlockSpec((bb, 1, T), bmap),   # tgt pad row
                    pl.BlockSpec((bb, 1, S), bmap),   # src pad row
                    wspec((D, D)),        # self-attn Wq (bf16, scale folded)
                    wspec((D, 2 * D)),    # self-attn Wk|Wv (bf16)
                    wspec((D, D)),        # self-attn Wo (bf16)
                    wspec((D, D)),        # ctx-attn Wq (bf16, scale folded)
                    wspec((D, 2 * D)),    # ctx-attn Wk|Wv (bf16)
                    wspec((D, D)),        # ctx-attn Wo (bf16)
                    wspec((11, D)),       # LN params + bq/bo biases + ff_b2 (f32)
                    wspec((1, 2 * D)),    # self-attn bk|bv (f32)
                    wspec((1, 2 * D)),    # ctx-attn bk|bv (f32)
                    wspec((D, H)),        # FFN W1 (bf16)
                    wspec((1, H)),        # FFN b1 (f32)
                    wspec((H, D)),        # FFN W2 (bf16)
                ],
                out_specs=(
                    pl.BlockSpec((bb, T, D), bmap),
                    pl.BlockSpec((bb, T, S), bmap),
                    pl.BlockSpec((bb, T, D), bmap),
                ),
            ),
            compiler_params=pltpu.CompilerParams(
                dimension_semantics=("parallel",),
                vmem_limit_bytes=vmem_limit_bytes),
        )

    args = (inputs, mem_bf, tgt_pad3, src_pad3,
            packed["wq_s"], packed["wkv_s"], packed["wo_s"],
            packed["wq_c"], packed["wkv_c"], packed["wo_c"],
            packed["vecs"], packed["bkv_s"], packed["bkv_c"],
            packed["w1"], packed["b1"], packed["w2"])

    if single_buffer_weights:
        try:
            # Constant-index weights don't need double buffering; reclaim the VMEM.
            return build(pl.Buffered(buffer_count=1))(*args)
        except Exception:
            pass  # fall back to default buffering if Buffered(1) is unsupported
    return build(None)(*args)


# ------------------------- host-side parameter packing -------------------------

def pack_layer_params(p, heads):
    D = p["ln1_g"].shape[0]
    dk = D // heads
    scale = 1.0 / math.sqrt(dk)

    def attn_pack(prefix):
        wq = (p[prefix + "Wq"] * scale).astype(jnp.bfloat16)                  # [D, D]
        wkv = jnp.concatenate([p[prefix + "Wk"], p[prefix + "Wv"]],
                              axis=1).astype(jnp.bfloat16)                    # [D, 2D]
        bq = (p[prefix + "bq"] * scale).astype(jnp.float32)                   # [D]
        bkv = jnp.concatenate([p[prefix + "bk"], p[prefix + "bv"]]
                              ).reshape(1, 2 * D).astype(jnp.float32)         # [1, 2D]
        wo = p[prefix + "Wo"].astype(jnp.bfloat16)                            # [D, D]
        return wq, wkv, bq, bkv, wo

    wq_s, wkv_s, bq_s, bkv_s, wo_s = attn_pack("self_")
    wq_c, wkv_c, bq_c, bkv_c, wo_c = attn_pack("ctx_")
    vecs = jnp.stack([p["ln1_g"], p["ln1_b"], p["ln2_g"], p["ln2_b"],
                      p["ff_ln_g"], p["ff_ln_b"],
                      bq_s, p["self_bo"],
                      bq_c, p["ctx_bo"], p["ff_b2"]]).astype(jnp.float32)     # [11, D]
    return dict(wq_s=wq_s, wkv_s=wkv_s, wo_s=wo_s,
                wq_c=wq_c, wkv_c=wkv_c, wo_c=wo_c,
                vecs=vecs, bkv_s=bkv_s, bkv_c=bkv_c,
                w1=p["ff_w1"].astype(jnp.bfloat16),
                b1=p["ff_b1"].reshape(1, -1).astype(jnp.float32),
                w2=p["ff_w2"].astype(jnp.bfloat16))


def init_layer_params(key, D, H):
    ks = jax.random.split(key, 11)
    p = {}
    names = ["self_Wq", "self_Wk", "self_Wv", "self_Wo",
             "ctx_Wq", "ctx_Wk", "ctx_Wv", "ctx_Wo"]
    for i, n in enumerate(names):
        p[n] = jax.random.normal(ks[i], (D, D), jnp.float32) * 0.05
    p["ff_w1"] = jax.random.normal(ks[8], (D, H), jnp.float32) * 0.05
    p["ff_w2"] = jax.random.normal(ks[9], (H, D), jnp.float32) * 0.05
    bks = jax.random.split(ks[10], 10)
    for i, n in enumerate(["self_bq", "self_bk", "self_bv", "self_bo",
                           "ctx_bq", "ctx_bk", "ctx_bv", "ctx_bo",
                           "ff_b1", "ff_b2"]):
        shape = (H,) if n == "ff_b1" else (D,)
        p[n] = jax.random.normal(bks[i], shape, jnp.float32) * 0.01
    for n in ["ln1", "ln2", "ff_ln"]:
        p[n + "_g"] = jnp.ones((D,), jnp.float32)
        p[n + "_b"] = jnp.zeros((D,), jnp.float32)
    return p


# ------------------------------------ demo ------------------------------------

if __name__ == "__main__":
    key = jax.random.PRNGKey(0)
    B, T, S, D, H, heads = 2, 8, 8, 32, 64, 4
    k1, k2, k3 = jax.random.split(key, 3)

    inputs = jax.random.normal(k1, (B, T, D), jnp.float32)
    memory_bank = jax.random.normal(k2, (B, S, D), jnp.float32)
    # pad flags (1.0 == padding position), exercising both masks
    src_pad = jnp.zeros((B, S), jnp.float32).at[0, -2:].set(1.0)
    tgt_pad = jnp.zeros((B, T), jnp.float32).at[1, -1:].set(1.0)

    raw = init_layer_params(k3, D, H)
    packed = pack_layer_params(raw, heads)

    out, attn, all_input = transformer_decoder_layer(
        inputs, memory_bank, src_pad, tgt_pad, packed, heads)
    jax.block_until_ready((out, attn, all_input))

    assert out.shape == (B, T, D)
    assert attn.shape == (B, T, S)
    assert all_input.shape == (B, T, D)
    assert bool(jnp.all(jnp.isfinite(out)))
    assert bool(jnp.all(jnp.isfinite(attn)))
    assert bool(jnp.all(jnp.isfinite(all_input)))
    # attention rows are a softmax over source positions (approx reciprocal -> 1e-2)
    assert bool(jnp.allclose(jnp.sum(attn, axis=-1), 1.0, atol=1e-2))
    print("KERNEL_OK")
</pallas_src>

<mosaic_0001>
module attributes {stable_mosaic.version = 11 : i64} {
  func.func @decoder_layer_kernel(%arg0: i32, %arg1: memref<1x8x32xf32, #tpu.memory_space<vmem>>, %arg2: memref<1x8x32xbf16, #tpu.memory_space<vmem>>, %arg3: memref<1x1x8xf32, #tpu.memory_space<vmem>>, %arg4: memref<1x1x8xf32, #tpu.memory_space<vmem>>, %arg5: memref<32x32xbf16, #tpu.memory_space<vmem>>, %arg6: memref<32x64xbf16, #tpu.memory_space<vmem>>, %arg7: memref<32x32xbf16, #tpu.memory_space<vmem>>, %arg8: memref<32x32xbf16, #tpu.memory_space<vmem>>, %arg9: memref<32x64xbf16, #tpu.memory_space<vmem>>, %arg10: memref<32x32xbf16, #tpu.memory_space<vmem>>, %arg11: memref<11x32xf32, #tpu.memory_space<vmem>>, %arg12: memref<1x64xf32, #tpu.memory_space<vmem>>, %arg13: memref<1x64xf32, #tpu.memory_space<vmem>>, %arg14: memref<32x64xbf16, #tpu.memory_space<vmem>>, %arg15: memref<1x64xf32, #tpu.memory_space<vmem>>, %arg16: memref<64x32xbf16, #tpu.memory_space<vmem>>, %arg17: memref<1x8x32xf32, #tpu.memory_space<vmem>>, %arg18: memref<1x8x8xf32, #tpu.memory_space<vmem>>, %arg19: memref<1x8x32xf32, #tpu.memory_space<vmem>>) attributes {dimension_semantics = [#tpu.dimension_semantics<parallel>], iteration_bounds = array<i64: 2>, scalar_prefetch = 0 : i64, scratch_operands = 0 : i64, tpu.core_type = #tpu.core_type<tc>, window_params = [{transform_indices = @transform_0, window_bounds = array<i64: 1, 8, 32>}, {transform_indices = @transform_1, window_bounds = array<i64: 1, 8, 32>}, {transform_indices = @transform_2, window_bounds = array<i64: 1, 1, 8>}, {transform_indices = @transform_3, window_bounds = array<i64: 1, 1, 8>}, {pipeline_mode = #tpu.pipeline_mode<synchronous>, transform_indices = @transform_4, window_bounds = array<i64: 32, 32>}, {pipeline_mode = #tpu.pipeline_mode<synchronous>, transform_indices = @transform_5, window_bounds = array<i64: 32, 64>}, {pipeline_mode = #tpu.pipeline_mode<synchronous>, transform_indices = @transform_6, window_bounds = array<i64: 32, 32>}, {pipeline_mode = #tpu.pipeline_mode<synchronous>, transform_indices = @transform_7, window_bounds = array<i64: 32, 32>}, {pipeline_mode = #tpu.pipeline_mode<synchronous>, transform_indices = @transform_8, window_bounds = array<i64: 32, 64>}, {pipeline_mode = #tpu.pipeline_mode<synchronous>, transform_indices = @transform_9, window_bounds = array<i64: 32, 32>}, {pipeline_mode = #tpu.pipeline_mode<synchronous>, transform_indices = @transform_10, window_bounds = array<i64: 11, 32>}, {pipeline_mode = #tpu.pipeline_mode<synchronous>, transform_indices = @transform_11, window_bounds = array<i64: 1, 64>}, {pipeline_mode = #tpu.pipeline_mode<synchronous>, transform_indices = @transform_12, window_bounds = array<i64: 1, 64>}, {pipeline_mode = #tpu.pipeline_mode<synchronous>, transform_indices = @transform_13, window_bounds = array<i64: 32, 64>}, {pipeline_mode = #tpu.pipeline_mode<synchronous>, transform_indices = @transform_14, window_bounds = array<i64: 1, 64>}, {pipeline_mode = #tpu.pipeline_mode<synchronous>, transform_indices = @transform_15, window_bounds = array<i64: 64, 32>}, {transform_indices = @transform_16, window_bounds = array<i64: 1, 8, 32>}, {transform_indices = @transform_17, window_bounds = array<i64: 1, 8, 8>}, {transform_indices = @transform_18, window_bounds = array<i64: 1, 8, 32>}]} {
    %c0 = arith.constant 0 : index
    %c0_0 = arith.constant 0 : index
    %c0_1 = arith.constant 0 : index
    %0 = vector.load %arg1[%c0, %c0_0, %c0_1] : memref<1x8x32xf32, #tpu.memory_space<vmem>>, vector<1x8x32xf32>
    %1 = vector.shape_cast %0 : vector<1x8x32xf32> to vector<8x32xf32>
    %c0_2 = arith.constant 0 : index
    %c0_3 = arith.constant 0 : index
    %c0_4 = arith.constant 0 : index
    %2 = vector.load %arg2[%c0_2, %c0_3, %c0_4] : memref<1x8x32xbf16, #tpu.memory_space<vmem>>, vector<1x8x32xbf16>
    %3 = vector.shape_cast %2 : vector<1x8x32xbf16> to vector<8x32xbf16>
    %c0_5 = arith.constant 0 : index
    %c0_6 = arith.constant 0 : index
    %4 = vector.load %arg11[%c0_5, %c0_6] : memref<11x32xf32, #tpu.memory_space<vmem>>, vector<11x32xf32>
    %5 = vector.extract_strided_slice %4 {offsets = [0, 0], sizes = [1, 32], strides = [1, 1]} : vector<11x32xf32> to vector<1x32xf32>
    %6 = vector.extract_strided_slice %4 {offsets = [1, 0], sizes = [1, 32], strides = [1, 1]} : vector<11x32xf32> to vector<1x32xf32>
    %7 = vector.extract_strided_slice %4 {offsets = [2, 0], sizes = [1, 32], strides = [1, 1]} : vector<11x32xf32> to vector<1x32xf32>
    %8 = vector.extract_strided_slice %4 {offsets = [3, 0], sizes = [1, 32], strides = [1, 1]} : vector<11x32xf32> to vector<1x32xf32>
    %9 = vector.extract_strided_slice %4 {offsets = [4, 0], sizes = [1, 32], strides = [1, 1]} : vector<11x32xf32> to vector<1x32xf32>
    %10 = vector.extract_strided_slice %4 {offsets = [5, 0], sizes = [1, 32], strides = [1, 1]} : vector<11x32xf32> to vector<1x32xf32>
    %11 = vector.extract_strided_slice %4 {offsets = [6, 0], sizes = [1, 32], strides = [1, 1]} : vector<11x32xf32> to vector<1x32xf32>
    %12 = vector.extract_strided_slice %4 {offsets = [7, 0], sizes = [1, 32], strides = [1, 1]} : vector<11x32xf32> to vector<1x32xf32>
    %13 = vector.extract_strided_slice %4 {offsets = [8, 0], sizes = [1, 32], strides = [1, 1]} : vector<11x32xf32> to vector<1x32xf32>
    %14 = vector.extract_strided_slice %4 {offsets = [9, 0], sizes = [1, 32], strides = [1, 1]} : vector<11x32xf32> to vector<1x32xf32>
    %15 = vector.extract_strided_slice %4 {offsets = [10, 0], sizes = [1, 32], strides = [1, 1]} : vector<11x32xf32> to vector<1x32xf32>
    %16 = tpu.iota {dimensions = array<i32: 1>} : vector<1x8x8xi32>
    %17 = tpu.iota {dimensions = array<i32: 2>} : vector<1x8x8xi32>
    %18 = arith.cmpi sgt, %17, %16 : vector<1x8x8xi32>
    %c0_7 = arith.constant 0 : index
    %c0_8 = arith.constant 0 : index
    %c0_9 = arith.constant 0 : index
    %19 = vector.load %arg3[%c0_7, %c0_8, %c0_9] : memref<1x1x8xf32, #tpu.memory_space<vmem>>, vector<1x1x8xf32>
    %cst = arith.constant 5.000000e-01 : f32
    %20 = vector.broadcast %cst : f32 to vector<1x1x8xf32>
    %21 = arith.cmpf ogt, %19, %20 : vector<1x1x8xf32>
    %22 = vector.broadcast %21 : vector<1x1x8xi1> to vector<1x8x8xi1>
    %23 = arith.ori %18, %22 : vector<1x8x8xi1>
    %cst_10 = arith.constant -9.99999984E+17 : f32
    %cst_11 = arith.constant 0.000000e+00 : f32
    %24 = vector.broadcast %cst_10 : f32 to vector<1x8x8xf32>
    %25 = vector.broadcast %cst_11 : f32 to vector<1x8x8xf32>
    %26 = arith.select %23, %24, %25 : vector<1x8x8xi1>, vector<1x8x8xf32>
    %c0_12 = arith.constant 0 : index
    %c0_13 = arith.constant 0 : index
    %c0_14 = arith.constant 0 : index
    %27 = vector.load %arg4[%c0_12, %c0_13, %c0_14] : memref<1x1x8xf32, #tpu.memory_space<vmem>>, vector<1x1x8xf32>
    %cst_15 = arith.constant 5.000000e-01 : f32
    %28 = vector.broadcast %cst_15 : f32 to vector<1x1x8xf32>
    %29 = arith.cmpf ogt, %27, %28 : vector<1x1x8xf32>
    %cst_16 = arith.constant -9.99999984E+17 : f32
    %cst_17 = arith.constant 0.000000e+00 : f32
    %30 = vector.broadcast %cst_16 : f32 to vector<1x1x8xf32>
    %31 = vector.broadcast %cst_17 : f32 to vector<1x1x8xf32>
    %32 = arith.select %29, %30, %31 : vector<1x1x8xi1>, vector<1x1x8xf32>
    %33 = vector.shape_cast %32 : vector<1x1x8xf32> to vector<1x1x8xf32>
    %34 = vector.broadcast %33 : vector<1x1x8xf32> to vector<1x8x8xf32>
    %cst_18 = arith.constant dense<0.000000e+00> : vector<8xf32>
    %35 = vector.multi_reduction <add>, %1, %cst_18 [1] : vector<8x32xf32> to vector<8xf32>
    %36 = vector.shape_cast %35 : vector<8xf32> to vector<8x1xf32>
    %cst_19 = arith.constant 3.200000e+01 : f32
    %37 = vector.broadcast %cst_19 : f32 to vector<8x1xf32>
    %38 = arith.divf %36, %37 : vector<8x1xf32>
    %39 = vector.broadcast %38 : vector<8x1xf32> to vector<8x32xf32>
    %40 = arith.subf %1, %39 : vector<8x32xf32>
    %41 = arith.mulf %40, %40 : vector<8x32xf32>
    %cst_20 = arith.constant dense<0.000000e+00> : vector<8xf32>
    %42 = vector.multi_reduction <add>, %41, %cst_20 [1] : vector<8x32xf32> to vector<8xf32>
    %43 = vector.shape_cast %42 : vector<8xf32> to vector<8x1xf32>
    %cst_21 = arith.constant 3.100000e+01 : f32
    %44 = vector.broadcast %cst_21 : f32 to vector<8x1xf32>
    %45 = arith.divf %43, %44 : vector<8x1xf32>
    %46 = vector.broadcast %38 : vector<8x1xf32> to vector<8x32xf32>
    %47 = arith.subf %1, %46 : vector<8x32xf32>
    %48 = vector.broadcast %5 : vector<1x32xf32> to vector<8x32xf32>
    %49 = arith.mulf %48, %47 : vector<8x32xf32>
    %50 = math.sqrt %45 : vector<8x1xf32>
    %cst_22 = arith.constant 9.99999997E-7 : f32
    %51 = vector.broadcast %cst_22 : f32 to vector<8x1xf32>
    %52 = arith.addf %50, %51 : vector<8x1xf32>
    %53 = vector.broadcast %52 : vector<8x1xf32> to vector<8x32xf32>
    %54 = arith.divf %49, %53 : vector<8x32xf32>
    %55 = vector.broadcast %6 : vector<1x32xf32> to vector<8x32xf32>
    %56 = arith.addf %54, %55 : vector<8x32xf32>
    %57 = vector.shape_cast %56 : vector<8x32xf32> to vector<1x8x32xf32>
    %c0_23 = arith.constant 0 : index
    %c0_24 = arith.constant 0 : index
    %c0_25 = arith.constant 0 : index
    %58 = vector.load %arg19[%c0_23, %c0_24, %c0_25] : memref<1x8x32xf32, #tpu.memory_space<vmem>>, vector<1x8x32xf32>
    tpu.vector_store %arg19[%c0_23, %c0_24, %c0_25], %57 {strides = array<i32>} : memref<1x8x32xf32, #tpu.memory_space<vmem>>, vector<1x8x32xf32>,
    %59 = arith.truncf %56 : vector<8x32xf32> to vector<8x32xbf16>
    %c0_26 = arith.constant 0 : index
    %c0_27 = arith.constant 0 : index
    %60 = vector.load %arg5[%c0_26, %c0_27] : memref<32x32xbf16, #tpu.memory_space<vmem>>, vector<32x32xbf16>
    %c0_28 = arith.constant 0 : index
    %c0_29 = arith.constant 0 : index
    %61 = vector.load %arg6[%c0_28, %c0_29] : memref<32x64xbf16, #tpu.memory_space<vmem>>, vector<32x64xbf16>
    %c0_30 = arith.constant 0 : index
    %c0_31 = arith.constant 0 : index
    %62 = vector.load %arg12[%c0_30, %c0_31] : memref<1x64xf32, #tpu.memory_space<vmem>>, vector<1x64xf32>
    %c0_32 = arith.constant 0 : index
    %c0_33 = arith.constant 0 : index
    %63 = vector.load %arg7[%c0_32, %c0_33] : memref<32x32xbf16, #tpu.memory_space<vmem>>, vector<32x32xbf16>
    %cst_34 = arith.constant dense<0.000000e+00> : vector<8x32xf32>
    %64 = tpu.matmul %59, %60, %cst_34 {dimension_numbers = #tpu.dot_dimension_numbers<[1], [0], [0], [1], [0, 0, 1, 1], [], []>} : vector<8x32xbf16>, vector<32x32xbf16>, vector<8x32xf32> -> vector<8x32xf32>
    %65 = vector.broadcast %11 : vector<1x32xf32> to vector<8x32xf32>
    %66 = arith.addf %64, %65 : vector<8x32xf32>
    %cst_35 = arith.constant dense<0.000000e+00> : vector<8x64xf32>
    %67 = tpu.matmul %59, %61, %cst_35 {dimension_numbers = #tpu.dot_dimension_numbers<[1], [0], [0], [1], [0, 0, 1, 1], [], []>} : vector<8x32xbf16>, vector<32x64xbf16>, vector<8x64xf32> -> vector<8x64xf32>
    %68 = vector.broadcast %62 : vector<1x64xf32> to vector<8x64xf32>
    %69 = arith.addf %67, %68 : vector<8x64xf32>
    %70 = arith.truncf %66 : vector<8x32xf32> to vector<8x32xbf16>
    %71 = vector.shape_cast %70 : vector<8x32xbf16> to vector<1x8x32xbf16>
    %72 = vector.extract_strided_slice %69 {offsets = [0, 0], sizes = [8, 32], strides = [1, 1]} : vector<8x64xf32> to vector<8x32xf32>
    %73 = arith.truncf %72 : vector<8x32xf32> to vector<8x32xbf16>
    %74 = vector.shape_cast %73 : vector<8x32xbf16> to vector<1x8x32xbf16>
    %75 = vector.extract_strided_slice %69 {offsets = [0, 32], sizes = [8, 32], strides = [1, 1]} : vector<8x64xf32> to vector<8x32xf32>
    %76 = arith.truncf %75 : vector<8x32xf32> to vector<8x32xbf16>
    %77 = vector.shape_cast %76 : vector<8x32xbf16> to vector<1x8x32xbf16>
    %78 = vector.extract_strided_slice %71 {offsets = [0, 0, 0], sizes = [1, 8, 8], strides = [1, 1, 1]} : vector<1x8x32xbf16> to vector<1x8x8xbf16>
    %79 = vector.extract_strided_slice %74 {offsets = [0, 0, 0], sizes = [1, 8, 8], strides = [1, 1, 1]} : vector<1x8x32xbf16> to vector<1x8x8xbf16>
    "tpu.trace_start"() <{level = 10 : i32, message = "bqd,bkd->bqk"}> : () -> ()
    %cst_36 = arith.constant dense<0.000000e+00> : vector<1x8x8xf32>
    %80 = tpu.matmul %78, %79, %cst_36 {dimension_numbers = #tpu.dot_dimension_numbers<[2], [2], [1], [1], [0, 0, 0, 1, 1, 1], [0], [0]>} : vector<1x8x8xbf16>, vector<1x8x8xbf16>, vector<1x8x8xf32> -> vector<1x8x8xf32>
    "tpu.trace_stop"() : () -> ()
    %81 = arith.addf %80, %26 : vector<1x8x8xf32>
    %cst_37 = arith.constant dense<0xFF800000> : vector<1x8xf32>
    %82 = vector.multi_reduction <maximumf>, %81, %cst_37 [2] : vector<1x8x8xf32> to vector<1x8xf32>
    %83 = vector.shape_cast %82 : vector<1x8xf32> to vector<1x8x1xf32>
    %84 = vector.broadcast %83 : vector<1x8x1xf32> to vector<1x8x8xf32>
    %85 = arith.subf %81, %84 : vector<1x8x8xf32>
    %86 = math.exp %85 : vector<1x8x8xf32>
    %cst_38 = arith.constant dense<0.000000e+00> : vector<1x8xf32>
    %87 = vector.multi_reduction <add>, %86, %cst_38 [2] : vector<1x8x8xf32> to vector<1x8xf32>
    %88 = vector.shape_cast %87 : vector<1x8xf32> to vector<1x8x1xf32>
    %89 = tpu.reciprocal %88 {approx = true} : vector<1x8x1xf32> -> vector<1x8x1xf32>
    %90 = vector.broadcast %89 : vector<1x8x1xf32> to vector<1x8x8xf32>
    %91 = arith.mulf %86, %90 : vector<1x8x8xf32>
    %92 = arith.truncf %91 : vector<1x8x8xf32> to vector<1x8x8xbf16>
    %93 = vector.extract_strided_slice %77 {offsets = [0, 0, 0], sizes = [1, 8, 8], strides = [1, 1, 1]} : vector<1x8x32xbf16> to vector<1x8x8xbf16>
    "tpu.trace_start"() <{level = 10 : i32, message = "bqk,bkd->bqd"}> : () -> ()
    %cst_39 = arith.constant dense<0.000000e+00> : vector<1x8x8xf32>
    %94 = tpu.matmul %92, %93, %cst_39 {dimension_numbers = #tpu.dot_dimension_numbers<[2], [1], [1], [2], [0, 0, 0, 1, 1, 2], [0], [0]>} : vector<1x8x8xbf16>, vector<1x8x8xbf16>, vector<1x8x8xf32> -> vector<1x8x8xf32>
    "tpu.trace_stop"() : () -> ()
    %95 = vector.extract_strided_slice %71 {offsets = [0, 0, 8], sizes = [1, 8, 8], strides = [1, 1, 1]} : vector<1x8x32xbf16> to vector<1x8x8xbf16>
    %96 = vector.extract_strided_slice %74 {offsets = [0, 0, 8], sizes = [1, 8, 8], strides = [1, 1, 1]} : vector<1x8x32xbf16> to vector<1x8x8xbf16>
    "tpu.trace_start"() <{level = 10 : i32, message = "bqd,bkd->bqk"}> : () -> ()
    %cst_40 = arith.constant dense<0.000000e+00> : vector<1x8x8xf32>
    %97 = tpu.matmul %95, %96, %cst_40 {dimension_numbers = #tpu.dot_dimension_numbers<[2], [2], [1], [1], [0, 0, 0, 1, 1, 1], [0], [0]>} : vector<1x8x8xbf16>, vector<1x8x8xbf16>, vector<1x8x8xf32> -> vector<1x8x8xf32>
    "tpu.trace_stop"() : () -> ()
    %98 = arith.addf %97, %26 : vector<1x8x8xf32>
    %cst_41 = arith.constant dense<0xFF800000> : vector<1x8xf32>
    %99 = vector.multi_reduction <maximumf>, %98, %cst_41 [2] : vector<1x8x8xf32> to vector<1x8xf32>
    %100 = vector.shape_cast %99 : vector<1x8xf32> to vector<1x8x1xf32>
    %101 = vector.broadcast %100 : vector<1x8x1xf32> to vector<1x8x8xf32>
    %102 = arith.subf %98, %101 : vector<1x8x8xf32>
    %103 = math.exp %102 : vector<1x8x8xf32>
    %cst_42 = arith.constant dense<0.000000e+00> : vector<1x8xf32>
    %104 = vector.multi_reduction <add>, %103, %cst_42 [2] : vector<1x8x8xf32> to vector<1x8xf32>
    %105 = vector.shape_cast %104 : vector<1x8xf32> to vector<1x8x1xf32>
    %106 = tpu.reciprocal %105 {approx = true} : vector<1x8x1xf32> -> vector<1x8x1xf32>
    %107 = vector.broadcast %106 : vector<1x8x1xf32> to vector<1x8x8xf32>
    %108 = arith.mulf %103, %107 : vector<1x8x8xf32>
    %109 = arith.truncf %108 : vector<1x8x8xf32> to vector<1x8x8xbf16>
    %110 = vector.extract_strided_slice %77 {offsets = [0, 0, 8], sizes = [1, 8, 8], strides = [1, 1, 1]} : vector<1x8x32xbf16> to vector<1x8x8xbf16>
    "tpu.trace_start"() <{level = 10 : i32, message = "bqk,bkd->bqd"}> : () -> ()
    %cst_43 = arith.constant dense<0.000000e+00> : vector<1x8x8xf32>
    %111 = tpu.matmul %109, %110, %cst_43 {dimension_numbers = #tpu.dot_dimension_numbers<[2], [1], [1], [2], [0, 0, 0, 1, 1, 2], [0], [0]>} : vector<1x8x8xbf16>, vector<1x8x8xbf16>, vector<1x8x8xf32> -> vector<1x8x8xf32>
    "tpu.trace_stop"() : () -> ()
    %112 = vector.extract_strided_slice %71 {offsets = [0, 0, 16], sizes = [1, 8, 8], strides = [1, 1, 1]} : vector<1x8x32xbf16> to vector<1x8x8xbf16>
    %113 = vector.extract_strided_slice %74 {offsets = [0, 0, 16], sizes = [1, 8, 8], strides = [1, 1, 1]} : vector<1x8x32xbf16> to vector<1x8x8xbf16>
    "tpu.trace_start"() <{level = 10 : i32, message = "bqd,bkd->bqk"}> : () -> ()
    %cst_44 = arith.constant dense<0.000000e+00> : vector<1x8x8xf32>
    %114 = tpu.matmul %112, %113, %cst_44 {dimension_numbers = #tpu.dot_dimension_numbers<[2], [2], [1], [1], [0, 0, 0, 1, 1, 1], [0], [0]>} : vector<1x8x8xbf16>, vector<1x8x8xbf16>, vector<1x8x8xf32> -> vector<1x8x8xf32>
    "tpu.trace_stop"() : () -> ()
    %115 = arith.addf %114, %26 : vector<1x8x8xf32>
    %cst_45 = arith.constant dense<0xFF800000> : vector<1x8xf32>
    %116 = vector.multi_reduction <maximumf>, %115, %cst_45 [2] : vector<1x8x8xf32> to vector<1x8xf32>
    %117 = vector.shape_cast %116 : vector<1x8xf32> to vector<1x8x1xf32>
    %118 = vector.broadcast %117 : vector<1x8x1xf32> to vector<1x8x8xf32>
    %119 = arith.subf %115, %118 : vector<1x8x8xf32>
    %120 = math.exp %119 : vector<1x8x8xf32>
    %cst_46 = arith.constant dense<0.000000e+00> : vector<1x8xf32>
    %121 = vector.multi_reduction <add>, %120, %cst_46 [2] : vector<1x8x8xf32> to vector<1x8xf32>
    %122 = vector.shape_cast %121 : vector<1x8xf32> to vector<1x8x1xf32>
    %123 = tpu.reciprocal %122 {approx = true} : vector<1x8x1xf32> -> vector<1x8x1xf32>
    %124 = vector.broadcast %123 : vector<1x8x1xf32> to vector<1x8x8xf32>
    %125 = arith.mulf %120, %124 : vector<1x8x8xf32>
    %126 = arith.truncf %125 : vector<1x8x8xf32> to vector<1x8x8xbf16>
    %127 = vector.extract_strided_slice %77 {offsets = [0, 0, 16], sizes = [1, 8, 8], strides = [1, 1, 1]} : vector<1x8x32xbf16> to vector<1x8x8xbf16>
    "tpu.trace_start"() <{level = 10 : i32, message = "bqk,bkd->bqd"}> : () -> ()
    %cst_47 = arith.constant dense<0.000000e+00> : vector<1x8x8xf32>
    %128 = tpu.matmul %126, %127, %cst_47 {dimension_numbers = #tpu.dot_dimension_numbers<[2], [1], [1], [2], [0, 0, 0, 1, 1, 2], [0], [0]>} : vector<1x8x8xbf16>, vector<1x8x8xbf16>, vector<1x8x8xf32> -> vector<1x8x8xf32>
    "tpu.trace_stop"() : () -> ()
    %129 = vector.extract_strided_slice %71 {offsets = [0, 0, 24], sizes = [1, 8, 8], strides = [1, 1, 1]} : vector<1x8x32xbf16> to vector<1x8x8xbf16>
    %130 = vector.extract_strided_slice %74 {offsets = [0, 0, 24], sizes = [1, 8, 8], strides = [1, 1, 1]} : vector<1x8x32xbf16> to vector<1x8x8xbf16>
    "tpu.trace_start"() <{level = 10 : i32, message = "bqd,bkd->bqk"}> : () -> ()
    %cst_48 = arith.constant dense<0.000000e+00> : vector<1x8x8xf32>
    %131 = tpu.matmul %129, %130, %cst_48 {dimension_numbers = #tpu.dot_dimension_numbers<[2], [2], [1], [1], [0, 0, 0, 1, 1, 1], [0], [0]>} : vector<1x8x8xbf16>, vector<1x8x8xbf16>, vector<1x8x8xf32> -> vector<1x8x8xf32>
    "tpu.trace_stop"() : () -> ()
    %132 = arith.addf %131, %26 : vector<1x8x8xf32>
    %cst_49 = arith.constant dense<0xFF800000> : vector<1x8xf32>
    %133 = vector.multi_reduction <maximumf>, %132, %cst_49 [2] : vector<1x8x8xf32> to vector<1x8xf32>
    %134 = vector.shape_cast %133 : vector<1x8xf32> to vector<1x8x1xf32>
    %135 = vector.broadcast %134 : vector<1x8x1xf32> to vector<1x8x8xf32>
    %136 = arith.subf %132, %135 : vector<1x8x8xf32>
    %137 = math.exp %136 : vector<1x8x8xf32>
    %cst_50 = arith.constant dense<0.000000e+00> : vector<1x8xf32>
    %138 = vector.multi_reduction <add>, %137, %cst_50 [2] : vector<1x8x8xf32> to vector<1x8xf32>
    %139 = vector.shape_cast %138 : vector<1x8xf32> to vector<1x8x1xf32>
    %140 = tpu.reciprocal %139 {approx = true} : vector<1x8x1xf32> -> vector<1x8x1xf32>
    %141 = vector.broadcast %140 : vector<1x8x1xf32> to vector<1x8x8xf32>
    %142 = arith.mulf %137, %141 : vector<1x8x8xf32>
    %143 = arith.truncf %142 : vector<1x8x8xf32> to vector<1x8x8xbf16>
    %144 = vector.extract_strided_slice %77 {offsets = [0, 0, 24], sizes = [1, 8, 8], strides = [1, 1, 1]} : vector<1x8x32xbf16> to vector<1x8x8xbf16>
    "tpu.trace_start"() <{level = 10 : i32, message = "bqk,bkd->bqd"}> : () -> ()
    %cst_51 = arith.constant dense<0.000000e+00> : vector<1x8x8xf32>
    %145 = tpu.matmul %143, %144, %cst_51 {dimension_numbers = #tpu.dot_dimension_numbers<[2], [1], [1], [2], [0, 0, 0, 1, 1, 2], [0], [0]>} : vector<1x8x8xbf16>, vector<1x8x8xbf16>, vector<1x8x8xf32> -> vector<1x8x8xf32>
    "tpu.trace_stop"() : () -> ()
    %146 = tpu.concatenate %94, %111, %128, %145 in 2 : vector<1x8x8xf32>, vector<1x8x8xf32>, vector<1x8x8xf32>, vector<1x8x8xf32> -> vector<1x8x32xf32>
    %147 = vector.shape_cast %146 : vector<1x8x32xf32> to vector<8x32xf32>
    %148 = arith.truncf %147 : vector<8x32xf32> to vector<8x32xbf16>
    %cst_52 = arith.constant dense<0.000000e+00> : vector<8x32xf32>
    %149 = tpu.matmul %148, %63, %cst_52 {dimension_numbers = #tpu.dot_dimension_numbers<[1], [0], [0], [1], [0, 0, 1, 1], [], []>} : vector<8x32xbf16>, vector<32x32xbf16>, vector<8x32xf32> -> vector<8x32xf32>
    %150 = vector.broadcast %12 : vector<1x32xf32> to vector<8x32xf32>
    %151 = arith.addf %149, %150 : vector<8x32xf32>
    %152 = arith.addf %151, %1 : vector<8x32xf32>
    %cst_53 = arith.constant dense<0.000000e+00> : vector<8xf32>
    %153 = vector.multi_reduction <add>, %152, %cst_53 [1] : vector<8x32xf32> to vector<8xf32>
    %154 = vector.shape_cast %153 : vector<8xf32> to vector<8x1xf32>
    %cst_54 = arith.constant 3.200000e+01 : f32
    %155 = vector.broadcast %cst_54 : f32 to vector<8x1xf32>
    %156 = arith.divf %154, %155 : vector<8x1xf32>
    %157 = vector.broadcast %156 : vector<8x1xf32> to vector<8x32xf32>
    %158 = arith.subf %152, %157 : vector<8x32xf32>
    %159 = arith.mulf %158, %158 : vector<8x32xf32>
    %cst_55 = arith.constant dense<0.000000e+00> : vector<8xf32>
    %160 = vector.multi_reduction <add>, %159, %cst_55 [1] : vector<8x32xf32> to vector<8xf32>
    %161 = vector.shape_cast %160 : vector<8xf32> to vector<8x1xf32>
    %cst_56 = arith.constant 3.100000e+01 : f32
    %162 = vector.broadcast %cst_56 : f32 to vector<8x1xf32>
    %163 = arith.divf %161, %162 : vector<8x1xf32>
    %164 = vector.broadcast %156 : vector<8x1xf32> to vector<8x32xf32>
    %165 = arith.subf %152, %164 : vector<8x32xf32>
    %166 = vector.broadcast %7 : vector<1x32xf32> to vector<8x32xf32>
    %167 = arith.mulf %166, %165 : vector<8x32xf32>
    %168 = math.sqrt %163 : vector<8x1xf32>
    %cst_57 = arith.constant 9.99999997E-7 : f32
    %169 = vector.broadcast %cst_57 : f32 to vector<8x1xf32>
    %170 = arith.addf %168, %169 : vector<8x1xf32>
    %171 = vector.broadcast %170 : vector<8x1xf32> to vector<8x32xf32>
    %172 = arith.divf %167, %171 : vector<8x32xf32>
    %173 = vector.broadcast %8 : vector<1x32xf32> to vector<8x32xf32>
    %174 = arith.addf %172, %173 : vector<8x32xf32>
    %175 = arith.truncf %174 : vector<8x32xf32> to vector<8x32xbf16>
    %c0_58 = arith.constant 0 : index
    %c0_59 = arith.constant 0 : index
    %176 = vector.load %arg8[%c0_58, %c0_59] : memref<32x32xbf16, #tpu.memory_space<vmem>>, vector<32x32xbf16>
    %c0_60 = arith.constant 0 : index
    %c0_61 = arith.constant 0 : index
    %177 = vector.load %arg9[%c0_60, %c0_61] : memref<32x64xbf16, #tpu.memory_space<vmem>>, vector<32x64xbf16>
    %c0_62 = arith.constant 0 : index
    %c0_63 = arith.constant 0 : index
    %178 = vector.load %arg13[%c0_62, %c0_63] : memref<1x64xf32, #tpu.memory_space<vmem>>, vector<1x64xf32>
    %c0_64 = arith.constant 0 : index
    %c0_65 = arith.constant 0 : index
    %179 = vector.load %arg10[%c0_64, %c0_65] : memref<32x32xbf16, #tpu.memory_space<vmem>>, vector<32x32xbf16>
    %cst_66 = arith.constant dense<0.000000e+00> : vector<8x32xf32>
    %180 = tpu.matmul %175, %176, %cst_66 {dimension_numbers = #tpu.dot_dimension_numbers<[1], [0], [0], [1], [0, 0, 1, 1], [], []>} : vector<8x32xbf16>, vector<32x32xbf16>, vector<8x32xf32> -> vector<8x32xf32>
    %181 = vector.broadcast %13 : vector<1x32xf32> to vector<8x32xf32>
    %182 = arith.addf %180, %181 : vector<8x32xf32>
    %cst_67 = arith.constant dense<0.000000e+00> : vector<8x64xf32>
    %183 = tpu.matmul %3, %177, %cst_67 {dimension_numbers = #tpu.dot_dimension_numbers<[1], [0], [0], [1], [0, 0, 1, 1], [], []>} : vector<8x32xbf16>, vector<32x64xbf16>, vector<8x64xf32> -> vector<8x64xf32>
    %184 = vector.broadcast %178 : vector<1x64xf32> to vector<8x64xf32>
    %185 = arith.addf %183, %184 : vector<8x64xf32>
    %186 = arith.truncf %182 : vector<8x32xf32> to vector<8x32xbf16>
    %187 = vector.shape_cast %186 : vector<8x32xbf16> to vector<1x8x32xbf16>
    %188 = vector.extract_strided_slice %185 {offsets = [0, 0], sizes = [8, 32], strides = [1, 1]} : vector<8x64xf32> to vector<8x32xf32>
    %189 = arith.truncf %188 : vector<8x32xf32> to vector<8x32xbf16>
    %190 = vector.shape_cast %189 : vector<8x32xbf16> to vector<1x8x32xbf16>
    %191 = vector.extract_strided_slice %185 {offsets = [0, 32], sizes = [8, 32], strides = [1, 1]} : vector<8x64xf32> to vector<8x32xf32>
    %192 = arith.truncf %191 : vector<8x32xf32> to vector<8x32xbf16>
    %193 = vector.shape_cast %192 : vector<8x32xbf16> to vector<1x8x32xbf16>
    %194 = vector.extract_strided_slice %187 {offsets = [0, 0, 0], sizes = [1, 8, 8], strides = [1, 1, 1]} : vector<1x8x32xbf16> to vector<1x8x8xbf16>
    %195 = vector.extract_strided_slice %190 {offsets = [0, 0, 0], sizes = [1, 8, 8], strides = [1, 1, 1]} : vector<1x8x32xbf16> to vector<1x8x8xbf16>
    "tpu.trace_start"() <{level = 10 : i32, message = "bqd,bkd->bqk"}> : () -> ()
    %cst_68 = arith.constant dense<0.000000e+00> : vector<1x8x8xf32>
    %196 = tpu.matmul %194, %195, %cst_68 {dimension_numbers = #tpu.dot_dimension_numbers<[2], [2], [1], [1], [0, 0, 0, 1, 1, 1], [0], [0]>} : vector<1x8x8xbf16>, vector<1x8x8xbf16>, vector<1x8x8xf32> -> vector<1x8x8xf32>
    "tpu.trace_stop"() : () -> ()
    %197 = arith.addf %196, %34 : vector<1x8x8xf32>
    %cst_69 = arith.constant dense<0xFF800000> : vector<1x8xf32>
    %198 = vector.multi_reduction <maximumf>, %197, %cst_69 [2] : vector<1x8x8xf32> to vector<1x8xf32>
    %199 = vector.shape_cast %198 : vector<1x8xf32> to vector<1x8x1xf32>
    %200 = vector.broadcast %199 : vector<1x8x1xf32> to vector<1x8x8xf32>
    %201 = arith.subf %197, %200 : vector<1x8x8xf32>
    %202 = math.exp %201 : vector<1x8x8xf32>
    %cst_70 = arith.constant dense<0.000000e+00> : vector<1x8xf32>
    %203 = vector.multi_reduction <add>, %202, %cst_70 [2] : vector<1x8x8xf32> to vector<1x8xf32>
    %204 = vector.shape_cast %203 : vector<1x8xf32> to vector<1x8x1xf32>
    %205 = tpu.reciprocal %204 {approx = true} : vector<1x8x1xf32> -> vector<1x8x1xf32>
    %206 = vector.broadcast %205 : vector<1x8x1xf32> to vector<1x8x8xf32>
    %207 = arith.mulf %202, %206 : vector<1x8x8xf32>
    %208 = arith.truncf %207 : vector<1x8x8xf32> to vector<1x8x8xbf16>
    %209 = vector.extract_strided_slice %193 {offsets = [0, 0, 0], sizes = [1, 8, 8], strides = [1, 1, 1]} : vector<1x8x32xbf16> to vector<1x8x8xbf16>
    "tpu.trace_start"() <{level = 10 : i32, message = "bqk,bkd->bqd"}> : () -> ()
    %cst_71 = arith.constant dense<0.000000e+00> : vector<1x8x8xf32>
    %210 = tpu.matmul %208, %209, %cst_71 {dimension_numbers = #tpu.dot_dimension_numbers<[2], [1], [1], [2], [0, 0, 0, 1, 1, 2], [0], [0]>} : vector<1x8x8xbf16>, vector<1x8x8xbf16>, vector<1x8x8xf32> -> vector<1x8x8xf32>
    "tpu.trace_stop"() : () -> ()
    %211 = vector.extract_strided_slice %187 {offsets = [0, 0, 8], sizes = [1, 8, 8], strides = [1, 1, 1]} : vector<1x8x32xbf16> to vector<1x8x8xbf16>
    %212 = vector.extract_strided_slice %190 {offsets = [0, 0, 8], sizes = [1, 8, 8], strides = [1, 1, 1]} : vector<1x8x32xbf16> to vector<1x8x8xbf16>
    "tpu.trace_start"() <{level = 10 : i32, message = "bqd,bkd->bqk"}> : () -> ()
    %cst_72 = arith.constant dense<0.000000e+00> : vector<1x8x8xf32>
    %213 = tpu.matmul %211, %212, %cst_72 {dimension_numbers = #tpu.dot_dimension_numbers<[2], [2], [1], [1], [0, 0, 0, 1, 1, 1], [0], [0]>} : vector<1x8x8xbf16>, vector<1x8x8xbf16>, vector<1x8x8xf32> -> vector<1x8x8xf32>
    "tpu.trace_stop"() : () -> ()
    %214 = arith.addf %213, %34 : vector<1x8x8xf32>
    %cst_73 = arith.constant dense<0xFF800000> : vector<1x8xf32>
    %215 = vector.multi_reduction <maximumf>, %214, %cst_73 [2] : vector<1x8x8xf32> to vector<1x8xf32>
    %216 = vector.shape_cast %215 : vector<1x8xf32> to vector<1x8x1xf32>
    %217 = vector.broadcast %216 : vector<1x8x1xf32> to vector<1x8x8xf32>
    %218 = arith.subf %214, %217 : vector<1x8x8xf32>
    %219 = math.exp %218 : vector<1x8x8xf32>
    %cst_74 = arith.constant dense<0.000000e+00> : vector<1x8xf32>
    %220 = vector.multi_reduction <add>, %219, %cst_74 [2] : vector<1x8x8xf32> to vector<1x8xf32>
    %221 = vector.shape_cast %220 : vector<1x8xf32> to vector<1x8x1xf32>
    %222 = tpu.reciprocal %221 {approx = true} : vector<1x8x1xf32> -> vector<1x8x1xf32>
    %223 = vector.broadcast %222 : vector<1x8x1xf32> to vector<1x8x8xf32>
    %224 = arith.mulf %219, %223 : vector<1x8x8xf32>
    %225 = arith.truncf %224 : vector<1x8x8xf32> to vector<1x8x8xbf16>
    %226 = vector.extract_strided_slice %193 {offsets = [0, 0, 8], sizes = [1, 8, 8], strides = [1, 1, 1]} : vector<1x8x32xbf16> to vector<1x8x8xbf16>
    "tpu.trace_start"() <{level = 10 : i32, message = "bqk,bkd->bqd"}> : () -> ()
    %cst_75 = arith.constant dense<0.000000e+00> : vector<1x8x8xf32>
    %227 = tpu.matmul %225, %226, %cst_75 {dimension_numbers = #tpu.dot_dimension_numbers<[2], [1], [1], [2], [0, 0, 0, 1, 1, 2], [0], [0]>} : vector<1x8x8xbf16>, vector<1x8x8xbf16>, vector<1x8x8xf32> -> vector<1x8x8xf32>
    "tpu.trace_stop"() : () -> ()
    %228 = vector.extract_strided_slice %187 {offsets = [0, 0, 16], sizes = [1, 8, 8], strides = [1, 1, 1]} : vector<1x8x32xbf16> to vector<1x8x8xbf16>
    %229 = vector.extract_strided_slice %190 {offsets = [0, 0, 16], sizes = [1, 8, 8], strides = [1, 1, 1]} : vector<1x8x32xbf16> to vector<1x8x8xbf16>
    "tpu.trace_start"() <{level = 10 : i32, message = "bqd,bkd->bqk"}> : () -> ()
    %cst_76 = arith.constant dense<0.000000e+00> : vector<1x8x8xf32>
    %230 = tpu.matmul %228, %229, %cst_76 {dimension_numbers = #tpu.dot_dimension_numbers<[2], [2], [1], [1], [0, 0, 0, 1, 1, 1], [0], [0]>} : vector<1x8x8xbf16>, vector<1x8x8xbf16>, vector<1x8x8xf32> -> vector<1x8x8xf32>
    "tpu.trace_stop"() : () -> ()
    %231 = arith.addf %230, %34 : vector<1x8x8xf32>
    %cst_77 = arith.constant dense<0xFF800000> : vector<1x8xf32>
    %232 = vector.multi_reduction <maximumf>, %231, %cst_77 [2] : vector<1x8x8xf32> to vector<1x8xf32>
    %233 = vector.shape_cast %232 : vector<1x8xf32> to vector<1x8x1xf32>
    %234 = vector.broadcast %233 : vector<1x8x1xf32> to vector<1x8x8xf32>
    %235 = arith.subf %231, %234 : vector<1x8x8xf32>
    %236 = math.exp %235 : vector<1x8x8xf32>
    %cst_78 = arith.constant dense<0.000000e+00> : vector<1x8xf32>
    %237 = vector.multi_reduction <add>, %236, %cst_78 [2] : vector<1x8x8xf32> to vector<1x8xf32>
    %238 = vector.shape_cast %237 : vector<1x8xf32> to vector<1x8x1xf32>
    %239 = tpu.reciprocal %238 {approx = true} : vector<1x8x1xf32> -> vector<1x8x1xf32>
    %240 = vector.broadcast %239 : vector<1x8x1xf32> to vector<1x8x8xf32>
    %241 = arith.mulf %236, %240 : vector<1x8x8xf32>
    %242 = arith.truncf %241 : vector<1x8x8xf32> to vector<1x8x8xbf16>
    %243 = vector.extract_strided_slice %193 {offsets = [0, 0, 16], sizes = [1, 8, 8], strides = [1, 1, 1]} : vector<1x8x32xbf16> to vector<1x8x8xbf16>
    "tpu.trace_start"() <{level = 10 : i32, message = "bqk,bkd->bqd"}> : () -> ()
    %cst_79 = arith.constant dense<0.000000e+00> : vector<1x8x8xf32>
    %244 = tpu.matmul %242, %243, %cst_79 {dimension_numbers = #tpu.dot_dimension_numbers<[2], [1], [1], [2], [0, 0, 0, 1, 1, 2], [0], [0]>} : vector<1x8x8xbf16>, vector<1x8x8xbf16>, vector<1x8x8xf32> -> vector<1x8x8xf32>
    "tpu.trace_stop"() : () -> ()
    %245 = vector.extract_strided_slice %187 {offsets = [0, 0, 24], sizes = [1, 8, 8], strides = [1, 1, 1]} : vector<1x8x32xbf16> to vector<1x8x8xbf16>
    %246 = vector.extract_strided_slice %190 {offsets = [0, 0, 24], sizes = [1, 8, 8], strides = [1, 1, 1]} : vector<1x8x32xbf16> to vector<1x8x8xbf16>
    "tpu.trace_start"() <{level = 10 : i32, message = "bqd,bkd->bqk"}> : () -> ()
    %cst_80 = arith.constant dense<0.000000e+00> : vector<1x8x8xf32>
    %247 = tpu.matmul %245, %246, %cst_80 {dimension_numbers = #tpu.dot_dimension_numbers<[2], [2], [1], [1], [0, 0, 0, 1, 1, 1], [0], [0]>} : vector<1x8x8xbf16>, vector<1x8x8xbf16>, vector<1x8x8xf32> -> vector<1x8x8xf32>
    "tpu.trace_stop"() : () -> ()
    %248 = arith.addf %247, %34 : vector<1x8x8xf32>
    %cst_81 = arith.constant dense<0xFF800000> : vector<1x8xf32>
    %249 = vector.multi_reduction <maximumf>, %248, %cst_81 [2] : vector<1x8x8xf32> to vector<1x8xf32>
    %250 = vector.shape_cast %249 : vector<1x8xf32> to vector<1x8x1xf32>
    %251 = vector.broadcast %250 : vector<1x8x1xf32> to vector<1x8x8xf32>
    %252 = arith.subf %248, %251 : vector<1x8x8xf32>
    %253 = math.exp %252 : vector<1x8x8xf32>
    %cst_82 = arith.constant dense<0.000000e+00> : vector<1x8xf32>
    %254 = vector.multi_reduction <add>, %253, %cst_82 [2] : vector<1x8x8xf32> to vector<1x8xf32>
    %255 = vector.shape_cast %254 : vector<1x8xf32> to vector<1x8x1xf32>
    %256 = tpu.reciprocal %255 {approx = true} : vector<1x8x1xf32> -> vector<1x8x1xf32>
    %257 = vector.broadcast %256 : vector<1x8x1xf32> to vector<1x8x8xf32>
    %258 = arith.mulf %253, %257 : vector<1x8x8xf32>
    %259 = arith.truncf %258 : vector<1x8x8xf32> to vector<1x8x8xbf16>
    %260 = vector.extract_strided_slice %193 {offsets = [0, 0, 24], sizes = [1, 8, 8], strides = [1, 1, 1]} : vector<1x8x32xbf16> to vector<1x8x8xbf16>
    "tpu.trace_start"() <{level = 10 : i32, message = "bqk,bkd->bqd"}> : () -> ()
    %cst_83 = arith.constant dense<0.000000e+00> : vector<1x8x8xf32>
    %261 = tpu.matmul %259, %260, %cst_83 {dimension_numbers = #tpu.dot_dimension_numbers<[2], [1], [1], [2], [0, 0, 0, 1, 1, 2], [0], [0]>} : vector<1x8x8xbf16>, vector<1x8x8xbf16>, vector<1x8x8xf32> -> vector<1x8x8xf32>
    "tpu.trace_stop"() : () -> ()
    %262 = tpu.concatenate %210, %227, %244, %261 in 2 : vector<1x8x8xf32>, vector<1x8x8xf32>, vector<1x8x8xf32>, vector<1x8x8xf32> -> vector<1x8x32xf32>
    %263 = vector.shape_cast %262 : vector<1x8x32xf32> to vector<8x32xf32>
    %264 = arith.truncf %263 : vector<8x32xf32> to vector<8x32xbf16>
    %cst_84 = arith.constant dense<0.000000e+00> : vector<8x32xf32>
    %265 = tpu.matmul %264, %179, %cst_84 {dimension_numbers = #tpu.dot_dimension_numbers<[1], [0], [0], [1], [0, 0, 1, 1], [], []>} : vector<8x32xbf16>, vector<32x32xbf16>, vector<8x32xf32> -> vector<8x32xf32>
    %266 = vector.broadcast %14 : vector<1x32xf32> to vector<8x32xf32>
    %267 = arith.addf %265, %266 : vector<8x32xf32>
    %c0_85 = arith.constant 0 : index
    %c0_86 = arith.constant 0 : index
    %c0_87 = arith.constant 0 : index
    %268 = vector.load %arg18[%c0_85, %c0_86, %c0_87] : memref<1x8x8xf32, #tpu.memory_space<vmem>>, vector<1x8x8xf32>
    tpu.vector_store %arg18[%c0_85, %c0_86, %c0_87], %207 {strides = array<i32>} : memref<1x8x8xf32, #tpu.memory_space<vmem>>, vector<1x8x8xf32>,
    %269 = arith.addf %267, %152 : vector<8x32xf32>
    %cst_88 = arith.constant dense<0.000000e+00> : vector<8xf32>
    %270 = vector.multi_reduction <add>, %269, %cst_88 [1] : vector<8x32xf32> to vector<8xf32>
    %271 = vector.shape_cast %270 : vector<8xf32> to vector<8x1xf32>
    %cst_89 = arith.constant 3.200000e+01 : f32
    %272 = vector.broadcast %cst_89 : f32 to vector<8x1xf32>
    %273 = arith.divf %271, %272 : vector<8x1xf32>
    %274 = vector.broadcast %273 : vector<8x1xf32> to vector<8x32xf32>
    %275 = arith.subf %269, %274 : vector<8x32xf32>
    %276 = arith.mulf %275, %275 : vector<8x32xf32>
    %cst_90 = arith.constant dense<0.000000e+00> : vector<8xf32>
    %277 = vector.multi_reduction <add>, %276, %cst_90 [1] : vector<8x32xf32> to vector<8xf32>
    %278 = vector.shape_cast %277 : vector<8xf32> to vector<8x1xf32>
    %cst_91 = arith.constant 3.100000e+01 : f32
    %279 = vector.broadcast %cst_91 : f32 to vector<8x1xf32>
    %280 = arith.divf %278, %279 : vector<8x1xf32>
    %281 = vector.broadcast %273 : vector<8x1xf32> to vector<8x32xf32>
    %282 = arith.subf %269, %281 : vector<8x32xf32>
    %283 = vector.broadcast %9 : vector<1x32xf32> to vector<8x32xf32>
    %284 = arith.mulf %283, %282 : vector<8x32xf32>
    %285 = math.sqrt %280 : vector<8x1xf32>
    %cst_92 = arith.constant 9.99999997E-7 : f32
    %286 = vector.broadcast %cst_92 : f32 to vector<8x1xf32>
    %287 = arith.addf %285, %286 : vector<8x1xf32>
    %288 = vector.broadcast %287 : vector<8x1xf32> to vector<8x32xf32>
    %289 = arith.divf %284, %288 : vector<8x32xf32>
    %290 = vector.broadcast %10 : vector<1x32xf32> to vector<8x32xf32>
    %291 = arith.addf %289, %290 : vector<8x32xf32>
    %292 = arith.truncf %291 : vector<8x32xf32> to vector<8x32xbf16>
    %c0_93 = arith.constant 0 : index
    %c0_94 = arith.constant 0 : index
    %293 = vector.load %arg14[%c0_93, %c0_94] : memref<32x64xbf16, #tpu.memory_space<vmem>>, vector<32x64xbf16>
    %cst_95 = arith.constant dense<0.000000e+00> : vector<8x64xf32>
    %294 = tpu.matmul %292, %293, %cst_95 {dimension_numbers = #tpu.dot_dimension_numbers<[1], [0], [0], [1], [0, 0, 1, 1], [], []>} : vector<8x32xbf16>, vector<32x64xbf16>, vector<8x64xf32> -> vector<8x64xf32>
    %c0_96 = arith.constant 0 : index
    %c0_97 = arith.constant 0 : index
    %295 = vector.load %arg15[%c0_96, %c0_97] : memref<1x64xf32, #tpu.memory_space<vmem>>, vector<1x64xf32>
    %296 = vector.broadcast %295 : vector<1x64xf32> to vector<8x64xf32>
    %297 = arith.addf %294, %296 : vector<8x64xf32>
    %cst_98 = arith.constant 0.000000e+00 : f32
    %298 = vector.broadcast %cst_98 : f32 to vector<8x64xf32>
    %299 = arith.maximumf %297, %298 : vector<8x64xf32>
    %300 = arith.truncf %299 : vector<8x64xf32> to vector<8x64xbf16>
    %c0_99 = arith.constant 0 : index
    %c0_100 = arith.constant 0 : index
    %301 = vector.load %arg16[%c0_99, %c0_100] : memref<64x32xbf16, #tpu.memory_space<vmem>>, vector<64x32xbf16>
    %cst_101 = arith.constant dense<0.000000e+00> : vector<8x32xf32>
    %302 = tpu.matmul %300, %301, %cst_101 {dimension_numbers = #tpu.dot_dimension_numbers<[1], [0], [0], [1], [0, 0, 1, 1], [], []>} : vector<8x64xbf16>, vector<64x32xbf16>, vector<8x32xf32> -> vector<8x32xf32>
    %303 = vector.broadcast %15 : vector<1x32xf32> to vector<8x32xf32>
    %304 = arith.addf %302, %303 : vector<8x32xf32>
    %305 = arith.addf %304, %269 : vector<8x32xf32>
    %306 = vector.shape_cast %305 : vector<8x32xf32> to vector<1x8x32xf32>
    %c0_102 = arith.constant 0 : index
    %c0_103 = arith.constant 0 : index
    %c0_104 = arith.constant 0 : index
    %307 = vector.load %arg17[%c0_102, %c0_103, %c0_104] : memref<1x8x32xf32, #tpu.memory_space<vmem>>, vector<1x8x32xf32>
    tpu.vector_store %arg17[%c0_102, %c0_103, %c0_104], %306 {strides = array<i32>} : memref<1x8x32xf32, #tpu.memory_space<vmem>>, vector<1x8x32xf32>,
    return
  }
  func.func @transform_0(%arg0: i32) -> (i32, i32, i32) {
    %c0_i32 = arith.constant 0 : i32
    %c0_i32_0 = arith.constant 0 : i32
    %c0_i32_1 = arith.constant 0 : i32
    return %arg0, %c0_i32, %c0_i32_0 : i32, i32, i32
  }
  func.func @transform_1(%arg0: i32) -> (i32, i32, i32) {
    %c0_i32 = arith.constant 0 : i32
    %c0_i32_0 = arith.constant 0 : i32
    %c0_i32_1 = arith.constant 0 : i32
    return %arg0, %c0_i32, %c0_i32_0 : i32, i32, i32
  }
  func.func @transform_2(%arg0: i32) -> (i32, i32, i32) {
    %c0_i32 = arith.constant 0 : i32
    %c0_i32_0 = arith.constant 0 : i32
    %c0_i32_1 = arith.constant 0 : i32
    return %arg0, %c0_i32, %c0_i32_0 : i32, i32, i32
  }
  func.func @transform_3(%arg0: i32) -> (i32, i32, i32) {
    %c0_i32 = arith.constant 0 : i32
    %c0_i32_0 = arith.constant 0 : i32
    %c0_i32_1 = arith.constant 0 : i32
    return %arg0, %c0_i32, %c0_i32_0 : i32, i32, i32
  }
  func.func @transform_4(%arg0: i32) -> (i32, i32) {
    %c0_i32 = arith.constant 0 : i32
    %c0_i32_0 = arith.constant 0 : i32
    %c0_i32_1 = arith.constant 0 : i32
    return %c0_i32, %c0_i32_0 : i32, i32
  }
  func.func @transform_5(%arg0: i32) -> (i32, i32) {
    %c0_i32 = arith.constant 0 : i32
    %c0_i32_0 = arith.constant 0 : i32
    %c0_i32_1 = arith.constant 0 : i32
    return %c0_i32, %c0_i32_0 : i32, i32
  }
  func.func @transform_6(%arg0: i32) -> (i32, i32) {
    %c0_i32 = arith.constant 0 : i32
    %c0_i32_0 = arith.constant 0 : i32
    %c0_i32_1 = arith.constant 0 : i32
    return %c0_i32, %c0_i32_0 : i32, i32
  }
  func.func @transform_7(%arg0: i32) -> (i32, i32) {
    %c0_i32 = arith.constant 0 : i32
    %c0_i32_0 = arith.constant 0 : i32
    %c0_i32_1 = arith.constant 0 : i32
    return %c0_i32, %c0_i32_0 : i32, i32
  }
  func.func @transform_8(%arg0: i32) -> (i32, i32) {
    %c0_i32 = arith.constant 0 : i32
    %c0_i32_0 = arith.constant 0 : i32
    %c0_i32_1 = arith.constant 0 : i32
    return %c0_i32, %c0_i32_0 : i32, i32
  }
  func.func @transform_9(%arg0: i32) -> (i32, i32) {
    %c0_i32 = arith.constant 0 : i32
    %c0_i32_0 = arith.constant 0 : i32
    %c0_i32_1 = arith.constant 0 : i32
    return %c0_i32, %c0_i32_0 : i32, i32
  }
  func.func @transform_10(%arg0: i32) -> (i32, i32) {
    %c0_i32 = arith.constant 0 : i32
    %c0_i32_0 = arith.constant 0 : i32
    %c0_i32_1 = arith.constant 0 : i32
    return %c0_i32, %c0_i32_0 : i32, i32
  }
  func.func @transform_11(%arg0: i32) -> (i32, i32) {
    %c0_i32 = arith.constant 0 : i32
    %c0_i32_0 = arith.constant 0 : i32
    %c0_i32_1 = arith.constant 0 : i32
    return %c0_i32, %c0_i32_0 : i32, i32
  }
  func.func @transform_12(%arg0: i32) -> (i32, i32) {
    %c0_i32 = arith.constant 0 : i32
    %c0_i32_0 = arith.constant 0 : i32
    %c0_i32_1 = arith.constant 0 : i32
    return %c0_i32, %c0_i32_0 : i32, i32
  }
  func.func @transform_13(%arg0: i32) -> (i32, i32) {
    %c0_i32 = arith.constant 0 : i32
    %c0_i32_0 = arith.constant 0 : i32
    %c0_i32_1 = arith.constant 0 : i32
    return %c0_i32, %c0_i32_0 : i32, i32
  }
  func.func @transform_14(%arg0: i32) -> (i32, i32) {
    %c0_i32 = arith.constant 0 : i32
    %c0_i32_0 = arith.constant 0 : i32
    %c0_i32_1 = arith.constant 0 : i32
    return %c0_i32, %c0_i32_0 : i32, i32
  }
  func.func @transform_15(%arg0: i32) -> (i32, i32) {
    %c0_i32 = arith.constant 0 : i32
    %c0_i32_0 = arith.constant 0 : i32
    %c0_i32_1 = arith.constant 0 : i32
    return %c0_i32, %c0_i32_0 : i32, i32
  }
  func.func @transform_16(%arg0: i32) -> (i32, i32, i32) {
    %c0_i32 = arith.constant 0 : i32
    %c0_i32_0 = arith.constant 0 : i32
    %c0_i32_1 = arith.constant 0 : i32
    return %arg0, %c0_i32, %c0_i32_0 : i32, i32, i32
  }
  func.func @transform_17(%arg0: i32) -> (i32, i32, i32) {
    %c0_i32 = arith.constant 0 : i32
    %c0_i32_0 = arith.constant 0 : i32
    %c0_i32_1 = arith.constant 0 : i32
    return %arg0, %c0_i32, %c0_i32_0 : i32, i32, i32
  }
  func.func @transform_18(%arg0: i32) -> (i32, i32, i32) {
    %c0_i32 = arith.constant 0 : i32
    %c0_i32_0 = arith.constant 0 : i32
    %c0_i32_1 = arith.constant 0 : i32
    return %arg0, %c0_i32, %c0_i32_0 : i32, i32, i32
  }
}

module attributes {stable_mosaic.version = 11 : i64} {
  func.func @decoder_layer_kernel(%arg0: i32, %arg1: memref<1x8x32xf32, #tpu.memory_space<vmem>>, %arg2: memref<1x8x32xbf16, #tpu.memory_space<vmem>>, %arg3: memref<1x1x8xf32, #tpu.memory_space<vmem>>, %arg4: memref<1x1x8xf32, #tpu.memory_space<vmem>>, %arg5: memref<32x32xbf16, #tpu.memory_space<vmem>>, %arg6: memref<32x64xbf16, #tpu.memory_space<vmem>>, %arg7: memref<32x32xbf16, #tpu.memory_space<vmem>>, %arg8: memref<32x32xbf16, #tpu.memory_space<vmem>>, %arg9: memref<32x64xbf16, #tpu.memory_space<vmem>>, %arg10: memref<32x32xbf16, #tpu.memory_space<vmem>>, %arg11: memref<11x32xf32, #tpu.memory_space<vmem>>, %arg12: memref<1x64xf32, #tpu.memory_space<vmem>>, %arg13: memref<1x64xf32, #tpu.memory_space<vmem>>, %arg14: memref<32x64xbf16, #tpu.memory_space<vmem>>, %arg15: memref<1x64xf32, #tpu.memory_space<vmem>>, %arg16: memref<64x32xbf16, #tpu.memory_space<vmem>>, %arg17: memref<1x8x32xf32, #tpu.memory_space<vmem>>, %arg18: memref<1x8x8xf32, #tpu.memory_space<vmem>>, %arg19: memref<1x8x32xf32, #tpu.memory_space<vmem>>) attributes {dimension_semantics = [#tpu.dimension_semantics<parallel>], iteration_bounds = array<i64: 2>, scalar_prefetch = 0 : i64, scratch_operands = 0 : i64, tpu.core_type = #tpu.core_type<tc>, window_params = [{transform_indices = @transform_0, window_bounds = array<i64: 1, 8, 32>}, {transform_indices = @transform_1, window_bounds = array<i64: 1, 8, 32>}, {transform_indices = @transform_2, window_bounds = array<i64: 1, 1, 8>}, {transform_indices = @transform_3, window_bounds = array<i64: 1, 1, 8>}, {pipeline_mode = #tpu.pipeline_mode<synchronous>, transform_indices = @transform_4, window_bounds = array<i64: 32, 32>}, {pipeline_mode = #tpu.pipeline_mode<synchronous>, transform_indices = @transform_5, window_bounds = array<i64: 32, 64>}, {pipeline_mode = #tpu.pipeline_mode<synchronous>, transform_indices = @transform_6, window_bounds = array<i64: 32, 32>}, {pipeline_mode = #tpu.pipeline_mode<synchronous>, transform_indices = @transform_7, window_bounds = array<i64: 32, 32>}, {pipeline_mode = #tpu.pipeline_mode<synchronous>, transform_indices = @transform_8, window_bounds = array<i64: 32, 64>}, {pipeline_mode = #tpu.pipeline_mode<synchronous>, transform_indices = @transform_9, window_bounds = array<i64: 32, 32>}, {pipeline_mode = #tpu.pipeline_mode<synchronous>, transform_indices = @transform_10, window_bounds = array<i64: 11, 32>}, {pipeline_mode = #tpu.pipeline_mode<synchronous>, transform_indices = @transform_11, window_bounds = array<i64: 1, 64>}, {pipeline_mode = #tpu.pipeline_mode<synchronous>, transform_indices = @transform_12, window_bounds = array<i64: 1, 64>}, {pipeline_mode = #tpu.pipeline_mode<synchronous>, transform_indices = @transform_13, window_bounds = array<i64: 32, 64>}, {pipeline_mode = #tpu.pipeline_mode<synchronous>, transform_indices = @transform_14, window_bounds = array<i64: 1, 64>}, {pipeline_mode = #tpu.pipeline_mode<synchronous>, transform_indices = @transform_15, window_bounds = array<i64: 64, 32>}, {transform_indices = @transform_16, window_bounds = array<i64: 1, 8, 32>}, {transform_indices = @transform_17, window_bounds = array<i64: 1, 8, 8>}, {transform_indices = @transform_18, window_bounds = array<i64: 1, 8, 32>}]} {
    %c0 = arith.constant 0 : index
    %c0_0 = arith.constant 0 : index
    %c0_1 = arith.constant 0 : index
    %0 = vector.load %arg1[%c0, %c0_0, %c0_1] : memref<1x8x32xf32, #tpu.memory_space<vmem>>, vector<1x8x32xf32>
    %1 = vector.shape_cast %0 : vector<1x8x32xf32> to vector<8x32xf32>
    %c0_2 = arith.constant 0 : index
    %c0_3 = arith.constant 0 : index
    %c0_4 = arith.constant 0 : index
    %2 = vector.load %arg2[%c0_2, %c0_3, %c0_4] : memref<1x8x32xbf16, #tpu.memory_space<vmem>>, vector<1x8x32xbf16>
    %3 = vector.shape_cast %2 : vector<1x8x32xbf16> to vector<8x32xbf16>
    %c0_5 = arith.constant 0 : index
    %c0_6 = arith.constant 0 : index
    %4 = vector.load %arg11[%c0_5, %c0_6] : memref<11x32xf32, #tpu.memory_space<vmem>>, vector<11x32xf32>
    %5 = vector.extract_strided_slice %4 {offsets = [0, 0], sizes = [1, 32], strides = [1, 1]} : vector<11x32xf32> to vector<1x32xf32>
    %6 = vector.extract_strided_slice %4 {offsets = [1, 0], sizes = [1, 32], strides = [1, 1]} : vector<11x32xf32> to vector<1x32xf32>
    %7 = vector.extract_strided_slice %4 {offsets = [2, 0], sizes = [1, 32], strides = [1, 1]} : vector<11x32xf32> to vector<1x32xf32>
    %8 = vector.extract_strided_slice %4 {offsets = [3, 0], sizes = [1, 32], strides = [1, 1]} : vector<11x32xf32> to vector<1x32xf32>
    %9 = vector.extract_strided_slice %4 {offsets = [4, 0], sizes = [1, 32], strides = [1, 1]} : vector<11x32xf32> to vector<1x32xf32>
    %10 = vector.extract_strided_slice %4 {offsets = [5, 0], sizes = [1, 32], strides = [1, 1]} : vector<11x32xf32> to vector<1x32xf32>
    %11 = vector.extract_strided_slice %4 {offsets = [6, 0], sizes = [1, 32], strides = [1, 1]} : vector<11x32xf32> to vector<1x32xf32>
    %12 = vector.extract_strided_slice %4 {offsets = [7, 0], sizes = [1, 32], strides = [1, 1]} : vector<11x32xf32> to vector<1x32xf32>
    %13 = vector.extract_strided_slice %4 {offsets = [8, 0], sizes = [1, 32], strides = [1, 1]} : vector<11x32xf32> to vector<1x32xf32>
    %14 = vector.extract_strided_slice %4 {offsets = [9, 0], sizes = [1, 32], strides = [1, 1]} : vector<11x32xf32> to vector<1x32xf32>
    %15 = vector.extract_strided_slice %4 {offsets = [10, 0], sizes = [1, 32], strides = [1, 1]} : vector<11x32xf32> to vector<1x32xf32>
    %16 = tpu.iota {dimensions = array<i32: 1>} : vector<1x8x8xi32>
    %17 = tpu.iota {dimensions = array<i32: 2>} : vector<1x8x8xi32>
    %18 = arith.cmpi sgt, %17, %16 : vector<1x8x8xi32>
    %c0_7 = arith.constant 0 : index
    %c0_8 = arith.constant 0 : index
    %c0_9 = arith.constant 0 : index
    %19 = vector.load %arg3[%c0_7, %c0_8, %c0_9] : memref<1x1x8xf32, #tpu.memory_space<vmem>>, vector<1x1x8xf32>
    %cst = arith.constant 5.000000e-01 : f32
    %20 = vector.broadcast %cst : f32 to vector<1x1x8xf32>
    %21 = arith.cmpf ogt, %19, %20 : vector<1x1x8xf32>
    %22 = vector.broadcast %21 : vector<1x1x8xi1> to vector<1x8x8xi1>
    %23 = arith.ori %18, %22 : vector<1x8x8xi1>
    %cst_10 = arith.constant -9.99999984E+17 : f32
    %cst_11 = arith.constant 0.000000e+00 : f32
    %24 = vector.broadcast %cst_10 : f32 to vector<1x8x8xf32>
    %25 = vector.broadcast %cst_11 : f32 to vector<1x8x8xf32>
    %26 = arith.select %23, %24, %25 : vector<1x8x8xi1>, vector<1x8x8xf32>
    %c0_12 = arith.constant 0 : index
    %c0_13 = arith.constant 0 : index
    %c0_14 = arith.constant 0 : index
    %27 = vector.load %arg4[%c0_12, %c0_13, %c0_14] : memref<1x1x8xf32, #tpu.memory_space<vmem>>, vector<1x1x8xf32>
    %cst_15 = arith.constant 5.000000e-01 : f32
    %28 = vector.broadcast %cst_15 : f32 to vector<1x1x8xf32>
    %29 = arith.cmpf ogt, %27, %28 : vector<1x1x8xf32>
    %cst_16 = arith.constant -9.99999984E+17 : f32
    %cst_17 = arith.constant 0.000000e+00 : f32
    %30 = vector.broadcast %cst_16 : f32 to vector<1x1x8xf32>
    %31 = vector.broadcast %cst_17 : f32 to vector<1x1x8xf32>
    %32 = arith.select %29, %30, %31 : vector<1x1x8xi1>, vector<1x1x8xf32>
    %33 = vector.shape_cast %32 : vector<1x1x8xf32> to vector<1x1x8xf32>
    %34 = vector.broadcast %33 : vector<1x1x8xf32> to vector<1x8x8xf32>
    %cst_18 = arith.constant dense<0.000000e+00> : vector<8xf32>
    %35 = vector.multi_reduction <add>, %1, %cst_18 [1] : vector<8x32xf32> to vector<8xf32>
    %36 = vector.shape_cast %35 : vector<8xf32> to vector<8x1xf32>
    %cst_19 = arith.constant 3.200000e+01 : f32
    %37 = vector.broadcast %cst_19 : f32 to vector<8x1xf32>
    %38 = arith.divf %36, %37 : vector<8x1xf32>
    %39 = vector.broadcast %38 : vector<8x1xf32> to vector<8x32xf32>
    %40 = arith.subf %1, %39 : vector<8x32xf32>
    %41 = arith.mulf %40, %40 : vector<8x32xf32>
    %cst_20 = arith.constant dense<0.000000e+00> : vector<8xf32>
    %42 = vector.multi_reduction <add>, %41, %cst_20 [1] : vector<8x32xf32> to vector<8xf32>
    %43 = vector.shape_cast %42 : vector<8xf32> to vector<8x1xf32>
    %cst_21 = arith.constant 3.100000e+01 : f32
    %44 = vector.broadcast %cst_21 : f32 to vector<8x1xf32>
    %45 = arith.divf %43, %44 : vector<8x1xf32>
    %46 = vector.broadcast %38 : vector<8x1xf32> to vector<8x32xf32>
    %47 = arith.subf %1, %46 : vector<8x32xf32>
    %48 = vector.broadcast %5 : vector<1x32xf32> to vector<8x32xf32>
    %49 = arith.mulf %48, %47 : vector<8x32xf32>
    %50 = math.sqrt %45 : vector<8x1xf32>
    %cst_22 = arith.constant 9.99999997E-7 : f32
    %51 = vector.broadcast %cst_22 : f32 to vector<8x1xf32>
    %52 = arith.addf %50, %51 : vector<8x1xf32>
    %53 = vector.broadcast %52 : vector<8x1xf32> to vector<8x32xf32>
    %54 = arith.divf %49, %53 : vector<8x32xf32>
    %55 = vector.broadcast %6 : vector<1x32xf32> to vector<8x32xf32>
    %56 = arith.addf %54, %55 : vector<8x32xf32>
    %57 = vector.shape_cast %56 : vector<8x32xf32> to vector<1x8x32xf32>
    %c0_23 = arith.constant 0 : index
    %c0_24 = arith.constant 0 : index
    %c0_25 = arith.constant 0 : index
    %58 = vector.load %arg19[%c0_23, %c0_24, %c0_25] : memref<1x8x32xf32, #tpu.memory_space<vmem>>, vector<1x8x32xf32>
    tpu.vector_store %arg19[%c0_23, %c0_24, %c0_25], %57 {strides = array<i32>} : memref<1x8x32xf32, #tpu.memory_space<vmem>>, vector<1x8x32xf32>,
    %59 = arith.truncf %56 : vector<8x32xf32> to vector<8x32xbf16>
    %c0_26 = arith.constant 0 : index
    %c0_27 = arith.constant 0 : index
    %60 = vector.load %arg5[%c0_26, %c0_27] : memref<32x32xbf16, #tpu.memory_space<vmem>>, vector<32x32xbf16>
    %c0_28 = arith.constant 0 : index
    %c0_29 = arith.constant 0 : index
    %61 = vector.load %arg6[%c0_28, %c0_29] : memref<32x64xbf16, #tpu.memory_space<vmem>>, vector<32x64xbf16>
    %c0_30 = arith.constant 0 : index
    %c0_31 = arith.constant 0 : index
    %62 = vector.load %arg12[%c0_30, %c0_31] : memref<1x64xf32, #tpu.memory_space<vmem>>, vector<1x64xf32>
    %c0_32 = arith.constant 0 : index
    %c0_33 = arith.constant 0 : index
    %63 = vector.load %arg7[%c0_32, %c0_33] : memref<32x32xbf16, #tpu.memory_space<vmem>>, vector<32x32xbf16>
    %cst_34 = arith.constant dense<0.000000e+00> : vector<8x32xf32>
    %64 = tpu.matmul %59, %60, %cst_34 {dimension_numbers = #tpu.dot_dimension_numbers<[1], [0], [0], [1], [0, 0, 1, 1], [], []>} : vector<8x32xbf16>, vector<32x32xbf16>, vector<8x32xf32> -> vector<8x32xf32>
    %65 = vector.broadcast %11 : vector<1x32xf32> to vector<8x32xf32>
    %66 = arith.addf %64, %65 : vector<8x32xf32>
    %cst_35 = arith.constant dense<0.000000e+00> : vector<8x64xf32>
    %67 = tpu.matmul %59, %61, %cst_35 {dimension_numbers = #tpu.dot_dimension_numbers<[1], [0], [0], [1], [0, 0, 1, 1], [], []>} : vector<8x32xbf16>, vector<32x64xbf16>, vector<8x64xf32> -> vector<8x64xf32>
    %68 = vector.broadcast %62 : vector<1x64xf32> to vector<8x64xf32>
    %69 = arith.addf %67, %68 : vector<8x64xf32>
    %70 = arith.truncf %66 : vector<8x32xf32> to vector<8x32xbf16>
    %71 = vector.shape_cast %70 : vector<8x32xbf16> to vector<1x8x32xbf16>
    %72 = vector.extract_strided_slice %69 {offsets = [0, 0], sizes = [8, 32], strides = [1, 1]} : vector<8x64xf32> to vector<8x32xf32>
    %73 = arith.truncf %72 : vector<8x32xf32> to vector<8x32xbf16>
    %74 = vector.shape_cast %73 : vector<8x32xbf16> to vector<1x8x32xbf16>
    %75 = vector.extract_strided_slice %69 {offsets = [0, 32], sizes = [8, 32], strides = [1, 1]} : vector<8x64xf32> to vector<8x32xf32>
    %76 = arith.truncf %75 : vector<8x32xf32> to vector<8x32xbf16>
    %77 = vector.shape_cast %76 : vector<8x32xbf16> to vector<1x8x32xbf16>
    %78 = vector.extract_strided_slice %71 {offsets = [0, 0, 0], sizes = [1, 8, 8], strides = [1, 1, 1]} : vector<1x8x32xbf16> to vector<1x8x8xbf16>
    %79 = vector.extract_strided_slice %74 {offsets = [0, 0, 0], sizes = [1, 8, 8], strides = [1, 1, 1]} : vector<1x8x32xbf16> to vector<1x8x8xbf16>
    "tpu.trace_start"() <{level = 10 : i32, message = "bqd,bkd->bqk"}> : () -> ()
    %cst_36 = arith.constant dense<0.000000e+00> : vector<1x8x8xf32>
    %80 = tpu.matmul %78, %79, %cst_36 {dimension_numbers = #tpu.dot_dimension_numbers<[2], [2], [1], [1], [0, 0, 0, 1, 1, 1], [0], [0]>} : vector<1x8x8xbf16>, vector<1x8x8xbf16>, vector<1x8x8xf32> -> vector<1x8x8xf32>
    "tpu.trace_stop"() : () -> ()
    %81 = arith.addf %80, %26 : vector<1x8x8xf32>
    %cst_37 = arith.constant dense<0xFF800000> : vector<1x8xf32>
    %82 = vector.multi_reduction <maximumf>, %81, %cst_37 [2] : vector<1x8x8xf32> to vector<1x8xf32>
    %83 = vector.shape_cast %82 : vector<1x8xf32> to vector<1x8x1xf32>
    %84 = vector.broadcast %83 : vector<1x8x1xf32> to vector<1x8x8xf32>
    %85 = arith.subf %81, %84 : vector<1x8x8xf32>
    %86 = math.exp %85 : vector<1x8x8xf32>
    %cst_38 = arith.constant dense<0.000000e+00> : vector<1x8xf32>
    %87 = vector.multi_reduction <add>, %86, %cst_38 [2] : vector<1x8x8xf32> to vector<1x8xf32>
    %88 = vector.shape_cast %87 : vector<1x8xf32> to vector<1x8x1xf32>
    %89 = tpu.reciprocal %88 {approx = true} : vector<1x8x1xf32> -> vector<1x8x1xf32>
    %90 = vector.broadcast %89 : vector<1x8x1xf32> to vector<1x8x8xf32>
    %91 = arith.mulf %86, %90 : vector<1x8x8xf32>
    %92 = arith.truncf %91 : vector<1x8x8xf32> to vector<1x8x8xbf16>
    %93 = vector.extract_strided_slice %77 {offsets = [0, 0, 0], sizes = [1, 8, 8], strides = [1, 1, 1]} : vector<1x8x32xbf16> to vector<1x8x8xbf16>
    "tpu.trace_start"() <{level = 10 : i32, message = "bqk,bkd->bqd"}> : () -> ()
    %cst_39 = arith.constant dense<0.000000e+00> : vector<1x8x8xf32>
    %94 = tpu.matmul %92, %93, %cst_39 {dimension_numbers = #tpu.dot_dimension_numbers<[2], [1], [1], [2], [0, 0, 0, 1, 1, 2], [0], [0]>} : vector<1x8x8xbf16>, vector<1x8x8xbf16>, vector<1x8x8xf32> -> vector<1x8x8xf32>
    "tpu.trace_stop"() : () -> ()
    %95 = vector.extract_strided_slice %71 {offsets = [0, 0, 8], sizes = [1, 8, 8], strides = [1, 1, 1]} : vector<1x8x32xbf16> to vector<1x8x8xbf16>
    %96 = vector.extract_strided_slice %74 {offsets = [0, 0, 8], sizes = [1, 8, 8], strides = [1, 1, 1]} : vector<1x8x32xbf16> to vector<1x8x8xbf16>
    "tpu.trace_start"() <{level = 10 : i32, message = "bqd,bkd->bqk"}> : () -> ()
    %cst_40 = arith.constant dense<0.000000e+00> : vector<1x8x8xf32>
    %97 = tpu.matmul %95, %96, %cst_40 {dimension_numbers = #tpu.dot_dimension_numbers<[2], [2], [1], [1], [0, 0, 0, 1, 1, 1], [0], [0]>} : vector<1x8x8xbf16>, vector<1x8x8xbf16>, vector<1x8x8xf32> -> vector<1x8x8xf32>
    "tpu.trace_stop"() : () -> ()
    %98 = arith.addf %97, %26 : vector<1x8x8xf32>
    %cst_41 = arith.constant dense<0xFF800000> : vector<1x8xf32>
    %99 = vector.multi_reduction <maximumf>, %98, %cst_41 [2] : vector<1x8x8xf32> to vector<1x8xf32>
    %100 = vector.shape_cast %99 : vector<1x8xf32> to vector<1x8x1xf32>
    %101 = vector.broadcast %100 : vector<1x8x1xf32> to vector<1x8x8xf32>
    %102 = arith.subf %98, %101 : vector<1x8x8xf32>
    %103 = math.exp %102 : vector<1x8x8xf32>
    %cst_42 = arith.constant dense<0.000000e+00> : vector<1x8xf32>
    %104 = vector.multi_reduction <add>, %103, %cst_42 [2] : vector<1x8x8xf32> to vector<1x8xf32>
    %105 = vector.shape_cast %104 : vector<1x8xf32> to vector<1x8x1xf32>
    %106 = tpu.reciprocal %105 {approx = true} : vector<1x8x1xf32> -> vector<1x8x1xf32>
    %107 = vector.broadcast %106 : vector<1x8x1xf32> to vector<1x8x8xf32>
    %108 = arith.mulf %103, %107 : vector<1x8x8xf32>
    %109 = arith.truncf %108 : vector<1x8x8xf32> to vector<1x8x8xbf16>
    %110 = vector.extract_strided_slice %77 {offsets = [0, 0, 8], sizes = [1, 8, 8], strides = [1, 1, 1]} : vector<1x8x32xbf16> to vector<1x8x8xbf16>
    "tpu.trace_start"() <{level = 10 : i32, message = "bqk,bkd->bqd"}> : () -> ()
    %cst_43 = arith.constant dense<0.000000e+00> : vector<1x8x8xf32>
    %111 = tpu.matmul %109, %110, %cst_43 {dimension_numbers = #tpu.dot_dimension_numbers<[2], [1], [1], [2], [0, 0, 0, 1, 1, 2], [0], [0]>} : vector<1x8x8xbf16>, vector<1x8x8xbf16>, vector<1x8x8xf32> -> vector<1x8x8xf32>
    "tpu.trace_stop"() : () -> ()
    %112 = vector.extract_strided_slice %71 {offsets = [0, 0, 16], sizes = [1, 8, 8], strides = [1, 1, 1]} : vector<1x8x32xbf16> to vector<1x8x8xbf16>
    %113 = vector.extract_strided_slice %74 {offsets = [0, 0, 16], sizes = [1, 8, 8], strides = [1, 1, 1]} : vector<1x8x32xbf16> to vector<1x8x8xbf16>
    "tpu.trace_start"() <{level = 10 : i32, message = "bqd,bkd->bqk"}> : () -> ()
    %cst_44 = arith.constant dense<0.000000e+00> : vector<1x8x8xf32>
    %114 = tpu.matmul %112, %113, %cst_44 {dimension_numbers = #tpu.dot_dimension_numbers<[2], [2], [1], [1], [0, 0, 0, 1, 1, 1], [0], [0]>} : vector<1x8x8xbf16>, vector<1x8x8xbf16>, vector<1x8x8xf32> -> vector<1x8x8xf32>
    "tpu.trace_stop"() : () -> ()
    %115 = arith.addf %114, %26 : vector<1x8x8xf32>
    %cst_45 = arith.constant dense<0xFF800000> : vector<1x8xf32>
    %116 = vector.multi_reduction <maximumf>, %115, %cst_45 [2] : vector<1x8x8xf32> to vector<1x8xf32>
    %117 = vector.shape_cast %116 : vector<1x8xf32> to vector<1x8x1xf32>
    %118 = vector.broadcast %117 : vector<1x8x1xf32> to vector<1x8x8xf32>
    %119 = arith.subf %115, %118 : vector<1x8x8xf32>
    %120 = math.exp %119 : vector<1x8x8xf32>
    %cst_46 = arith.constant dense<0.000000e+00> : vector<1x8xf32>
    %121 = vector.multi_reduction <add>, %120, %cst_46 [2] : vector<1x8x8xf32> to vector<1x8xf32>
    %122 = vector.shape_cast %121 : vector<1x8xf32> to vector<1x8x1xf32>
    %123 = tpu.reciprocal %122 {approx = true} : vector<1x8x1xf32> -> vector<1x8x1xf32>
    %124 = vector.broadcast %123 : vector<1x8x1xf32> to vector<1x8x8xf32>
    %125 = arith.mulf %120, %124 : vector<1x8x8xf32>
    %126 = arith.truncf %125 : vector<1x8x8xf32> to vector<1x8x8xbf16>
    %127 = vector.extract_strided_slice %77 {offsets = [0, 0, 16], sizes = [1, 8, 8], strides = [1, 1, 1]} : vector<1x8x32xbf16> to vector<1x8x8xbf16>
    "tpu.trace_start"() <{level = 10 : i32, message = "bqk,bkd->bqd"}> : () -> ()
    %cst_47 = arith.constant dense<0.000000e+00> : vector<1x8x8xf32>
    %128 = tpu.matmul %126, %127, %cst_47 {dimension_numbers = #tpu.dot_dimension_numbers<[2], [1], [1], [2], [0, 0, 0, 1, 1, 2], [0], [0]>} : vector<1x8x8xbf16>, vector<1x8x8xbf16>, vector<1x8x8xf32> -> vector<1x8x8xf32>
    "tpu.trace_stop"() : () -> ()
    %129 = vector.extract_strided_slice %71 {offsets = [0, 0, 24], sizes = [1, 8, 8], strides = [1, 1, 1]} : vector<1x8x32xbf16> to vector<1x8x8xbf16>
    %130 = vector.extract_strided_slice %74 {offsets = [0, 0, 24], sizes = [1, 8, 8], strides = [1, 1, 1]} : vector<1x8x32xbf16> to vector<1x8x8xbf16>
    "tpu.trace_start"() <{level = 10 : i32, message = "bqd,bkd->bqk"}> : () -> ()
    %cst_48 = arith.constant dense<0.000000e+00> : vector<1x8x8xf32>
    %131 = tpu.matmul %129, %130, %cst_48 {dimension_numbers = #tpu.dot_dimension_numbers<[2], [2], [1], [1], [0, 0, 0, 1, 1, 1], [0], [0]>} : vector<1x8x8xbf16>, vector<1x8x8xbf16>, vector<1x8x8xf32> -> vector<1x8x8xf32>
    "tpu.trace_stop"() : () -> ()
    %132 = arith.addf %131, %26 : vector<1x8x8xf32>
    %cst_49 = arith.constant dense<0xFF800000> : vector<1x8xf32>
    %133 = vector.multi_reduction <maximumf>, %132, %cst_49 [2] : vector<1x8x8xf32> to vector<1x8xf32>
    %134 = vector.shape_cast %133 : vector<1x8xf32> to vector<1x8x1xf32>
    %135 = vector.broadcast %134 : vector<1x8x1xf32> to vector<1x8x8xf32>
    %136 = arith.subf %132, %135 : vector<1x8x8xf32>
    %137 = math.exp %136 : vector<1x8x8xf32>
    %cst_50 = arith.constant dense<0.000000e+00> : vector<1x8xf32>
    %138 = vector.multi_reduction <add>, %137, %cst_50 [2] : vector<1x8x8xf32> to vector<1x8xf32>
    %139 = vector.shape_cast %138 : vector<1x8xf32> to vector<1x8x1xf32>
    %140 = tpu.reciprocal %139 {approx = true} : vector<1x8x1xf32> -> vector<1x8x1xf32>
    %141 = vector.broadcast %140 : vector<1x8x1xf32> to vector<1x8x8xf32>
    %142 = arith.mulf %137, %141 : vector<1x8x8xf32>
    %143 = arith.truncf %142 : vector<1x8x8xf32> to vector<1x8x8xbf16>
    %144 = vector.extract_strided_slice %77 {offsets = [0, 0, 24], sizes = [1, 8, 8], strides = [1, 1, 1]} : vector<1x8x32xbf16> to vector<1x8x8xbf16>
    "tpu.trace_start"() <{level = 10 : i32, message = "bqk,bkd->bqd"}> : () -> ()
    %cst_51 = arith.constant dense<0.000000e+00> : vector<1x8x8xf32>
    %145 = tpu.matmul %143, %144, %cst_51 {dimension_numbers = #tpu.dot_dimension_numbers<[2], [1], [1], [2], [0, 0, 0, 1, 1, 2], [0], [0]>} : vector<1x8x8xbf16>, vector<1x8x8xbf16>, vector<1x8x8xf32> -> vector<1x8x8xf32>
    "tpu.trace_stop"() : () -> ()
    %146 = tpu.concatenate %94, %111, %128, %145 in 2 : vector<1x8x8xf32>, vector<1x8x8xf32>, vector<1x8x8xf32>, vector<1x8x8xf32> -> vector<1x8x32xf32>
    %147 = vector.shape_cast %146 : vector<1x8x32xf32> to vector<8x32xf32>
    %148 = arith.truncf %147 : vector<8x32xf32> to vector<8x32xbf16>
    %cst_52 = arith.constant dense<0.000000e+00> : vector<8x32xf32>
    %149 = tpu.matmul %148, %63, %cst_52 {dimension_numbers = #tpu.dot_dimension_numbers<[1], [0], [0], [1], [0, 0, 1, 1], [], []>} : vector<8x32xbf16>, vector<32x32xbf16>, vector<8x32xf32> -> vector<8x32xf32>
    %150 = vector.broadcast %12 : vector<1x32xf32> to vector<8x32xf32>
    %151 = arith.addf %149, %150 : vector<8x32xf32>
    %152 = arith.addf %151, %1 : vector<8x32xf32>
    %cst_53 = arith.constant dense<0.000000e+00> : vector<8xf32>
    %153 = vector.multi_reduction <add>, %152, %cst_53 [1] : vector<8x32xf32> to vector<8xf32>
    %154 = vector.shape_cast %153 : vector<8xf32> to vector<8x1xf32>
    %cst_54 = arith.constant 3.200000e+01 : f32
    %155 = vector.broadcast %cst_54 : f32 to vector<8x1xf32>
    %156 = arith.divf %154, %155 : vector<8x1xf32>
    %157 = vector.broadcast %156 : vector<8x1xf32> to vector<8x32xf32>
    %158 = arith.subf %152, %157 : vector<8x32xf32>
    %159 = arith.mulf %158, %158 : vector<8x32xf32>
    %cst_55 = arith.constant dense<0.000000e+00> : vector<8xf32>
    %160 = vector.multi_reduction <add>, %159, %cst_55 [1] : vector<8x32xf32> to vector<8xf32>
    %161 = vector.shape_cast %160 : vector<8xf32> to vector<8x1xf32>
    %cst_56 = arith.constant 3.100000e+01 : f32
    %162 = vector.broadcast %cst_56 : f32 to vector<8x1xf32>
    %163 = arith.divf %161, %162 : vector<8x1xf32>
    %164 = vector.broadcast %156 : vector<8x1xf32> to vector<8x32xf32>
    %165 = arith.subf %152, %164 : vector<8x32xf32>
    %166 = vector.broadcast %7 : vector<1x32xf32> to vector<8x32xf32>
    %167 = arith.mulf %166, %165 : vector<8x32xf32>
    %168 = math.sqrt %163 : vector<8x1xf32>
    %cst_57 = arith.constant 9.99999997E-7 : f32
    %169 = vector.broadcast %cst_57 : f32 to vector<8x1xf32>
    %170 = arith.addf %168, %169 : vector<8x1xf32>
    %171 = vector.broadcast %170 : vector<8x1xf32> to vector<8x32xf32>
    %172 = arith.divf %167, %171 : vector<8x32xf32>
    %173 = vector.broadcast %8 : vector<1x32xf32> to vector<8x32xf32>
    %174 = arith.addf %172, %173 : vector<8x32xf32>
    %175 = arith.truncf %174 : vector<8x32xf32> to vector<8x32xbf16>
    %c0_58 = arith.constant 0 : index
    %c0_59 = arith.constant 0 : index
    %176 = vector.load %arg8[%c0_58, %c0_59] : memref<32x32xbf16, #tpu.memory_space<vmem>>, vector<32x32xbf16>
    %c0_60 = arith.constant 0 : index
    %c0_61 = arith.constant 0 : index
    %177 = vector.load %arg9[%c0_60, %c0_61] : memref<32x64xbf16, #tpu.memory_space<vmem>>, vector<32x64xbf16>
    %c0_62 = arith.constant 0 : index
    %c0_63 = arith.constant 0 : index
    %178 = vector.load %arg13[%c0_62, %c0_63] : memref<1x64xf32, #tpu.memory_space<vmem>>, vector<1x64xf32>
    %c0_64 = arith.constant 0 : index
    %c0_65 = arith.constant 0 : index
    %179 = vector.load %arg10[%c0_64, %c0_65] : memref<32x32xbf16, #tpu.memory_space<vmem>>, vector<32x32xbf16>
    %cst_66 = arith.constant dense<0.000000e+00> : vector<8x32xf32>
    %180 = tpu.matmul %175, %176, %cst_66 {dimension_numbers = #tpu.dot_dimension_numbers<[1], [0], [0], [1], [0, 0, 1, 1], [], []>} : vector<8x32xbf16>, vector<32x32xbf16>, vector<8x32xf32> -> vector<8x32xf32>
    %181 = vector.broadcast %13 : vector<1x32xf32> to vector<8x32xf32>
    %182 = arith.addf %180, %181 : vector<8x32xf32>
    %cst_67 = arith.constant dense<0.000000e+00> : vector<8x64xf32>
    %183 = tpu.matmul %3, %177, %cst_67 {dimension_numbers = #tpu.dot_dimension_numbers<[1], [0], [0], [1], [0, 0, 1, 1], [], []>} : vector<8x32xbf16>, vector<32x64xbf16>, vector<8x64xf32> -> vector<8x64xf32>
    %184 = vector.broadcast %178 : vector<1x64xf32> to vector<8x64xf32>
    %185 = arith.addf %183, %184 : vector<8x64xf32>
    %186 = arith.truncf %182 : vector<8x32xf32> to vector<8x32xbf16>
    %187 = vector.shape_cast %186 : vector<8x32xbf16> to vector<1x8x32xbf16>
    %188 = vector.extract_strided_slice %185 {offsets = [0, 0], sizes = [8, 32], strides = [1, 1]} : vector<8x64xf32> to vector<8x32xf32>
    %189 = arith.truncf %188 : vector<8x32xf32> to vector<8x32xbf16>
    %190 = vector.shape_cast %189 : vector<8x32xbf16> to vector<1x8x32xbf16>
    %191 = vector.extract_strided_slice %185 {offsets = [0, 32], sizes = [8, 32], strides = [1, 1]} : vector<8x64xf32> to vector<8x32xf32>
    %192 = arith.truncf %191 : vector<8x32xf32> to vector<8x32xbf16>
    %193 = vector.shape_cast %192 : vector<8x32xbf16> to vector<1x8x32xbf16>
    %194 = vector.extract_strided_slice %187 {offsets = [0, 0, 0], sizes = [1, 8, 8], strides = [1, 1, 1]} : vector<1x8x32xbf16> to vector<1x8x8xbf16>
    %195 = vector.extract_strided_slice %190 {offsets = [0, 0, 0], sizes = [1, 8, 8], strides = [1, 1, 1]} : vector<1x8x32xbf16> to vector<1x8x8xbf16>
    "tpu.trace_start"() <{level = 10 : i32, message = "bqd,bkd->bqk"}> : () -> ()
    %cst_68 = arith.constant dense<0.000000e+00> : vector<1x8x8xf32>
    %196 = tpu.matmul %194, %195, %cst_68 {dimension_numbers = #tpu.dot_dimension_numbers<[2], [2], [1], [1], [0, 0, 0, 1, 1, 1], [0], [0]>} : vector<1x8x8xbf16>, vector<1x8x8xbf16>, vector<1x8x8xf32> -> vector<1x8x8xf32>
    "tpu.trace_stop"() : () -> ()
    %197 = arith.addf %196, %34 : vector<1x8x8xf32>
    %cst_69 = arith.constant dense<0xFF800000> : vector<1x8xf32>
    %198 = vector.multi_reduction <maximumf>, %197, %cst_69 [2] : vector<1x8x8xf32> to vector<1x8xf32>
    %199 = vector.shape_cast %198 : vector<1x8xf32> to vector<1x8x1xf32>
    %200 = vector.broadcast %199 : vector<1x8x1xf32> to vector<1x8x8xf32>
    %201 = arith.subf %197, %200 : vector<1x8x8xf32>
    %202 = math.exp %201 : vector<1x8x8xf32>
    %cst_70 = arith.constant dense<0.000000e+00> : vector<1x8xf32>
    %203 = vector.multi_reduction <add>, %202, %cst_70 [2] : vector<1x8x8xf32> to vector<1x8xf32>
    %204 = vector.shape_cast %203 : vector<1x8xf32> to vector<1x8x1xf32>
    %205 = tpu.reciprocal %204 {approx = true} : vector<1x8x1xf32> -> vector<1x8x1xf32>
    %206 = vector.broadcast %205 : vector<1x8x1xf32> to vector<1x8x8xf32>
    %207 = arith.mulf %202, %206 : vector<1x8x8xf32>
    %208 = arith.truncf %207 : vector<1x8x8xf32> to vector<1x8x8xbf16>
    %209 = vector.extract_strided_slice %193 {offsets = [0, 0, 0], sizes = [1, 8, 8], strides = [1, 1, 1]} : vector<1x8x32xbf16> to vector<1x8x8xbf16>
    "tpu.trace_start"() <{level = 10 : i32, message = "bqk,bkd->bqd"}> : () -> ()
    %cst_71 = arith.constant dense<0.000000e+00> : vector<1x8x8xf32>
    %210 = tpu.matmul %208, %209, %cst_71 {dimension_numbers = #tpu.dot_dimension_numbers<[2], [1], [1], [2], [0, 0, 0, 1, 1, 2], [0], [0]>} : vector<1x8x8xbf16>, vector<1x8x8xbf16>, vector<1x8x8xf32> -> vector<1x8x8xf32>
    "tpu.trace_stop"() : () -> ()
    %211 = vector.extract_strided_slice %187 {offsets = [0, 0, 8], sizes = [1, 8, 8], strides = [1, 1, 1]} : vector<1x8x32xbf16> to vector<1x8x8xbf16>
    %212 = vector.extract_strided_slice %190 {offsets = [0, 0, 8], sizes = [1, 8, 8], strides = [1, 1, 1]} : vector<1x8x32xbf16> to vector<1x8x8xbf16>
    "tpu.trace_start"() <{level = 10 : i32, message = "bqd,bkd->bqk"}> : () -> ()
    %cst_72 = arith.constant dense<0.000000e+00> : vector<1x8x8xf32>
    %213 = tpu.matmul %211, %212, %cst_72 {dimension_numbers = #tpu.dot_dimension_numbers<[2], [2], [1], [1], [0, 0, 0, 1, 1, 1], [0], [0]>} : vector<1x8x8xbf16>, vector<1x8x8xbf16>, vector<1x8x8xf32> -> vector<1x8x8xf32>
    "tpu.trace_stop"() : () -> ()
    %214 = arith.addf %213, %34 : vector<1x8x8xf32>
    %cst_73 = arith.constant dense<0xFF800000> : vector<1x8xf32>
    %215 = vector.multi_reduction <maximumf>, %214, %cst_73 [2] : vector<1x8x8xf32> to vector<1x8xf32>
    %216 = vector.shape_cast %215 : vector<1x8xf32> to vector<1x8x1xf32>
    %217 = vector.broadcast %216 : vector<1x8x1xf32> to vector<1x8x8xf32>
    %218 = arith.subf %214, %217 : vector<1x8x8xf32>
    %219 = math.exp %218 : vector<1x8x8xf32>
    %cst_74 = arith.constant dense<0.000000e+00> : vector<1x8xf32>
    %220 = vector.multi_reduction <add>, %219, %cst_74 [2] : vector<1x8x8xf32> to vector<1x8xf32>
    %221 = vector.shape_cast %220 : vector<1x8xf32> to vector<1x8x1xf32>
    %222 = tpu.reciprocal %221 {approx = true} : vector<1x8x1xf32> -> vector<1x8x1xf32>
    %223 = vector.broadcast %222 : vector<1x8x1xf32> to vector<1x8x8xf32>
    %224 = arith.mulf %219, %223 : vector<1x8x8xf32>
    %225 = arith.truncf %224 : vector<1x8x8xf32> to vector<1x8x8xbf16>
    %226 = vector.extract_strided_slice %193 {offsets = [0, 0, 8], sizes = [1, 8, 8], strides = [1, 1, 1]} : vector<1x8x32xbf16> to vector<1x8x8xbf16>
    "tpu.trace_start"() <{level = 10 : i32, message = "bqk,bkd->bqd"}> : () -> ()
    %cst_75 = arith.constant dense<0.000000e+00> : vector<1x8x8xf32>
    %227 = tpu.matmul %225, %226, %cst_75 {dimension_numbers = #tpu.dot_dimension_numbers<[2], [1], [1], [2], [0, 0, 0, 1, 1, 2], [0], [0]>} : vector<1x8x8xbf16>, vector<1x8x8xbf16>, vector<1x8x8xf32> -> vector<1x8x8xf32>
    "tpu.trace_stop"() : () -> ()
    %228 = vector.extract_strided_slice %187 {offsets = [0, 0, 16], sizes = [1, 8, 8], strides = [1, 1, 1]} : vector<1x8x32xbf16> to vector<1x8x8xbf16>
    %229 = vector.extract_strided_slice %190 {offsets = [0, 0, 16], sizes = [1, 8, 8], strides = [1, 1, 1]} : vector<1x8x32xbf16> to vector<1x8x8xbf16>
    "tpu.trace_start"() <{level = 10 : i32, message = "bqd,bkd->bqk"}> : () -> ()
    %cst_76 = arith.constant dense<0.000000e+00> : vector<1x8x8xf32>
    %230 = tpu.matmul %228, %229, %cst_76 {dimension_numbers = #tpu.dot_dimension_numbers<[2], [2], [1], [1], [0, 0, 0, 1, 1, 1], [0], [0]>} : vector<1x8x8xbf16>, vector<1x8x8xbf16>, vector<1x8x8xf32> -> vector<1x8x8xf32>
    "tpu.trace_stop"() : () -> ()
    %231 = arith.addf %230, %34 : vector<1x8x8xf32>
    %cst_77 = arith.constant dense<0xFF800000> : vector<1x8xf32>
    %232 = vector.multi_reduction <maximumf>, %231, %cst_77 [2] : vector<1x8x8xf32> to vector<1x8xf32>
    %233 = vector.shape_cast %232 : vector<1x8xf32> to vector<1x8x1xf32>
    %234 = vector.broadcast %233 : vector<1x8x1xf32> to vector<1x8x8xf32>
    %235 = arith.subf %231, %234 : vector<1x8x8xf32>
    %236 = math.exp %235 : vector<1x8x8xf32>
    %cst_78 = arith.constant dense<0.000000e+00> : vector<1x8xf32>
    %237 = vector.multi_reduction <add>, %236, %cst_78 [2] : vector<1x8x8xf32> to vector<1x8xf32>
    %238 = vector.shape_cast %237 : vector<1x8xf32> to vector<1x8x1xf32>
    %239 = tpu.reciprocal %238 {approx = true} : vector<1x8x1xf32> -> vector<1x8x1xf32>
    %240 = vector.broadcast %239 : vector<1x8x1xf32> to vector<1x8x8xf32>
    %241 = arith.mulf %236, %240 : vector<1x8x8xf32>
    %242 = arith.truncf %241 : vector<1x8x8xf32> to vector<1x8x8xbf16>
    %243 = vector.extract_strided_slice %193 {offsets = [0, 0, 16], sizes = [1, 8, 8], strides = [1, 1, 1]} : vector<1x8x32xbf16> to vector<1x8x8xbf16>
    "tpu.trace_start"() <{level = 10 : i32, message = "bqk,bkd->bqd"}> : () -> ()
    %cst_79 = arith.constant dense<0.000000e+00> : vector<1x8x8xf32>
    %244 = tpu.matmul %242, %243, %cst_79 {dimension_numbers = #tpu.dot_dimension_numbers<[2], [1], [1], [2], [0, 0, 0, 1, 1, 2], [0], [0]>} : vector<1x8x8xbf16>, vector<1x8x8xbf16>, vector<1x8x8xf32> -> vector<1x8x8xf32>
    "tpu.trace_stop"() : () -> ()
    %245 = vector.extract_strided_slice %187 {offsets = [0, 0, 24], sizes = [1, 8, 8], strides = [1, 1, 1]} : vector<1x8x32xbf16> to vector<1x8x8xbf16>
    %246 = vector.extract_strided_slice %190 {offsets = [0, 0, 24], sizes = [1, 8, 8], strides = [1, 1, 1]} : vector<1x8x32xbf16> to vector<1x8x8xbf16>
    "tpu.trace_start"() <{level = 10 : i32, message = "bqd,bkd->bqk"}> : () -> ()
    %cst_80 = arith.constant dense<0.000000e+00> : vector<1x8x8xf32>
    %247 = tpu.matmul %245, %246, %cst_80 {dimension_numbers = #tpu.dot_dimension_numbers<[2], [2], [1], [1], [0, 0, 0, 1, 1, 1], [0], [0]>} : vector<1x8x8xbf16>, vector<1x8x8xbf16>, vector<1x8x8xf32> -> vector<1x8x8xf32>
    "tpu.trace_stop"() : () -> ()
    %248 = arith.addf %247, %34 : vector<1x8x8xf32>
    %cst_81 = arith.constant dense<0xFF800000> : vector<1x8xf32>
    %249 = vector.multi_reduction <maximumf>, %248, %cst_81 [2] : vector<1x8x8xf32> to vector<1x8xf32>
    %250 = vector.shape_cast %249 : vector<1x8xf32> to vector<1x8x1xf32>
    %251 = vector.broadcast %250 : vector<1x8x1xf32> to vector<1x8x8xf32>
    %252 = arith.subf %248, %251 : vector<1x8x8xf32>
    %253 = math.exp %252 : vector<1x8x8xf32>
    %cst_82 = arith.constant dense<0.000000e+00> : vector<1x8xf32>
    %254 = vector.multi_reduction <add>, %253, %cst_82 [2] : vector<1x8x8xf32> to vector<1x8xf32>
    %255 = vector.shape_cast %254 : vector<1x8xf32> to vector<1x8x1xf32>
    %256 = tpu.reciprocal %255 {approx = true} : vector<1x8x1xf32> -> vector<1x8x1xf32>
    %257 = vector.broadcast %256 : vector<1x8x1xf32> to vector<1x8x8xf32>
    %258 = arith.mulf %253, %257 : vector<1x8x8xf32>
    %259 = arith.truncf %258 : vector<1x8x8xf32> to vector<1x8x8xbf16>
    %260 = vector.extract_strided_slice %193 {offsets = [0, 0, 24], sizes = [1, 8, 8], strides = [1, 1, 1]} : vector<1x8x32xbf16> to vector<1x8x8xbf16>
    "tpu.trace_start"() <{level = 10 : i32, message = "bqk,bkd->bqd"}> : () -> ()
    %cst_83 = arith.constant dense<0.000000e+00> : vector<1x8x8xf32>
    %261 = tpu.matmul %259, %260, %cst_83 {dimension_numbers = #tpu.dot_dimension_numbers<[2], [1], [1], [2], [0, 0, 0, 1, 1, 2], [0], [0]>} : vector<1x8x8xbf16>, vector<1x8x8xbf16>, vector<1x8x8xf32> -> vector<1x8x8xf32>
    "tpu.trace_stop"() : () -> ()
    %262 = tpu.concatenate %210, %227, %244, %261 in 2 : vector<1x8x8xf32>, vector<1x8x8xf32>, vector<1x8x8xf32>, vector<1x8x8xf32> -> vector<1x8x32xf32>
    %263 = vector.shape_cast %262 : vector<1x8x32xf32> to vector<8x32xf32>
    %264 = arith.truncf %263 : vector<8x32xf32> to vector<8x32xbf16>
    %cst_84 = arith.constant dense<0.000000e+00> : vector<8x32xf32>
    %265 = tpu.matmul %264, %179, %cst_84 {dimension_numbers = #tpu.dot_dimension_numbers<[1], [0], [0], [1], [0, 0, 1, 1], [], []>} : vector<8x32xbf16>, vector<32x32xbf16>, vector<8x32xf32> -> vector<8x32xf32>
    %266 = vector.broadcast %14 : vector<1x32xf32> to vector<8x32xf32>
    %267 = arith.addf %265, %266 : vector<8x32xf32>
    %c0_85 = arith.constant 0 : index
    %c0_86 = arith.constant 0 : index
    %c0_87 = arith.constant 0 : index
    %268 = vector.load %arg18[%c0_85, %c0_86, %c0_87] : memref<1x8x8xf32, #tpu.memory_space<vmem>>, vector<1x8x8xf32>
    tpu.vector_store %arg18[%c0_85, %c0_86, %c0_87], %207 {strides = array<i32>} : memref<1x8x8xf32, #tpu.memory_space<vmem>>, vector<1x8x8xf32>,
    %269 = arith.addf %267, %152 : vector<8x32xf32>
    %cst_88 = arith.constant dense<0.000000e+00> : vector<8xf32>
    %270 = vector.multi_reduction <add>, %269, %cst_88 [1] : vector<8x32xf32> to vector<8xf32>
    %271 = vector.shape_cast %270 : vector<8xf32> to vector<8x1xf32>
    %cst_89 = arith.constant 3.200000e+01 : f32
    %272 = vector.broadcast %cst_89 : f32 to vector<8x1xf32>
    %273 = arith.divf %271, %272 : vector<8x1xf32>
    %274 = vector.broadcast %273 : vector<8x1xf32> to vector<8x32xf32>
    %275 = arith.subf %269, %274 : vector<8x32xf32>
    %276 = arith.mulf %275, %275 : vector<8x32xf32>
    %cst_90 = arith.constant dense<0.000000e+00> : vector<8xf32>
    %277 = vector.multi_reduction <add>, %276, %cst_90 [1] : vector<8x32xf32> to vector<8xf32>
    %278 = vector.shape_cast %277 : vector<8xf32> to vector<8x1xf32>
    %cst_91 = arith.constant 3.100000e+01 : f32
    %279 = vector.broadcast %cst_91 : f32 to vector<8x1xf32>
    %280 = arith.divf %278, %279 : vector<8x1xf32>
    %281 = vector.broadcast %273 : vector<8x1xf32> to vector<8x32xf32>
    %282 = arith.subf %269, %281 : vector<8x32xf32>
    %283 = vector.broadcast %9 : vector<1x32xf32> to vector<8x32xf32>
    %284 = arith.mulf %283, %282 : vector<8x32xf32>
    %285 = math.sqrt %280 : vector<8x1xf32>
    %cst_92 = arith.constant 9.99999997E-7 : f32
    %286 = vector.broadcast %cst_92 : f32 to vector<8x1xf32>
    %287 = arith.addf %285, %286 : vector<8x1xf32>
    %288 = vector.broadcast %287 : vector<8x1xf32> to vector<8x32xf32>
    %289 = arith.divf %284, %288 : vector<8x32xf32>
    %290 = vector.broadcast %10 : vector<1x32xf32> to vector<8x32xf32>
    %291 = arith.addf %289, %290 : vector<8x32xf32>
    %292 = arith.truncf %291 : vector<8x32xf32> to vector<8x32xbf16>
    %c0_93 = arith.constant 0 : index
    %c0_94 = arith.constant 0 : index
    %293 = vector.load %arg14[%c0_93, %c0_94] : memref<32x64xbf16, #tpu.memory_space<vmem>>, vector<32x64xbf16>
    %cst_95 = arith.constant dense<0.000000e+00> : vector<8x64xf32>
    %294 = tpu.matmul %292, %293, %cst_95 {dimension_numbers = #tpu.dot_dimension_numbers<[1], [0], [0], [1], [0, 0, 1, 1], [], []>} : vector<8x32xbf16>, vector<32x64xbf16>, vector<8x64xf32> -> vector<8x64xf32>
    %c0_96 = arith.constant 0 : index
    %c0_97 = arith.constant 0 : index
    %295 = vector.load %arg15[%c0_96, %c0_97] : memref<1x64xf32, #tpu.memory_space<vmem>>, vector<1x64xf32>
    %296 = vector.broadcast %295 : vector<1x64xf32> to vector<8x64xf32>
    %297 = arith.addf %294, %296 : vector<8x64xf32>
    %cst_98 = arith.constant 0.000000e+00 : f32
    %298 = vector.broadcast %cst_98 : f32 to vector<8x64xf32>
    %299 = arith.maximumf %297, %298 : vector<8x64xf32>
    %300 = arith.truncf %299 : vector<8x64xf32> to vector<8x64xbf16>
    %c0_99 = arith.constant 0 : index
    %c0_100 = arith.constant 0 : index
    %301 = vector.load %arg16[%c0_99, %c0_100] : memref<64x32xbf16, #tpu.memory_space<vmem>>, vector<64x32xbf16>
    %cst_101 = arith.constant dense<0.000000e+00> : vector<8x32xf32>
    %302 = tpu.matmul %300, %301, %cst_101 {dimension_numbers = #tpu.dot_dimension_numbers<[1], [0], [0], [1], [0, 0, 1, 1], [], []>} : vector<8x64xbf16>, vector<64x32xbf16>, vector<8x32xf32> -> vector<8x32xf32>
    %303 = vector.broadcast %15 : vector<1x32xf32> to vector<8x32xf32>
    %304 = arith.addf %302, %303 : vector<8x32xf32>
    %305 = arith.addf %304, %269 : vector<8x32xf32>
    %306 = vector.shape_cast %305 : vector<8x32xf32> to vector<1x8x32xf32>
    %c0_102 = arith.constant 0 : index
    %c0_103 = arith.constant 0 : index
    %c0_104 = arith.constant 0 : index
    %307 = vector.load %arg17[%c0_102, %c0_103, %c0_104] : memref<1x8x32xf32, #tpu.memory_space<vmem>>, vector<1x8x32xf32>
    tpu.vector_store %arg17[%c0_102, %c0_103, %c0_104], %306 {strides = array<i32>} : memref<1x8x32xf32, #tpu.memory_space<vmem>>, vector<1x8x32xf32>,
    return
  }
  func.func @transform_0(%arg0: i32) -> (i32, i32, i32) {
    %c0_i32 = arith.constant 0 : i32
    %c0_i32_0 = arith.constant 0 : i32
    %c0_i32_1 = arith.constant 0 : i32
    return %arg0, %c0_i32, %c0_i32_0 : i32, i32, i32
  }
  func.func @transform_1(%arg0: i32) -> (i32, i32, i32) {
    %c0_i32 = arith.constant 0 : i32
    %c0_i32_0 = arith.constant 0 : i32
    %c0_i32_1 = arith.constant 0 : i32
    return %arg0, %c0_i32, %c0_i32_0 : i32, i32, i32
  }
  func.func @transform_2(%arg0: i32) -> (i32, i32, i32) {
    %c0_i32 = arith.constant 0 : i32
    %c0_i32_0 = arith.constant 0 : i32
    %c0_i32_1 = arith.constant 0 : i32
    return %arg0, %c0_i32, %c0_i32_0 : i32, i32, i32
  }
  func.func @transform_3(%arg0: i32) -> (i32, i32, i32) {
    %c0_i32 = arith.constant 0 : i32
    %c0_i32_0 = arith.constant 0 : i32
    %c0_i32_1 = arith.constant 0 : i32
    return %arg0, %c0_i32, %c0_i32_0 : i32, i32, i32
  }
  func.func @transform_4(%arg0: i32) -> (i32, i32) {
    %c0_i32 = arith.constant 0 : i32
    %c0_i32_0 = arith.constant 0 : i32
    %c0_i32_1 = arith.constant 0 : i32
    return %c0_i32, %c0_i32_0 : i32, i32
  }
  func.func @transform_5(%arg0: i32) -> (i32, i32) {
    %c0_i32 = arith.constant 0 : i32
    %c0_i32_0 = arith.constant 0 : i32
    %c0_i32_1 = arith.constant 0 : i32
    return %c0_i32, %c0_i32_0 : i32, i32
  }
  func.func @transform_6(%arg0: i32) -> (i32, i32) {
    %c0_i32 = arith.constant 0 : i32
    %c0_i32_0 = arith.constant 0 : i32
    %c0_i32_1 = arith.constant 0 : i32
    return %c0_i32, %c0_i32_0 : i32, i32
  }
  func.func @transform_7(%arg0: i32) -> (i32, i32) {
    %c0_i32 = arith.constant 0 : i32
    %c0_i32_0 = arith.constant 0 : i32
    %c0_i32_1 = arith.constant 0 : i32
    return %c0_i32, %c0_i32_0 : i32, i32
  }
  func.func @transform_8(%arg0: i32) -> (i32, i32) {
    %c0_i32 = arith.constant 0 : i32
    %c0_i32_0 = arith.constant 0 : i32
    %c0_i32_1 = arith.constant 0 : i32
    return %c0_i32, %c0_i32_0 : i32, i32
  }
  func.func @transform_9(%arg0: i32) -> (i32, i32) {
    %c0_i32 = arith.constant 0 : i32
    %c0_i32_0 = arith.constant 0 : i32
    %c0_i32_1 = arith.constant 0 : i32
    return %c0_i32, %c0_i32_0 : i32, i32
  }
  func.func @transform_10(%arg0: i32) -> (i32, i32) {
    %c0_i32 = arith.constant 0 : i32
    %c0_i32_0 = arith.constant 0 : i32
    %c0_i32_1 = arith.constant 0 : i32
    return %c0_i32, %c0_i32_0 : i32, i32
  }
  func.func @transform_11(%arg0: i32) -> (i32, i32) {
    %c0_i32 = arith.constant 0 : i32
    %c0_i32_0 = arith.constant 0 : i32
    %c0_i32_1 = arith.constant 0 : i32
    return %c0_i32, %c0_i32_0 : i32, i32
  }
  func.func @transform_12(%arg0: i32) -> (i32, i32) {
    %c0_i32 = arith.constant 0 : i32
    %c0_i32_0 = arith.constant 0 : i32
    %c0_i32_1 = arith.constant 0 : i32
    return %c0_i32, %c0_i32_0 : i32, i32
  }
  func.func @transform_13(%arg0: i32) -> (i32, i32) {
    %c0_i32 = arith.constant 0 : i32
    %c0_i32_0 = arith.constant 0 : i32
    %c0_i32_1 = arith.constant 0 : i32
    return %c0_i32, %c0_i32_0 : i32, i32
  }
  func.func @transform_14(%arg0: i32) -> (i32, i32) {
    %c0_i32 = arith.constant 0 : i32
    %c0_i32_0 = arith.constant 0 : i32
    %c0_i32_1 = arith.constant 0 : i32
    return %c0_i32, %c0_i32_0 : i32, i32
  }
  func.func @transform_15(%arg0: i32) -> (i32, i32) {
    %c0_i32 = arith.constant 0 : i32
    %c0_i32_0 = arith.constant 0 : i32
    %c0_i32_1 = arith.constant 0 : i32
    return %c0_i32, %c0_i32_0 : i32, i32
  }
  func.func @transform_16(%arg0: i32) -> (i32, i32, i32) {
    %c0_i32 = arith.constant 0 : i32
    %c0_i32_0 = arith.constant 0 : i32
    %c0_i32_1 = arith.constant 0 : i32
    return %arg0, %c0_i32, %c0_i32_0 : i32, i32, i32
  }
  func.func @transform_17(%arg0: i32) -> (i32, i32, i32) {
    %c0_i32 = arith.constant 0 : i32
    %c0_i32_0 = arith.constant 0 : i32
    %c0_i32_1 = arith.constant 0 : i32
    return %arg0, %c0_i32, %c0_i32_0 : i32, i32, i32
  }
  func.func @transform_18(%arg0: i32) -> (i32, i32, i32) {
    %c0_i32 = arith.constant 0 : i32
    %c0_i32_0 = arith.constant 0 : i32
    %c0_i32_1 = arith.constant 0 : i32
    return %arg0, %c0_i32, %c0_i32_0 : i32, i32, i32
  }
}

</mosaic_0001>

<llo_original>
// kernel: tpu_custom_call.1
$region0: #{tpu_custom_call.1}
  #allocation0 [shape = 'u32[]', space=smem, size = 0x4, offset = 0x4, fixed_abs, tag = 'smem constant byte address 0x4 - core index']
  #allocation1 [shape = 'u32[144,128]{1,0:T(1,128)}', space=vmem, size = 0x12000, scoped, tag = 'internal scratch']
  %s0 = inlined_call_operand.hbm [shape: f32[2,8,32], index: 0, kind: input, shape index: {}]
  %s1 = inlined_call_operand.hbm [shape: bf16[2,8,32], index: 1, kind: input, shape index: {}]
  %s2 = inlined_call_operand.hbm [shape: f32[2,1,8], index: 2, kind: input, shape index: {}]
  %s3 = inlined_call_operand.hbm [shape: f32[2,1,8], index: 3, kind: input, shape index: {}]
  %s4 = inlined_call_operand.hbm [shape: bf16[32,32], index: 4, kind: input, shape index: {}]
  %s5 = inlined_call_operand.hbm [shape: bf16[32,64], index: 5, kind: input, shape index: {}]
  %s6 = inlined_call_operand.hbm [shape: bf16[32,32], index: 6, kind: input, shape index: {}]
  %s7 = inlined_call_operand.hbm [shape: bf16[32,32], index: 7, kind: input, shape index: {}]
  %s8 = inlined_call_operand.hbm [shape: bf16[32,64], index: 8, kind: input, shape index: {}]
  %s9 = inlined_call_operand.hbm [shape: bf16[32,32], index: 9, kind: input, shape index: {}]
  %s10 = inlined_call_operand.hbm [shape: f32[11,32], index: 10, kind: input, shape index: {}]
  %s11 = inlined_call_operand.hbm [shape: f32[1,64], index: 11, kind: input, shape index: {}]
  %s12 = inlined_call_operand.hbm [shape: f32[1,64], index: 12, kind: input, shape index: {}]
  %s13 = inlined_call_operand.hbm [shape: bf16[32,64], index: 13, kind: input, shape index: {}]
  %s14 = inlined_call_operand.hbm [shape: f32[1,64], index: 14, kind: input, shape index: {}]
  %s15 = inlined_call_operand.hbm [shape: bf16[64,32], index: 15, kind: input, shape index: {}]
  %s16 = inlined_call_operand.hbm [shape: f32[2,8,32], index: 16, kind: output, shape index: {0}]
  %s17 = inlined_call_operand.hbm [shape: f32[2,8,8], index: 17, kind: output, shape index: {1}]
  %s18 = inlined_call_operand.hbm [shape: f32[2,8,32], index: 18, kind: output, shape index: {2}]
  %19 = xla_tuple %s16, %s17, %s18
  %s20 = sld [smem:[#allocation0]]
  $region177: #{tpu_custom_call.1} parent=0
    _
  %s22 = ssub.s32 1, %s20
  %s23 = scalar_select 0, %s22, %s20
  $region1: #{tpu_custom_call.1} parent=0
    #allocation2 [shape = 'u8[8192]{0}', space=vmem, size = 0x2000, scoped, tag = 'input window, operand 0']
    #allocation3 [shape = 's32[2]{0}', space=sflag, size = 0x8, scoped, tag = 'scoped memory for tpu_custom_call.1']
    #allocation4 [shape = 's32[2]{0}', space=sflag, size = 0x8, scoped, tag = 'scoped memory for tpu_custom_call.1']
    #allocation5 [shape = 'u8[4096]{0}', space=vmem, size = 0x1000, scoped, tag = 'input window, operand 1']
    #allocation6 [shape = 's32[2]{0}', space=sflag, size = 0x8, scoped, tag = 'scoped memory for tpu_custom_call.1']
    #allocation7 [shape = 'u8[1024]{0}', space=vmem, size = 0x400, scoped, tag = 'input window, operand 2']
    #allocation8 [shape = 'u8[1024]{0}', space=vmem, size = 0x400, scoped, tag = 'input window, operand 3']
    #allocation9 [shape = 's32[2]{0}', space=sflag, size = 0x8, scoped, tag = 'scoped memory for tpu_custom_call.1']
    #allocation10 [shape = 'u8[8192]{0}', space=vmem, size = 0x2000, scoped, tag = 'input window, operand 4, single buffered']
    #allocation11 [shape = 'u8[8192]{0}', space=vmem, size = 0x2000, scoped, tag = 'input window, operand 5, single buffered']
    #allocation12 [shape = 's32[1]{0}', space=sflag, size = 0x4, scoped, tag = 'scoped memory for tpu_custom_call.1']
    #allocation13 [shape = 'u8[8192]{0}', space=vmem, size = 0x2000, scoped, tag = 'input window, operand 6, single buffered']
    #allocation14 [shape = 'u8[8192]{0}', space=vmem, size = 0x2000, scoped, tag = 'input window, operand 7, single buffered']
    #allocation15 [shape = 's32[1]{0}', space=sflag, size = 0x4, scoped, tag = 'scoped memory for tpu_custom_call.1']
    #allocation16 [shape = 'u8[8192]{0}', space=vmem, size = 0x2000, scoped, tag = 'input window, operand 8, single buffered']
    #allocation17 [shape = 'u8[8192]{0}', space=vmem, size = 0x2000, scoped, tag = 'input window, operand 9, single buffered']
    #allocation18 [shape = 's32[1]{0}', space=sflag, size = 0x4, scoped, tag = 'scoped memory for tpu_custom_call.1']
    #allocation19 [shape = 'u8[8192]{0}', space=vmem, size = 0x2000, scoped, tag = 'input window, operand 10, single buffered']
    #allocation20 [shape = 'u8[512]{0}', space=vmem, size = 0x400, scoped, tag = 'input window, operand 11, single buffered']
    #allocation21 [shape = 's32[1]{0}', space=sflag, size = 0x4, scoped, tag = 'scoped memory for tpu_custom_call.1']
    #allocation22 [shape = 'u8[512]{0}', space=vmem, size = 0x400, scoped, tag = 'input window, operand 12, single buffered']
    #allocation23 [shape = 'u8[8192]{0}', space=vmem, size = 0x2000, scoped, tag = 'input window, operand 13, single buffered']
    #allocation24 [shape = 's32[1]{0}', space=sflag, size = 0x4, scoped, tag = 'scoped memory for tpu_custom_call.1']
    #allocation25 [shape = 'u8[512]{0}', space=vmem, size = 0x400, scoped, tag = 'input window, operand 14, single buffered']
    #allocation26 [shape = 'u8[16384]{0}', space=vmem, size = 0x4000, scoped, tag = 'input window, operand 15, single buffered']
    #allocation27 [shape = 's32[1]{0}', space=sflag, size = 0x4, scoped, tag = 'scoped memory for tpu_custom_call.1']
    #allocation28 [shape = 'u8[8192]{0}', space=vmem, size = 0x2000, scoped, tag = 'output window, operand 0']
    #allocation29 [shape = 'u8[8192]{0}', space=vmem, size = 0x2000, scoped, tag = 'output window, operand 1']
    #allocation30 [shape = 's32[2]{0}', space=sflag, size = 0x8, scoped, tag = 'scoped memory for tpu_custom_call.1']
    #allocation31 [shape = 'u8[8192]{0}', space=vmem, size = 0x2000, scoped, tag = 'output window, operand 2']
    %24 = vsyncpa [#allocation3], 0
    %s25 = scalar_lea.sflag [#allocation3], 1
    %26 = vsyncpa %s25, 0
    %27 = vsyncpa [#allocation6], 0
    %s28 = scalar_lea.sflag [#allocation6], 1
    %29 = vsyncpa %s28, 0
    %30 = vsyncpa [#allocation9], 0
    %s31 = scalar_lea.sflag [#allocation9], 1
    %32 = vsyncpa %s31, 0
    %33 = vsyncpa [#allocation12], 0
    %34 = vsyncpa [#allocation15], 0
    %35 = vsyncpa [#allocation18], 0
    %36 = vsyncpa [#allocation21], 0
    %37 = vsyncpa [#allocation24], 0
    %38 = vsyncpa [#allocation27], 0
    %39 = vsyncpa [#allocation4], 0
    %s40 = scalar_lea.sflag [#allocation4], 1
    %41 = vsyncpa %s40, 0
    %42 = vsyncpa [#allocation30], 0
    %s43 = scalar_lea.sflag [#allocation30], 1
    %44 = vsyncpa %s43, 0
    loop: start=0, step=1, limit=4
    $region2: #{tpu_custom_call.1} parent=1 // loop_pre_header
      _
    $region3: #{tpu_custom_call.1} parent=1 // loop_header
      %s46 = sphi 0, %s50
      %p47 = scmp.ge.s32.totalorder %s46, 4
      %s56 = sphi 0, %s58
      %s59 = sphi 0, %s56
      %s60 = sphi 0, %s59
      %s76 = sphi 0, %s60
      %s82 = sphi 0, %s84
      %s85 = sphi 0, %s82
      %s86 = sphi 0, %s85
      %s102 = sphi 0, %s86
      %s108 = sphi 0, %s110
      %s111 = sphi 0, %s108
      %s112 = sphi 0, %s111
      %s128 = sphi 0, %s112
      %s134 = sphi 0, %s136
      %s137 = sphi 0, %s134
      %s138 = sphi 0, %s137
      %s154 = sphi 0, %s138
      %s158 = sphi 0, %s158
      %s160 = sphi 0, %s158
      %s161 = sphi 0, %s160
      %s175 = sphi 0, %s161
      %s179 = sphi 0, %s179
      %s181 = sphi 0, %s179
      %s182 = sphi 0, %s181
      %s196 = sphi 0, %s182
      %s200 = sphi 0, %s200
      %s202 = sphi 0, %s200
      %s203 = sphi 0, %s202
      %s217 = sphi 0, %s203
      %s221 = sphi 0, %s221
      %s223 = sphi 0, %s221
      %s224 = sphi 0, %s223
      %s238 = sphi 0, %s224
      %s242 = sphi 0, %s242
      %s244 = sphi 0, %s242
      %s245 = sphi 0, %s244
      %s259 = sphi 0, %s245
      %s263 = sphi 0, %s263
      %s265 = sphi 0, %s263
      %s266 = sphi 0, %s265
      %s280 = sphi 0, %s266
      %s284 = sphi 0, %s284
      %s286 = sphi 0, %s284
      %s287 = sphi 0, %s286
      %s301 = sphi 0, %s287
      %s305 = sphi 0, %s305
      %s307 = sphi 0, %s305
      %s308 = sphi 0, %s307
      %s322 = sphi 0, %s308
      %s326 = sphi 0, %s326
      %s328 = sphi 0, %s326
      %s329 = sphi 0, %s328
      %s343 = sphi 0, %s329
      %s347 = sphi 0, %s347
      %s349 = sphi 0, %s347
      %s350 = sphi 0, %s349
      %s364 = sphi 0, %s350
      %s368 = sphi 0, %s368
      %s370 = sphi 0, %s368
      %s371 = sphi 0, %s370
      %s385 = sphi 0, %s371
      %s389 = sphi 0, %s389
      %s391 = sphi 0, %s389
      %s392 = sphi 0, %s391
      %s406 = sphi 0, %s392
      %s412 = sphi 0, %s414
      %s415 = sphi 0, %s412
      %s416 = sphi 0, %s415
      %s432 = sphi 0, %s416
      %s438 = sphi 0, %s440
      %s441 = sphi 0, %s438
      %s442 = sphi 0, %s441
      %s458 = sphi 0, %s442
      %s464 = sphi 0, %s466
      %s467 = sphi 0, %s464
      %s468 = sphi 0, %s467
      %s484 = sphi 0, %s468
    $region4: #{tpu_custom_call.1} parent=1 // loop_header_branch
      %49 = sbr.rel (%p47) target = $region8
    $region5: #{tpu_custom_call.1} parent=1 // loop_body
      %s51 = ssub.s32 %s46, 1
      %s52 = ssub.s32 %s46, 2
      %s53 = sadd.s32 %s46, 1
      %s54 = ssub.s32 %s46, %s53
      %p55 = scmp.eq.s32.totalorder %s54, 0
      %s57 = sadd.s32 %s56, 1
      %s58 = scalar_select %p55, %s56, %s57
      %p61 = pneg %p55
      %p62 = scmp.eq.s32.totalorder %s46, 1
      %p63 = por %p61, %p62
      %p64 = scmp.ne.s32.totalorder %s56, %s59
      %p65 = scmp.eq.s32.totalorder %s46, 0
      %p66 = por %p64, %p65
      %p67 = scmp.ne.s32.totalorder %s56, %s59
      %p68 = scmp.eq.s32.totalorder %s51, 1
      %p69 = por %p67, %p68
      %p70 = scmp.ne.s32.totalorder %s59, %s60
      %p71 = scmp.eq.s32.totalorder %s51, 0
      %p72 = por %p70, %p71
      %p73 = scmp.ne.s32.totalorder %s59, %s60
      %p74 = scmp.eq.s32.totalorder %s52, 1
      %p75 = por %p73, %p74
      %p77 = scmp.ne.s32.totalorder %s60, %s76
      %p78 = scmp.eq.s32.totalorder %s52, 0
      %p79 = por %p77, %p78
      %s80 = ssub.s32 %s46, %s53
      %p81 = scmp.eq.s32.totalorder %s80, 0
      %s83 = sadd.s32 %s82, 1
      %s84 = scalar_select %p81, %s82, %s83
      %p87 = pneg %p81
      %p88 = scmp.eq.s32.totalorder %s46, 1
      %p89 = por %p87, %p88
      %p90 = scmp.ne.s32.totalorder %s82, %s85
      %p91 = scmp.eq.s32.totalorder %s46, 0
      %p92 = por %p90, %p91
      %p93 = scmp.ne.s32.totalorder %s82, %s85
      %p94 = scmp.eq.s32.totalorder %s51, 1
      %p95 = por %p93, %p94
      %p96 = scmp.ne.s32.totalorder %s85, %s86
      %p97 = scmp.eq.s32.totalorder %s51, 0
      %p98 = por %p96, %p97
      %p99 = scmp.ne.s32.totalorder %s85, %s86
      %p100 = scmp.eq.s32.totalorder %s52, 1
      %p101 = por %p99, %p100
      %p103 = scmp.ne.s32.totalorder %s86, %s102
      %p104 = scmp.eq.s32.totalorder %s52, 0
      %p105 = por %p103, %p104
      %s106 = ssub.s32 %s46, %s53
      %p107 = scmp.eq.s32.totalorder %s106, 0
      %s109 = sadd.s32 %s108, 1
      %s110 = scalar_select %p107, %s108, %s109
      %p113 = pneg %p107
      %p114 = scmp.eq.s32.totalorder %s46, 1
      %p115 = por %p113, %p114
      %p116 = scmp.ne.s32.totalorder %s108, %s111
      %p117 = scmp.eq.s32.totalorder %s46, 0
      %p118 = por %p116, %p117
      %p119 = scmp.ne.s32.totalorder %s108, %s111
      %p120 = scmp.eq.s32.totalorder %s51, 1
      %p121 = por %p119, %p120
      %p122 = scmp.ne.s32.totalorder %s111, %s112
      %p123 = scmp.eq.s32.totalorder %s51, 0
      %p124 = por %p122, %p123
      %p125 = scmp.ne.s32.totalorder %s111, %s112
      %p126 = scmp.eq.s32.totalorder %s52, 1
      %p127 = por %p125, %p126
      %p129 = scmp.ne.s32.totalorder %s112, %s128
      %p130 = scmp.eq.s32.totalorder %s52, 0
      %p131 = por %p129, %p130
      %s132 = ssub.s32 %s46, %s53
      %p133 = scmp.eq.s32.totalorder %s132, 0
      %s135 = sadd.s32 %s134, 1
      %s136 = scalar_select %p133, %s134, %s135
      %p139 = pneg %p133
      %p140 = scmp.eq.s32.totalorder %s46, 1
      %p141 = por %p139, %p140
      %p142 = scmp.ne.s32.totalorder %s134, %s137
      %p143 = scmp.eq.s32.totalorder %s46, 0
      %p144 = por %p142, %p143
      %p145 = scmp.ne.s32.totalorder %s134, %s137
      %p146 = scmp.eq.s32.totalorder %s51, 1
      %p147 = por %p145, %p146
      %p148 = scmp.ne.s32.totalorder %s137, %s138
      %p149 = scmp.eq.s32.totalorder %s51, 0
      %p150 = por %p148, %p149
      %p151 = scmp.ne.s32.totalorder %s137, %s138
      %p152 = scmp.eq.s32.totalorder %s52, 1
      %p153 = por %p151, %p152
      %p155 = scmp.ne.s32.totalorder %s138, %s154
      %p156 = scmp.eq.s32.totalorder %s52, 0
      %p157 = por %p155, %p156
      %s159 = sadd.s32 %s158, 1
      %p162 = scmp.eq.s32.totalorder %s46, 1
      %p163 = scmp.ne.s32.totalorder %s158, %s160
      %p164 = scmp.eq.s32.totalorder %s46, 0
      %p165 = por %p163, %p164
      %p166 = scmp.ne.s32.totalorder %s158, %s160
      %p167 = scmp.eq.s32.totalorder %s51, 1
      %p168 = por %p166, %p167
      %p169 = scmp.ne.s32.totalorder %s160, %s161
      %p170 = scmp.eq.s32.totalorder %s51, 0
      %p171 = por %p169, %p170
      %p172 = scmp.ne.s32.totalorder %s160, %s161
      %p173 = scmp.eq.s32.totalorder %s52, 1
      %p174 = por %p172, %p173
      %p176 = scmp.ne.s32.totalorder %s161, %s175
      %p177 = scmp.eq.s32.totalorder %s52, 0
      %p178 = por %p176, %p177
      %s180 = sadd.s32 %s179, 1
      %p183 = scmp.eq.s32.totalorder %s46, 1
      %p184 = scmp.ne.s32.totalorder %s179, %s181
      %p185 = scmp.eq.s32.totalorder %s46, 0
      %p186 = por %p184, %p185
      %p187 = scmp.ne.s32.totalorder %s179, %s181
      %p188 = scmp.eq.s32.totalorder %s51, 1
      %p189 = por %p187, %p188
      %p190 = scmp.ne.s32.totalorder %s181, %s182
      %p191 = scmp.eq.s32.totalorder %s51, 0
      %p192 = por %p190, %p191
      %p193 = scmp.ne.s32.totalorder %s181, %s182
      %p194 = scmp.eq.s32.totalorder %s52, 1
      %p195 = por %p193, %p194
      %p197 = scmp.ne.s32.totalorder %s182, %s196
      %p198 = scmp.eq.s32.totalorder %s52, 0
      %p199 = por %p197, %p198
      %s201 = sadd.s32 %s200, 1
      %p204 = scmp.eq.s32.totalorder %s46, 1
      %p205 = scmp.ne.s32.totalorder %s200, %s202
      %p206 = scmp.eq.s32.totalorder %s46, 0
      %p207 = por %p205, %p206
      %p208 = scmp.ne.s32.totalorder %s200, %s202
      %p209 = scmp.eq.s32.totalorder %s51, 1
      %p210 = por %p208, %p209
      %p211 = scmp.ne.s32.totalorder %s202, %s203
      %p212 = scmp.eq.s32.totalorder %s51, 0
      %p213 = por %p211, %p212
      %p214 = scmp.ne.s32.totalorder %s202, %s203
      %p215 = scmp.eq.s32.totalorder %s52, 1
      %p216 = por %p214, %p215
      %p218 = scmp.ne.s32.totalorder %s203, %s217
      %p219 = scmp.eq.s32.totalorder %s52, 0
      %p220 = por %p218, %p219
      %s222 = sadd.s32 %s221, 1
      %p225 = scmp.eq.s32.totalorder %s46, 1
      %p226 = scmp.ne.s32.totalorder %s221, %s223
      %p227 = scmp.eq.s32.totalorder %s46, 0
      %p228 = por %p226, %p227
      %p229 = scmp.ne.s32.totalorder %s221, %s223
      %p230 = scmp.eq.s32.totalorder %s51, 1
      %p231 = por %p229, %p230
      %p232 = scmp.ne.s32.totalorder %s223, %s224
      %p233 = scmp.eq.s32.totalorder %s51, 0
      %p234 = por %p232, %p233
      %p235 = scmp.ne.s32.totalorder %s223, %s224
      %p236 = scmp.eq.s32.totalorder %s52, 1
      %p237 = por %p235, %p236
      %p239 = scmp.ne.s32.totalorder %s224, %s238
      %p240 = scmp.eq.s32.totalorder %s52, 0
      %p241 = por %p239, %p240
      %s243 = sadd.s32 %s242, 1
      %p246 = scmp.eq.s32.totalorder %s46, 1
      %p247 = scmp.ne.s32.totalorder %s242, %s244
      %p248 = scmp.eq.s32.totalorder %s46, 0
      %p249 = por %p247, %p248
      %p250 = scmp.ne.s32.totalorder %s242, %s244
      %p251 = scmp.eq.s32.totalorder %s51, 1
      %p252 = por %p250, %p251
      %p253 = scmp.ne.s32.totalorder %s244, %s245
      %p254 = scmp.eq.s32.totalorder %s51, 0
      %p255 = por %p253, %p254
      %p256 = scmp.ne.s32.totalorder %s244, %s245
      %p257 = scmp.eq.s32.totalorder %s52, 1
      %p258 = por %p256, %p257
      %p260 = scmp.ne.s32.totalorder %s245, %s259
      %p261 = scmp.eq.s32.totalorder %s52, 0
      %p262 = por %p260, %p261
      %s264 = sadd.s32 %s263, 1
      %p267 = scmp.eq.s32.totalorder %s46, 1
      %p268 = scmp.ne.s32.totalorder %s263, %s265
      %p269 = scmp.eq.s32.totalorder %s46, 0
      %p270 = por %p268, %p269
      %p271 = scmp.ne.s32.totalorder %s263, %s265
      %p272 = scmp.eq.s32.totalorder %s51, 1
      %p273 = por %p271, %p272
      %p274 = scmp.ne.s32.totalorder %s265, %s266
      %p275 = scmp.eq.s32.totalorder %s51, 0
      %p276 = por %p274, %p275
      %p277 = scmp.ne.s32.totalorder %s265, %s266
      %p278 = scmp.eq.s32.totalorder %s52, 1
      %p279 = por %p277, %p278
      %p281 = scmp.ne.s32.totalorder %s266, %s280
      %p282 = scmp.eq.s32.totalorder %s52, 0
      %p283 = por %p281, %p282
      %s285 = sadd.s32 %s284, 1
      %p288 = scmp.eq.s32.totalorder %s46, 1
      %p289 = scmp.ne.s32.totalorder %s284, %s286
      %p290 = scmp.eq.s32.totalorder %s46, 0
      %p291 = por %p289, %p290
      %p292 = scmp.ne.s32.totalorder %s284, %s286
      %p293 = scmp.eq.s32.totalorder %s51, 1
      %p294 = por %p292, %p293
      %p295 = scmp.ne.s32.totalorder %s286, %s287
      %p296 = scmp.eq.s32.totalorder %s51, 0
      %p297 = por %p295, %p296
      %p298 = scmp.ne.s32.totalorder %s286, %s287
      %p299 = scmp.eq.s32.totalorder %s52, 1
      %p300 = por %p298, %p299
      %p302 = scmp.ne.s32.totalorder %s287, %s301
      %p303 = scmp.eq.s32.totalorder %s52, 0
      %p304 = por %p302, %p303
      %s306 = sadd.s32 %s305, 1
      %p309 = scmp.eq.s32.totalorder %s46, 1
      %p310 = scmp.ne.s32.totalorder %s305, %s307
      %p311 = scmp.eq.s32.totalorder %s46, 0
      %p312 = por %p310, %p311
      %p313 = scmp.ne.s32.totalorder %s305, %s307
      %p314 = scmp.eq.s32.totalorder %s51, 1
      %p315 = por %p313, %p314
      %p316 = scmp.ne.s32.totalorder %s307, %s308
      %p317 = scmp.eq.s32.totalorder %s51, 0
      %p318 = por %p316, %p317
      %p319 = scmp.ne.s32.totalorder %s307, %s308
      %p320 = scmp.eq.s32.totalorder %s52, 1
      %p321 = por %p319, %p320
      %p323 = scmp.ne.s32.totalorder %s308, %s322
      %p324 = scmp.eq.s32.totalorder %s52, 0
      %p325 = por %p323, %p324
      %s327 = sadd.s32 %s326, 1
      %p330 = scmp.eq.s32.totalorder %s46, 1
      %p331 = scmp.ne.s32.totalorder %s326, %s328
      %p332 = scmp.eq.s32.totalorder %s46, 0
      %p333 = por %p331, %p332
      %p334 = scmp.ne.s32.totalorder %s326, %s328
      %p335 = scmp.eq.s32.totalorder %s51, 1
      %p336 = por %p334, %p335
      %p337 = scmp.ne.s32.totalorder %s328, %s329
      %p338 = scmp.eq.s32.totalorder %s51, 0
      %p339 = por %p337, %p338
      %p340 = scmp.ne.s32.totalorder %s328, %s329
      %p341 = scmp.eq.s32.totalorder %s52, 1
      %p342 = por %p340, %p341
      %p344 = scmp.ne.s32.totalorder %s329, %s343
      %p345 = scmp.eq.s32.totalorder %s52, 0
      %p346 = por %p344, %p345
      %s348 = sadd.s32 %s347, 1
      %p351 = scmp.eq.s32.totalorder %s46, 1
      %p352 = scmp.ne.s32.totalorder %s347, %s349
      %p353 = scmp.eq.s32.totalorder %s46, 0
      %p354 = por %p352, %p353
      %p355 = scmp.ne.s32.totalorder %s347, %s349
      %p356 = scmp.eq.s32.totalorder %s51, 1
      %p357 = por %p355, %p356
      %p358 = scmp.ne.s32.totalorder %s349, %s350
      %p359 = scmp.eq.s32.totalorder %s51, 0
      %p360 = por %p358, %p359
      %p361 = scmp.ne.s32.totalorder %s349, %s350
      %p362 = scmp.eq.s32.totalorder %s52, 1
      %p363 = por %p361, %p362
      %p365 = scmp.ne.s32.totalorder %s350, %s364
      %p366 = scmp.eq.s32.totalorder %s52, 0
      %p367 = por %p365, %p366
      %s369 = sadd.s32 %s368, 1
      %p372 = scmp.eq.s32.totalorder %s46, 1
      %p373 = scmp.ne.s32.totalorder %s368, %s370
      %p374 = scmp.eq.s32.totalorder %s46, 0
      %p375 = por %p373, %p374
      %p376 = scmp.ne.s32.totalorder %s368, %s370
      %p377 = scmp.eq.s32.totalorder %s51, 1
      %p378 = por %p376, %p377
      %p379 = scmp.ne.s32.totalorder %s370, %s371
      %p380 = scmp.eq.s32.totalorder %s51, 0
      %p381 = por %p379, %p380
      %p382 = scmp.ne.s32.totalorder %s370, %s371
      %p383 = scmp.eq.s32.totalorder %s52, 1
      %p384 = por %p382, %p383
      %p386 = scmp.ne.s32.totalorder %s371, %s385
      %p387 = scmp.eq.s32.totalorder %s52, 0
      %p388 = por %p386, %p387
      %s390 = sadd.s32 %s389, 1
      %p393 = scmp.eq.s32.totalorder %s46, 1
      %p394 = scmp.ne.s32.totalorder %s389, %s391
      %p395 = scmp.eq.s32.totalorder %s46, 0
      %p396 = por %p394, %p395
      %p397 = scmp.ne.s32.totalorder %s389, %s391
      %p398 = scmp.eq.s32.totalorder %s51, 1
      %p399 = por %p397, %p398
      %p400 = scmp.ne.s32.totalorder %s391, %s392
      %p401 = scmp.eq.s32.totalorder %s51, 0
      %p402 = por %p400, %p401
      %p403 = scmp.ne.s32.totalorder %s391, %s392
      %p404 = scmp.eq.s32.totalorder %s52, 1
      %p405 = por %p403, %p404
      %p407 = scmp.ne.s32.totalorder %s392, %s406
      %p408 = scmp.eq.s32.totalorder %s52, 0
      %p409 = por %p407, %p408
      %s410 = ssub.s32 %s46, %s53
      %p411 = scmp.eq.s32.totalorder %s410, 0
      %s413 = sadd.s32 %s412, 1
      %s414 = scalar_select %p411, %s412, %s413
      %p417 = pneg %p411
      %p418 = scmp.eq.s32.totalorder %s46, 1
      %p419 = por %p417, %p418
      %p420 = scmp.ne.s32.totalorder %s412, %s415
      %p421 = scmp.eq.s32.totalorder %s46, 0
      %p422 = por %p420, %p421
      %p423 = scmp.ne.s32.totalorder %s412, %s415
      %p424 = scmp.eq.s32.totalorder %s51, 1
      %p425 = por %p423, %p424
      %p426 = scmp.ne.s32.totalorder %s415, %s416
      %p427 = scmp.eq.s32.totalorder %s51, 0
      %p428 = por %p426, %p427
      %p429 = scmp.ne.s32.totalorder %s415, %s416
      %p430 = scmp.eq.s32.totalorder %s52, 1
      %p431 = por %p429, %p430
      %p433 = scmp.ne.s32.totalorder %s416, %s432
      %p434 = scmp.eq.s32.totalorder %s52, 0
      %p435 = por %p433, %p434
      %s436 = ssub.s32 %s46, %s53
      %p437 = scmp.eq.s32.totalorder %s436, 0
      %s439 = sadd.s32 %s438, 1
      %s440 = scalar_select %p437, %s438, %s439
      %p443 = pneg %p437
      %p444 = scmp.eq.s32.totalorder %s46, 1
      %p445 = por %p443, %p444
      %p446 = scmp.ne.s32.totalorder %s438, %s441
      %p447 = scmp.eq.s32.totalorder %s46, 0
      %p448 = por %p446, %p447
      %p449 = scmp.ne.s32.totalorder %s438, %s441
      %p450 = scmp.eq.s32.totalorder %s51, 1
      %p451 = por %p449, %p450
      %p452 = scmp.ne.s32.totalorder %s441, %s442
      %p453 = scmp.eq.s32.totalorder %s51, 0
      %p454 = por %p452, %p453
      %p455 = scmp.ne.s32.totalorder %s441, %s442
      %p456 = scmp.eq.s32.totalorder %s52, 1
      %p457 = por %p455, %p456
      %p459 = scmp.ne.s32.totalorder %s442, %s458
      %p460 = scmp.eq.s32.totalorder %s52, 0
      %p461 = por %p459, %p460
      %s462 = ssub.s32 %s46, %s53
      %p463 = scmp.eq.s32.totalorder %s462, 0
      %s465 = sadd.s32 %s464, 1
      %s466 = scalar_select %p463, %s464, %s465
      %p469 = pneg %p463
      %p470 = scmp.eq.s32.totalorder %s46, 1
      %p471 = por %p469, %p470
      %p472 = scmp.ne.s32.totalorder %s464, %s467
      %p473 = scmp.eq.s32.totalorder %s46, 0
      %p474 = por %p472, %p473
      %p475 = scmp.ne.s32.totalorder %s464, %s467
      %p476 = scmp.eq.s32.totalorder %s51, 1
      %p477 = por %p475, %p476
      %p478 = scmp.ne.s32.totalorder %s467, %s468
      %p479 = scmp.eq.s32.totalorder %s51, 0
      %p480 = por %p478, %p479
      %p481 = scmp.ne.s32.totalorder %s467, %s468
      %p482 = scmp.eq.s32.totalorder %s52, 1
      %p483 = por %p481, %p482
      %p485 = scmp.ne.s32.totalorder %s468, %s484
      %p486 = scmp.eq.s32.totalorder %s52, 0
      %p487 = por %p485, %p486
      %p488 = scmp.le.s32.totalorder 1, %s46
      %p489 = scmp.lt.s32.totalorder %s46, 3
      %p490 = pnand %p488, %p489
      %p491 = pneg %p490
      // Predicated region
      $region9: #{tpu_custom_call.1} parent=5 // pred_check
        _
      $region10: #{tpu_custom_call.1} parent=5 // pred_check_branch
        %493 = sbr.rel (%p490) target = $region12
      $region11: #{tpu_custom_call.1} parent=5 // pred_region
        %s494 = ssub.s32 %s46, 1
        // Predicated region
        $region13: #{tpu_custom_call.1} parent=11 // pred_check
          %p495 = pneg %p171
        $region14: #{tpu_custom_call.1} parent=11 // pred_check_branch
          %497 = sbr.rel (%p495) target = $region16
        $region15: #{tpu_custom_call.1} parent=11 // pred_region
          %s499 = ssub.s32 256, 256
          %500 = vsyncadd [#allocation9], %s499
          %s501 = sshll.u32 [#allocation10], 4
          %s502 = int_to_ptr.vmem [resolvable:$true] %s501
          %507 = dma.hbm_to_vmem [thread:$0]  %s4, 256, %s502, [#allocation9], 64, 64, 4
        $region16: #{tpu_custom_call.1} parent=11 // pred_fallthru
          _
        // Predicated region
        $region17: #{tpu_custom_call.1} parent=11 // pred_check
          %p508 = pneg %p192
        $region18: #{tpu_custom_call.1} parent=11 // pred_check_branch
          %510 = sbr.rel (%p508) target = $region20
        $region19: #{tpu_custom_call.1} parent=11 // pred_region
          %s512 = ssub.s32 256, 256
          %513 = vsyncadd [#allocation12], %s512
          %s514 = sshll.u32 [#allocation11], 4
          %s515 = int_to_ptr.vmem [resolvable:$true] %s514
          %520 = dma.hbm_to_vmem [thread:$0]  %s5, 256, %s515, [#allocation12], 64, 64, 4
        $region20: #{tpu_custom_call.1} parent=11 // pred_fallthru
          _
        // Predicated region
        $region21: #{tpu_custom_call.1} parent=11 // pred_check
          %p521 = pneg %p213
        $region22: #{tpu_custom_call.1} parent=11 // pred_check_branch
          %523 = sbr.rel (%p521) target = $region24
        $region23: #{tpu_custom_call.1} parent=11 // pred_region
          %s525 = ssub.s32 256, 256
          %526 = vsyncadd [#allocation12], %s525
          %s527 = sshll.u32 [#allocation13], 4
          %s528 = int_to_ptr.vmem [resolvable:$true] %s527
          %533 = dma.hbm_to_vmem [thread:$0]  %s6, 256, %s528, [#allocation12], 64, 64, 4
        $region24: #{tpu_custom_call.1} parent=11 // pred_fallthru
          _
        // Predicated region
        $region25: #{tpu_custom_call.1} parent=11 // pred_check
          %p534 = pneg %p234
        $region26: #{tpu_custom_call.1} parent=11 // pred_check_branch
          %536 = sbr.rel (%p534) target = $region28
        $region27: #{tpu_custom_call.1} parent=11 // pred_region
          %s538 = ssub.s32 256, 256
          %539 = vsyncadd [#allocation15], %s538
          %s540 = sshll.u32 [#allocation14], 4
          %s541 = int_to_ptr.vmem [resolvable:$true] %s540
          %546 = dma.hbm_to_vmem [thread:$0]  %s7, 256, %s541, [#allocation15], 64, 64, 4
        $region28: #{tpu_custom_call.1} parent=11 // pred_fallthru
          _
        // Predicated region
        $region29: #{tpu_custom_call.1} parent=11 // pred_check
          %p547 = pneg %p255
        $region30: #{tpu_custom_call.1} parent=11 // pred_check_branch
          %549 = sbr.rel (%p547) target = $region32
        $region31: #{tpu_custom_call.1} parent=11 // pred_region
          %s551 = ssub.s32 256, 256
          %552 = vsyncadd [#allocation15], %s551
          %s553 = sshll.u32 [#allocation16], 4
          %s554 = int_to_ptr.vmem [resolvable:$true] %s553
          %559 = dma.hbm_to_vmem [thread:$0]  %s8, 256, %s554, [#allocation15], 64, 64, 4
        $region32: #{tpu_custom_call.1} parent=11 // pred_fallthru
          _
        // Predicated region
        $region33: #{tpu_custom_call.1} parent=11 // pred_check
          %p560 = pneg %p276
        $region34: #{tpu_custom_call.1} parent=11 // pred_check_branch
          %562 = sbr.rel (%p560) target = $region36
        $region35: #{tpu_custom_call.1} parent=11 // pred_region
          %s564 = ssub.s32 256, 256
          %565 = vsyncadd [#allocation18], %s564
          %s566 = sshll.u32 [#allocation17], 4
          %s567 = int_to_ptr.vmem [resolvable:$true] %s566
          %572 = dma.hbm_to_vmem [thread:$0]  %s9, 256, %s567, [#allocation18], 64, 64, 4
        $region36: #{tpu_custom_call.1} parent=11 // pred_fallthru
          _
        // Predicated region
        $region37: #{tpu_custom_call.1} parent=11 // pred_check
          %p573 = pneg %p297
        $region38: #{tpu_custom_call.1} parent=11 // pred_check_branch
          %575 = sbr.rel (%p573) target = $region40
        $region39: #{tpu_custom_call.1} parent=11 // pred_region
          %s577 = ssub.s32 256, 256
          %578 = vsyncadd [#allocation18], %s577
          %s579 = sshll.u32 [#allocation19], 4
          %s580 = int_to_ptr.vmem [resolvable:$true] %s579
          %585 = dma.hbm_to_vmem [thread:$0]  %s10, 256, %s580, [#allocation18], 128, 128, 8
        $region40: #{tpu_custom_call.1} parent=11 // pred_fallthru
          _
        // Predicated region
        $region41: #{tpu_custom_call.1} parent=11 // pred_check
          %p586 = pneg %p318
        $region42: #{tpu_custom_call.1} parent=11 // pred_check_branch
          %588 = sbr.rel (%p586) target = $region44
        $region43: #{tpu_custom_call.1} parent=11 // pred_region
          %s590 = ssub.s32 16, 16
          %591 = vsyncadd [#allocation21], %s590
          %s593 = sshll.u32 [#allocation20], 4
          %s594 = int_to_ptr.vmem [resolvable:$true] %s593
          %596 = dma.hbm_to_vmem [thread:$0]  %s11, 16, %s594, [#allocation21]
        $region44: #{tpu_custom_call.1} parent=11 // pred_fallthru
          _
        // Predicated region
        $region45: #{tpu_custom_call.1} parent=11 // pred_check
          %p597 = pneg %p339
        $region46: #{tpu_custom_call.1} parent=11 // pred_check_branch
          %599 = sbr.rel (%p597) target = $region48
        $region47: #{tpu_custom_call.1} parent=11 // pred_region
          %s601 = ssub.s32 16, 16
          %602 = vsyncadd [#allocation21], %s601
          %s604 = sshll.u32 [#allocation22], 4
          %s605 = int_to_ptr.vmem [resolvable:$true] %s604
          %607 = dma.hbm_to_vmem [thread:$0]  %s12, 16, %s605, [#allocation21]
        $region48: #{tpu_custom_call.1} parent=11 // pred_fallthru
          _
        // Predicated region
        $region49: #{tpu_custom_call.1} parent=11 // pred_check
          %p608 = pneg %p360
        $region50: #{tpu_custom_call.1} parent=11 // pred_check_branch
          %610 = sbr.rel (%p608) target = $region52
        $region51: #{tpu_custom_call.1} parent=11 // pred_region
          %s612 = ssub.s32 256, 256
          %613 = vsyncadd [#allocation24], %s612
          %s614 = sshll.u32 [#allocation23], 4
          %s615 = int_to_ptr.vmem [resolvable:$true] %s614
          %620 = dma.hbm_to_vmem [thread:$0]  %s13, 256, %s615, [#allocation24], 64, 64, 4
        $region52: #{tpu_custom_call.1} parent=11 // pred_fallthru
          _
        // Predicated region
        $region53: #{tpu_custom_call.1} parent=11 // pred_check
          %p621 = pneg %p381
        $region54: #{tpu_custom_call.1} parent=11 // pred_check_branch
          %623 = sbr.rel (%p621) target = $region56
        $region55: #{tpu_custom_call.1} parent=11 // pred_region
          %s625 = ssub.s32 16, 16
          %626 = vsyncadd [#allocation24], %s625
          %s628 = sshll.u32 [#allocation25], 4
          %s629 = int_to_ptr.vmem [resolvable:$true] %s628
          %631 = dma.hbm_to_vmem [thread:$0]  %s14, 16, %s629, [#allocation24]
        $region56: #{tpu_custom_call.1} parent=11 // pred_fallthru
          _
        // Predicated region
        $region57: #{tpu_custom_call.1} parent=11 // pred_check
          %p632 = pneg %p402
        $region58: #{tpu_custom_call.1} parent=11 // pred_check_branch
          %634 = sbr.rel (%p632) target = $region60
        $region59: #{tpu_custom_call.1} parent=11 // pred_region
          %s636 = ssub.s32 512, 512
          %637 = vsyncadd [#allocation27], %s636
          %s638 = sshll.u32 [#allocation26], 4
          %s639 = int_to_ptr.vmem [resolvable:$true] %s638
          %644 = dma.hbm_to_vmem [thread:$0]  %s15, 512, %s639, [#allocation27], 64, 64, 4
        $region60: #{tpu_custom_call.1} parent=11 // pred_fallthru
          _
      $region12: #{tpu_custom_call.1} parent=5 // pred_fallthru
        _
      %p645 = scmp.lt.s32.totalorder %s46, 2
      // Predicated region
      $region61: #{tpu_custom_call.1} parent=5 // pred_check
        %p646 = pneg %p645
      $region62: #{tpu_custom_call.1} parent=5 // pred_check_branch
        %648 = sbr.rel (%p646) target = $region64
      $region63: #{tpu_custom_call.1} parent=5 // pred_region
        // Predicated region
        $region65: #{tpu_custom_call.1} parent=63 // pred_check
          %p649 = pneg %p66
        $region66: #{tpu_custom_call.1} parent=63 // pred_check_branch
          %651 = sbr.rel (%p649) target = $region68
        $region67: #{tpu_custom_call.1} parent=63 // pred_region
          %s652 = sand.u32 %s56, 1
          %s653 = scalar_lea.sflag [#allocation3], %s652
          %s654 = sand.u32 %s56, 1
          %s655 = smul.addr %s654, 8
          %s656 = scalar_lea.vmem [#allocation2], %s655
          %s658 = ssub.s32 128, 128
          %659 = vsyncadd %s653, %s658
          %s660 = smul.addr %s46, 128
          %s661 = scalar_lea.hbm %s0, %s660
          %s663 = sshll.u32 %s656, 4
          %s664 = int_to_ptr.vmem [resolvable:$true] %s663
          %666 = dma.hbm_to_vmem [thread:$0]  %s661, 128, %s664, %s653
        $region68: #{tpu_custom_call.1} parent=63 // pred_fallthru
          _
        // Predicated region
        $region69: #{tpu_custom_call.1} parent=63 // pred_check
          %p667 = pneg %p92
        $region70: #{tpu_custom_call.1} parent=63 // pred_check_branch
          %669 = sbr.rel (%p667) target = $region72
        $region71: #{tpu_custom_call.1} parent=63 // pred_region
          %s670 = sand.u32 %s46, 1
          %s671 = scalar_lea.sflag [#allocation6], %s670
          %s672 = sand.u32 %s82, 1
          %s673 = smul.addr %s672, 4
          %s674 = scalar_lea.vmem [#allocation5], %s673
          %s676 = ssub.s32 64, 64
          %677 = vsyncadd %s671, %s676
          %s678 = smul.addr %s46, 64
          %s679 = scalar_lea.hbm %s1, %s678
          %s681 = sshll.u32 %s674, 4
          %s682 = int_to_ptr.vmem [resolvable:$true] %s681
          %684 = dma.hbm_to_vmem [thread:$0]  %s679, 64, %s682, %s671
        $region72: #{tpu_custom_call.1} parent=63 // pred_fallthru
          _
        // Predicated region
        $region73: #{tpu_custom_call.1} parent=63 // pred_check
          %p685 = pneg %p118
        $region74: #{tpu_custom_call.1} parent=63 // pred_check_branch
          %687 = sbr.rel (%p685) target = $region76
        $region75: #{tpu_custom_call.1} parent=63 // pred_region
          %s688 = sand.u32 %s46, 1
          %s689 = scalar_lea.sflag [#allocation6], %s688
          %s690 = sand.u32 %s108, 1
          %s691 = scalar_lea.vmem [#allocation7], %s690
          %s693 = ssub.s32 16, 16
          %694 = vsyncadd %s689, %s693
          %s695 = smul.addr %s46, 16
          %s696 = scalar_lea.hbm %s2, %s695
          %s698 = sshll.u32 %s691, 4
          %s699 = int_to_ptr.vmem [resolvable:$true] %s698
          %701 = dma.hbm_to_vmem [thread:$0]  %s696, 16, %s699, %s689
        $region76: #{tpu_custom_call.1} parent=63 // pred_fallthru
          _
        // Predicated region
        $region77: #{tpu_custom_call.1} parent=63 // pred_check
          %p702 = pneg %p144
        $region78: #{tpu_custom_call.1} parent=63 // pred_check_branch
          %704 = sbr.rel (%p702) target = $region80
        $region79: #{tpu_custom_call.1} parent=63 // pred_region
          %s705 = sand.u32 %s46, 1
          %s706 = scalar_lea.sflag [#allocation9], %s705
          %s707 = sand.u32 %s134, 1
          %s708 = scalar_lea.vmem [#allocation8], %s707
          %s710 = ssub.s32 16, 16
          %711 = vsyncadd %s706, %s710
          %s712 = smul.addr %s46, 16
          %s713 = scalar_lea.hbm %s3, %s712
          %s715 = sshll.u32 %s708, 4
          %s716 = int_to_ptr.vmem [resolvable:$true] %s715
          %718 = dma.hbm_to_vmem [thread:$0]  %s713, 16, %s716, %s706
        $region80: #{tpu_custom_call.1} parent=63 // pred_fallthru
          _
      $region64: #{tpu_custom_call.1} parent=5 // pred_fallthru
        _
      %p719 = scmp.le.s32.totalorder 1, %s46
      %p720 = scmp.lt.s32.totalorder %s46, 3
      %p721 = pnand %p719, %p720
      %p722 = pneg %p721
      // Predicated region
      $region81: #{tpu_custom_call.1} parent=5 // pred_check
        _
      $region82: #{tpu_custom_call.1} parent=5 // pred_check_branch
        %724 = sbr.rel (%p721) target = $region84
      $region83: #{tpu_custom_call.1} parent=5 // pred_region
        %s725 = ssub.s32 %s46, 1
        %s726 = sand.u32 %s59, 1
        %s727 = scalar_lea.sflag [#allocation3], %s726
        %s728 = sand.u32 %s59, 1
        %s729 = smul.addr %s728, 8
        %s730 = scalar_lea.vmem [#allocation2], %s729
        // Predicated region
        $region85: #{tpu_custom_call.1} parent=83 // pred_check
          %p731 = pneg %p72
        $region86: #{tpu_custom_call.1} parent=83 // pred_check_branch
          %733 = sbr.rel (%p731) target = $region88
        $region87: #{tpu_custom_call.1} parent=83 // pred_region
          %734 = dma.done %s727, 128
        $region88: #{tpu_custom_call.1} parent=83 // pred_fallthru
          _
        %s735 = sand.u32 %s51, 1
        %s736 = scalar_lea.sflag [#allocation6], %s735
        %s737 = sand.u32 %s85, 1
        %s738 = smul.addr %s737, 4
        %s739 = scalar_lea.vmem [#allocation5], %s738
        // Predicated region
        $region89: #{tpu_custom_call.1} parent=83 // pred_check
          %p740 = pneg %p98
        $region90: #{tpu_custom_call.1} parent=83 // pred_check_branch
          %742 = sbr.rel (%p740) target = $region92
        $region91: #{tpu_custom_call.1} parent=83 // pred_region
          %743 = dma.done %s736, 64
        $region92: #{tpu_custom_call.1} parent=83 // pred_fallthru
          _
        %s744 = sand.u32 %s51, 1
        %s745 = scalar_lea.sflag [#allocation6], %s744
        %s746 = sand.u32 %s111, 1
        %s747 = scalar_lea.vmem [#allocation7], %s746
        // Predicated region
        $region93: #{tpu_custom_call.1} parent=83 // pred_check
          %p748 = pneg %p124
        $region94: #{tpu_custom_call.1} parent=83 // pred_check_branch
          %750 = sbr.rel (%p748) target = $region96
        $region95: #{tpu_custom_call.1} parent=83 // pred_region
          %751 = dma.done %s745, 16
        $region96: #{tpu_custom_call.1} parent=83 // pred_fallthru
          _
        %s752 = sand.u32 %s51, 1
        %s753 = scalar_lea.sflag [#allocation9], %s752
        %s754 = sand.u32 %s137, 1
        %s755 = scalar_lea.vmem [#allocation8], %s754
        // Predicated region
        $region97: #{tpu_custom_call.1} parent=83 // pred_check
          %p756 = pneg %p150
        $region98: #{tpu_custom_call.1} parent=83 // pred_check_branch
          %758 = sbr.rel (%p756) target = $region100
        $region99: #{tpu_custom_call.1} parent=83 // pred_region
          %759 = dma.done %s753, 16
        $region100: #{tpu_custom_call.1} parent=83 // pred_fallthru
          _
        // Predicated region
        $region101: #{tpu_custom_call.1} parent=83 // pred_check
          %p760 = pneg %p171
        $region102: #{tpu_custom_call.1} parent=83 // pred_check_branch
          %762 = sbr.rel (%p760) target = $region104
        $region103: #{tpu_custom_call.1} parent=83 // pred_region
          %763 = dma.done [#allocation9], 256
        $region104: #{tpu_custom_call.1} parent=83 // pred_fallthru
          _
        // Predicated region
        $region105: #{tpu_custom_call.1} parent=83 // pred_check
          %p764 = pneg %p192
        $region106: #{tpu_custom_call.1} parent=83 // pred_check_branch
          %766 = sbr.rel (%p764) target = $region108
        $region107: #{tpu_custom_call.1} parent=83 // pred_region
          %767 = dma.done [#allocation12], 256
        $region108: #{tpu_custom_call.1} parent=83 // pred_fallthru
          _
        // Predicated region
        $region109: #{tpu_custom_call.1} parent=83 // pred_check
          %p768 = pneg %p213
        $region110: #{tpu_custom_call.1} parent=83 // pred_check_branch
          %770 = sbr.rel (%p768) target = $region112
        $region111: #{tpu_custom_call.1} parent=83 // pred_region
          %771 = dma.done [#allocation12], 256
        $region112: #{tpu_custom_call.1} parent=83 // pred_fallthru
          _
        // Predicated region
        $region113: #{tpu_custom_call.1} parent=83 // pred_check
          %p772 = pneg %p234
        $region114: #{tpu_custom_call.1} parent=83 // pred_check_branch
          %774 = sbr.rel (%p772) target = $region116
        $region115: #{tpu_custom_call.1} parent=83 // pred_region
          %775 = dma.done [#allocation15], 256
        $region116: #{tpu_custom_call.1} parent=83 // pred_fallthru
          _
        // Predicated region
        $region117: #{tpu_custom_call.1} parent=83 // pred_check
          %p776 = pneg %p255
        $region118: #{tpu_custom_call.1} parent=83 // pred_check_branch
          %778 = sbr.rel (%p776) target = $region120
        $region119: #{tpu_custom_call.1} parent=83 // pred_region
          %779 = dma.done [#allocation15], 256
        $region120: #{tpu_custom_call.1} parent=83 // pred_fallthru
          _
        // Predicated region
        $region121: #{tpu_custom_call.1} parent=83 // pred_check
          %p780 = pneg %p276
        $region122: #{tpu_custom_call.1} parent=83 // pred_check_branch
          %782 = sbr.rel (%p780) target = $region124
        $region123: #{tpu_custom_call.1} parent=83 // pred_region
          %783 = dma.done [#allocation18], 256
        $region124: #{tpu_custom_call.1} parent=83 // pred_fallthru
          _
        // Predicated region
        $region125: #{tpu_custom_call.1} parent=83 // pred_check
          %p784 = pneg %p297
        $region126: #{tpu_custom_call.1} parent=83 // pred_check_branch
          %786 = sbr.rel (%p784) target = $region128
        $region127: #{tpu_custom_call.1} parent=83 // pred_region
          %787 = dma.done [#allocation18], 256
        $region128: #{tpu_custom_call.1} parent=83 // pred_fallthru
          _
        // Predicated region
        $region129: #{tpu_custom_call.1} parent=83 // pred_check
          %p788 = pneg %p318
        $region130: #{tpu_custom_call.1} parent=83 // pred_check_branch
          %790 = sbr.rel (%p788) target = $region132
        $region131: #{tpu_custom_call.1} parent=83 // pred_region
          %791 = dma.done [#allocation21], 16
        $region132: #{tpu_custom_call.1} parent=83 // pred_fallthru
          _
        // Predicated region
        $region133: #{tpu_custom_call.1} parent=83 // pred_check
          %p792 = pneg %p339
        $region134: #{tpu_custom_call.1} parent=83 // pred_check_branch
          %794 = sbr.rel (%p792) target = $region136
        $region135: #{tpu_custom_call.1} parent=83 // pred_region
          %795 = dma.done [#allocation21], 16
        $region136: #{tpu_custom_call.1} parent=83 // pred_fallthru
          _
        // Predicated region
        $region137: #{tpu_custom_call.1} parent=83 // pred_check
          %p796 = pneg %p360
        $region138: #{tpu_custom_call.1} parent=83 // pred_check_branch
          %798 = sbr.rel (%p796) target = $region140
        $region139: #{tpu_custom_call.1} parent=83 // pred_region
          %799 = dma.done [#allocation24], 256
        $region140: #{tpu_custom_call.1} parent=83 // pred_fallthru
          _
        // Predicated region
        $region141: #{tpu_custom_call.1} parent=83 // pred_check
          %p800 = pneg %p381
        $region142: #{tpu_custom_call.1} parent=83 // pred_check_branch
          %802 = sbr.rel (%p800) target = $region144
        $region143: #{tpu_custom_call.1} parent=83 // pred_region
          %803 = dma.done [#allocation24], 16
        $region144: #{tpu_custom_call.1} parent=83 // pred_fallthru
          _
        // Predicated region
        $region145: #{tpu_custom_call.1} parent=83 // pred_check
          %p804 = pneg %p402
        $region146: #{tpu_custom_call.1} parent=83 // pred_check_branch
          %806 = sbr.rel (%p804) target = $region148
        $region147: #{tpu_custom_call.1} parent=83 // pred_region
          %807 = dma.done [#allocation27], 512
        $region148: #{tpu_custom_call.1} parent=83 // pred_fallthru
          _
        %s808 = sand.u32 %s59, 1
        %s809 = scalar_lea.sflag [#allocation3], %s808
        %s810 = sand.u32 %s59, 1
        %s811 = smul.addr %s810, 8
        %s812 = scalar_lea.vmem [#allocation2], %s811
        %p813 = pneg %p72
        %p814 = pneg %p69
        %s815 = sand.u32 %s51, 1
        %s816 = scalar_lea.sflag [#allocation6], %s815
        %s817 = sand.u32 %s85, 1
        %s818 = smul.addr %s817, 4
        %s819 = scalar_lea.vmem [#allocation5], %s818
        %p820 = pneg %p98
        %p821 = pneg %p95
        %s822 = sand.u32 %s51, 1
        %s823 = scalar_lea.sflag [#allocation6], %s822
        %s824 = sand.u32 %s111, 1
        %s825 = scalar_lea.vmem [#allocation7], %s824
        %p826 = pneg %p124
        %p827 = pneg %p121
        %s828 = sand.u32 %s51, 1
        %s829 = scalar_lea.sflag [#allocation9], %s828
        %s830 = sand.u32 %s137, 1
        %s831 = scalar_lea.vmem [#allocation8], %s830
        %p832 = pneg %p150
        %p833 = pneg %p147
        %p834 = pneg %p171
        %p835 = pneg %p168
        %p836 = pneg %p192
        %p837 = pneg %p189
        %p838 = pneg %p213
        %p839 = pneg %p210
        %p840 = pneg %p234
        %p841 = pneg %p231
        %p842 = pneg %p255
        %p843 = pneg %p252
        %p844 = pneg %p276
        %p845 = pneg %p273
        %p846 = pneg %p297
        %p847 = pneg %p294
        %p848 = pneg %p318
        %p849 = pneg %p315
        %p850 = pneg %p339
        %p851 = pneg %p336
        %p852 = pneg %p360
        %p853 = pneg %p357
        %p854 = pneg %p381
        %p855 = pneg %p378
        %p856 = pneg %p402
        %p857 = pneg %p399
        %p858 = pneg %p428
        %p859 = pneg %p425
        %s860 = sand.u32 %s415, 1
        %s861 = scalar_lea.sflag [#allocation4], %s860
        %s862 = sand.u32 %s415, 1
        %s863 = smul.addr %s862, 8
        %s864 = scalar_lea.vmem [#allocation28], %s863
        %p865 = pneg %p454
        %p866 = pneg %p451
        %s867 = sand.u32 %s51, 1
        %s868 = scalar_lea.sflag [#allocation30], %s867
        %s869 = sand.u32 %s441, 1
        %s870 = smul.addr %s869, 8
        %s871 = scalar_lea.vmem [#allocation29], %s870
        %p872 = pneg %p480
        %p873 = pneg %p477
        %s874 = sand.u32 %s51, 1
        %s875 = scalar_lea.sflag [#allocation30], %s874
        %s876 = sand.u32 %s467, 1
        %s877 = smul.addr %s876, 8
        %s878 = scalar_lea.vmem [#allocation31], %s877
        %v880 = vld [vmem:[%s730] sm:$0xff]
        %v881 = vld [vmem:[%s739] sm:$0xf]
        %v882 = vld [vmem:[#allocation19] sm:$0xff]
        %v883 = vld [vmem:[#allocation19 + $0x8] sm:$0x7]
        %v884 = vlaneseq
        %v885 = vshrl.u32 %v884, 7
        %v886 = vlaneseq
        %v887 = vand.u32 %v886, 127
        %vm888 = vcmp.gt.s32.totalorder %v887, %v885
        %v889 = vld [vmem:[%s747] sm:$0x1]
        %vm890 = vcmp.gt.f32.partialorder %v889, 0.5
        %v891 = vsel %vm890, 1, 0
        %v892 = vlaneseq
        %v893 = vshrl.u32 %v892, 7
        %v894 = vsub.s32 0, %v893
        %v895 = vrot.slane %v891, %v894
        %vm896 = vcmp.eq.s32.totalorder %v895, 1
        %vm897 = vmor %vm888, %vm896
        %v898 = vsel %vm897, -1e+18, 0.0
        %v899 = vld [vmem:[%s755] sm:$0x1]
        %vm900 = vcmp.gt.f32.partialorder %v899, 0.5
        %v901 = vsel %vm900, -1e+18, 0.0
        %v903 = vlaneseq
        %v904 = vshrl.u32 %v903, 7
        %v905 = vsub.s32 0, %v904
        %v906 = vrot.slane %v901, %v905
        %vm908 = vcmask 261120
        %v909 = vsel %vm908, %v880, 0.0
        %910 = vadd.xlane.f32.xlu0 %v909
        %v911 = vpop.xlane.xlu0 %910
        %v912 = vrcp.pop 32.0
        %v913 = vmul.f32 %v911, %v912
        %v914 = vsub.f32 %v880, %v913
        %v915 = vmul.f32 %v914, %v914
        %v916 = vsel %vm908, %v915, 0.0
        %917 = vadd.xlane.f32.xlu0 %v916
        %v918 = vpop.xlane.xlu0 %917
        %v919 = vrcp.pop 31.0
        %v920 = vmul.f32 %v918, %v919
        %v921 = vlaneseq
        %v922 = vshrl.u32 %v921, 7
        %v923 = vsub.s32 0, %v922
        %v924 = vrot.slane %v882, %v923
        %v925 = vmul.f32 %v924, %v914
        %v926 = vrsqrt.pop %v920
        %v927 = vmul.f32 %v920, %v926
        %vm928 = vcmp.eq.f32.partialorder %v920, inf
        %v929 = vsel %vm928, %v920, %v927
        %vm930 = vcmp.eq.f32.partialorder %v920, 0.0
        %v931 = vand.u32 %v920, 2147483648
        %v932 = vsel %vm930, %v931, %v929
        %v933 = vadd.f32 %v932, 1e-06
        %v934 = vrcp.pop %v933
        %v935 = vmul.f32 %v925, %v934
        %v936 = vlaneseq
        %v937 = vshrl.u32 %v936, 7
        %v938 = vsub.s32 1, %v937
        %v939 = vrot.slane %v882, %v938
        %v940 = vadd.f32 %v935, %v939
        %941 = vst.msk [vmem:[%s878] sm:$0xff] %vm908, %v940
        %v942 = vpack.c.bf16 %v940, %v940
        %v943 = vld [vmem:[#allocation10] sm:$0xf]
        %v944 = vld [vmem:[#allocation10 + $0x4] sm:$0xf]
        %v945 = vld [vmem:[#allocation10 + $0x8] sm:$0xf]
        %v946 = vld [vmem:[#allocation10 + $0xc] sm:$0xf]
        %v947 = vld [vmem:[#allocation11] sm:$0xf]
        %v948 = vld [vmem:[#allocation11 + $0x4] sm:$0xf]
        %v949 = vld [vmem:[#allocation11 + $0x8] sm:$0xf]
        %v950 = vld [vmem:[#allocation11 + $0xc] sm:$0xf]
        %v951 = vld [vmem:[#allocation20] sm:$0x1]
        %v952 = vld [vmem:[#allocation13] sm:$0xf]
        %v953 = vld [vmem:[#allocation13 + $0x4] sm:$0xf]
        %v954 = vld [vmem:[#allocation13 + $0x8] sm:$0xf]
        %v955 = vld [vmem:[#allocation13 + $0xc] sm:$0xf]
        %v956 = vlaneseq
        %v957 = vshrl.u32 %v956, 7
        %v958 = vsub.s32 6, %v957
        %v959 = vrot.slane %v882, %v958
        %v964 = vunpack.c.l.b16 %v943
        %v965 = vunpack.c.l.b16 %v944
        %v966 = vunpack.c.l.b16 %v945
        %v967 = vunpack.c.l.b16 %v946
        %v968 = vpack.c.b16 %v965, %v964
        %v969 = vpack.c.b16 %v967, %v966
        %v973 = vsel %vm908, %v942, 0
        %975 = vmatprep.subr.bf16.mxu0 0
        %976 = vmatpush1.bf16.msra.mxu0 %v968
        %977 = vmatprep.subr.bf16.mxu0 0
        %978 = vmatpush1.bf16.msra.mxu0 %v969
        %979 = vmatprep.subr.bf16.mxu0 0
        %980 = vmatpush1.bf16.msra.mxu0 0
        %981 = vmatprep.subr.bf16.mxu0 0
        %982 = vmatpush1.bf16.msra.mxu0 0
        %983 = vmatprep.subr.bf16.mxu0 0
        %984 = vmatpush1.bf16.msra.mxu0 0
        %985 = vmatprep.subr.bf16.mxu0 0
        %986 = vmatpush1.bf16.msra.mxu0 0
        %987 = vmatprep.subr.bf16.mxu0 0
        %988 = vmatpush1.bf16.msra.mxu0 0
        %989 = vmatprep.subr.bf16.mxu0 0
        %990 = vmatpush1.bf16.msra.mxu0 0
        %991 = vmatprep.subr.bf16.mxu0 0
        %992 = vmatpush1.bf16.msra.mxu0 0
        %993 = vmatprep.subr.bf16.mxu0 0
        %994 = vmatpush1.bf16.msra.mxu0 0
        %995 = vmatprep.subr.bf16.mxu0 0
        %996 = vmatpush1.bf16.msra.mxu0 0
        %997 = vmatprep.subr.bf16.mxu0 0
        %998 = vmatpush1.bf16.msra.mxu0 0
        %999 = vmatprep.subr.bf16.mxu0 0
        %1000 = vmatpush1.bf16.msra.mxu0 0
        %1001 = vmatprep.subr.bf16.mxu0 0
        %1002 = vmatpush1.bf16.msra.mxu0 0
        %1003 = vmatprep.subr.bf16.mxu0 0
        %1004 = vmatpush1.bf16.msra.mxu0 0
        %1005 = vmatprep.subr.bf16.mxu0 0
        %1006 = vmatpush1.bf16.msra.mxu0 0
        %1007 = vmatprep.mubr.bf16.mxu0 0
        %1008 = vmatmul.mubr.bf16.gmra.mrb[0].mxu0 %v973
        %v1009 = vpop.f32.mrb[0].mxu0
        %v1010 = vadd.f32 %v959, %v1009
        %v1011 = vpop.f32.mrb[0].mxu0
        %v1012 = vpop.f32.mrb[0].mxu0
        %v1013 = vpop.f32.mrb[0].mxu0
        %1014 = vdwg.mxu0
        %v1016 = vlaneseq
        %v1017 = vshrl.u32 %v1016, 7
        %v1018 = vsub.s32 0, %v1017
        %v1019 = vrot.slane %v951, %v1018
        %v1025 = vunpack.c.l.b16 %v947
        %v1026 = vunpack.c.l.b16 %v948
        %v1027 = vunpack.c.l.b16 %v949
        %v1028 = vunpack.c.l.b16 %v950
        %v1029 = vpack.c.b16 %v1026, %v1025
        %v1030 = vpack.c.b16 %v1028, %v1027
        %1033 = vmatprep.subr.bf16.mxu0 0
        %1034 = vmatpush1.bf16.msra.mxu0 %v1029
        %1035 = vmatprep.subr.bf16.mxu0 0
        %1036 = vmatpush1.bf16.msra.mxu0 %v1030
        %1037 = vmatprep.subr.bf16.mxu0 0
        %1038 = vmatpush1.bf16.msra.mxu0 0
        %1039 = vmatprep.subr.bf16.mxu0 0
        %1040 = vmatpush1.bf16.msra.mxu0 0
        %1041 = vmatprep.subr.bf16.mxu0 0
        %1042 = vmatpush1.bf16.msra.mxu0 0
        %1043 = vmatprep.subr.bf16.mxu0 0
        %1044 = vmatpush1.bf16.msra.mxu0 0
        %1045 = vmatprep.subr.bf16.mxu0 0
        %1046 = vmatpush1.bf16.msra.mxu0 0
        %1047 = vmatprep.subr.bf16.mxu0 0
        %1048 = vmatpush1.bf16.msra.mxu0 0
        %1049 = vmatprep.subr.bf16.mxu0 0
        %1050 = vmatpush1.bf16.msra.mxu0 0
        %1051 = vmatprep.subr.bf16.mxu0 0
        %1052 = vmatpush1.bf16.msra.mxu0 0
        %1053 = vmatprep.subr.bf16.mxu0 0
        %1054 = vmatpush1.bf16.msra.mxu0 0
        %1055 = vmatprep.subr.bf16.mxu0 0
        %1056 = vmatpush1.bf16.msra.mxu0 0
        %1057 = vmatprep.subr.bf16.mxu0 0
        %1058 = vmatpush1.bf16.msra.mxu0 0
        %1059 = vmatprep.subr.bf16.mxu0 0
        %1060 = vmatpush1.bf16.msra.mxu0 0
        %1061 = vmatprep.subr.bf16.mxu0 0
        %1062 = vmatpush1.bf16.msra.mxu0 0
        %1063 = vmatprep.subr.bf16.mxu0 0
        %1064 = vmatpush1.bf16.msra.mxu0 0
        %1065 = vmatprep.mubr.bf16.mxu0 0
        %1066 = vmatmul.mubr.bf16.gmra.mrb[0].mxu0 %v973
        %v1067 = vpop.f32.mrb[0].mxu0
        %v1068 = vadd.f32 %v1019, %v1067
        %v1069 = vpop.f32.mrb[0].mxu0
        %v1070 = vpop.f32.mrb[0].mxu0
        %v1071 = vpop.f32.mrb[0].mxu0
        %1072 = vdwg.mxu0
        %v1073 = vpack.c.bf16 %v1010, %v1010
        %v1074 = vpack.c.bf16 %v1068, %v1068
        %vm1075 = vcmask 64512
        %v1077 = vsel %vm1075, %v1073, 0
        %v1080 = vsel %vm1075, %v1074, 0
        %1082 = vmatprep.subr.bf16.mxu0 0
        %1083 = vmatpush1.bf16.xpose.msra.mxu0 %v1080
        %1084 = vmatprep.subr.bf16.mxu0 0
        %1085 = vmatpush1.bf16.xpose.msra.mxu0 0
        %1086 = vmatprep.subr.bf16.mxu0 0
        %1087 = vmatpush1.bf16.xpose.msra.mxu0 0
        %1088 = vmatprep.subr.bf16.mxu0 0
        %1089 = vmatpush1.bf16.xpose.msra.mxu0 0
        %1090 = vmatprep.subr.bf16.mxu0 0
        %1091 = vmatpush1.bf16.xpose.msra.mxu0 0
        %1092 = vmatprep.subr.bf16.mxu0 0
        %1093 = vmatpush1.bf16.xpose.msra.mxu0 0
        %1094 = vmatprep.subr.bf16.mxu0 0
        %1095 = vmatpush1.bf16.xpose.msra.mxu0 0
        %1096 = vmatprep.subr.bf16.mxu0 0
        %1097 = vmatpush1.bf16.xpose.msra.mxu0 0
        %1098 = vmatprep.subr.bf16.mxu0 0
        %1099 = vmatpush1.bf16.xpose.msra.mxu0 0
        %1100 = vmatprep.subr.bf16.mxu0 0
        %1101 = vmatpush1.bf16.xpose.msra.mxu0 0
        %1102 = vmatprep.subr.bf16.mxu0 0
        %1103 = vmatpush1.bf16.xpose.msra.mxu0 0
        %1104 = vmatprep.subr.bf16.mxu0 0
        %1105 = vmatpush1.bf16.xpose.msra.mxu0 0
        %1106 = vmatprep.subr.bf16.mxu0 0
        %1107 = vmatpush1.bf16.xpose.msra.mxu0 0
        %1108 = vmatprep.subr.bf16.mxu0 0
        %1109 = vmatpush1.bf16.xpose.msra.mxu0 0
        %1110 = vmatprep.subr.bf16.mxu0 0
        %1111 = vmatpush1.bf16.xpose.msra.mxu0 0
        %1112 = vmatprep.subr.bf16.mxu0 0
        %1113 = vmatpush1.bf16.xpose.msra.mxu0 0
        %1114 = vmatprep.mubr.bf16.mxu0 0
        %1115 = vmatmul.mubr.bf16.gmra.mrb[0].mxu0 %v1077
        %v1116 = vpop.f32.mrb[0].mxu0
        %v1117 = vadd.f32 %v898, %v1116
        %v1118 = vpop.f32.mrb[0].mxu0
        %v1119 = vpop.f32.mrb[0].mxu0
        %v1120 = vpop.f32.mrb[0].mxu0
        %1121 = vdwg.mxu0
        %v1122 = vsel %vm1075, %v1117, -inf
        %1123 = vmax.xlane.f32.xlu0 %v1122
        %v1124 = vpop.xlane.xlu0 %1123
        %v1125 = vsub.f32 %v1117, %v1124
        %v1126 = vmul.f32 %v1125, 1.442695
        %v1127 = vpow.pop %v1126
        %v1128 = vsel %vm1075, %v1127, 0.0
        %1129 = vadd.xlane.f32.xlu0 %v1128
        %v1130 = vpop.xlane.xlu0 %1129
        %v1131 = vrcp.pop %v1130
        %v1132 = vmul.f32 %v1127, %v1131
        %v1133 = vpack.c.bf16 %v1132, %v1132
        %1135 = vrot.lane.b32.xlu0 %v1074, 96
        %v1136 = vpop.permute.xlu0 %1135
        %v1138 = vsel %vm1075, %v1133, 0
        %vm1140 = vcmask 1043456
        %v1142 = vsel %vm1140, %v1136, 0
        %1144 = vmatprep.subr.bf16.mxu0 0
        %1145 = vmatpush1.bf16.msra.mxu0 %v1142
        %1146 = vmatprep.subr.bf16.mxu0 0
        %1147 = vmatpush1.bf16.msra.mxu0 0
        %1148 = vmatprep.subr.bf16.mxu0 0
        %1149 = vmatpush1.bf16.msra.mxu0 0
        %1150 = vmatprep.subr.bf16.mxu0 0
        %1151 = vmatpush1.bf16.msra.mxu0 0
        %1152 = vmatprep.subr.bf16.mxu0 0
        %1153 = vmatpush1.bf16.msra.mxu0 0
        %1154 = vmatprep.subr.bf16.mxu0 0
        %1155 = vmatpush1.bf16.msra.mxu0 0
        %1156 = vmatprep.subr.bf16.mxu0 0
        %1157 = vmatpush1.bf16.msra.mxu0 0
        %1158 = vmatprep.subr.bf16.mxu0 0
        %1159 = vmatpush1.bf16.msra.mxu0 0
        %1160 = vmatprep.subr.bf16.mxu0 0
        %1161 = vmatpush1.bf16.msra.mxu0 0
        %1162 = vmatprep.subr.bf16.mxu0 0
        %1163 = vmatpush1.bf16.msra.mxu0 0
        %1164 = vmatprep.subr.bf16.mxu0 0
        %1165 = vmatpush1.bf16.msra.mxu0 0
        %1166 = vmatprep.subr.bf16.mxu0 0
        %1167 = vmatpush1.bf16.msra.mxu0 0
        %1168 = vmatprep.subr.bf16.mxu0 0
        %1169 = vmatpush1.bf16.msra.mxu0 0
        %1170 = vmatprep.subr.bf16.mxu0 0
        %1171 = vmatpush1.bf16.msra.mxu0 0
        %1172 = vmatprep.subr.bf16.mxu0 0
        %1173 = vmatpush1.bf16.msra.mxu0 0
        %1174 = vmatprep.subr.bf16.mxu0 0
        %1175 = vmatpush1.bf16.msra.mxu0 0
        %1176 = vmatprep.mubr.bf16.mxu0 0
        %1177 = vmatmul.mubr.bf16.gmra.mrb[0].mxu0 %v1138
        %v1178 = vpop.f32.mrb[0].mxu0
        %v1179 = vadd.f32 0.0, %v1178
        %v1180 = vpop.f32.mrb[0].mxu0
        %v1181 = vpop.f32.mrb[0].mxu0
        %v1182 = vpop.f32.mrb[0].mxu0
        %1183 = vdwg.mxu0
        %1185 = vrot.lane.b32.xlu0 %v1073, 120
        %v1186 = vpop.permute.xlu0 %1185
        %1187 = vrot.lane.b32.xlu0 %v1074, 120
        %v1188 = vpop.permute.xlu0 %1187
        %v1190 = vsel %vm1075, %v1186, 0
        %v1193 = vsel %vm1075, %v1188, 0
        %1195 = vmatprep.subr.bf16.mxu0 0
        %1196 = vmatpush1.bf16.xpose.msra.mxu0 %v1193
        %1197 = vmatprep.subr.bf16.mxu0 0
        %1198 = vmatpush1.bf16.xpose.msra.mxu0 0
        %1199 = vmatprep.subr.bf16.mxu0 0
        %1200 = vmatpush1.bf16.xpose.msra.mxu0 0
        %1201 = vmatprep.subr.bf16.mxu0 0
        %1202 = vmatpush1.bf16.xpose.msra.mxu0 0
        %1203 = vmatprep.subr.bf16.mxu0 0
        %1204 = vmatpush1.bf16.xpose.msra.mxu0 0
        %1205 = vmatprep.subr.bf16.mxu0 0
        %1206 = vmatpush1.bf16.xpose.msra.mxu0 0
        %1207 = vmatprep.subr.bf16.mxu0 0
        %1208 = vmatpush1.bf16.xpose.msra.mxu0 0
        %1209 = vmatprep.subr.bf16.mxu0 0
        %1210 = vmatpush1.bf16.xpose.msra.mxu0 0
        %1211 = vmatprep.subr.bf16.mxu0 0
        %1212 = vmatpush1.bf16.xpose.msra.mxu0 0
        %1213 = vmatprep.subr.bf16.mxu0 0
        %1214 = vmatpush1.bf16.xpose.msra.mxu0 0
        %1215 = vmatprep.subr.bf16.mxu0 0
        %1216 = vmatpush1.bf16.xpose.msra.mxu0 0
        %1217 = vmatprep.subr.bf16.mxu0 0
        %1218 = vmatpush1.bf16.xpose.msra.mxu0 0
        %1219 = vmatprep.subr.bf16.mxu0 0
        %1220 = vmatpush1.bf16.xpose.msra.mxu0 0
        %1221 = vmatprep.subr.bf16.mxu0 0
        %1222 = vmatpush1.bf16.xpose.msra.mxu0 0
        %1223 = vmatprep.subr.bf16.mxu0 0
        %1224 = vmatpush1.bf16.xpose.msra.mxu0 0
        %1225 = vmatprep.subr.bf16.mxu0 0
        %1226 = vmatpush1.bf16.xpose.msra.mxu0 0
        %1227 = vmatprep.mubr.bf16.mxu0 0
        %1228 = vmatmul.mubr.bf16.gmra.mrb[0].mxu0 %v1190
        %v1229 = vpop.f32.mrb[0].mxu0
        %v1230 = vadd.f32 %v898, %v1229
        %v1231 = vpop.f32.mrb[0].mxu0
        %v1232 = vpop.f32.mrb[0].mxu0
        %v1233 = vpop.f32.mrb[0].mxu0
        %1234 = vdwg.mxu0
        %v1235 = vsel %vm1075, %v1230, -inf
        %1236 = vmax.xlane.f32.xlu0 %v1235
        %v1237 = vpop.xlane.xlu0 %1236
        %v1238 = vsub.f32 %v1230, %v1237
        %v1239 = vmul.f32 %v1238, 1.442695
        %v1240 = vpow.pop %v1239
        %v1241 = vsel %vm1075, %v1240, 0.0
        %1242 = vadd.xlane.f32.xlu0 %v1241
        %v1243 = vpop.xlane.xlu0 %1242
        %v1244 = vrcp.pop %v1243
        %v1245 = vmul.f32 %v1240, %v1244
        %v1246 = vpack.c.bf16 %v1245, %v1245
        %1247 = vrot.lane.b32.xlu0 %v1074, 88
        %v1248 = vpop.permute.xlu0 %1247
        %v1250 = vsel %vm1075, %v1246, 0
        %v1253 = vsel %vm1140, %v1248, 0
        %1255 = vmatprep.subr.bf16.mxu0 0
        %1256 = vmatpush1.bf16.msra.mxu0 %v1253
        %1257 = vmatprep.subr.bf16.mxu0 0
        %1258 = vmatpush1.bf16.msra.mxu0 0
        %1259 = vmatprep.subr.bf16.mxu0 0
        %1260 = vmatpush1.bf16.msra.mxu0 0
        %1261 = vmatprep.subr.bf16.mxu0 0
        %1262 = vmatpush1.bf16.msra.mxu0 0
        %1263 = vmatprep.subr.bf16.mxu0 0
        %1264 = vmatpush1.bf16.msra.mxu0 0
        %1265 = vmatprep.subr.bf16.mxu0 0
        %1266 = vmatpush1.bf16.msra.mxu0 0
        %1267 = vmatprep.subr.bf16.mxu0 0
        %1268 = vmatpush1.bf16.msra.mxu0 0
        %1269 = vmatprep.subr.bf16.mxu0 0
        %1270 = vmatpush1.bf16.msra.mxu0 0
        %1271 = vmatprep.subr.bf16.mxu0 0
        %1272 = vmatpush1.bf16.msra.mxu0 0
        %1273 = vmatprep.subr.bf16.mxu0 0
        %1274 = vmatpush1.bf16.msra.mxu0 0
        %1275 = vmatprep.subr.bf16.mxu0 0
        %1276 = vmatpush1.bf16.msra.mxu0 0
        %1277 = vmatprep.subr.bf16.mxu0 0
        %1278 = vmatpush1.bf16.msra.mxu0 0
        %1279 = vmatprep.subr.bf16.mxu0 0
        %1280 = vmatpush1.bf16.msra.mxu0 0
        %1281 = vmatprep.subr.bf16.mxu0 0
        %1282 = vmatpush1.bf16.msra.mxu0 0
        %1283 = vmatprep.subr.bf16.mxu0 0
        %1284 = vmatpush1.bf16.msra.mxu0 0
        %1285 = vmatprep.subr.bf16.mxu0 0
        %1286 = vmatpush1.bf16.msra.mxu0 0
        %1287 = vmatprep.mubr.bf16.mxu0 0
        %1288 = vmatmul.mubr.bf16.gmra.mrb[0].mxu0 %v1250
        %v1289 = vpop.f32.mrb[0].mxu0
        %v1290 = vadd.f32 0.0, %v1289
        %v1291 = vpop.f32.mrb[0].mxu0
        %v1292 = vpop.f32.mrb[0].mxu0
        %v1293 = vpop.f32.mrb[0].mxu0
        %1294 = vdwg.mxu0
        %1295 = vrot.lane.b32.xlu0 %v1073, 112
        %v1296 = vpop.permute.xlu0 %1295
        %1297 = vrot.lane.b32.xlu0 %v1074, 112
        %v1298 = vpop.permute.xlu0 %1297
        %v1300 = vsel %vm1075, %v1296, 0
        %v1303 = vsel %vm1075, %v1298, 0
        %1305 = vmatprep.subr.bf16.mxu0 0
        %1306 = vmatpush1.bf16.xpose.msra.mxu0 %v1303
        %1307 = vmatprep.subr.bf16.mxu0 0
        %1308 = vmatpush1.bf16.xpose.msra.mxu0 0
        %1309 = vmatprep.subr.bf16.mxu0 0
        %1310 = vmatpush1.bf16.xpose.msra.mxu0 0
        %1311 = vmatprep.subr.bf16.mxu0 0
        %1312 = vmatpush1.bf16.xpose.msra.mxu0 0
        %1313 = vmatprep.subr.bf16.mxu0 0
        %1314 = vmatpush1.bf16.xpose.msra.mxu0 0
        %1315 = vmatprep.subr.bf16.mxu0 0
        %1316 = vmatpush1.bf16.xpose.msra.mxu0 0
        %1317 = vmatprep.subr.bf16.mxu0 0
        %1318 = vmatpush1.bf16.xpose.msra.mxu0 0
        %1319 = vmatprep.subr.bf16.mxu0 0
        %1320 = vmatpush1.bf16.xpose.msra.mxu0 0
        %1321 = vmatprep.subr.bf16.mxu0 0
        %1322 = vmatpush1.bf16.xpose.msra.mxu0 0
        %1323 = vmatprep.subr.bf16.mxu0 0
        %1324 = vmatpush1.bf16.xpose.msra.mxu0 0
        %1325 = vmatprep.subr.bf16.mxu0 0
        %1326 = vmatpush1.bf16.xpose.msra.mxu0 0
        %1327 = vmatprep.subr.bf16.mxu0 0
        %1328 = vmatpush1.bf16.xpose.msra.mxu0 0
        %1329 = vmatprep.subr.bf16.mxu0 0
        %1330 = vmatpush1.bf16.xpose.msra.mxu0 0
        %1331 = vmatprep.subr.bf16.mxu0 0
        %1332 = vmatpush1.bf16.xpose.msra.mxu0 0
        %1333 = vmatprep.subr.bf16.mxu0 0
        %1334 = vmatpush1.bf16.xpose.msra.mxu0 0
        %1335 = vmatprep.subr.bf16.mxu0 0
        %1336 = vmatpush1.bf16.xpose.msra.mxu0 0
        %1337 = vmatprep.mubr.bf16.mxu0 0
        %1338 = vmatmul.mubr.bf16.gmra.mrb[0].mxu0 %v1300
        %v1339 = vpop.f32.mrb[0].mxu0
        %v1340 = vadd.f32 %v898, %v1339
        %v1341 = vpop.f32.mrb[0].mxu0
        %v1342 = vpop.f32.mrb[0].mxu0
        %v1343 = vpop.f32.mrb[0].mxu0
        %1344 = vdwg.mxu0
        %v1345 = vsel %vm1075, %v1340, -inf
        %1346 = vmax.xlane.f32.xlu0 %v1345
        %v1347 = vpop.xlane.xlu0 %1346
        %v1348 = vsub.f32 %v1340, %v1347
        %v1349 = vmul.f32 %v1348, 1.442695
        %v1350 = vpow.pop %v1349
        %v1351 = vsel %vm1075, %v1350, 0.0
        %1352 = vadd.xlane.f32.xlu0 %v1351
        %v1353 = vpop.xlane.xlu0 %1352
        %v1354 = vrcp.pop %v1353
        %v1355 = vmul.f32 %v1350, %v1354
        %v1356 = vpack.c.bf16 %v1355, %v1355
        %1357 = vrot.lane.b32.xlu0 %v1074, 80
        %v1358 = vpop.permute.xlu0 %1357
        %v1360 = vsel %vm1075, %v1356, 0
        %v1363 = vsel %vm1140, %v1358, 0
        %1365 = vmatprep.subr.bf16.mxu0 0
        %1366 = vmatpush1.bf16.msra.mxu0 %v1363
        %1367 = vmatprep.subr.bf16.mxu0 0
        %1368 = vmatpush1.bf16.msra.mxu0 0
        %1369 = vmatprep.subr.bf16.mxu0 0
        %1370 = vmatpush1.bf16.msra.mxu0 0
        %1371 = vmatprep.subr.bf16.mxu0 0
        %1372 = vmatpush1.bf16.msra.mxu0 0
        %1373 = vmatprep.subr.bf16.mxu0 0
        %1374 = vmatpush1.bf16.msra.mxu0 0
        %1375 = vmatprep.subr.bf16.mxu0 0
        %1376 = vmatpush1.bf16.msra.mxu0 0
        %1377 = vmatprep.subr.bf16.mxu0 0
        %1378 = vmatpush1.bf16.msra.mxu0 0
        %1379 = vmatprep.subr.bf16.mxu0 0
        %1380 = vmatpush1.bf16.msra.mxu0 0
        %1381 = vmatprep.subr.bf16.mxu0 0
        %1382 = vmatpush1.bf16.msra.mxu0 0
        %1383 = vmatprep.subr.bf16.mxu0 0
        %1384 = vmatpush1.bf16.msra.mxu0 0
        %1385 = vmatprep.subr.bf16.mxu0 0
        %1386 = vmatpush1.bf16.msra.mxu0 0
        %1387 = vmatprep.subr.bf16.mxu0 0
        %1388 = vmatpush1.bf16.msra.mxu0 0
        %1389 = vmatprep.subr.bf16.mxu0 0
        %1390 = vmatpush1.bf16.msra.mxu0 0
        %1391 = vmatprep.subr.bf16.mxu0 0
        %1392 = vmatpush1.bf16.msra.mxu0 0
        %1393 = vmatprep.subr.bf16.mxu0 0
        %1394 = vmatpush1.bf16.msra.mxu0 0
        %1395 = vmatprep.subr.bf16.mxu0 0
        %1396 = vmatpush1.bf16.msra.mxu0 0
        %1397 = vmatprep.mubr.bf16.mxu0 0
        %1398 = vmatmul.mubr.bf16.gmra.mrb[0].mxu0 %v1360
        %v1399 = vpop.f32.mrb[0].mxu0
        %v1400 = vadd.f32 0.0, %v1399
        %v1401 = vpop.f32.mrb[0].mxu0
        %v1402 = vpop.f32.mrb[0].mxu0
        %v1403 = vpop.f32.mrb[0].mxu0
        %1404 = vdwg.mxu0
        %1405 = vrot.lane.b32.xlu0 %v1073, 104
        %v1406 = vpop.permute.xlu0 %1405
        %1407 = vrot.lane.b32.xlu0 %v1074, 104
        %v1408 = vpop.permute.xlu0 %1407
        %v1410 = vsel %vm1075, %v1406, 0
        %v1413 = vsel %vm1075, %v1408, 0
        %1415 = vmatprep.subr.bf16.mxu0 0
        %1416 = vmatpush1.bf16.xpose.msra.mxu0 %v1413
        %1417 = vmatprep.subr.bf16.mxu0 0
        %1418 = vmatpush1.bf16.xpose.msra.mxu0 0
        %1419 = vmatprep.subr.bf16.mxu0 0
        %1420 = vmatpush1.bf16.xpose.msra.mxu0 0
        %1421 = vmatprep.subr.bf16.mxu0 0
        %1422 = vmatpush1.bf16.xpose.msra.mxu0 0
        %1423 = vmatprep.subr.bf16.mxu0 0
        %1424 = vmatpush1.bf16.xpose.msra.mxu0 0
        %1425 = vmatprep.subr.bf16.mxu0 0
        %1426 = vmatpush1.bf16.xpose.msra.mxu0 0
        %1427 = vmatprep.subr.bf16.mxu0 0
        %1428 = vmatpush1.bf16.xpose.msra.mxu0 0
        %1429 = vmatprep.subr.bf16.mxu0 0
        %1430 = vmatpush1.bf16.xpose.msra.mxu0 0
        %1431 = vmatprep.subr.bf16.mxu0 0
        %1432 = vmatpush1.bf16.xpose.msra.mxu0 0
        %1433 = vmatprep.subr.bf16.mxu0 0
        %1434 = vmatpush1.bf16.xpose.msra.mxu0 0
        %1435 = vmatprep.subr.bf16.mxu0 0
        %1436 = vmatpush1.bf16.xpose.msra.mxu0 0
        %1437 = vmatprep.subr.bf16.mxu0 0
        %1438 = vmatpush1.bf16.xpose.msra.mxu0 0
        %1439 = vmatprep.subr.bf16.mxu0 0
        %1440 = vmatpush1.bf16.xpose.msra.mxu0 0
        %1441 = vmatprep.subr.bf16.mxu0 0
        %1442 = vmatpush1.bf16.xpose.msra.mxu0 0
        %1443 = vmatprep.subr.bf16.mxu0 0
        %1444 = vmatpush1.bf16.xpose.msra.mxu0 0
        %1445 = vmatprep.subr.bf16.mxu0 0
        %1446 = vmatpush1.bf16.xpose.msra.mxu0 0
        %1447 = vmatprep.mubr.bf16.mxu0 0
        %1448 = vmatmul.mubr.bf16.gmra.mrb[0].mxu0 %v1410
        %v1449 = vpop.f32.mrb[0].mxu0
        %v1450 = vadd.f32 %v898, %v1449
        %v1451 = vpop.f32.mrb[0].mxu0
        %v1452 = vpop.f32.mrb[0].mxu0
        %v1453 = vpop.f32.mrb[0].mxu0
        %1454 = vdwg.mxu0
        %v1455 = vsel %vm1075, %v1450, -inf
        %1456 = vmax.xlane.f32.xlu0 %v1455
        %v1457 = vpop.xlane.xlu0 %1456
        %v1458 = vsub.f32 %v1450, %v1457
        %v1459 = vmul.f32 %v1458, 1.442695
        %v1460 = vpow.pop %v1459
        %v1461 = vsel %vm1075, %v1460, 0.0
        %1462 = vadd.xlane.f32.xlu0 %v1461
        %v1463 = vpop.xlane.xlu0 %1462
        %v1464 = vrcp.pop %v1463
        %v1465 = vmul.f32 %v1460, %v1464
        %v1466 = vpack.c.bf16 %v1465, %v1465
        %1467 = vrot.lane.b32.xlu0 %v1074, 72
        %v1468 = vpop.permute.xlu0 %1467
        %v1470 = vsel %vm1075, %v1466, 0
        %v1473 = vsel %vm1140, %v1468, 0
        %1475 = vmatprep.subr.bf16.mxu0 0
        %1476 = vmatpush1.bf16.msra.mxu0 %v1473
        %1477 = vmatprep.subr.bf16.mxu0 0
        %1478 = vmatpush1.bf16.msra.mxu0 0
        %1479 = vmatprep.subr.bf16.mxu0 0
        %1480 = vmatpush1.bf16.msra.mxu0 0
        %1481 = vmatprep.subr.bf16.mxu0 0
        %1482 = vmatpush1.bf16.msra.mxu0 0
        %1483 = vmatprep.subr.bf16.mxu0 0
        %1484 = vmatpush1.bf16.msra.mxu0 0
        %1485 = vmatprep.subr.bf16.mxu0 0
        %1486 = vmatpush1.bf16.msra.mxu0 0
        %1487 = vmatprep.subr.bf16.mxu0 0
        %1488 = vmatpush1.bf16.msra.mxu0 0
        %1489 = vmatprep.subr.bf16.mxu0 0
        %1490 = vmatpush1.bf16.msra.mxu0 0
        %1491 = vmatprep.subr.bf16.mxu0 0
        %1492 = vmatpush1.bf16.msra.mxu0 0
        %1493 = vmatprep.subr.bf16.mxu0 0
        %1494 = vmatpush1.bf16.msra.mxu0 0
        %1495 = vmatprep.subr.bf16.mxu0 0
        %1496 = vmatpush1.bf16.msra.mxu0 0
        %1497 = vmatprep.subr.bf16.mxu0 0
        %1498 = vmatpush1.bf16.msra.mxu0 0
        %1499 = vmatprep.subr.bf16.mxu0 0
        %1500 = vmatpush1.bf16.msra.mxu0 0
        %1501 = vmatprep.subr.bf16.mxu0 0
        %1502 = vmatpush1.bf16.msra.mxu0 0
        %1503 = vmatprep.subr.bf16.mxu0 0
        %1504 = vmatpush1.bf16.msra.mxu0 0
        %1505 = vmatprep.subr.bf16.mxu0 0
        %1506 = vmatpush1.bf16.msra.mxu0 0
        %1507 = vmatprep.mubr.bf16.mxu0 0
        %1508 = vmatmul.mubr.bf16.gmra.mrb[0].mxu0 %v1470
        %v1509 = vpop.f32.mrb[0].mxu0
        %v1510 = vadd.f32 0.0, %v1509
        %v1511 = vpop.f32.mrb[0].mxu0
        %v1512 = vpop.f32.mrb[0].mxu0
        %v1513 = vpop.f32.mrb[0].mxu0
        %1514 = vdwg.mxu0
        %1516 = vrot.lane.b32.xlu0 %v1290, 8
        %v1517 = vpop.permute.xlu0 %1516
        %1520 = vrot.lane.b32.xlu0 %v1400, 16
        %v1521 = vpop.permute.xlu0 %1520
        %1524 = vrot.lane.b32.xlu0 %v1510, 24
        %v1525 = vpop.permute.xlu0 %1524
        %v1527 = vsel %vm1075, %v1179, %v1517
        %vm1528 = vcmask 130048
        %v1529 = vsel %vm1528, %v1527, %v1521
        %vm1530 = vcmask 195584
        %v1531 = vsel %vm1530, %v1529, %v1525
        %v1532 = vpack.c.bf16 %v1531, %v1531
        %v1533 = vlaneseq
        %v1534 = vshrl.u32 %v1533, 7
        %v1535 = vsub.s32 7, %v1534
        %v1536 = vrot.slane %v882, %v1535
        %v1541 = vunpack.c.l.b16 %v952
        %v1542 = vunpack.c.l.b16 %v953
        %v1543 = vunpack.c.l.b16 %v954
        %v1544 = vunpack.c.l.b16 %v955
        %v1545 = vpack.c.b16 %v1542, %v1541
        %v1546 = vpack.c.b16 %v1544, %v1543
        %v1550 = vsel %vm908, %v1532, 0
        %1552 = vmatprep.subr.bf16.mxu0 0
        %1553 = vmatpush1.bf16.msra.mxu0 %v1545
        %1554 = vmatprep.subr.bf16.mxu0 0
        %1555 = vmatpush1.bf16.msra.mxu0 %v1546
        %1556 = vmatprep.subr.bf16.mxu0 0
        %1557 = vmatpush1.bf16.msra.mxu0 0
        %1558 = vmatprep.subr.bf16.mxu0 0
        %1559 = vmatpush1.bf16.msra.mxu0 0
        %1560 = vmatprep.subr.bf16.mxu0 0
        %1561 = vmatpush1.bf16.msra.mxu0 0
        %1562 = vmatprep.subr.bf16.mxu0 0
        %1563 = vmatpush1.bf16.msra.mxu0 0
        %1564 = vmatprep.subr.bf16.mxu0 0
        %1565 = vmatpush1.bf16.msra.mxu0 0
        %1566 = vmatprep.subr.bf16.mxu0 0
        %1567 = vmatpush1.bf16.msra.mxu0 0
        %1568 = vmatprep.subr.bf16.mxu0 0
        %1569 = vmatpush1.bf16.msra.mxu0 0
        %1570 = vmatprep.subr.bf16.mxu0 0
        %1571 = vmatpush1.bf16.msra.mxu0 0
        %1572 = vmatprep.subr.bf16.mxu0 0
        %1573 = vmatpush1.bf16.msra.mxu0 0
        %1574 = vmatprep.subr.bf16.mxu0 0
        %1575 = vmatpush1.bf16.msra.mxu0 0
        %1576 = vmatprep.subr.bf16.mxu0 0
        %1577 = vmatpush1.bf16.msra.mxu0 0
        %1578 = vmatprep.subr.bf16.mxu0 0
        %1579 = vmatpush1.bf16.msra.mxu0 0
        %1580 = vmatprep.subr.bf16.mxu0 0
        %1581 = vmatpush1.bf16.msra.mxu0 0
        %1582 = vmatprep.subr.bf16.mxu0 0
        %1583 = vmatpush1.bf16.msra.mxu0 0
        %1584 = vmatprep.mubr.bf16.mxu0 0
        %1585 = vmatmul.mubr.bf16.gmra.mrb[0].mxu0 %v1550
        %v1586 = vpop.f32.mrb[0].mxu0
        %v1587 = vadd.f32 %v1536, %v1586
        %v1588 = vpop.f32.mrb[0].mxu0
        %v1589 = vpop.f32.mrb[0].mxu0
        %v1590 = vpop.f32.mrb[0].mxu0
        %1591 = vdwg.mxu0
        %v1592 = vadd.f32 %v1587, %v880
        %v1593 = vsel %vm908, %v1592, 0.0
        %1594 = vadd.xlane.f32.xlu0 %v1593
        %v1595 = vpop.xlane.xlu0 %1594
        %v1596 = vmul.f32 %v1595, %v912
        %v1597 = vsub.f32 %v1592, %v1596
        %v1598 = vmul.f32 %v1597, %v1597
        %v1599 = vsel %vm908, %v1598, 0.0
        %1600 = vadd.xlane.f32.xlu0 %v1599
        %v1601 = vpop.xlane.xlu0 %1600
        %v1602 = vmul.f32 %v1601, %v919
        %v1603 = vlaneseq
        %v1604 = vshrl.u32 %v1603, 7
        %v1605 = vsub.s32 2, %v1604
        %v1606 = vrot.slane %v882, %v1605
        %v1607 = vmul.f32 %v1606, %v1597
        %v1608 = vrsqrt.pop %v1602
        %v1609 = vmul.f32 %v1602, %v1608
        %vm1610 = vcmp.eq.f32.partialorder %v1602, inf
        %v1611 = vsel %vm1610, %v1602, %v1609
        %vm1612 = vcmp.eq.f32.partialorder %v1602, 0.0
        %v1613 = vand.u32 %v1602, 2147483648
        %v1614 = vsel %vm1612, %v1613, %v1611
        %v1615 = vadd.f32 %v1614, 1e-06
        %v1616 = vrcp.pop %v1615
        %v1617 = vmul.f32 %v1607, %v1616
        %v1618 = vlaneseq
        %v1619 = vshrl.u32 %v1618, 7
        %v1620 = vsub.s32 3, %v1619
        %v1621 = vrot.slane %v882, %v1620
        %v1622 = vadd.f32 %v1617, %v1621
        %v1623 = vpack.c.bf16 %v1622, %v1622
        %v1624 = vld [vmem:[#allocation14] sm:$0xf]
        %v1625 = vld [vmem:[#allocation14 + $0x4] sm:$0xf]
        %v1626 = vld [vmem:[#allocation14 + $0x8] sm:$0xf]
        %v1627 = vld [vmem:[#allocation14 + $0xc] sm:$0xf]
        %v1628 = vld [vmem:[#allocation16] sm:$0xf]
        %v1629 = vld [vmem:[#allocation16 + $0x4] sm:$0xf]
        %v1630 = vld [vmem:[#allocation16 + $0x8] sm:$0xf]
        %v1631 = vld [vmem:[#allocation16 + $0xc] sm:$0xf]
        %v1632 = vld [vmem:[#allocation22] sm:$0x1]
        %v1633 = vld [vmem:[#allocation17] sm:$0xf]
        %v1634 = vld [vmem:[#allocation17 + $0x4] sm:$0xf]
        %v1635 = vld [vmem:[#allocation17 + $0x8] sm:$0xf]
        %v1636 = vld [vmem:[#allocation17 + $0xc] sm:$0xf]
        %v1637 = vlaneseq
        %v1638 = vshrl.u32 %v1637, 7
        %v1639 = vsub.s32 0, %v1638
        %v1640 = vrot.slane %v883, %v1639
        %v1645 = vunpack.c.l.b16 %v1624
        %v1646 = vunpack.c.l.b16 %v1625
        %v1647 = vunpack.c.l.b16 %v1626
        %v1648 = vunpack.c.l.b16 %v1627
        %v1649 = vpack.c.b16 %v1646, %v1645
        %v1650 = vpack.c.b16 %v1648, %v1647
        %v1654 = vsel %vm908, %v1623, 0
        %1656 = vmatprep.subr.bf16.mxu0 0
        %1657 = vmatpush1.bf16.msra.mxu0 %v1649
        %1658 = vmatprep.subr.bf16.mxu0 0
        %1659 = vmatpush1.bf16.msra.mxu0 %v1650
        %1660 = vmatprep.subr.bf16.mxu0 0
        %1661 = vmatpush1.bf16.msra.mxu0 0
        %1662 = vmatprep.subr.bf16.mxu0 0
        %1663 = vmatpush1.bf16.msra.mxu0 0
        %1664 = vmatprep.subr.bf16.mxu0 0
        %1665 = vmatpush1.bf16.msra.mxu0 0
        %1666 = vmatprep.subr.bf16.mxu0 0
        %1667 = vmatpush1.bf16.msra.mxu0 0
        %1668 = vmatprep.subr.bf16.mxu0 0
        %1669 = vmatpush1.bf16.msra.mxu0 0
        %1670 = vmatprep.subr.bf16.mxu0 0
        %1671 = vmatpush1.bf16.msra.mxu0 0
        %1672 = vmatprep.subr.bf16.mxu0 0
        %1673 = vmatpush1.bf16.msra.mxu0 0
        %1674 = vmatprep.subr.bf16.mxu0 0
        %1675 = vmatpush1.bf16.msra.mxu0 0
        %1676 = vmatprep.subr.bf16.mxu0 0
        %1677 = vmatpush1.bf16.msra.mxu0 0
        %1678 = vmatprep.subr.bf16.mxu0 0
        %1679 = vmatpush1.bf16.msra.mxu0 0
        %1680 = vmatprep.subr.bf16.mxu0 0
        %1681 = vmatpush1.bf16.msra.mxu0 0
        %1682 = vmatprep.subr.bf16.mxu0 0
        %1683 = vmatpush1.bf16.msra.mxu0 0
        %1684 = vmatprep.subr.bf16.mxu0 0
        %1685 = vmatpush1.bf16.msra.mxu0 0
        %1686 = vmatprep.subr.bf16.mxu0 0
        %1687 = vmatpush1.bf16.msra.mxu0 0
        %1688 = vmatprep.mubr.bf16.mxu0 0
        %1689 = vmatmul.mubr.bf16.gmra.mrb[0].mxu0 %v1654
        %v1690 = vpop.f32.mrb[0].mxu0
        %v1691 = vadd.f32 %v1640, %v1690
        %v1692 = vpop.f32.mrb[0].mxu0
        %v1693 = vpop.f32.mrb[0].mxu0
        %v1694 = vpop.f32.mrb[0].mxu0
        %1695 = vdwg.mxu0
        %v1697 = vlaneseq
        %v1698 = vshrl.u32 %v1697, 7
        %v1699 = vsub.s32 0, %v1698
        %v1700 = vrot.slane %v1632, %v1699
        %v1706 = vunpack.c.l.b16 %v1628
        %v1707 = vunpack.c.l.b16 %v1629
        %v1708 = vunpack.c.l.b16 %v1630
        %v1709 = vunpack.c.l.b16 %v1631
        %v1710 = vpack.c.b16 %v1707, %v1706
        %v1711 = vpack.c.b16 %v1709, %v1708
        %v1715 = vsel %vm908, %v881, 0
        %1717 = vmatprep.subr.bf16.mxu0 0
        %1718 = vmatpush1.bf16.msra.mxu0 %v1710
        %1719 = vmatprep.subr.bf16.mxu0 0
        %1720 = vmatpush1.bf16.msra.mxu0 %v1711
        %1721 = vmatprep.subr.bf16.mxu0 0
        %1722 = vmatpush1.bf16.msra.mxu0 0
        %1723 = vmatprep.subr.bf16.mxu0 0
        %1724 = vmatpush1.bf16.msra.mxu0 0
        %1725 = vmatprep.subr.bf16.mxu0 0
        %1726 = vmatpush1.bf16.msra.mxu0 0
        %1727 = vmatprep.subr.bf16.mxu0 0
        %1728 = vmatpush1.bf16.msra.mxu0 0
        %1729 = vmatprep.subr.bf16.mxu0 0
        %1730 = vmatpush1.bf16.msra.mxu0 0
        %1731 = vmatprep.subr.bf16.mxu0 0
        %1732 = vmatpush1.bf16.msra.mxu0 0
        %1733 = vmatprep.subr.bf16.mxu0 0
        %1734 = vmatpush1.bf16.msra.mxu0 0
        %1735 = vmatprep.subr.bf16.mxu0 0
        %1736 = vmatpush1.bf16.msra.mxu0 0
        %1737 = vmatprep.subr.bf16.mxu0 0
        %1738 = vmatpush1.bf16.msra.mxu0 0
        %1739 = vmatprep.subr.bf16.mxu0 0
        %1740 = vmatpush1.bf16.msra.mxu0 0
        %1741 = vmatprep.subr.bf16.mxu0 0
        %1742 = vmatpush1.bf16.msra.mxu0 0
        %1743 = vmatprep.subr.bf16.mxu0 0
        %1744 = vmatpush1.bf16.msra.mxu0 0
        %1745 = vmatprep.subr.bf16.mxu0 0
        %1746 = vmatpush1.bf16.msra.mxu0 0
        %1747 = vmatprep.subr.bf16.mxu0 0
        %1748 = vmatpush1.bf16.msra.mxu0 0
        %1749 = vmatprep.mubr.bf16.mxu0 0
        %1750 = vmatmul.mubr.bf16.gmra.mrb[0].mxu0 %v1715
        %v1751 = vpop.f32.mrb[0].mxu0
        %v1752 = vadd.f32 %v1700, %v1751
        %v1753 = vpop.f32.mrb[0].mxu0
        %v1754 = vpop.f32.mrb[0].mxu0
        %v1755 = vpop.f32.mrb[0].mxu0
        %1756 = vdwg.mxu0
        %v1757 = vpack.c.bf16 %v1691, %v1691
        %v1758 = vpack.c.bf16 %v1752, %v1752
        %v1760 = vsel %vm1075, %v1757, 0
        %v1763 = vsel %vm1075, %v1758, 0
        %1765 = vmatprep.subr.bf16.mxu0 0
        %1766 = vmatpush1.bf16.xpose.msra.mxu0 %v1763
        %1767 = vmatprep.subr.bf16.mxu0 0
        %1768 = vmatpush1.bf16.xpose.msra.mxu0 0
        %1769 = vmatprep.subr.bf16.mxu0 0
        %1770 = vmatpush1.bf16.xpose.msra.mxu0 0
        %1771 = vmatprep.subr.bf16.mxu0 0
        %1772 = vmatpush1.bf16.xpose.msra.mxu0 0
        %1773 = vmatprep.subr.bf16.mxu0 0
        %1774 = vmatpush1.bf16.xpose.msra.mxu0 0
        %1775 = vmatprep.subr.bf16.mxu0 0
        %1776 = vmatpush1.bf16.xpose.msra.mxu0 0
        %1777 = vmatprep.subr.bf16.mxu0 0
        %1778 = vmatpush1.bf16.xpose.msra.mxu0 0
        %1779 = vmatprep.subr.bf16.mxu0 0
        %1780 = vmatpush1.bf16.xpose.msra.mxu0 0
        %1781 = vmatprep.subr.bf16.mxu0 0
        %1782 = vmatpush1.bf16.xpose.msra.mxu0 0
        %1783 = vmatprep.subr.bf16.mxu0 0
        %1784 = vmatpush1.bf16.xpose.msra.mxu0 0
        %1785 = vmatprep.subr.bf16.mxu0 0
        %1786 = vmatpush1.bf16.xpose.msra.mxu0 0
        %1787 = vmatprep.subr.bf16.mxu0 0
        %1788 = vmatpush1.bf16.xpose.msra.mxu0 0
        %1789 = vmatprep.subr.bf16.mxu0 0
        %1790 = vmatpush1.bf16.xpose.msra.mxu0 0
        %1791 = vmatprep.subr.bf16.mxu0 0
        %1792 = vmatpush1.bf16.xpose.msra.mxu0 0
        %1793 = vmatprep.subr.bf16.mxu0 0
        %1794 = vmatpush1.bf16.xpose.msra.mxu0 0
        %1795 = vmatprep.subr.bf16.mxu0 0
        %1796 = vmatpush1.bf16.xpose.msra.mxu0 0
        %1797 = vmatprep.mubr.bf16.mxu0 0
        %1798 = vmatmul.mubr.bf16.gmra.mrb[0].mxu0 %v1760
        %v1799 = vpop.f32.mrb[0].mxu0
        %v1800 = vadd.f32 %v906, %v1799
        %v1801 = vpop.f32.mrb[0].mxu0
        %v1802 = vpop.f32.mrb[0].mxu0
        %v1803 = vpop.f32.mrb[0].mxu0
        %1804 = vdwg.mxu0
        %v1805 = vsel %vm1075, %v1800, -inf
        %1806 = vmax.xlane.f32.xlu0 %v1805
        %v1807 = vpop.xlane.xlu0 %1806
        %v1808 = vsub.f32 %v1800, %v1807
        %v1809 = vmul.f32 %v1808, 1.442695
        %v1810 = vpow.pop %v1809
        %v1811 = vsel %vm1075, %v1810, 0.0
        %1812 = vadd.xlane.f32.xlu0 %v1811
        %v1813 = vpop.xlane.xlu0 %1812
        %v1814 = vrcp.pop %v1813
        %v1815 = vmul.f32 %v1810, %v1814
        %v1816 = vpack.c.bf16 %v1815, %v1815
        %1818 = vrot.lane.b32.xlu0 %v1758, 96
        %v1819 = vpop.permute.xlu0 %1818
        %v1821 = vsel %vm1075, %v1816, 0
        %v1824 = vsel %vm1140, %v1819, 0
        %1826 = vmatprep.subr.bf16.mxu0 0
        %1827 = vmatpush1.bf16.msra.mxu0 %v1824
        %1828 = vmatprep.subr.bf16.mxu0 0
        %1829 = vmatpush1.bf16.msra.mxu0 0
        %1830 = vmatprep.subr.bf16.mxu0 0
        %1831 = vmatpush1.bf16.msra.mxu0 0
        %1832 = vmatprep.subr.bf16.mxu0 0
        %1833 = vmatpush1.bf16.msra.mxu0 0
        %1834 = vmatprep.subr.bf16.mxu0 0
        %1835 = vmatpush1.bf16.msra.mxu0 0
        %1836 = vmatprep.subr.bf16.mxu0 0
        %1837 = vmatpush1.bf16.msra.mxu0 0
        %1838 = vmatprep.subr.bf16.mxu0 0
        %1839 = vmatpush1.bf16.msra.mxu0 0
        %1840 = vmatprep.subr.bf16.mxu0 0
        %1841 = vmatpush1.bf16.msra.mxu0 0
        %1842 = vmatprep.subr.bf16.mxu0 0
        %1843 = vmatpush1.bf16.msra.mxu0 0
        %1844 = vmatprep.subr.bf16.mxu0 0
        %1845 = vmatpush1.bf16.msra.mxu0 0
        %1846 = vmatprep.subr.bf16.mxu0 0
        %1847 = vmatpush1.bf16.msra.mxu0 0
        %1848 = vmatprep.subr.bf16.mxu0 0
        %1849 = vmatpush1.bf16.msra.mxu0 0
        %1850 = vmatprep.subr.bf16.mxu0 0
        %1851 = vmatpush1.bf16.msra.mxu0 0
        %1852 = vmatprep.subr.bf16.mxu0 0
        %1853 = vmatpush1.bf16.msra.mxu0 0
        %1854 = vmatprep.subr.bf16.mxu0 0
        %1855 = vmatpush1.bf16.msra.mxu0 0
        %1856 = vmatprep.subr.bf16.mxu0 0
        %1857 = vmatpush1.bf16.msra.mxu0 0
        %1858 = vmatprep.mubr.bf16.mxu0 0
        %1859 = vmatmul.mubr.bf16.gmra.mrb[0].mxu0 %v1821
        %v1860 = vpop.f32.mrb[0].mxu0
        %v1861 = vadd.f32 0.0, %v1860
        %v1862 = vpop.f32.mrb[0].mxu0
        %v1863 = vpop.f32.mrb[0].mxu0
        %v1864 = vpop.f32.mrb[0].mxu0
        %1865 = vdwg.mxu0
        %1867 = vrot.lane.b32.xlu0 %v1757, 120
        %v1868 = vpop.permute.xlu0 %1867
        %1869 = vrot.lane.b32.xlu0 %v1758, 120
        %v1870 = vpop.permute.xlu0 %1869
        %v1872 = vsel %vm1075, %v1868, 0
        %v1875 = vsel %vm1075, %v1870, 0
        %1877 = vmatprep.subr.bf16.mxu0 0
        %1878 = vmatpush1.bf16.xpose.msra.mxu0 %v1875
        %1879 = vmatprep.subr.bf16.mxu0 0
        %1880 = vmatpush1.bf16.xpose.msra.mxu0 0
        %1881 = vmatprep.subr.bf16.mxu0 0
        %1882 = vmatpush1.bf16.xpose.msra.mxu0 0
        %1883 = vmatprep.subr.bf16.mxu0 0
        %1884 = vmatpush1.bf16.xpose.msra.mxu0 0
        %1885 = vmatprep.subr.bf16.mxu0 0
        %1886 = vmatpush1.bf16.xpose.msra.mxu0 0
        %1887 = vmatprep.subr.bf16.mxu0 0
        %1888 = vmatpush1.bf16.xpose.msra.mxu0 0
        %1889 = vmatprep.subr.bf16.mxu0 0
        %1890 = vmatpush1.bf16.xpose.msra.mxu0 0
        %1891 = vmatprep.subr.bf16.mxu0 0
        %1892 = vmatpush1.bf16.xpose.msra.mxu0 0
        %1893 = vmatprep.subr.bf16.mxu0 0
        %1894 = vmatpush1.bf16.xpose.msra.mxu0 0
        %1895 = vmatprep.subr.bf16.mxu0 0
        %1896 = vmatpush1.bf16.xpose.msra.mxu0 0
        %1897 = vmatprep.subr.bf16.mxu0 0
        %1898 = vmatpush1.bf16.xpose.msra.mxu0 0
        %1899 = vmatprep.subr.bf16.mxu0 0
        %1900 = vmatpush1.bf16.xpose.msra.mxu0 0
        %1901 = vmatprep.subr.bf16.mxu0 0
        %1902 = vmatpush1.bf16.xpose.msra.mxu0 0
        %1903 = vmatprep.subr.bf16.mxu0 0
        %1904 = vmatpush1.bf16.xpose.msra.mxu0 0
        %1905 = vmatprep.subr.bf16.mxu0 0
        %1906 = vmatpush1.bf16.xpose.msra.mxu0 0
        %1907 = vmatprep.subr.bf16.mxu0 0
        %1908 = vmatpush1.bf16.xpose.msra.mxu0 0
        %1909 = vmatprep.mubr.bf16.mxu0 0
        %1910 = vmatmul.mubr.bf16.gmra.mrb[0].mxu0 %v1872
        %v1911 = vpop.f32.mrb[0].mxu0
        %v1912 = vadd.f32 %v906, %v1911
        %v1913 = vpop.f32.mrb[0].mxu0
        %v1914 = vpop.f32.mrb[0].mxu0
        %v1915 = vpop.f32.mrb[0].mxu0
        %1916 = vdwg.mxu0
        %v1917 = vsel %vm1075, %v1912, -inf
        %1918 = vmax.xlane.f32.xlu0 %v1917
        %v1919 = vpop.xlane.xlu0 %1918
        %v1920 = vsub.f32 %v1912, %v1919
        %v1921 = vmul.f32 %v1920, 1.442695
        %v1922 = vpow.pop %v1921
        %v1923 = vsel %vm1075, %v1922, 0.0
        %1924 = vadd.xlane.f32.xlu0 %v1923
        %v1925 = vpop.xlane.xlu0 %1924
        %v1926 = vrcp.pop %v1925
        %v1927 = vmul.f32 %v1922, %v1926
        %v1928 = vpack.c.bf16 %v1927, %v1927
        %1929 = vrot.lane.b32.xlu0 %v1758, 88
        %v1930 = vpop.permute.xlu0 %1929
        %v1932 = vsel %vm1075, %v1928, 0
        %v1935 = vsel %vm1140, %v1930, 0
        %1937 = vmatprep.subr.bf16.mxu0 0
        %1938 = vmatpush1.bf16.msra.mxu0 %v1935
        %1939 = vmatprep.subr.bf16.mxu0 0
        %1940 = vmatpush1.bf16.msra.mxu0 0
        %1941 = vmatprep.subr.bf16.mxu0 0
        %1942 = vmatpush1.bf16.msra.mxu0 0
        %1943 = vmatprep.subr.bf16.mxu0 0
        %1944 = vmatpush1.bf16.msra.mxu0 0
        %1945 = vmatprep.subr.bf16.mxu0 0
        %1946 = vmatpush1.bf16.msra.mxu0 0
        %1947 = vmatprep.subr.bf16.mxu0 0
        %1948 = vmatpush1.bf16.msra.mxu0 0
        %1949 = vmatprep.subr.bf16.mxu0 0
        %1950 = vmatpush1.bf16.msra.mxu0 0
        %1951 = vmatprep.subr.bf16.mxu0 0
        %1952 = vmatpush1.bf16.msra.mxu0 0
        %1953 = vmatprep.subr.bf16.mxu0 0
        %1954 = vmatpush1.bf16.msra.mxu0 0
        %1955 = vmatprep.subr.bf16.mxu0 0
        %1956 = vmatpush1.bf16.msra.mxu0 0
        %1957 = vmatprep.subr.bf16.mxu0 0
        %1958 = vmatpush1.bf16.msra.mxu0 0
        %1959 = vmatprep.subr.bf16.mxu0 0
        %1960 = vmatpush1.bf16.msra.mxu0 0
        %1961 = vmatprep.subr.bf16.mxu0 0
        %1962 = vmatpush1.bf16.msra.mxu0 0
        %1963 = vmatprep.subr.bf16.mxu0 0
        %1964 = vmatpush1.bf16.msra.mxu0 0
        %1965 = vmatprep.subr.bf16.mxu0 0
        %1966 = vmatpush1.bf16.msra.mxu0 0
        %1967 = vmatprep.subr.bf16.mxu0 0
        %1968 = vmatpush1.bf16.msra.mxu0 0
        %1969 = vmatprep.mubr.bf16.mxu0 0
        %1970 = vmatmul.mubr.bf16.gmra.mrb[0].mxu0 %v1932
        %v1971 = vpop.f32.mrb[0].mxu0
        %v1972 = vadd.f32 0.0, %v1971
        %v1973 = vpop.f32.mrb[0].mxu0
        %v1974 = vpop.f32.mrb[0].mxu0
        %v1975 = vpop.f32.mrb[0].mxu0
        %1976 = vdwg.mxu0
        %1977 = vrot.lane.b32.xlu0 %v1757, 112
        %v1978 = vpop.permute.xlu0 %1977
        %1979 = vrot.lane.b32.xlu0 %v1758, 112
        %v1980 = vpop.permute.xlu0 %1979
        %v1982 = vsel %vm1075, %v1978, 0
        %v1985 = vsel %vm1075, %v1980, 0
        %1987 = vmatprep.subr.bf16.mxu0 0
        %1988 = vmatpush1.bf16.xpose.msra.mxu0 %v1985
        %1989 = vmatprep.subr.bf16.mxu0 0
        %1990 = vmatpush1.bf16.xpose.msra.mxu0 0
        %1991 = vmatprep.subr.bf16.mxu0 0
        %1992 = vmatpush1.bf16.xpose.msra.mxu0 0
        %1993 = vmatprep.subr.bf16.mxu0 0
        %1994 = vmatpush1.bf16.xpose.msra.mxu0 0
        %1995 = vmatprep.subr.bf16.mxu0 0
        %1996 = vmatpush1.bf16.xpose.msra.mxu0 0
        %1997 = vmatprep.subr.bf16.mxu0 0
        %1998 = vmatpush1.bf16.xpose.msra.mxu0 0
        %1999 = vmatprep.subr.bf16.mxu0 0
        %2000 = vmatpush1.bf16.xpose.msra.mxu0 0
        %2001 = vmatprep.subr.bf16.mxu0 0
        %2002 = vmatpush1.bf16.xpose.msra.mxu0 0
        %2003 = vmatprep.subr.bf16.mxu0 0
        %2004 = vmatpush1.bf16.xpose.msra.mxu0 0
        %2005 = vmatprep.subr.bf16.mxu0 0
        %2006 = vmatpush1.bf16.xpose.msra.mxu0 0
        %2007 = vmatprep.subr.bf16.mxu0 0
        %2008 = vmatpush1.bf16.xpose.msra.mxu0 0
        %2009 = vmatprep.subr.bf16.mxu0 0
        %2010 = vmatpush1.bf16.xpose.msra.mxu0 0
        %2011 = vmatprep.subr.bf16.mxu0 0
        %2012 = vmatpush1.bf16.xpose.msra.mxu0 0
        %2013 = vmatprep.subr.bf16.mxu0 0
        %2014 = vmatpush1.bf16.xpose.msra.mxu0 0
        %2015 = vmatprep.subr.bf16.mxu0 0
        %2016 = vmatpush1.bf16.xpose.msra.mxu0 0
        %2017 = vmatprep.subr.bf16.mxu0 0
        %2018 = vmatpush1.bf16.xpose.msra.mxu0 0
        %2019 = vmatprep.mubr.bf16.mxu0 0
        %2020 = vmatmul.mubr.bf16.gmra.mrb[0].mxu0 %v1982
        %v2021 = vpop.f32.mrb[0].mxu0
        %v2022 = vadd.f32 %v906, %v2021
        %v2023 = vpop.f32.mrb[0].mxu0
        %v2024 = vpop.f32.mrb[0].mxu0
        %v2025 = vpop.f32.mrb[0].mxu0
        %2026 = vdwg.mxu0
        %v2027 = vsel %vm1075, %v2022, -inf
        %2028 = vmax.xlane.f32.xlu0 %v2027
        %v2029 = vpop.xlane.xlu0 %2028
        %v2030 = vsub.f32 %v2022, %v2029
        %v2031 = vmul.f32 %v2030, 1.442695
        %v2032 = vpow.pop %v2031
        %v2033 = vsel %vm1075, %v2032, 0.0
        %2034 = vadd.xlane.f32.xlu0 %v2033
        %v2035 = vpop.xlane.xlu0 %2034
        %v2036 = vrcp.pop %v2035
        %v2037 = vmul.f32 %v2032, %v2036
        %v2038 = vpack.c.bf16 %v2037, %v2037
        %2039 = vrot.lane.b32.xlu0 %v1758, 80
        %v2040 = vpop.permute.xlu0 %2039
        %v2042 = vsel %vm1075, %v2038, 0
        %v2045 = vsel %vm1140, %v2040, 0
        %2047 = vmatprep.subr.bf16.mxu0 0
        %2048 = vmatpush1.bf16.msra.mxu0 %v2045
        %2049 = vmatprep.subr.bf16.mxu0 0
        %2050 = vmatpush1.bf16.msra.mxu0 0
        %2051 = vmatprep.subr.bf16.mxu0 0
        %2052 = vmatpush1.bf16.msra.mxu0 0
        %2053 = vmatprep.subr.bf16.mxu0 0
        %2054 = vmatpush1.bf16.msra.mxu0 0
        %2055 = vmatprep.subr.bf16.mxu0 0
        %2056 = vmatpush1.bf16.msra.mxu0 0
        %2057 = vmatprep.subr.bf16.mxu0 0
        %2058 = vmatpush1.bf16.msra.mxu0 0
        %2059 = vmatprep.subr.bf16.mxu0 0
        %2060 = vmatpush1.bf16.msra.mxu0 0
        %2061 = vmatprep.subr.bf16.mxu0 0
        %2062 = vmatpush1.bf16.msra.mxu0 0
        %2063 = vmatprep.subr.bf16.mxu0 0
        %2064 = vmatpush1.bf16.msra.mxu0 0
        %2065 = vmatprep.subr.bf16.mxu0 0
        %2066 = vmatpush1.bf16.msra.mxu0 0
        %2067 = vmatprep.subr.bf16.mxu0 0
        %2068 = vmatpush1.bf16.msra.mxu0 0
        %2069 = vmatprep.subr.bf16.mxu0 0
        %2070 = vmatpush1.bf16.msra.mxu0 0
        %2071 = vmatprep.subr.bf16.mxu0 0
        %2072 = vmatpush1.bf16.msra.mxu0 0
        %2073 = vmatprep.subr.bf16.mxu0 0
        %2074 = vmatpush1.bf16.msra.mxu0 0
        %2075 = vmatprep.subr.bf16.mxu0 0
        %2076 = vmatpush1.bf16.msra.mxu0 0
        %2077 = vmatprep.subr.bf16.mxu0 0
        %2078 = vmatpush1.bf16.msra.mxu0 0
        %2079 = vmatprep.mubr.bf16.mxu0 0
        %2080 = vmatmul.mubr.bf16.gmra.mrb[0].mxu0 %v2042
        %v2081 = vpop.f32.mrb[0].mxu0
        %v2082 = vadd.f32 0.0, %v2081
        %v2083 = vpop.f32.mrb[0].mxu0
        %v2084 = vpop.f32.mrb[0].mxu0
        %v2085 = vpop.f32.mrb[0].mxu0
        %2086 = vdwg.mxu0
        %2087 = vrot.lane.b32.xlu0 %v1757, 104
        %v2088 = vpop.permute.xlu0 %2087
        %2089 = vrot.lane.b32.xlu0 %v1758, 104
        %v2090 = vpop.permute.xlu0 %2089
        %v2092 = vsel %vm1075, %v2088, 0
        %v2095 = vsel %vm1075, %v2090, 0
        %2097 = vmatprep.subr.bf16.mxu0 0
        %2098 = vmatpush1.bf16.xpose.msra.mxu0 %v2095
        %2099 = vmatprep.subr.bf16.mxu0 0
        %2100 = vmatpush1.bf16.xpose.msra.mxu0 0
        %2101 = vmatprep.subr.bf16.mxu0 0
        %2102 = vmatpush1.bf16.xpose.msra.mxu0 0
        %2103 = vmatprep.subr.bf16.mxu0 0
        %2104 = vmatpush1.bf16.xpose.msra.mxu0 0
        %2105 = vmatprep.subr.bf16.mxu0 0
        %2106 = vmatpush1.bf16.xpose.msra.mxu0 0
        %2107 = vmatprep.subr.bf16.mxu0 0
        %2108 = vmatpush1.bf16.xpose.msra.mxu0 0
        %2109 = vmatprep.subr.bf16.mxu0 0
        %2110 = vmatpush1.bf16.xpose.msra.mxu0 0
        %2111 = vmatprep.subr.bf16.mxu0 0
        %2112 = vmatpush1.bf16.xpose.msra.mxu0 0
        %2113 = vmatprep.subr.bf16.mxu0 0
        %2114 = vmatpush1.bf16.xpose.msra.mxu0 0
        %2115 = vmatprep.subr.bf16.mxu0 0
        %2116 = vmatpush1.bf16.xpose.msra.mxu0 0
        %2117 = vmatprep.subr.bf16.mxu0 0
        %2118 = vmatpush1.bf16.xpose.msra.mxu0 0
        %2119 = vmatprep.subr.bf16.mxu0 0
        %2120 = vmatpush1.bf16.xpose.msra.mxu0 0
        %2121 = vmatprep.subr.bf16.mxu0 0
        %2122 = vmatpush1.bf16.xpose.msra.mxu0 0
        %2123 = vmatprep.subr.bf16.mxu0 0
        %2124 = vmatpush1.bf16.xpose.msra.mxu0 0
        %2125 = vmatprep.subr.bf16.mxu0 0
        %2126 = vmatpush1.bf16.xpose.msra.mxu0 0
        %2127 = vmatprep.subr.bf16.mxu0 0
        %2128 = vmatpush1.bf16.xpose.msra.mxu0 0
        %2129 = vmatprep.mubr.bf16.mxu0 0
        %2130 = vmatmul.mubr.bf16.gmra.mrb[0].mxu0 %v2092
        %v2131 = vpop.f32.mrb[0].mxu0
        %v2132 = vadd.f32 %v906, %v2131
        %v2133 = vpop.f32.mrb[0].mxu0
        %v2134 = vpop.f32.mrb[0].mxu0
        %v2135 = vpop.f32.mrb[0].mxu0
        %2136 = vdwg.mxu0
        %v2137 = vsel %vm1075, %v2132, -inf
        %2138 = vmax.xlane.f32.xlu0 %v2137
        %v2139 = vpop.xlane.xlu0 %2138
        %v2140 = vsub.f32 %v2132, %v2139
        %v2141 = vmul.f32 %v2140, 1.442695
        %v2142 = vpow.pop %v2141
        %v2143 = vsel %vm1075, %v2142, 0.0
        %2144 = vadd.xlane.f32.xlu0 %v2143
        %v2145 = vpop.xlane.xlu0 %2144
        %v2146 = vrcp.pop %v2145
        %v2147 = vmul.f32 %v2142, %v2146
        %v2148 = vpack.c.bf16 %v2147, %v2147
        %2149 = vrot.lane.b32.xlu0 %v1758, 72
        %v2150 = vpop.permute.xlu0 %2149
        %v2152 = vsel %vm1075, %v2148, 0
        %v2155 = vsel %vm1140, %v2150, 0
        %2157 = vmatprep.subr.bf16.mxu0 0
        %2158 = vmatpush1.bf16.msra.mxu0 %v2155
        %2159 = vmatprep.subr.bf16.mxu0 0
        %2160 = vmatpush1.bf16.msra.mxu0 0
        %2161 = vmatprep.subr.bf16.mxu0 0
        %2162 = vmatpush1.bf16.msra.mxu0 0
        %2163 = vmatprep.subr.bf16.mxu0 0
        %2164 = vmatpush1.bf16.msra.mxu0 0
        %2165 = vmatprep.subr.bf16.mxu0 0
        %2166 = vmatpush1.bf16.msra.mxu0 0
        %2167 = vmatprep.subr.bf16.mxu0 0
        %2168 = vmatpush1.bf16.msra.mxu0 0
        %2169 = vmatprep.subr.bf16.mxu0 0
        %2170 = vmatpush1.bf16.msra.mxu0 0
        %2171 = vmatprep.subr.bf16.mxu0 0
        %2172 = vmatpush1.bf16.msra.mxu0 0
        %2173 = vmatprep.subr.bf16.mxu0 0
        %2174 = vmatpush1.bf16.msra.mxu0 0
        %2175 = vmatprep.subr.bf16.mxu0 0
        %2176 = vmatpush1.bf16.msra.mxu0 0
        %2177 = vmatprep.subr.bf16.mxu0 0
        %2178 = vmatpush1.bf16.msra.mxu0 0
        %2179 = vmatprep.subr.bf16.mxu0 0
        %2180 = vmatpush1.bf16.msra.mxu0 0
        %2181 = vmatprep.subr.bf16.mxu0 0
        %2182 = vmatpush1.bf16.msra.mxu0 0
        %2183 = vmatprep.subr.bf16.mxu0 0
        %2184 = vmatpush1.bf16.msra.mxu0 0
        %2185 = vmatprep.subr.bf16.mxu0 0
        %2186 = vmatpush1.bf16.msra.mxu0 0
        %2187 = vmatprep.subr.bf16.mxu0 0
        %2188 = vmatpush1.bf16.msra.mxu0 0
        %2189 = vmatprep.mubr.bf16.mxu0 0
        %2190 = vmatmul.mubr.bf16.gmra.mrb[0].mxu0 %v2152
        %v2191 = vpop.f32.mrb[0].mxu0
        %v2192 = vadd.f32 0.0, %v2191
        %v2193 = vpop.f32.mrb[0].mxu0
        %v2194 = vpop.f32.mrb[0].mxu0
        %v2195 = vpop.f32.mrb[0].mxu0
        %2196 = vdwg.mxu0
        %2198 = vrot.lane.b32.xlu0 %v1972, 8
        %v2199 = vpop.permute.xlu0 %2198
        %2202 = vrot.lane.b32.xlu0 %v2082, 16
        %v2203 = vpop.permute.xlu0 %2202
        %2206 = vrot.lane.b32.xlu0 %v2192, 24
        %v2207 = vpop.permute.xlu0 %2206
        %v2209 = vsel %vm1075, %v1861, %v2199
        %v2210 = vsel %vm1528, %v2209, %v2203
        %v2211 = vsel %vm1530, %v2210, %v2207
        %v2212 = vpack.c.bf16 %v2211, %v2211
        %v2213 = vlaneseq
        %v2214 = vshrl.u32 %v2213, 7
        %v2215 = vsub.s32 1, %v2214
        %v2216 = vrot.slane %v883, %v2215
        %v2221 = vunpack.c.l.b16 %v1633
        %v2222 = vunpack.c.l.b16 %v1634
        %v2223 = vunpack.c.l.b16 %v1635
        %v2224 = vunpack.c.l.b16 %v1636
        %v2225 = vpack.c.b16 %v2222, %v2221
        %v2226 = vpack.c.b16 %v2224, %v2223
        %v2230 = vsel %vm908, %v2212, 0
        %2232 = vmatprep.subr.bf16.mxu0 0
        %2233 = vmatpush1.bf16.msra.mxu0 %v2225
        %2234 = vmatprep.subr.bf16.mxu0 0
        %2235 = vmatpush1.bf16.msra.mxu0 %v2226
        %2236 = vmatprep.subr.bf16.mxu0 0
        %2237 = vmatpush1.bf16.msra.mxu0 0
        %2238 = vmatprep.subr.bf16.mxu0 0
        %2239 = vmatpush1.bf16.msra.mxu0 0
        %2240 = vmatprep.subr.bf16.mxu0 0
        %2241 = vmatpush1.bf16.msra.mxu0 0
        %2242 = vmatprep.subr.bf16.mxu0 0
        %2243 = vmatpush1.bf16.msra.mxu0 0
        %2244 = vmatprep.subr.bf16.mxu0 0
        %2245 = vmatpush1.bf16.msra.mxu0 0
        %2246 = vmatprep.subr.bf16.mxu0 0
        %2247 = vmatpush1.bf16.msra.mxu0 0
        %2248 = vmatprep.subr.bf16.mxu0 0
        %2249 = vmatpush1.bf16.msra.mxu0 0
        %2250 = vmatprep.subr.bf16.mxu0 0
        %2251 = vmatpush1.bf16.msra.mxu0 0
        %2252 = vmatprep.subr.bf16.mxu0 0
        %2253 = vmatpush1.bf16.msra.mxu0 0
        %2254 = vmatprep.subr.bf16.mxu0 0
        %2255 = vmatpush1.bf16.msra.mxu0 0
        %2256 = vmatprep.subr.bf16.mxu0 0
        %2257 = vmatpush1.bf16.msra.mxu0 0
        %2258 = vmatprep.subr.bf16.mxu0 0
        %2259 = vmatpush1.bf16.msra.mxu0 0
        %2260 = vmatprep.subr.bf16.mxu0 0
        %2261 = vmatpush1.bf16.msra.mxu0 0
        %2262 = vmatprep.subr.bf16.mxu0 0
        %2263 = vmatpush1.bf16.msra.mxu0 0
        %2264 = vmatprep.mubr.bf16.mxu0 0
        %2265 = vmatmul.mubr.bf16.gmra.mrb[0].mxu0 %v2230
        %v2266 = vpop.f32.mrb[0].mxu0
        %v2267 = vadd.f32 %v2216, %v2266
        %v2268 = vpop.f32.mrb[0].mxu0
        %v2269 = vpop.f32.mrb[0].mxu0
        %v2270 = vpop.f32.mrb[0].mxu0
        %2271 = vdwg.mxu0
        %2272 = vst.msk [vmem:[%s871] sm:$0xff] %vm1075, %v1815
        %v2273 = vadd.f32 %v2267, %v1592
        %v2274 = vsel %vm908, %v2273, 0.0
        %2275 = vadd.xlane.f32.xlu0 %v2274
        %v2276 = vpop.xlane.xlu0 %2275
        %v2277 = vmul.f32 %v2276, %v912
        %v2278 = vsub.f32 %v2273, %v2277
        %v2279 = vmul.f32 %v2278, %v2278
        %v2280 = vsel %vm908, %v2279, 0.0
        %2281 = vadd.xlane.f32.xlu0 %v2280
        %v2282 = vpop.xlane.xlu0 %2281
        %v2283 = vmul.f32 %v2282, %v919
        %v2284 = vlaneseq
        %v2285 = vshrl.u32 %v2284, 7
        %v2286 = vsub.s32 4, %v2285
        %v2287 = vrot.slane %v882, %v2286
        %v2288 = vmul.f32 %v2287, %v2278
        %v2289 = vrsqrt.pop %v2283
        %v2290 = vmul.f32 %v2283, %v2289
        %vm2291 = vcmp.eq.f32.partialorder %v2283, inf
        %v2292 = vsel %vm2291, %v2283, %v2290
        %vm2293 = vcmp.eq.f32.partialorder %v2283, 0.0
        %v2294 = vand.u32 %v2283, 2147483648
        %v2295 = vsel %vm2293, %v2294, %v2292
        %v2296 = vadd.f32 %v2295, 1e-06
        %v2297 = vrcp.pop %v2296
        %v2298 = vmul.f32 %v2288, %v2297
        %v2299 = vlaneseq
        %v2300 = vshrl.u32 %v2299, 7
        %v2301 = vsub.s32 5, %v2300
        %v2302 = vrot.slane %v882, %v2301
        %v2303 = vadd.f32 %v2298, %v2302
        %v2304 = vpack.c.bf16 %v2303, %v2303
        %v2305 = vld [vmem:[#allocation23] sm:$0xf]
        %v2306 = vld [vmem:[#allocation23 + $0x4] sm:$0xf]
        %v2307 = vld [vmem:[#allocation23 + $0x8] sm:$0xf]
        %v2308 = vld [vmem:[#allocation23 + $0xc] sm:$0xf]
        %v2309 = vld [vmem:[#allocation25] sm:$0x1]
        %v2311 = vlaneseq
        %v2312 = vshrl.u32 %v2311, 7
        %v2313 = vsub.s32 0, %v2312
        %v2314 = vrot.slane %v2309, %v2313
        %v2320 = vunpack.c.l.b16 %v2305
        %v2321 = vunpack.c.l.b16 %v2306
        %v2322 = vunpack.c.l.b16 %v2307
        %v2323 = vunpack.c.l.b16 %v2308
        %v2324 = vpack.c.b16 %v2321, %v2320
        %v2325 = vpack.c.b16 %v2323, %v2322
        %v2329 = vsel %vm908, %v2304, 0
        %2331 = vmatprep.subr.bf16.mxu0 0
        %2332 = vmatpush1.bf16.msra.mxu0 %v2324
        %2333 = vmatprep.subr.bf16.mxu0 0
        %2334 = vmatpush1.bf16.msra.mxu0 %v2325
        %2335 = vmatprep.subr.bf16.mxu0 0
        %2336 = vmatpush1.bf16.msra.mxu0 0
        %2337 = vmatprep.subr.bf16.mxu0 0
        %2338 = vmatpush1.bf16.msra.mxu0 0
        %2339 = vmatprep.subr.bf16.mxu0 0
        %2340 = vmatpush1.bf16.msra.mxu0 0
        %2341 = vmatprep.subr.bf16.mxu0 0
        %2342 = vmatpush1.bf16.msra.mxu0 0
        %2343 = vmatprep.subr.bf16.mxu0 0
        %2344 = vmatpush1.bf16.msra.mxu0 0
        %2345 = vmatprep.subr.bf16.mxu0 0
        %2346 = vmatpush1.bf16.msra.mxu0 0
        %2347 = vmatprep.subr.bf16.mxu0 0
        %2348 = vmatpush1.bf16.msra.mxu0 0
        %2349 = vmatprep.subr.bf16.mxu0 0
        %2350 = vmatpush1.bf16.msra.mxu0 0
        %2351 = vmatprep.subr.bf16.mxu0 0
        %2352 = vmatpush1.bf16.msra.mxu0 0
        %2353 = vmatprep.subr.bf16.mxu0 0
        %2354 = vmatpush1.bf16.msra.mxu0 0
        %2355 = vmatprep.subr.bf16.mxu0 0
        %2356 = vmatpush1.bf16.msra.mxu0 0
        %2357 = vmatprep.subr.bf16.mxu0 0
        %2358 = vmatpush1.bf16.msra.mxu0 0
        %2359 = vmatprep.subr.bf16.mxu0 0
        %2360 = vmatpush1.bf16.msra.mxu0 0
        %2361 = vmatprep.subr.bf16.mxu0 0
        %2362 = vmatpush1.bf16.msra.mxu0 0
        %2363 = vmatprep.mubr.bf16.mxu0 0
        %2364 = vmatmul.mubr.bf16.gmra.mrb[0].mxu0 %v2329
        %v2365 = vpop.f32.mrb[0].mxu0
        %v2366 = vadd.f32 %v2314, %v2365
        %v2367 = vpop.f32.mrb[0].mxu0
        %v2368 = vpop.f32.mrb[0].mxu0
        %v2369 = vpop.f32.mrb[0].mxu0
        %2370 = vdwg.mxu0
        %v2371 = vmax.f32 %v2366, 0.0
        %v2372 = vpack.c.bf16 %v2371, %v2371
        %v2373 = vld [vmem:[#allocation26] sm:$0xf]
        %v2374 = vld [vmem:[#allocation26 + $0x4] sm:$0xf]
        %v2375 = vld [vmem:[#allocation26 + $0x8] sm:$0xf]
        %v2376 = vld [vmem:[#allocation26 + $0xc] sm:$0xf]
        %v2377 = vld [vmem:[#allocation26 + $0x10] sm:$0xf]
        %v2378 = vld [vmem:[#allocation26 + $0x14] sm:$0xf]
        %v2379 = vld [vmem:[#allocation26 + $0x18] sm:$0xf]
        %v2380 = vld [vmem:[#allocation26 + $0x1c] sm:$0xf]
        %v2381 = vlaneseq
        %v2382 = vshrl.u32 %v2381, 7
        %v2383 = vsub.s32 2, %v2382
        %v2384 = vrot.slane %v883, %v2383
        %v2393 = vunpack.c.l.b16 %v2373
        %v2394 = vunpack.c.l.b16 %v2374
        %v2395 = vunpack.c.l.b16 %v2375
        %v2396 = vunpack.c.l.b16 %v2376
        %v2397 = vunpack.c.l.b16 %v2377
        %v2398 = vunpack.c.l.b16 %v2378
        %v2399 = vunpack.c.l.b16 %v2379
        %v2400 = vunpack.c.l.b16 %v2380
        %v2401 = vpack.c.b16 %v2394, %v2393
        %v2402 = vpack.c.b16 %v2396, %v2395
        %v2403 = vpack.c.b16 %v2398, %v2397
        %v2404 = vpack.c.b16 %v2400, %v2399
        %vm2409 = vcmask 523264
        %v2411 = vsel %vm2409, %v2372, 0
        %2413 = vmatprep.subr.bf16.mxu0 0
        %2414 = vmatpush1.bf16.msra.mxu0 %v2401
        %2415 = vmatprep.subr.bf16.mxu0 0
        %2416 = vmatpush1.bf16.msra.mxu0 %v2402
        %2417 = vmatprep.subr.bf16.mxu0 0
        %2418 = vmatpush1.bf16.msra.mxu0 %v2403
        %2419 = vmatprep.subr.bf16.mxu0 0
        %2420 = vmatpush1.bf16.msra.mxu0 %v2404
        %2421 = vmatprep.subr.bf16.mxu0 0
        %2422 = vmatpush1.bf16.msra.mxu0 0
        %2423 = vmatprep.subr.bf16.mxu0 0
        %2424 = vmatpush1.bf16.msra.mxu0 0
        %2425 = vmatprep.subr.bf16.mxu0 0
        %2426 = vmatpush1.bf16.msra.mxu0 0
        %2427 = vmatprep.subr.bf16.mxu0 0
        %2428 = vmatpush1.bf16.msra.mxu0 0
        %2429 = vmatprep.subr.bf16.mxu0 0
        %2430 = vmatpush1.bf16.msra.mxu0 0
        %2431 = vmatprep.subr.bf16.mxu0 0
        %2432 = vmatpush1.bf16.msra.mxu0 0
        %2433 = vmatprep.subr.bf16.mxu0 0
        %2434 = vmatpush1.bf16.msra.mxu0 0
        %2435 = vmatprep.subr.bf16.mxu0 0
        %2436 = vmatpush1.bf16.msra.mxu0 0
        %2437 = vmatprep.subr.bf16.mxu0 0
        %2438 = vmatpush1.bf16.msra.mxu0 0
        %2439 = vmatprep.subr.bf16.mxu0 0
        %2440 = vmatpush1.bf16.msra.mxu0 0
        %2441 = vmatprep.subr.bf16.mxu0 0
        %2442 = vmatpush1.bf16.msra.mxu0 0
        %2443 = vmatprep.subr.bf16.mxu0 0
        %2444 = vmatpush1.bf16.msra.mxu0 0
        %2445 = vmatprep.mubr.bf16.mxu0 0
        %2446 = vmatmul.mubr.bf16.gmra.mrb[0].mxu0 %v2411
        %v2447 = vpop.f32.mrb[0].mxu0
        %v2448 = vadd.f32 %v2384, %v2447
        %v2449 = vpop.f32.mrb[0].mxu0
        %v2450 = vpop.f32.mrb[0].mxu0
        %v2451 = vpop.f32.mrb[0].mxu0
        %2452 = vdwg.mxu0
        %v2453 = vadd.f32 %v2448, %v2273
        %2454 = vst.msk [vmem:[%s864] sm:$0xff] %vm908, %v2453
        %s2455 = sand.u32 %s415, 1
        %s2456 = scalar_lea.sflag [#allocation4], %s2455
        %s2457 = sand.u32 %s415, 1
        %s2458 = smul.addr %s2457, 8
        %s2459 = scalar_lea.vmem [#allocation28], %s2458
        %s2460 = sand.u32 %s51, 1
        %s2461 = scalar_lea.sflag [#allocation30], %s2460
        %s2462 = sand.u32 %s441, 1
        %s2463 = smul.addr %s2462, 8
        %s2464 = scalar_lea.vmem [#allocation29], %s2463
        %s2465 = sand.u32 %s51, 1
        %s2466 = scalar_lea.sflag [#allocation30], %s2465
        %s2467 = sand.u32 %s467, 1
        %s2468 = smul.addr %s2467, 8
        %s2469 = scalar_lea.vmem [#allocation31], %s2468
        // Predicated region
        $region149: #{tpu_custom_call.1} parent=83 // pred_check
          %p2470 = pneg %p425
        $region150: #{tpu_custom_call.1} parent=83 // pred_check_branch
          %2472 = sbr.rel (%p2470) target = $region152
        $region151: #{tpu_custom_call.1} parent=83 // pred_region
          %s2474 = ssub.s32 128, 128
          %2475 = vsyncadd %s2456, %s2474
          %s2476 = smul.addr %s51, 128
          %s2477 = scalar_lea.hbm %s16, %s2476
          %s2479 = sshll.u32 %s2459, 4
          %s2480 = int_to_ptr.vmem [resolvable:$true] %s2479
          %2482 = dma.vmem_to_hbm [thread:$0]  %s2480, 128, %s2477, %s2456
        $region152: #{tpu_custom_call.1} parent=83 // pred_fallthru
          _
        // Predicated region
        $region153: #{tpu_custom_call.1} parent=83 // pred_check
          %p2483 = pneg %p451
        $region154: #{tpu_custom_call.1} parent=83 // pred_check_branch
          %2485 = sbr.rel (%p2483) target = $region156
        $region155: #{tpu_custom_call.1} parent=83 // pred_region
          %s2487 = ssub.s32 128, 128
          %2488 = vsyncadd %s2461, %s2487
          %s2489 = smul.addr %s51, 128
          %s2490 = scalar_lea.hbm %s17, %s2489
          %s2492 = sshll.u32 %s2464, 4
          %s2493 = int_to_ptr.vmem [resolvable:$true] %s2492
          %2495 = dma.vmem_to_hbm [thread:$0]  %s2493, 128, %s2490, %s2461
        $region156: #{tpu_custom_call.1} parent=83 // pred_fallthru
          _
        // Predicated region
        $region157: #{tpu_custom_call.1} parent=83 // pred_check
          %p2496 = pneg %p477
        $region158: #{tpu_custom_call.1} parent=83 // pred_check_branch
          %2498 = sbr.rel (%p2496) target = $region160
        $region159: #{tpu_custom_call.1} parent=83 // pred_region
          %s2500 = ssub.s32 128, 128
          %2501 = vsyncadd %s2466, %s2500
          %s2502 = smul.addr %s51, 128
          %s2503 = scalar_lea.hbm %s18, %s2502
          %s2505 = sshll.u32 %s2469, 4
          %s2506 = int_to_ptr.vmem [resolvable:$true] %s2505
          %2508 = dma.vmem_to_hbm [thread:$0]  %s2506, 128, %s2503, %s2466
        $region160: #{tpu_custom_call.1} parent=83 // pred_fallthru
          _
      $region84: #{tpu_custom_call.1} parent=5 // pred_fallthru
        _
      %p2509 = scmp.le.s32.totalorder 2, %s46
      // Predicated region
      $region161: #{tpu_custom_call.1} parent=5 // pred_check
        %p2510 = pneg %p2509
      $region162: #{tpu_custom_call.1} parent=5 // pred_check_branch
        %2512 = sbr.rel (%p2510) target = $region164
      $region163: #{tpu_custom_call.1} parent=5 // pred_region
        %s2513 = ssub.s32 %s46, 2
        // Predicated region
        $region165: #{tpu_custom_call.1} parent=163 // pred_check
          %p2514 = pneg %p431
        $region166: #{tpu_custom_call.1} parent=163 // pred_check_branch
          %2516 = sbr.rel (%p2514) target = $region168
        $region167: #{tpu_custom_call.1} parent=163 // pred_region
          %s2517 = sand.u32 %s416, 1
          %s2518 = scalar_lea.sflag [#allocation4], %s2517
          %s2519 = sand.u32 %s416, 1
          %s2520 = smul.addr %s2519, 8
          %s2521 = scalar_lea.vmem [#allocation28], %s2520
          %2522 = dma.done %s2518, 128
        $region168: #{tpu_custom_call.1} parent=163 // pred_fallthru
          _
        // Predicated region
        $region169: #{tpu_custom_call.1} parent=163 // pred_check
          %p2523 = pneg %p457
        $region170: #{tpu_custom_call.1} parent=163 // pred_check_branch
          %2525 = sbr.rel (%p2523) target = $region172
        $region171: #{tpu_custom_call.1} parent=163 // pred_region
          %s2526 = sand.u32 %s52, 1
          %s2527 = scalar_lea.sflag [#allocation30], %s2526
          %s2528 = sand.u32 %s442, 1
          %s2529 = smul.addr %s2528, 8
          %s2530 = scalar_lea.vmem [#allocation29], %s2529
          %2531 = dma.done %s2527, 128
        $region172: #{tpu_custom_call.1} parent=163 // pred_fallthru
          _
        // Predicated region
        $region173: #{tpu_custom_call.1} parent=163 // pred_check
          %p2532 = pneg %p483
        $region174: #{tpu_custom_call.1} parent=163 // pred_check_branch
          %2534 = sbr.rel (%p2532) target = $region176
        $region175: #{tpu_custom_call.1} parent=163 // pred_region
          %s2535 = sand.u32 %s52, 1
          %s2536 = scalar_lea.sflag [#allocation30], %s2535
          %s2537 = sand.u32 %s468, 1
          %s2538 = smul.addr %s2537, 8
          %s2539 = scalar_lea.vmem [#allocation31], %s2538
          %2540 = dma.done %s2536, 128
        $region176: #{tpu_custom_call.1} parent=163 // pred_fallthru
          _
      $region164: #{tpu_custom_call.1} parent=5 // pred_fallthru
        _
    $region6: #{tpu_custom_call.1} parent=1 // loop_footer
      %s50 = sadd.s32 1, %s46
    $region7: #{tpu_custom_call.1} parent=1 // loop_footer_branch
      %45 = sbr.rel target = $region3
    $region8: #{tpu_custom_call.1} parent=1 // loop_exit
      _
    %2541 = vsyncpa [#allocation3], 1
    %s2542 = scalar_lea.sflag [#allocation3], 1
    %2543 = vsyncpa %s2542, 1
    %2544 = vsyncpa [#allocation6], 1
    %s2545 = scalar_lea.sflag [#allocation6], 1
    %2546 = vsyncpa %s2545, 1
    %2547 = vsyncpa [#allocation9], 1
    %s2548 = scalar_lea.sflag [#allocation9], 1
    %2549 = vsyncpa %s2548, 1
    %2550 = vsyncpa [#allocation12], 1
    %2551 = vsyncpa [#allocation15], 1
    %2552 = vsyncpa [#allocation18], 1
    %2553 = vsyncpa [#allocation21], 1
    %2554 = vsyncpa [#allocation24], 1
    %2555 = vsyncpa [#allocation27], 1
    %2556 = vsyncpa [#allocation4], 1
    %s2557 = scalar_lea.sflag [#allocation4], 1
    %2558 = vsyncpa %s2557, 1
    %2559 = vsyncpa [#allocation30], 1
    %s2560 = scalar_lea.sflag [#allocation30], 1
    %2561 = vsyncpa %s2560, 1

// kernel: tpu_custom_call.1
$region0: #{tpu_custom_call.1}
  #allocation0 [shape = 'u32[]', space=smem, size = 0x4, offset = 0x4, fixed_abs, tag = 'smem constant byte address 0x4 - core index']
  #allocation1 [shape = 'u32[144,128]{1,0:T(1,128)}', space=vmem, size = 0x12000, scoped, tag = 'internal scratch']
  %s0 = inlined_call_operand.hbm [shape: f32[2,8,32], index: 0, kind: input, shape index: {}]
  %s1 = inlined_call_operand.hbm [shape: bf16[2,8,32], index: 1, kind: input, shape index: {}]
  %s2 = inlined_call_operand.hbm [shape: f32[2,1,8], index: 2, kind: input, shape index: {}]
  %s3 = inlined_call_operand.hbm [shape: f32[2,1,8], index: 3, kind: input, shape index: {}]
  %s4 = inlined_call_operand.hbm [shape: bf16[32,32], index: 4, kind: input, shape index: {}]
  %s5 = inlined_call_operand.hbm [shape: bf16[32,64], index: 5, kind: input, shape index: {}]
  %s6 = inlined_call_operand.hbm [shape: bf16[32,32], index: 6, kind: input, shape index: {}]
  %s7 = inlined_call_operand.hbm [shape: bf16[32,32], index: 7, kind: input, shape index: {}]
  %s8 = inlined_call_operand.hbm [shape: bf16[32,64], index: 8, kind: input, shape index: {}]
  %s9 = inlined_call_operand.hbm [shape: bf16[32,32], index: 9, kind: input, shape index: {}]
  %s10 = inlined_call_operand.hbm [shape: f32[11,32], index: 10, kind: input, shape index: {}]
  %s11 = inlined_call_operand.hbm [shape: f32[1,64], index: 11, kind: input, shape index: {}]
  %s12 = inlined_call_operand.hbm [shape: f32[1,64], index: 12, kind: input, shape index: {}]
  %s13 = inlined_call_operand.hbm [shape: bf16[32,64], index: 13, kind: input, shape index: {}]
  %s14 = inlined_call_operand.hbm [shape: f32[1,64], index: 14, kind: input, shape index: {}]
  %s15 = inlined_call_operand.hbm [shape: bf16[64,32], index: 15, kind: input, shape index: {}]
  %s16 = inlined_call_operand.hbm [shape: f32[2,8,32], index: 16, kind: output, shape index: {0}]
  %s17 = inlined_call_operand.hbm [shape: f32[2,8,8], index: 17, kind: output, shape index: {1}]
  %s18 = inlined_call_operand.hbm [shape: f32[2,8,32], index: 18, kind: output, shape index: {2}]
  %19 = xla_tuple %s16, %s17, %s18
  %s20 = sld [smem:[#allocation0]]
  $region177: #{tpu_custom_call.1} parent=0
    _
  %s22 = ssub.s32 1, %s20
  %s23 = scalar_select 0, %s22, %s20
  $region1: #{tpu_custom_call.1} parent=0
    #allocation2 [shape = 'u8[8192]{0}', space=vmem, size = 0x2000, scoped, tag = 'input window, operand 0']
    #allocation3 [shape = 's32[2]{0}', space=sflag, size = 0x8, scoped, tag = 'scoped memory for tpu_custom_call.1']
    #allocation4 [shape = 's32[2]{0}', space=sflag, size = 0x8, scoped, tag = 'scoped memory for tpu_custom_call.1']
    #allocation5 [shape = 'u8[4096]{0}', space=vmem, size = 0x1000, scoped, tag = 'input window, operand 1']
    #allocation6 [shape = 's32[2]{0}', space=sflag, size = 0x8, scoped, tag = 'scoped memory for tpu_custom_call.1']
    #allocation7 [shape = 'u8[1024]{0}', space=vmem, size = 0x400, scoped, tag = 'input window, operand 2']
    #allocation8 [shape = 'u8[1024]{0}', space=vmem, size = 0x400, scoped, tag = 'input window, operand 3']
    #allocation9 [shape = 's32[2]{0}', space=sflag, size = 0x8, scoped, tag = 'scoped memory for tpu_custom_call.1']
    #allocation10 [shape = 'u8[8192]{0}', space=vmem, size = 0x2000, scoped, tag = 'input window, operand 4, single buffered']
    #allocation11 [shape = 'u8[8192]{0}', space=vmem, size = 0x2000, scoped, tag = 'input window, operand 5, single buffered']
    #allocation12 [shape = 's32[1]{0}', space=sflag, size = 0x4, scoped, tag = 'scoped memory for tpu_custom_call.1']
    #allocation13 [shape = 'u8[8192]{0}', space=vmem, size = 0x2000, scoped, tag = 'input window, operand 6, single buffered']
    #allocation14 [shape = 'u8[8192]{0}', space=vmem, size = 0x2000, scoped, tag = 'input window, operand 7, single buffered']
    #allocation15 [shape = 's32[1]{0}', space=sflag, size = 0x4, scoped, tag = 'scoped memory for tpu_custom_call.1']
    #allocation16 [shape = 'u8[8192]{0}', space=vmem, size = 0x2000, scoped, tag = 'input window, operand 8, single buffered']
    #allocation17 [shape = 'u8[8192]{0}', space=vmem, size = 0x2000, scoped, tag = 'input window, operand 9, single buffered']
    #allocation18 [shape = 's32[1]{0}', space=sflag, size = 0x4, scoped, tag = 'scoped memory for tpu_custom_call.1']
    #allocation19 [shape = 'u8[8192]{0}', space=vmem, size = 0x2000, scoped, tag = 'input window, operand 10, single buffered']
    #allocation20 [shape = 'u8[512]{0}', space=vmem, size = 0x400, scoped, tag = 'input window, operand 11, single buffered']
    #allocation21 [shape = 's32[1]{0}', space=sflag, size = 0x4, scoped, tag = 'scoped memory for tpu_custom_call.1']
    #allocation22 [shape = 'u8[512]{0}', space=vmem, size = 0x400, scoped, tag = 'input window, operand 12, single buffered']
    #allocation23 [shape = 'u8[8192]{0}', space=vmem, size = 0x2000, scoped, tag = 'input window, operand 13, single buffered']
    #allocation24 [shape = 's32[1]{0}', space=sflag, size = 0x4, scoped, tag = 'scoped memory for tpu_custom_call.1']
    #allocation25 [shape = 'u8[512]{0}', space=vmem, size = 0x400, scoped, tag = 'input window, operand 14, single buffered']
    #allocation26 [shape = 'u8[16384]{0}', space=vmem, size = 0x4000, scoped, tag = 'input window, operand 15, single buffered']
    #allocation27 [shape = 's32[1]{0}', space=sflag, size = 0x4, scoped, tag = 'scoped memory for tpu_custom_call.1']
    #allocation28 [shape = 'u8[8192]{0}', space=vmem, size = 0x2000, scoped, tag = 'output window, operand 0']
    #allocation29 [shape = 'u8[8192]{0}', space=vmem, size = 0x2000, scoped, tag = 'output window, operand 1']
    #allocation30 [shape = 's32[2]{0}', space=sflag, size = 0x8, scoped, tag = 'scoped memory for tpu_custom_call.1']
    #allocation31 [shape = 'u8[8192]{0}', space=vmem, size = 0x2000, scoped, tag = 'output window, operand 2']
    %24 = vsyncpa [#allocation3], 0
    %s25 = scalar_lea.sflag [#allocation3], 1
    %26 = vsyncpa %s25, 0
    %27 = vsyncpa [#allocation6], 0
    %s28 = scalar_lea.sflag [#allocation6], 1
    %29 = vsyncpa %s28, 0
    %30 = vsyncpa [#allocation9], 0
    %s31 = scalar_lea.sflag [#allocation9], 1
    %32 = vsyncpa %s31, 0
    %33 = vsyncpa [#allocation12], 0
    %34 = vsyncpa [#allocation15], 0
    %35 = vsyncpa [#allocation18], 0
    %36 = vsyncpa [#allocation21], 0
    %37 = vsyncpa [#allocation24], 0
    %38 = vsyncpa [#allocation27], 0
    %39 = vsyncpa [#allocation4], 0
    %s40 = scalar_lea.sflag [#allocation4], 1
    %41 = vsyncpa %s40, 0
    %42 = vsyncpa [#allocation30], 0
    %s43 = scalar_lea.sflag [#allocation30], 1
    %44 = vsyncpa %s43, 0
    loop: start=0, step=1, limit=4
    $region2: #{tpu_custom_call.1} parent=1 // loop_pre_header
      _
    $region3: #{tpu_custom_call.1} parent=1 // loop_header
      %s46 = sphi 0, %s50
      %p47 = scmp.ge.s32.totalorder %s46, 4
      %s56 = sphi 0, %s58
      %s59 = sphi 0, %s56
      %s60 = sphi 0, %s59
      %s76 = sphi 0, %s60
      %s82 = sphi 0, %s84
      %s85 = sphi 0, %s82
      %s86 = sphi 0, %s85
      %s102 = sphi 0, %s86
      %s108 = sphi 0, %s110
      %s111 = sphi 0, %s108
      %s112 = sphi 0, %s111
      %s128 = sphi 0, %s112
      %s134 = sphi 0, %s136
      %s137 = sphi 0, %s134
      %s138 = sphi 0, %s137
      %s154 = sphi 0, %s138
      %s158 = sphi 0, %s158
      %s160 = sphi 0, %s158
      %s161 = sphi 0, %s160
      %s175 = sphi 0, %s161
      %s179 = sphi 0, %s179
      %s181 = sphi 0, %s179
      %s182 = sphi 0, %s181
      %s196 = sphi 0, %s182
      %s200 = sphi 0, %s200
      %s202 = sphi 0, %s200
      %s203 = sphi 0, %s202
      %s217 = sphi 0, %s203
      %s221 = sphi 0, %s221
      %s223 = sphi 0, %s221
      %s224 = sphi 0, %s223
      %s238 = sphi 0, %s224
      %s242 = sphi 0, %s242
      %s244 = sphi 0, %s242
      %s245 = sphi 0, %s244
      %s259 = sphi 0, %s245
      %s263 = sphi 0, %s263
      %s265 = sphi 0, %s263
      %s266 = sphi 0, %s265
      %s280 = sphi 0, %s266
      %s284 = sphi 0, %s284
      %s286 = sphi 0, %s284
      %s287 = sphi 0, %s286
      %s301 = sphi 0, %s287
      %s305 = sphi 0, %s305
      %s307 = sphi 0, %s305
      %s308 = sphi 0, %s307
      %s322 = sphi 0, %s308
      %s326 = sphi 0, %s326
      %s328 = sphi 0, %s326
      %s329 = sphi 0, %s328
      %s343 = sphi 0, %s329
      %s347 = sphi 0, %s347
      %s349 = sphi 0, %s347
      %s350 = sphi 0, %s349
      %s364 = sphi 0, %s350
      %s368 = sphi 0, %s368
      %s370 = sphi 0, %s368
      %s371 = sphi 0, %s370
      %s385 = sphi 0, %s371
      %s389 = sphi 0, %s389
      %s391 = sphi 0, %s389
      %s392 = sphi 0, %s391
      %s406 = sphi 0, %s392
      %s412 = sphi 0, %s414
      %s415 = sphi 0, %s412
      %s416 = sphi 0, %s415
      %s432 = sphi 0, %s416
      %s438 = sphi 0, %s440
      %s441 = sphi 0, %s438
      %s442 = sphi 0, %s441
      %s458 = sphi 0, %s442
      %s464 = sphi 0, %s466
      %s467 = sphi 0, %s464
      %s468 = sphi 0, %s467
      %s484 = sphi 0, %s468
    $region4: #{tpu_custom_call.1} parent=1 // loop_header_branch
      %49 = sbr.rel (%p47) target = $region8
    $region5: #{tpu_custom_call.1} parent=1 // loop_body
      %s51 = ssub.s32 %s46, 1
      %s52 = ssub.s32 %s46, 2
      %s53 = sadd.s32 %s46, 1
      %s54 = ssub.s32 %s46, %s53
      %p55 = scmp.eq.s32.totalorder %s54, 0
      %s57 = sadd.s32 %s56, 1
      %s58 = scalar_select %p55, %s56, %s57
      %p61 = pneg %p55
      %p62 = scmp.eq.s32.totalorder %s46, 1
      %p63 = por %p61, %p62
      %p64 = scmp.ne.s32.totalorder %s56, %s59
      %p65 = scmp.eq.s32.totalorder %s46, 0
      %p66 = por %p64, %p65
      %p67 = scmp.ne.s32.totalorder %s56, %s59
      %p68 = scmp.eq.s32.totalorder %s51, 1
      %p69 = por %p67, %p68
      %p70 = scmp.ne.s32.totalorder %s59, %s60
      %p71 = scmp.eq.s32.totalorder %s51, 0
      %p72 = por %p70, %p71
      %p73 = scmp.ne.s32.totalorder %s59, %s60
      %p74 = scmp.eq.s32.totalorder %s52, 1
      %p75 = por %p73, %p74
      %p77 = scmp.ne.s32.totalorder %s60, %s76
      %p78 = scmp.eq.s32.totalorder %s52, 0
      %p79 = por %p77, %p78
      %s80 = ssub.s32 %s46, %s53
      %p81 = scmp.eq.s32.totalorder %s80, 0
      %s83 = sadd.s32 %s82, 1
      %s84 = scalar_select %p81, %s82, %s83
      %p87 = pneg %p81
      %p88 = scmp.eq.s32.totalorder %s46, 1
      %p89 = por %p87, %p88
      %p90 = scmp.ne.s32.totalorder %s82, %s85
      %p91 = scmp.eq.s32.totalorder %s46, 0
      %p92 = por %p90, %p91
      %p93 = scmp.ne.s32.totalorder %s82, %s85
      %p94 = scmp.eq.s32.totalorder %s51, 1
      %p95 = por %p93, %p94
      %p96 = scmp.ne.s32.totalorder %s85, %s86
      %p97 = scmp.eq.s32.totalorder %s51, 0
      %p98 = por %p96, %p97
      %p99 = scmp.ne.s32.totalorder %s85, %s86
      %p100 = scmp.eq.s32.totalorder %s52, 1
      %p101 = por %p99, %p100
      %p103 = scmp.ne.s32.totalorder %s86, %s102
      %p104 = scmp.eq.s32.totalorder %s52, 0
      %p105 = por %p103, %p104
      %s106 = ssub.s32 %s46, %s53
      %p107 = scmp.eq.s32.totalorder %s106, 0
      %s109 = sadd.s32 %s108, 1
      %s110 = scalar_select %p107, %s108, %s109
      %p113 = pneg %p107
      %p114 = scmp.eq.s32.totalorder %s46, 1
      %p115 = por %p113, %p114
      %p116 = scmp.ne.s32.totalorder %s108, %s111
      %p117 = scmp.eq.s32.totalorder %s46, 0
      %p118 = por %p116, %p117
      %p119 = scmp.ne.s32.totalorder %s108, %s111
      %p120 = scmp.eq.s32.totalorder %s51, 1
      %p121 = por %p119, %p120
      %p122 = scmp.ne.s32.totalorder %s111, %s112
      %p123 = scmp.eq.s32.totalorder %s51, 0
      %p124 = por %p122, %p123
      %p125 = scmp.ne.s32.totalorder %s111, %s112
      %p126 = scmp.eq.s32.totalorder %s52, 1
      %p127 = por %p125, %p126
      %p129 = scmp.ne.s32.totalorder %s112, %s128
      %p130 = scmp.eq.s32.totalorder %s52, 0
      %p131 = por %p129, %p130
      %s132 = ssub.s32 %s46, %s53
      %p133 = scmp.eq.s32.totalorder %s132, 0
      %s135 = sadd.s32 %s134, 1
      %s136 = scalar_select %p133, %s134, %s135
      %p139 = pneg %p133
      %p140 = scmp.eq.s32.totalorder %s46, 1
      %p141 = por %p139, %p140
      %p142 = scmp.ne.s32.totalorder %s134, %s137
      %p143 = scmp.eq.s32.totalorder %s46, 0
      %p144 = por %p142, %p143
      %p145 = scmp.ne.s32.totalorder %s134, %s137
      %p146 = scmp.eq.s32.totalorder %s51, 1
      %p147 = por %p145, %p146
      %p148 = scmp.ne.s32.totalorder %s137, %s138
      %p149 = scmp.eq.s32.totalorder %s51, 0
      %p150 = por %p148, %p149
      %p151 = scmp.ne.s32.totalorder %s137, %s138
      %p152 = scmp.eq.s32.totalorder %s52, 1
      %p153 = por %p151, %p152
      %p155 = scmp.ne.s32.totalorder %s138, %s154
      %p156 = scmp.eq.s32.totalorder %s52, 0
      %p157 = por %p155, %p156
      %s159 = sadd.s32 %s158, 1
      %p162 = scmp.eq.s32.totalorder %s46, 1
      %p163 = scmp.ne.s32.totalorder %s158, %s160
      %p164 = scmp.eq.s32.totalorder %s46, 0
      %p165 = por %p163, %p164
      %p166 = scmp.ne.s32.totalorder %s158, %s160
      %p167 = scmp.eq.s32.totalorder %s51, 1
      %p168 = por %p166, %p167
      %p169 = scmp.ne.s32.totalorder %s160, %s161
      %p170 = scmp.eq.s32.totalorder %s51, 0
      %p171 = por %p169, %p170
      %p172 = scmp.ne.s32.totalorder %s160, %s161
      %p173 = scmp.eq.s32.totalorder %s52, 1
      %p174 = por %p172, %p173
      %p176 = scmp.ne.s32.totalorder %s161, %s175
      %p177 = scmp.eq.s32.totalorder %s52, 0
      %p178 = por %p176, %p177
      %s180 = sadd.s32 %s179, 1
      %p183 = scmp.eq.s32.totalorder %s46, 1
      %p184 = scmp.ne.s32.totalorder %s179, %s181
      %p185 = scmp.eq.s32.totalorder %s46, 0
      %p186 = por %p184, %p185
      %p187 = scmp.ne.s32.totalorder %s179, %s181
      %p188 = scmp.eq.s32.totalorder %s51, 1
      %p189 = por %p187, %p188
      %p190 = scmp.ne.s32.totalorder %s181, %s182
      %p191 = scmp.eq.s32.totalorder %s51, 0
      %p192 = por %p190, %p191
      %p193 = scmp.ne.s32.totalorder %s181, %s182
      %p194 = scmp.eq.s32.totalorder %s52, 1
      %p195 = por %p193, %p194
      %p197 = scmp.ne.s32.totalorder %s182, %s196
      %p198 = scmp.eq.s32.totalorder %s52, 0
      %p199 = por %p197, %p198
      %s201 = sadd.s32 %s200, 1
      %p204 = scmp.eq.s32.totalorder %s46, 1
      %p205 = scmp.ne.s32.totalorder %s200, %s202
      %p206 = scmp.eq.s32.totalorder %s46, 0
      %p207 = por %p205, %p206
      %p208 = scmp.ne.s32.totalorder %s200, %s202
      %p209 = scmp.eq.s32.totalorder %s51, 1
      %p210 = por %p208, %p209
      %p211 = scmp.ne.s32.totalorder %s202, %s203
      %p212 = scmp.eq.s32.totalorder %s51, 0
      %p213 = por %p211, %p212
      %p214 = scmp.ne.s32.totalorder %s202, %s203
      %p215 = scmp.eq.s32.totalorder %s52, 1
      %p216 = por %p214, %p215
      %p218 = scmp.ne.s32.totalorder %s203, %s217
      %p219 = scmp.eq.s32.totalorder %s52, 0
      %p220 = por %p218, %p219
      %s222 = sadd.s32 %s221, 1
      %p225 = scmp.eq.s32.totalorder %s46, 1
      %p226 = scmp.ne.s32.totalorder %s221, %s223
      %p227 = scmp.eq.s32.totalorder %s46, 0
      %p228 = por %p226, %p227
      %p229 = scmp.ne.s32.totalorder %s221, %s223
      %p230 = scmp.eq.s32.totalorder %s51, 1
      %p231 = por %p229, %p230
      %p232 = scmp.ne.s32.totalorder %s223, %s224
      %p233 = scmp.eq.s32.totalorder %s51, 0
      %p234 = por %p232, %p233
      %p235 = scmp.ne.s32.totalorder %s223, %s224
      %p236 = scmp.eq.s32.totalorder %s52, 1
      %p237 = por %p235, %p236
      %p239 = scmp.ne.s32.totalorder %s224, %s238
      %p240 = scmp.eq.s32.totalorder %s52, 0
      %p241 = por %p239, %p240
      %s243 = sadd.s32 %s242, 1
      %p246 = scmp.eq.s32.totalorder %s46, 1
      %p247 = scmp.ne.s32.totalorder %s242, %s244
      %p248 = scmp.eq.s32.totalorder %s46, 0
      %p249 = por %p247, %p248
      %p250 = scmp.ne.s32.totalorder %s242, %s244
      %p251 = scmp.eq.s32.totalorder %s51, 1
      %p252 = por %p250, %p251
      %p253 = scmp.ne.s32.totalorder %s244, %s245
      %p254 = scmp.eq.s32.totalorder %s51, 0
      %p255 = por %p253, %p254
      %p256 = scmp.ne.s32.totalorder %s244, %s245
      %p257 = scmp.eq.s32.totalorder %s52, 1
      %p258 = por %p256, %p257
      %p260 = scmp.ne.s32.totalorder %s245, %s259
      %p261 = scmp.eq.s32.totalorder %s52, 0
      %p262 = por %p260, %p261
      %s264 = sadd.s32 %s263, 1
      %p267 = scmp.eq.s32.totalorder %s46, 1
      %p268 = scmp.ne.s32.totalorder %s263, %s265
      %p269 = scmp.eq.s32.totalorder %s46, 0
      %p270 = por %p268, %p269
      %p271 = scmp.ne.s32.totalorder %s263, %s265
      %p272 = scmp.eq.s32.totalorder %s51, 1
      %p273 = por %p271, %p272
      %p274 = scmp.ne.s32.totalorder %s265, %s266
      %p275 = scmp.eq.s32.totalorder %s51, 0
      %p276 = por %p274, %p275
      %p277 = scmp.ne.s32.totalorder %s265, %s266
      %p278 = scmp.eq.s32.totalorder %s52, 1
      %p279 = por %p277, %p278
      %p281 = scmp.ne.s32.totalorder %s266, %s280
      %p282 = scmp.eq.s32.totalorder %s52, 0
      %p283 = por %p281, %p282
      %s285 = sadd.s32 %s284, 1
      %p288 = scmp.eq.s32.totalorder %s46, 1
      %p289 = scmp.ne.s32.totalorder %s284, %s286
      %p290 = scmp.eq.s32.totalorder %s46, 0
      %p291 = por %p289, %p290
      %p292 = scmp.ne.s32.totalorder %s284, %s286
      %p293 = scmp.eq.s32.totalorder %s51, 1
      %p294 = por %p292, %p293
      %p295 = scmp.ne.s32.totalorder %s286, %s287
      %p296 = scmp.eq.s32.totalorder %s51, 0
      %p297 = por %p295, %p296
      %p298 = scmp.ne.s32.totalorder %s286, %s287
      %p299 = scmp.eq.s32.totalorder %s52, 1
      %p300 = por %p298, %p299
      %p302 = scmp.ne.s32.totalorder %s287, %s301
      %p303 = scmp.eq.s32.totalorder %s52, 0
      %p304 = por %p302, %p303
      %s306 = sadd.s32 %s305, 1
      %p309 = scmp.eq.s32.totalorder %s46, 1
      %p310 = scmp.ne.s32.totalorder %s305, %s307
      %p311 = scmp.eq.s32.totalorder %s46, 0
      %p312 = por %p310, %p311
      %p313 = scmp.ne.s32.totalorder %s305, %s307
      %p314 = scmp.eq.s32.totalorder %s51, 1
      %p315 = por %p313, %p314
      %p316 = scmp.ne.s32.totalorder %s307, %s308
      %p317 = scmp.eq.s32.totalorder %s51, 0
      %p318 = por %p316, %p317
      %p319 = scmp.ne.s32.totalorder %s307, %s308
      %p320 = scmp.eq.s32.totalorder %s52, 1
      %p321 = por %p319, %p320
      %p323 = scmp.ne.s32.totalorder %s308, %s322
      %p324 = scmp.eq.s32.totalorder %s52, 0
      %p325 = por %p323, %p324
      %s327 = sadd.s32 %s326, 1
      %p330 = scmp.eq.s32.totalorder %s46, 1
      %p331 = scmp.ne.s32.totalorder %s326, %s328
      %p332 = scmp.eq.s32.totalorder %s46, 0
      %p333 = por %p331, %p332
      %p334 = scmp.ne.s32.totalorder %s326, %s328
      %p335 = scmp.eq.s32.totalorder %s51, 1
      %p336 = por %p334, %p335
      %p337 = scmp.ne.s32.totalorder %s328, %s329
      %p338 = scmp.eq.s32.totalorder %s51, 0
      %p339 = por %p337, %p338
      %p340 = scmp.ne.s32.totalorder %s328, %s329
      %p341 = scmp.eq.s32.totalorder %s52, 1
      %p342 = por %p340, %p341
      %p344 = scmp.ne.s32.totalorder %s329, %s343
      %p345 = scmp.eq.s32.totalorder %s52, 0
      %p346 = por %p344, %p345
      %s348 = sadd.s32 %s347, 1
      %p351 = scmp.eq.s32.totalorder %s46, 1
      %p352 = scmp.ne.s32.totalorder %s347, %s349
      %p353 = scmp.eq.s32.totalorder %s46, 0
      %p354 = por %p352, %p353
      %p355 = scmp.ne.s32.totalorder %s347, %s349
      %p356 = scmp.eq.s32.totalorder %s51, 1
      %p357 = por %p355, %p356
      %p358 = scmp.ne.s32.totalorder %s349, %s350
      %p359 = scmp.eq.s32.totalorder %s51, 0
      %p360 = por %p358, %p359
      %p361 = scmp.ne.s32.totalorder %s349, %s350
      %p362 = scmp.eq.s32.totalorder %s52, 1
      %p363 = por %p361, %p362
      %p365 = scmp.ne.s32.totalorder %s350, %s364
      %p366 = scmp.eq.s32.totalorder %s52, 0
      %p367 = por %p365, %p366
      %s369 = sadd.s32 %s368, 1
      %p372 = scmp.eq.s32.totalorder %s46, 1
      %p373 = scmp.ne.s32.totalorder %s368, %s370
      %p374 = scmp.eq.s32.totalorder %s46, 0
      %p375 = por %p373, %p374
      %p376 = scmp.ne.s32.totalorder %s368, %s370
      %p377 = scmp.eq.s32.totalorder %s51, 1
      %p378 = por %p376, %p377
      %p379 = scmp.ne.s32.totalorder %s370, %s371
      %p380 = scmp.eq.s32.totalorder %s51, 0
      %p381 = por %p379, %p380
      %p382 = scmp.ne.s32.totalorder %s370, %s371
      %p383 = scmp.eq.s32.totalorder %s52, 1
      %p384 = por %p382, %p383
      %p386 = scmp.ne.s32.totalorder %s371, %s385
      %p387 = scmp.eq.s32.totalorder %s52, 0
      %p388 = por %p386, %p387
      %s390 = sadd.s32 %s389, 1
      %p393 = scmp.eq.s32.totalorder %s46, 1
      %p394 = scmp.ne.s32.totalorder %s389, %s391
      %p395 = scmp.eq.s32.totalorder %s46, 0
      %p396 = por %p394, %p395
      %p397 = scmp.ne.s32.totalorder %s389, %s391
      %p398 = scmp.eq.s32.totalorder %s51, 1
      %p399 = por %p397, %p398
      %p400 = scmp.ne.s32.totalorder %s391, %s392
      %p401 = scmp.eq.s32.totalorder %s51, 0
      %p402 = por %p400, %p401
      %p403 = scmp.ne.s32.totalorder %s391, %s392
      %p404 = scmp.eq.s32.totalorder %s52, 1
      %p405 = por %p403, %p404
      %p407 = scmp.ne.s32.totalorder %s392, %s406
      %p408 = scmp.eq.s32.totalorder %s52, 0
      %p409 = por %p407, %p408
      %s410 = ssub.s32 %s46, %s53
      %p411 = scmp.eq.s32.totalorder %s410, 0
      %s413 = sadd.s32 %s412, 1
      %s414 = scalar_select %p411, %s412, %s413
      %p417 = pneg %p411
      %p418 = scmp.eq.s32.totalorder %s46, 1
      %p419 = por %p417, %p418
      %p420 = scmp.ne.s32.totalorder %s412, %s415
      %p421 = scmp.eq.s32.totalorder %s46, 0
      %p422 = por %p420, %p421
      %p423 = scmp.ne.s32.totalorder %s412, %s415
      %p424 = scmp.eq.s32.totalorder %s51, 1
      %p425 = por %p423, %p424
      %p426 = scmp.ne.s32.totalorder %s415, %s416
      %p427 = scmp.eq.s32.totalorder %s51, 0
      %p428 = por %p426, %p427
      %p429 = scmp.ne.s32.totalorder %s415, %s416
      %p430 = scmp.eq.s32.totalorder %s52, 1
      %p431 = por %p429, %p430
      %p433 = scmp.ne.s32.totalorder %s416, %s432
      %p434 = scmp.eq.s32.totalorder %s52, 0
      %p435 = por %p433, %p434
      %s436 = ssub.s32 %s46, %s53
      %p437 = scmp.eq.s32.totalorder %s436, 0
      %s439 = sadd.s32 %s438, 1
      %s440 = scalar_select %p437, %s438, %s439
      %p443 = pneg %p437
      %p444 = scmp.eq.s32.totalorder %s46, 1
      %p445 = por %p443, %p444
      %p446 = scmp.ne.s32.totalorder %s438, %s441
      %p447 = scmp.eq.s32.totalorder %s46, 0
      %p448 = por %p446, %p447
      %p449 = scmp.ne.s32.totalorder %s438, %s441
      %p450 = scmp.eq.s32.totalorder %s51, 1
      %p451 = por %p449, %p450
      %p452 = scmp.ne.s32.totalorder %s441, %s442
      %p453 = scmp.eq.s32.totalorder %s51, 0
      %p454 = por %p452, %p453
      %p455 = scmp.ne.s32.totalorder %s441, %s442
      %p456 = scmp.eq.s32.totalorder %s52, 1
      %p457 = por %p455, %p456
      %p459 = scmp.ne.s32.totalorder %s442, %s458
      %p460 = scmp.eq.s32.totalorder %s52, 0
      %p461 = por %p459, %p460
      %s462 = ssub.s32 %s46, %s53
      %p463 = scmp.eq.s32.totalorder %s462, 0
      %s465 = sadd.s32 %s464, 1
      %s466 = scalar_select %p463, %s464, %s465
      %p469 = pneg %p463
      %p470 = scmp.eq.s32.totalorder %s46, 1
      %p471 = por %p469, %p470
      %p472 = scmp.ne.s32.totalorder %s464, %s467
      %p473 = scmp.eq.s32.totalorder %s46, 0
      %p474 = por %p472, %p473
      %p475 = scmp.ne.s32.totalorder %s464, %s467
      %p476 = scmp.eq.s32.totalorder %s51, 1
      %p477 = por %p475, %p476
      %p478 = scmp.ne.s32.totalorder %s467, %s468
      %p479 = scmp.eq.s32.totalorder %s51, 0
      %p480 = por %p478, %p479
      %p481 = scmp.ne.s32.totalorder %s467, %s468
      %p482 = scmp.eq.s32.totalorder %s52, 1
      %p483 = por %p481, %p482
      %p485 = scmp.ne.s32.totalorder %s468, %s484
      %p486 = scmp.eq.s32.totalorder %s52, 0
      %p487 = por %p485, %p486
      %p488 = scmp.le.s32.totalorder 1, %s46
      %p489 = scmp.lt.s32.totalorder %s46, 3
      %p490 = pnand %p488, %p489
      %p491 = pneg %p490
      // Predicated region
      $region9: #{tpu_custom_call.1} parent=5 // pred_check
        _
      $region10: #{tpu_custom_call.1} parent=5 // pred_check_branch
        %493 = sbr.rel (%p490) target = $region12
      $region11: #{tpu_custom_call.1} parent=5 // pred_region
        %s494 = ssub.s32 %s46, 1
        // Predicated region
        $region13: #{tpu_custom_call.1} parent=11 // pred_check
          %p495 = pneg %p171
        $region14: #{tpu_custom_call.1} parent=11 // pred_check_branch
          %497 = sbr.rel (%p495) target = $region16
        $region15: #{tpu_custom_call.1} parent=11 // pred_region
          %s499 = ssub.s32 256, 256
          %500 = vsyncadd [#allocation9], %s499
          %s501 = sshll.u32 [#allocation10], 4
          %s502 = int_to_ptr.vmem [resolvable:$true] %s501
          %507 = dma.hbm_to_vmem [thread:$0]  %s4, 256, %s502, [#allocation9], 64, 64, 4
        $region16: #{tpu_custom_call.1} parent=11 // pred_fallthru
          _
        // Predicated region
        $region17: #{tpu_custom_call.1} parent=11 // pred_check
          %p508 = pneg %p192
        $region18: #{tpu_custom_call.1} parent=11 // pred_check_branch
          %510 = sbr.rel (%p508) target = $region20
        $region19: #{tpu_custom_call.1} parent=11 // pred_region
          %s512 = ssub.s32 256, 256
          %513 = vsyncadd [#allocation12], %s512
          %s514 = sshll.u32 [#allocation11], 4
          %s515 = int_to_ptr.vmem [resolvable:$true] %s514
          %520 = dma.hbm_to_vmem [thread:$0]  %s5, 256, %s515, [#allocation12], 64, 64, 4
        $region20: #{tpu_custom_call.1} parent=11 // pred_fallthru
          _
        // Predicated region
        $region21: #{tpu_custom_call.1} parent=11 // pred_check
          %p521 = pneg %p213
        $region22: #{tpu_custom_call.1} parent=11 // pred_check_branch
          %523 = sbr.rel (%p521) target = $region24
        $region23: #{tpu_custom_call.1} parent=11 // pred_region
          %s525 = ssub.s32 256, 256
          %526 = vsyncadd [#allocation12], %s525
          %s527 = sshll.u32 [#allocation13], 4
          %s528 = int_to_ptr.vmem [resolvable:$true] %s527
          %533 = dma.hbm_to_vmem [thread:$0]  %s6, 256, %s528, [#allocation12], 64, 64, 4
        $region24: #{tpu_custom_call.1} parent=11 // pred_fallthru
          _
        // Predicated region
        $region25: #{tpu_custom_call.1} parent=11 // pred_check
          %p534 = pneg %p234
        $region26: #{tpu_custom_call.1} parent=11 // pred_check_branch
          %536 = sbr.rel (%p534) target = $region28
        $region27: #{tpu_custom_call.1} parent=11 // pred_region
          %s538 = ssub.s32 256, 256
          %539 = vsyncadd [#allocation15], %s538
          %s540 = sshll.u32 [#allocation14], 4
          %s541 = int_to_ptr.vmem [resolvable:$true] %s540
          %546 = dma.hbm_to_vmem [thread:$0]  %s7, 256, %s541, [#allocation15], 64, 64, 4
        $region28: #{tpu_custom_call.1} parent=11 // pred_fallthru
          _
        // Predicated region
        $region29: #{tpu_custom_call.1} parent=11 // pred_check
          %p547 = pneg %p255
        $region30: #{tpu_custom_call.1} parent=11 // pred_check_branch
          %549 = sbr.rel (%p547) target = $region32
        $region31: #{tpu_custom_call.1} parent=11 // pred_region
          %s551 = ssub.s32 256, 256
          %552 = vsyncadd [#allocation15], %s551
          %s553 = sshll.u32 [#allocation16], 4
          %s554 = int_to_ptr.vmem [resolvable:$true] %s553
          %559 = dma.hbm_to_vmem [thread:$0]  %s8, 256, %s554, [#allocation15], 64, 64, 4
        $region32: #{tpu_custom_call.1} parent=11 // pred_fallthru
          _
        // Predicated region
        $region33: #{tpu_custom_call.1} parent=11 // pred_check
          %p560 = pneg %p276
        $region34: #{tpu_custom_call.1} parent=11 // pred_check_branch
          %562 = sbr.rel (%p560) target = $region36
        $region35: #{tpu_custom_call.1} parent=11 // pred_region
          %s564 = ssub.s32 256, 256
          %565 = vsyncadd [#allocation18], %s564
          %s566 = sshll.u32 [#allocation17], 4
          %s567 = int_to_ptr.vmem [resolvable:$true] %s566
          %572 = dma.hbm_to_vmem [thread:$0]  %s9, 256, %s567, [#allocation18], 64, 64, 4
        $region36: #{tpu_custom_call.1} parent=11 // pred_fallthru
          _
        // Predicated region
        $region37: #{tpu_custom_call.1} parent=11 // pred_check
          %p573 = pneg %p297
        $region38: #{tpu_custom_call.1} parent=11 // pred_check_branch
          %575 = sbr.rel (%p573) target = $region40
        $region39: #{tpu_custom_call.1} parent=11 // pred_region
          %s577 = ssub.s32 256, 256
          %578 = vsyncadd [#allocation18], %s577
          %s579 = sshll.u32 [#allocation19], 4
          %s580 = int_to_ptr.vmem [resolvable:$true] %s579
          %585 = dma.hbm_to_vmem [thread:$0]  %s10, 256, %s580, [#allocation18], 128, 128, 8
        $region40: #{tpu_custom_call.1} parent=11 // pred_fallthru
          _
        // Predicated region
        $region41: #{tpu_custom_call.1} parent=11 // pred_check
          %p586 = pneg %p318
        $region42: #{tpu_custom_call.1} parent=11 // pred_check_branch
          %588 = sbr.rel (%p586) target = $region44
        $region43: #{tpu_custom_call.1} parent=11 // pred_region
          %s590 = ssub.s32 16, 16
          %591 = vsyncadd [#allocation21], %s590
          %s593 = sshll.u32 [#allocation20], 4
          %s594 = int_to_ptr.vmem [resolvable:$true] %s593
          %596 = dma.hbm_to_vmem [thread:$0]  %s11, 16, %s594, [#allocation21]
        $region44: #{tpu_custom_call.1} parent=11 // pred_fallthru
          _
        // Predicated region
        $region45: #{tpu_custom_call.1} parent=11 // pred_check
          %p597 = pneg %p339
        $region46: #{tpu_custom_call.1} parent=11 // pred_check_branch
          %599 = sbr.rel (%p597) target = $region48
        $region47: #{tpu_custom_call.1} parent=11 // pred_region
          %s601 = ssub.s32 16, 16
          %602 = vsyncadd [#allocation21], %s601
          %s604 = sshll.u32 [#allocation22], 4
          %s605 = int_to_ptr.vmem [resolvable:$true] %s604
          %607 = dma.hbm_to_vmem [thread:$0]  %s12, 16, %s605, [#allocation21]
        $region48: #{tpu_custom_call.1} parent=11 // pred_fallthru
          _
        // Predicated region
        $region49: #{tpu_custom_call.1} parent=11 // pred_check
          %p608 = pneg %p360
        $region50: #{tpu_custom_call.1} parent=11 // pred_check_branch
          %610 = sbr.rel (%p608) target = $region52
        $region51: #{tpu_custom_call.1} parent=11 // pred_region
          %s612 = ssub.s32 256, 256
          %613 = vsyncadd [#allocation24], %s612
          %s614 = sshll.u32 [#allocation23], 4
          %s615 = int_to_ptr.vmem [resolvable:$true] %s614
          %620 = dma.hbm_to_vmem [thread:$0]  %s13, 256, %s615, [#allocation24], 64, 64, 4
        $region52: #{tpu_custom_call.1} parent=11 // pred_fallthru
          _
        // Predicated region
        $region53: #{tpu_custom_call.1} parent=11 // pred_check
          %p621 = pneg %p381
        $region54: #{tpu_custom_call.1} parent=11 // pred_check_branch
          %623 = sbr.rel (%p621) target = $region56
        $region55: #{tpu_custom_call.1} parent=11 // pred_region
          %s625 = ssub.s32 16, 16
          %626 = vsyncadd [#allocation24], %s625
          %s628 = sshll.u32 [#allocation25], 4
          %s629 = int_to_ptr.vmem [resolvable:$true] %s628
          %631 = dma.hbm_to_vmem [thread:$0]  %s14, 16, %s629, [#allocation24]
        $region56: #{tpu_custom_call.1} parent=11 // pred_fallthru
          _
        // Predicated region
        $region57: #{tpu_custom_call.1} parent=11 // pred_check
          %p632 = pneg %p402
        $region58: #{tpu_custom_call.1} parent=11 // pred_check_branch
          %634 = sbr.rel (%p632) target = $region60
        $region59: #{tpu_custom_call.1} parent=11 // pred_region
          %s636 = ssub.s32 512, 512
          %637 = vsyncadd [#allocation27], %s636
          %s638 = sshll.u32 [#allocation26], 4
          %s639 = int_to_ptr.vmem [resolvable:$true] %s638
          %644 = dma.hbm_to_vmem [thread:$0]  %s15, 512, %s639, [#allocation27], 64, 64, 4
        $region60: #{tpu_custom_call.1} parent=11 // pred_fallthru
          _
      $region12: #{tpu_custom_call.1} parent=5 // pred_fallthru
        _
      %p645 = scmp.lt.s32.totalorder %s46, 2
      // Predicated region
      $region61: #{tpu_custom_call.1} parent=5 // pred_check
        %p646 = pneg %p645
      $region62: #{tpu_custom_call.1} parent=5 // pred_check_branch
        %648 = sbr.rel (%p646) target = $region64
      $region63: #{tpu_custom_call.1} parent=5 // pred_region
        // Predicated region
        $region65: #{tpu_custom_call.1} parent=63 // pred_check
          %p649 = pneg %p66
        $region66: #{tpu_custom_call.1} parent=63 // pred_check_branch
          %651 = sbr.rel (%p649) target = $region68
        $region67: #{tpu_custom_call.1} parent=63 // pred_region
          %s652 = sand.u32 %s56, 1
          %s653 = scalar_lea.sflag [#allocation3], %s652
          %s654 = sand.u32 %s56, 1
          %s655 = smul.addr %s654, 8
          %s656 = scalar_lea.vmem [#allocation2], %s655
          %s658 = ssub.s32 128, 128
          %659 = vsyncadd %s653, %s658
          %s660 = smul.addr %s46, 128
          %s661 = scalar_lea.hbm %s0, %s660
          %s663 = sshll.u32 %s656, 4
          %s664 = int_to_ptr.vmem [resolvable:$true] %s663
          %666 = dma.hbm_to_vmem [thread:$0]  %s661, 128, %s664, %s653
        $region68: #{tpu_custom_call.1} parent=63 // pred_fallthru
          _
        // Predicated region
        $region69: #{tpu_custom_call.1} parent=63 // pred_check
          %p667 = pneg %p92
        $region70: #{tpu_custom_call.1} parent=63 // pred_check_branch
          %669 = sbr.rel (%p667) target = $region72
        $region71: #{tpu_custom_call.1} parent=63 // pred_region
          %s670 = sand.u32 %s46, 1
          %s671 = scalar_lea.sflag [#allocation6], %s670
          %s672 = sand.u32 %s82, 1
          %s673 = smul.addr %s672, 4
          %s674 = scalar_lea.vmem [#allocation5], %s673
          %s676 = ssub.s32 64, 64
          %677 = vsyncadd %s671, %s676
          %s678 = smul.addr %s46, 64
          %s679 = scalar_lea.hbm %s1, %s678
          %s681 = sshll.u32 %s674, 4
          %s682 = int_to_ptr.vmem [resolvable:$true] %s681
          %684 = dma.hbm_to_vmem [thread:$0]  %s679, 64, %s682, %s671
        $region72: #{tpu_custom_call.1} parent=63 // pred_fallthru
          _
        // Predicated region
        $region73: #{tpu_custom_call.1} parent=63 // pred_check
          %p685 = pneg %p118
        $region74: #{tpu_custom_call.1} parent=63 // pred_check_branch
          %687 = sbr.rel (%p685) target = $region76
        $region75: #{tpu_custom_call.1} parent=63 // pred_region
          %s688 = sand.u32 %s46, 1
          %s689 = scalar_lea.sflag [#allocation6], %s688
          %s690 = sand.u32 %s108, 1
          %s691 = scalar_lea.vmem [#allocation7], %s690
          %s693 = ssub.s32 16, 16
          %694 = vsyncadd %s689, %s693
          %s695 = smul.addr %s46, 16
          %s696 = scalar_lea.hbm %s2, %s695
          %s698 = sshll.u32 %s691, 4
          %s699 = int_to_ptr.vmem [resolvable:$true] %s698
          %701 = dma.hbm_to_vmem [thread:$0]  %s696, 16, %s699, %s689
        $region76: #{tpu_custom_call.1} parent=63 // pred_fallthru
          _
        // Predicated region
        $region77: #{tpu_custom_call.1} parent=63 // pred_check
          %p702 = pneg %p144
        $region78: #{tpu_custom_call.1} parent=63 // pred_check_branch
          %704 = sbr.rel (%p702) target = $region80
        $region79: #{tpu_custom_call.1} parent=63 // pred_region
          %s705 = sand.u32 %s46, 1
          %s706 = scalar_lea.sflag [#allocation9], %s705
          %s707 = sand.u32 %s134, 1
          %s708 = scalar_lea.vmem [#allocation8], %s707
          %s710 = ssub.s32 16, 16
          %711 = vsyncadd %s706, %s710
          %s712 = smul.addr %s46, 16
          %s713 = scalar_lea.hbm %s3, %s712
          %s715 = sshll.u32 %s708, 4
          %s716 = int_to_ptr.vmem [resolvable:$true] %s715
          %718 = dma.hbm_to_vmem [thread:$0]  %s713, 16, %s716, %s706
        $region80: #{tpu_custom_call.1} parent=63 // pred_fallthru
          _
      $region64: #{tpu_custom_call.1} parent=5 // pred_fallthru
        _
      %p719 = scmp.le.s32.totalorder 1, %s46
      %p720 = scmp.lt.s32.totalorder %s46, 3
      %p721 = pnand %p719, %p720
      %p722 = pneg %p721
      // Predicated region
      $region81: #{tpu_custom_call.1} parent=5 // pred_check
        _
      $region82: #{tpu_custom_call.1} parent=5 // pred_check_branch
        %724 = sbr.rel (%p721) target = $region84
      $region83: #{tpu_custom_call.1} parent=5 // pred_region
        %s725 = ssub.s32 %s46, 1
        %s726 = sand.u32 %s59, 1
        %s727 = scalar_lea.sflag [#allocation3], %s726
        %s728 = sand.u32 %s59, 1
        %s729 = smul.addr %s728, 8
        %s730 = scalar_lea.vmem [#allocation2], %s729
        // Predicated region
        $region85: #{tpu_custom_call.1} parent=83 // pred_check
          %p731 = pneg %p72
        $region86: #{tpu_custom_call.1} parent=83 // pred_check_branch
          %733 = sbr.rel (%p731) target = $region88
        $region87: #{tpu_custom_call.1} parent=83 // pred_region
          %734 = dma.done %s727, 128
        $region88: #{tpu_custom_call.1} parent=83 // pred_fallthru
          _
        %s735 = sand.u32 %s51, 1
        %s736 = scalar_lea.sflag [#allocation6], %s735
        %s737 = sand.u32 %s85, 1
        %s738 = smul.addr %s737, 4
        %s739 = scalar_lea.vmem [#allocation5], %s738
        // Predicated region
        $region89: #{tpu_custom_call.1} parent=83 // pred_check
          %p740 = pneg %p98
        $region90: #{tpu_custom_call.1} parent=83 // pred_check_branch
          %742 = sbr.rel (%p740) target = $region92
        $region91: #{tpu_custom_call.1} parent=83 // pred_region
          %743 = dma.done %s736, 64
        $region92: #{tpu_custom_call.1} parent=83 // pred_fallthru
          _
        %s744 = sand.u32 %s51, 1
        %s745 = scalar_lea.sflag [#allocation6], %s744
        %s746 = sand.u32 %s111, 1
        %s747 = scalar_lea.vmem [#allocation7], %s746
        // Predicated region
        $region93: #{tpu_custom_call.1} parent=83 // pred_check
          %p748 = pneg %p124
        $region94: #{tpu_custom_call.1} parent=83 // pred_check_branch
          %750 = sbr.rel (%p748) target = $region96
        $region95: #{tpu_custom_call.1} parent=83 // pred_region
          %751 = dma.done %s745, 16
        $region96: #{tpu_custom_call.1} parent=83 // pred_fallthru
          _
        %s752 = sand.u32 %s51, 1
        %s753 = scalar_lea.sflag [#allocation9], %s752
        %s754 = sand.u32 %s137, 1
        %s755 = scalar_lea.vmem [#allocation8], %s754
        // Predicated region
        $region97: #{tpu_custom_call.1} parent=83 // pred_check
          %p756 = pneg %p150
        $region98: #{tpu_custom_call.1} parent=83 // pred_check_branch
          %758 = sbr.rel (%p756) target = $region100
        $region99: #{tpu_custom_call.1} parent=83 // pred_region
          %759 = dma.done %s753, 16
        $region100: #{tpu_custom_call.1} parent=83 // pred_fallthru
          _
        // Predicated region
        $region101: #{tpu_custom_call.1} parent=83 // pred_check
          %p760 = pneg %p171
        $region102: #{tpu_custom_call.1} parent=83 // pred_check_branch
          %762 = sbr.rel (%p760) target = $region104
        $region103: #{tpu_custom_call.1} parent=83 // pred_region
          %763 = dma.done [#allocation9], 256
        $region104: #{tpu_custom_call.1} parent=83 // pred_fallthru
          _
        // Predicated region
        $region105: #{tpu_custom_call.1} parent=83 // pred_check
          %p764 = pneg %p192
        $region106: #{tpu_custom_call.1} parent=83 // pred_check_branch
          %766 = sbr.rel (%p764) target = $region108
        $region107: #{tpu_custom_call.1} parent=83 // pred_region
          %767 = dma.done [#allocation12], 256
        $region108: #{tpu_custom_call.1} parent=83 // pred_fallthru
          _
        // Predicated region
        $region109: #{tpu_custom_call.1} parent=83 // pred_check
          %p768 = pneg %p213
        $region110: #{tpu_custom_call.1} parent=83 // pred_check_branch
          %770 = sbr.rel (%p768) target = $region112
        $region111: #{tpu_custom_call.1} parent=83 // pred_region
          %771 = dma.done [#allocation12], 256
        $region112: #{tpu_custom_call.1} parent=83 // pred_fallthru
          _
        // Predicated region
        $region113: #{tpu_custom_call.1} parent=83 // pred_check
          %p772 = pneg %p234
        $region114: #{tpu_custom_call.1} parent=83 // pred_check_branch
          %774 = sbr.rel (%p772) target = $region116
        $region115: #{tpu_custom_call.1} parent=83 // pred_region
          %775 = dma.done [#allocation15], 256
        $region116: #{tpu_custom_call.1} parent=83 // pred_fallthru
          _
        // Predicated region
        $region117: #{tpu_custom_call.1} parent=83 // pred_check
          %p776 = pneg %p255
        $region118: #{tpu_custom_call.1} parent=83 // pred_check_branch
          %778 = sbr.rel (%p776) target = $region120
        $region119: #{tpu_custom_call.1} parent=83 // pred_region
          %779 = dma.done [#allocation15], 256
        $region120: #{tpu_custom_call.1} parent=83 // pred_fallthru
          _
        // Predicated region
        $region121: #{tpu_custom_call.1} parent=83 // pred_check
          %p780 = pneg %p276
        $region122: #{tpu_custom_call.1} parent=83 // pred_check_branch
          %782 = sbr.rel (%p780) target = $region124
        $region123: #{tpu_custom_call.1} parent=83 // pred_region
          %783 = dma.done [#allocation18], 256
        $region124: #{tpu_custom_call.1} parent=83 // pred_fallthru
          _
        // Predicated region
        $region125: #{tpu_custom_call.1} parent=83 // pred_check
          %p784 = pneg %p297
        $region126: #{tpu_custom_call.1} parent=83 // pred_check_branch
          %786 = sbr.rel (%p784) target = $region128
        $region127: #{tpu_custom_call.1} parent=83 // pred_region
          %787 = dma.done [#allocation18], 256
        $region128: #{tpu_custom_call.1} parent=83 // pred_fallthru
          _
        // Predicated region
        $region129: #{tpu_custom_call.1} parent=83 // pred_check
          %p788 = pneg %p318
        $region130: #{tpu_custom_call.1} parent=83 // pred_check_branch
          %790 = sbr.rel (%p788) target = $region132
        $region131: #{tpu_custom_call.1} parent=83 // pred_region
          %791 = dma.done [#allocation21], 16
        $region132: #{tpu_custom_call.1} parent=83 // pred_fallthru
          _
        // Predicated region
        $region133: #{tpu_custom_call.1} parent=83 // pred_check
          %p792 = pneg %p339
        $region134: #{tpu_custom_call.1} parent=83 // pred_check_branch
          %794 = sbr.rel (%p792) target = $region136
        $region135: #{tpu_custom_call.1} parent=83 // pred_region
          %795 = dma.done [#allocation21], 16
        $region136: #{tpu_custom_call.1} parent=83 // pred_fallthru
          _
        // Predicated region
        $region137: #{tpu_custom_call.1} parent=83 // pred_check
          %p796 = pneg %p360
        $region138: #{tpu_custom_call.1} parent=83 // pred_check_branch
          %798 = sbr.rel (%p796) target = $region140
        $region139: #{tpu_custom_call.1} parent=83 // pred_region
          %799 = dma.done [#allocation24], 256
        $region140: #{tpu_custom_call.1} parent=83 // pred_fallthru
          _
        // Predicated region
        $region141: #{tpu_custom_call.1} parent=83 // pred_check
          %p800 = pneg %p381
        $region142: #{tpu_custom_call.1} parent=83 // pred_check_branch
          %802 = sbr.rel (%p800) target = $region144
        $region143: #{tpu_custom_call.1} parent=83 // pred_region
          %803 = dma.done [#allocation24], 16
        $region144: #{tpu_custom_call.1} parent=83 // pred_fallthru
          _
        // Predicated region
        $region145: #{tpu_custom_call.1} parent=83 // pred_check
          %p804 = pneg %p402
        $region146: #{tpu_custom_call.1} parent=83 // pred_check_branch
          %806 = sbr.rel (%p804) target = $region148
        $region147: #{tpu_custom_call.1} parent=83 // pred_region
          %807 = dma.done [#allocation27], 512
        $region148: #{tpu_custom_call.1} parent=83 // pred_fallthru
          _
        %s808 = sand.u32 %s59, 1
        %s809 = scalar_lea.sflag [#allocation3], %s808
        %s810 = sand.u32 %s59, 1
        %s811 = smul.addr %s810, 8
        %s812 = scalar_lea.vmem [#allocation2], %s811
        %p813 = pneg %p72
        %p814 = pneg %p69
        %s815 = sand.u32 %s51, 1
        %s816 = scalar_lea.sflag [#allocation6], %s815
        %s817 = sand.u32 %s85, 1
        %s818 = smul.addr %s817, 4
        %s819 = scalar_lea.vmem [#allocation5], %s818
        %p820 = pneg %p98
        %p821 = pneg %p95
        %s822 = sand.u32 %s51, 1
        %s823 = scalar_lea.sflag [#allocation6], %s822
        %s824 = sand.u32 %s111, 1
        %s825 = scalar_lea.vmem [#allocation7], %s824
        %p826 = pneg %p124
        %p827 = pneg %p121
        %s828 = sand.u32 %s51, 1
        %s829 = scalar_lea.sflag [#allocation9], %s828
        %s830 = sand.u32 %s137, 1
        %s831 = scalar_lea.vmem [#allocation8], %s830
        %p832 = pneg %p150
        %p833 = pneg %p147
        %p834 = pneg %p171
        %p835 = pneg %p168
        %p836 = pneg %p192
        %p837 = pneg %p189
        %p838 = pneg %p213
        %p839 = pneg %p210
        %p840 = pneg %p234
        %p841 = pneg %p231
        %p842 = pneg %p255
        %p843 = pneg %p252
        %p844 = pneg %p276
        %p845 = pneg %p273
        %p846 = pneg %p297
        %p847 = pneg %p294
        %p848 = pneg %p318
        %p849 = pneg %p315
        %p850 = pneg %p339
        %p851 = pneg %p336
        %p852 = pneg %p360
        %p853 = pneg %p357
        %p854 = pneg %p381
        %p855 = pneg %p378
        %p856 = pneg %p402
        %p857 = pneg %p399
        %p858 = pneg %p428
        %p859 = pneg %p425
        %s860 = sand.u32 %s415, 1
        %s861 = scalar_lea.sflag [#allocation4], %s860
        %s862 = sand.u32 %s415, 1
        %s863 = smul.addr %s862, 8
        %s864 = scalar_lea.vmem [#allocation28], %s863
        %p865 = pneg %p454
        %p866 = pneg %p451
        %s867 = sand.u32 %s51, 1
        %s868 = scalar_lea.sflag [#allocation30], %s867
        %s869 = sand.u32 %s441, 1
        %s870 = smul.addr %s869, 8
        %s871 = scalar_lea.vmem [#allocation29], %s870
        %p872 = pneg %p480
        %p873 = pneg %p477
        %s874 = sand.u32 %s51, 1
        %s875 = scalar_lea.sflag [#allocation30], %s874
        %s876 = sand.u32 %s467, 1
        %s877 = smul.addr %s876, 8
        %s878 = scalar_lea.vmem [#allocation31], %s877
        %v880 = vld [vmem:[%s730] sm:$0xff]
        %v881 = vld [vmem:[%s739] sm:$0xf]
        %v882 = vld [vmem:[#allocation19] sm:$0xff]
        %v883 = vld [vmem:[#allocation19 + $0x8] sm:$0x7]
        %v884 = vlaneseq
        %v885 = vshrl.u32 %v884, 7
        %v886 = vlaneseq
        %v887 = vand.u32 %v886, 127
        %vm888 = vcmp.gt.s32.totalorder %v887, %v885
        %v889 = vld [vmem:[%s747] sm:$0x1]
        %vm890 = vcmp.gt.f32.partialorder %v889, 0.5
        %v891 = vsel %vm890, 1, 0
        %v892 = vlaneseq
        %v893 = vshrl.u32 %v892, 7
        %v894 = vsub.s32 0, %v893
        %v895 = vrot.slane %v891, %v894
        %vm896 = vcmp.eq.s32.totalorder %v895, 1
        %vm897 = vmor %vm888, %vm896
        %v898 = vsel %vm897, -1e+18, 0.0
        %v899 = vld [vmem:[%s755] sm:$0x1]
        %vm900 = vcmp.gt.f32.partialorder %v899, 0.5
        %v901 = vsel %vm900, -1e+18, 0.0
        %v903 = vlaneseq
        %v904 = vshrl.u32 %v903, 7
        %v905 = vsub.s32 0, %v904
        %v906 = vrot.slane %v901, %v905
        %vm908 = vcmask 261120
        %v909 = vsel %vm908, %v880, 0.0
        %910 = vadd.xlane.f32.xlu0 %v909
        %v911 = vpop.xlane.xlu0 %910
        %v912 = vrcp.pop 32.0
        %v913 = vmul.f32 %v911, %v912
        %v914 = vsub.f32 %v880, %v913
        %v915 = vmul.f32 %v914, %v914
        %v916 = vsel %vm908, %v915, 0.0
        %917 = vadd.xlane.f32.xlu0 %v916
        %v918 = vpop.xlane.xlu0 %917
        %v919 = vrcp.pop 31.0
        %v920 = vmul.f32 %v918, %v919
        %v921 = vlaneseq
        %v922 = vshrl.u32 %v921, 7
        %v923 = vsub.s32 0, %v922
        %v924 = vrot.slane %v882, %v923
        %v925 = vmul.f32 %v924, %v914
        %v926 = vrsqrt.pop %v920
        %v927 = vmul.f32 %v920, %v926
        %vm928 = vcmp.eq.f32.partialorder %v920, inf
        %v929 = vsel %vm928, %v920, %v927
        %vm930 = vcmp.eq.f32.partialorder %v920, 0.0
        %v931 = vand.u32 %v920, 2147483648
        %v932 = vsel %vm930, %v931, %v929
        %v933 = vadd.f32 %v932, 1e-06
        %v934 = vrcp.pop %v933
        %v935 = vmul.f32 %v925, %v934
        %v936 = vlaneseq
        %v937 = vshrl.u32 %v936, 7
        %v938 = vsub.s32 1, %v937
        %v939 = vrot.slane %v882, %v938
        %v940 = vadd.f32 %v935, %v939
        %941 = vst.msk [vmem:[%s878] sm:$0xff] %vm908, %v940
        %v942 = vpack.c.bf16 %v940, %v940
        %v943 = vld [vmem:[#allocation10] sm:$0xf]
        %v944 = vld [vmem:[#allocation10 + $0x4] sm:$0xf]
        %v945 = vld [vmem:[#allocation10 + $0x8] sm:$0xf]
        %v946 = vld [vmem:[#allocation10 + $0xc] sm:$0xf]
        %v947 = vld [vmem:[#allocation11] sm:$0xf]
        %v948 = vld [vmem:[#allocation11 + $0x4] sm:$0xf]
        %v949 = vld [vmem:[#allocation11 + $0x8] sm:$0xf]
        %v950 = vld [vmem:[#allocation11 + $0xc] sm:$0xf]
        %v951 = vld [vmem:[#allocation20] sm:$0x1]
        %v952 = vld [vmem:[#allocation13] sm:$0xf]
        %v953 = vld [vmem:[#allocation13 + $0x4] sm:$0xf]
        %v954 = vld [vmem:[#allocation13 + $0x8] sm:$0xf]
        %v955 = vld [vmem:[#allocation13 + $0xc] sm:$0xf]
        %v956 = vlaneseq
        %v957 = vshrl.u32 %v956, 7
        %v958 = vsub.s32 6, %v957
        %v959 = vrot.slane %v882, %v958
        %v964 = vunpack.c.l.b16 %v943
        %v965 = vunpack.c.l.b16 %v944
        %v966 = vunpack.c.l.b16 %v945
        %v967 = vunpack.c.l.b16 %v946
        %v968 = vpack.c.b16 %v965, %v964
        %v969 = vpack.c.b16 %v967, %v966
        %v973 = vsel %vm908, %v942, 0
        %975 = vmatprep.subr.bf16.mxu0 0
        %976 = vmatpush1.bf16.msra.mxu0 %v968
        %977 = vmatprep.subr.bf16.mxu0 0
        %978 = vmatpush1.bf16.msra.mxu0 %v969
        %979 = vmatprep.subr.bf16.mxu0 0
        %980 = vmatpush1.bf16.msra.mxu0 0
        %981 = vmatprep.subr.bf16.mxu0 0
        %982 = vmatpush1.bf16.msra.mxu0 0
        %983 = vmatprep.subr.bf16.mxu0 0
        %984 = vmatpush1.bf16.msra.mxu0 0
        %985 = vmatprep.subr.bf16.mxu0 0
        %986 = vmatpush1.bf16.msra.mxu0 0
        %987 = vmatprep.subr.bf16.mxu0 0
        %988 = vmatpush1.bf16.msra.mxu0 0
        %989 = vmatprep.subr.bf16.mxu0 0
        %990 = vmatpush1.bf16.msra.mxu0 0
        %991 = vmatprep.subr.bf16.mxu0 0
        %992 = vmatpush1.bf16.msra.mxu0 0
        %993 = vmatprep.subr.bf16.mxu0 0
        %994 = vmatpush1.bf16.msra.mxu0 0
        %995 = vmatprep.subr.bf16.mxu0 0
        %996 = vmatpush1.bf16.msra.mxu0 0
        %997 = vmatprep.subr.bf16.mxu0 0
        %998 = vmatpush1.bf16.msra.mxu0 0
        %999 = vmatprep.subr.bf16.mxu0 0
        %1000 = vmatpush1.bf16.msra.mxu0 0
        %1001 = vmatprep.subr.bf16.mxu0 0
        %1002 = vmatpush1.bf16.msra.mxu0 0
        %1003 = vmatprep.subr.bf16.mxu0 0
        %1004 = vmatpush1.bf16.msra.mxu0 0
        %1005 = vmatprep.subr.bf16.mxu0 0
        %1006 = vmatpush1.bf16.msra.mxu0 0
        %1007 = vmatprep.mubr.bf16.mxu0 0
        %1008 = vmatmul.mubr.bf16.gmra.mrb[0].mxu0 %v973
        %v1009 = vpop.f32.mrb[0].mxu0
        %v1010 = vadd.f32 %v959, %v1009
        %v1011 = vpop.f32.mrb[0].mxu0
        %v1012 = vpop.f32.mrb[0].mxu0
        %v1013 = vpop.f32.mrb[0].mxu0
        %1014 = vdwg.mxu0
        %v1016 = vlaneseq
        %v1017 = vshrl.u32 %v1016, 7
        %v1018 = vsub.s32 0, %v1017
        %v1019 = vrot.slane %v951, %v1018
        %v1025 = vunpack.c.l.b16 %v947
        %v1026 = vunpack.c.l.b16 %v948
        %v1027 = vunpack.c.l.b16 %v949
        %v1028 = vunpack.c.l.b16 %v950
        %v1029 = vpack.c.b16 %v1026, %v1025
        %v1030 = vpack.c.b16 %v1028, %v1027
        %1033 = vmatprep.subr.bf16.mxu0 0
        %1034 = vmatpush1.bf16.msra.mxu0 %v1029
        %1035 = vmatprep.subr.bf16.mxu0 0
        %1036 = vmatpush1.bf16.msra.mxu0 %v1030
        %1037 = vmatprep.subr.bf16.mxu0 0
        %1038 = vmatpush1.bf16.msra.mxu0 0
        %1039 = vmatprep.subr.bf16.mxu0 0
        %1040 = vmatpush1.bf16.msra.mxu0 0
        %1041 = vmatprep.subr.bf16.mxu0 0
        %1042 = vmatpush1.bf16.msra.mxu0 0
        %1043 = vmatprep.subr.bf16.mxu0 0
        %1044 = vmatpush1.bf16.msra.mxu0 0
        %1045 = vmatprep.subr.bf16.mxu0 0
        %1046 = vmatpush1.bf16.msra.mxu0 0
        %1047 = vmatprep.subr.bf16.mxu0 0
        %1048 = vmatpush1.bf16.msra.mxu0 0
        %1049 = vmatprep.subr.bf16.mxu0 0
        %1050 = vmatpush1.bf16.msra.mxu0 0
        %1051 = vmatprep.subr.bf16.mxu0 0
        %1052 = vmatpush1.bf16.msra.mxu0 0
        %1053 = vmatprep.subr.bf16.mxu0 0
        %1054 = vmatpush1.bf16.msra.mxu0 0
        %1055 = vmatprep.subr.bf16.mxu0 0
        %1056 = vmatpush1.bf16.msra.mxu0 0
        %1057 = vmatprep.subr.bf16.mxu0 0
        %1058 = vmatpush1.bf16.msra.mxu0 0
        %1059 = vmatprep.subr.bf16.mxu0 0
        %1060 = vmatpush1.bf16.msra.mxu0 0
        %1061 = vmatprep.subr.bf16.mxu0 0
        %1062 = vmatpush1.bf16.msra.mxu0 0
        %1063 = vmatprep.subr.bf16.mxu0 0
        %1064 = vmatpush1.bf16.msra.mxu0 0
        %1065 = vmatprep.mubr.bf16.mxu0 0
        %1066 = vmatmul.mubr.bf16.gmra.mrb[0].mxu0 %v973
        %v1067 = vpop.f32.mrb[0].mxu0
        %v1068 = vadd.f32 %v1019, %v1067
        %v1069 = vpop.f32.mrb[0].mxu0
        %v1070 = vpop.f32.mrb[0].mxu0
        %v1071 = vpop.f32.mrb[0].mxu0
        %1072 = vdwg.mxu0
        %v1073 = vpack.c.bf16 %v1010, %v1010
        %v1074 = vpack.c.bf16 %v1068, %v1068
        %vm1075 = vcmask 64512
        %v1077 = vsel %vm1075, %v1073, 0
        %v1080 = vsel %vm1075, %v1074, 0
        %1082 = vmatprep.subr.bf16.mxu0 0
        %1083 = vmatpush1.bf16.xpose.msra.mxu0 %v1080
        %1084 = vmatprep.subr.bf16.mxu0 0
        %1085 = vmatpush1.bf16.xpose.msra.mxu0 0
        %1086 = vmatprep.subr.bf16.mxu0 0
        %1087 = vmatpush1.bf16.xpose.msra.mxu0 0
        %1088 = vmatprep.subr.bf16.mxu0 0
        %1089 = vmatpush1.bf16.xpose.msra.mxu0 0
        %1090 = vmatprep.subr.bf16.mxu0 0
        %1091 = vmatpush1.bf16.xpose.msra.mxu0 0
        %1092 = vmatprep.subr.bf16.mxu0 0
        %1093 = vmatpush1.bf16.xpose.msra.mxu0 0
        %1094 = vmatprep.subr.bf16.mxu0 0
        %1095 = vmatpush1.bf16.xpose.msra.mxu0 0
        %1096 = vmatprep.subr.bf16.mxu0 0
        %1097 = vmatpush1.bf16.xpose.msra.mxu0 0
        %1098 = vmatprep.subr.bf16.mxu0 0
        %1099 = vmatpush1.bf16.xpose.msra.mxu0 0
        %1100 = vmatprep.subr.bf16.mxu0 0
        %1101 = vmatpush1.bf16.xpose.msra.mxu0 0
        %1102 = vmatprep.subr.bf16.mxu0 0
        %1103 = vmatpush1.bf16.xpose.msra.mxu0 0
        %1104 = vmatprep.subr.bf16.mxu0 0
        %1105 = vmatpush1.bf16.xpose.msra.mxu0 0
        %1106 = vmatprep.subr.bf16.mxu0 0
        %1107 = vmatpush1.bf16.xpose.msra.mxu0 0
        %1108 = vmatprep.subr.bf16.mxu0 0
        %1109 = vmatpush1.bf16.xpose.msra.mxu0 0
        %1110 = vmatprep.subr.bf16.mxu0 0
        %1111 = vmatpush1.bf16.xpose.msra.mxu0 0
        %1112 = vmatprep.subr.bf16.mxu0 0
        %1113 = vmatpush1.bf16.xpose.msra.mxu0 0
        %1114 = vmatprep.mubr.bf16.mxu0 0
        %1115 = vmatmul.mubr.bf16.gmra.mrb[0].mxu0 %v1077
        %v1116 = vpop.f32.mrb[0].mxu0
        %v1117 = vadd.f32 %v898, %v1116
        %v1118 = vpop.f32.mrb[0].mxu0
        %v1119 = vpop.f32.mrb[0].mxu0
        %v1120 = vpop.f32.mrb[0].mxu0
        %1121 = vdwg.mxu0
        %v1122 = vsel %vm1075, %v1117, -inf
        %1123 = vmax.xlane.f32.xlu0 %v1122
        %v1124 = vpop.xlane.xlu0 %1123
        %v1125 = vsub.f32 %v1117, %v1124
        %v1126 = vmul.f32 %v1125, 1.442695
        %v1127 = vpow.pop %v1126
        %v1128 = vsel %vm1075, %v1127, 0.0
        %1129 = vadd.xlane.f32.xlu0 %v1128
        %v1130 = vpop.xlane.xlu0 %1129
        %v1131 = vrcp.pop %v1130
        %v1132 = vmul.f32 %v1127, %v1131
        %v1133 = vpack.c.bf16 %v1132, %v1132
        %1135 = vrot.lane.b32.xlu0 %v1074, 96
        %v1136 = vpop.permute.xlu0 %1135
        %v1138 = vsel %vm1075, %v1133, 0
        %vm1140 = vcmask 1043456
        %v1142 = vsel %vm1140, %v1136, 0
        %1144 = vmatprep.subr.bf16.mxu0 0
        %1145 = vmatpush1.bf16.msra.mxu0 %v1142
        %1146 = vmatprep.subr.bf16.mxu0 0
        %1147 = vmatpush1.bf16.msra.mxu0 0
        %1148 = vmatprep.subr.bf16.mxu0 0
        %1149 = vmatpush1.bf16.msra.mxu0 0
        %1150 = vmatprep.subr.bf16.mxu0 0
        %1151 = vmatpush1.bf16.msra.mxu0 0
        %1152 = vmatprep.subr.bf16.mxu0 0
        %1153 = vmatpush1.bf16.msra.mxu0 0
        %1154 = vmatprep.subr.bf16.mxu0 0
        %1155 = vmatpush1.bf16.msra.mxu0 0
        %1156 = vmatprep.subr.bf16.mxu0 0
        %1157 = vmatpush1.bf16.msra.mxu0 0
        %1158 = vmatprep.subr.bf16.mxu0 0
        %1159 = vmatpush1.bf16.msra.mxu0 0
        %1160 = vmatprep.subr.bf16.mxu0 0
        %1161 = vmatpush1.bf16.msra.mxu0 0
        %1162 = vmatprep.subr.bf16.mxu0 0
        %1163 = vmatpush1.bf16.msra.mxu0 0
        %1164 = vmatprep.subr.bf16.mxu0 0
        %1165 = vmatpush1.bf16.msra.mxu0 0
        %1166 = vmatprep.subr.bf16.mxu0 0
        %1167 = vmatpush1.bf16.msra.mxu0 0
        %1168 = vmatprep.subr.bf16.mxu0 0
        %1169 = vmatpush1.bf16.msra.mxu0 0
        %1170 = vmatprep.subr.bf16.mxu0 0
        %1171 = vmatpush1.bf16.msra.mxu0 0
        %1172 = vmatprep.subr.bf16.mxu0 0
        %1173 = vmatpush1.bf16.msra.mxu0 0
        %1174 = vmatprep.subr.bf16.mxu0 0
        %1175 = vmatpush1.bf16.msra.mxu0 0
        %1176 = vmatprep.mubr.bf16.mxu0 0
        %1177 = vmatmul.mubr.bf16.gmra.mrb[0].mxu0 %v1138
        %v1178 = vpop.f32.mrb[0].mxu0
        %v1179 = vadd.f32 0.0, %v1178
        %v1180 = vpop.f32.mrb[0].mxu0
        %v1181 = vpop.f32.mrb[0].mxu0
        %v1182 = vpop.f32.mrb[0].mxu0
        %1183 = vdwg.mxu0
        %1185 = vrot.lane.b32.xlu0 %v1073, 120
        %v1186 = vpop.permute.xlu0 %1185
        %1187 = vrot.lane.b32.xlu0 %v1074, 120
        %v1188 = vpop.permute.xlu0 %1187
        %v1190 = vsel %vm1075, %v1186, 0
        %v1193 = vsel %vm1075, %v1188, 0
        %1195 = vmatprep.subr.bf16.mxu0 0
        %1196 = vmatpush1.bf16.xpose.msra.mxu0 %v1193
        %1197 = vmatprep.subr.bf16.mxu0 0
        %1198 = vmatpush1.bf16.xpose.msra.mxu0 0
        %1199 = vmatprep.subr.bf16.mxu0 0
        %1200 = vmatpush1.bf16.xpose.msra.mxu0 0
        %1201 = vmatprep.subr.bf16.mxu0 0
        %1202 = vmatpush1.bf16.xpose.msra.mxu0 0
        %1203 = vmatprep.subr.bf16.mxu0 0
        %1204 = vmatpush1.bf16.xpose.msra.mxu0 0
        %1205 = vmatprep.subr.bf16.mxu0 0
        %1206 = vmatpush1.bf16.xpose.msra.mxu0 0
        %1207 = vmatprep.subr.bf16.mxu0 0
        %1208 = vmatpush1.bf16.xpose.msra.mxu0 0
        %1209 = vmatprep.subr.bf16.mxu0 0
        %1210 = vmatpush1.bf16.xpose.msra.mxu0 0
        %1211 = vmatprep.subr.bf16.mxu0 0
        %1212 = vmatpush1.bf16.xpose.msra.mxu0 0
        %1213 = vmatprep.subr.bf16.mxu0 0
        %1214 = vmatpush1.bf16.xpose.msra.mxu0 0
        %1215 = vmatprep.subr.bf16.mxu0 0
        %1216 = vmatpush1.bf16.xpose.msra.mxu0 0
        %1217 = vmatprep.subr.bf16.mxu0 0
        %1218 = vmatpush1.bf16.xpose.msra.mxu0 0
        %1219 = vmatprep.subr.bf16.mxu0 0
        %1220 = vmatpush1.bf16.xpose.msra.mxu0 0
        %1221 = vmatprep.subr.bf16.mxu0 0
        %1222 = vmatpush1.bf16.xpose.msra.mxu0 0
        %1223 = vmatprep.subr.bf16.mxu0 0
        %1224 = vmatpush1.bf16.xpose.msra.mxu0 0
        %1225 = vmatprep.subr.bf16.mxu0 0
        %1226 = vmatpush1.bf16.xpose.msra.mxu0 0
        %1227 = vmatprep.mubr.bf16.mxu0 0
        %1228 = vmatmul.mubr.bf16.gmra.mrb[0].mxu0 %v1190
        %v1229 = vpop.f32.mrb[0].mxu0
        %v1230 = vadd.f32 %v898, %v1229
        %v1231 = vpop.f32.mrb[0].mxu0
        %v1232 = vpop.f32.mrb[0].mxu0
        %v1233 = vpop.f32.mrb[0].mxu0
        %1234 = vdwg.mxu0
        %v1235 = vsel %vm1075, %v1230, -inf
        %1236 = vmax.xlane.f32.xlu0 %v1235
        %v1237 = vpop.xlane.xlu0 %1236
        %v1238 = vsub.f32 %v1230, %v1237
        %v1239 = vmul.f32 %v1238, 1.442695
        %v1240 = vpow.pop %v1239
        %v1241 = vsel %vm1075, %v1240, 0.0
        %1242 = vadd.xlane.f32.xlu0 %v1241
        %v1243 = vpop.xlane.xlu0 %1242
        %v1244 = vrcp.pop %v1243
        %v1245 = vmul.f32 %v1240, %v1244
        %v1246 = vpack.c.bf16 %v1245, %v1245
        %1247 = vrot.lane.b32.xlu0 %v1074, 88
        %v1248 = vpop.permute.xlu0 %1247
        %v1250 = vsel %vm1075, %v1246, 0
        %v1253 = vsel %vm1140, %v1248, 0
        %1255 = vmatprep.subr.bf16.mxu0 0
        %1256 = vmatpush1.bf16.msra.mxu0 %v1253
        %1257 = vmatprep.subr.bf16.mxu0 0
        %1258 = vmatpush1.bf16.msra.mxu0 0
        %1259 = vmatprep.subr.bf16.mxu0 0
        %1260 = vmatpush1.bf16.msra.mxu0 0
        %1261 = vmatprep.subr.bf16.mxu0 0
        %1262 = vmatpush1.bf16.msra.mxu0 0
        %1263 = vmatprep.subr.bf16.mxu0 0
        %1264 = vmatpush1.bf16.msra.mxu0 0
        %1265 = vmatprep.subr.bf16.mxu0 0
        %1266 = vmatpush1.bf16.msra.mxu0 0
        %1267 = vmatprep.subr.bf16.mxu0 0
        %1268 = vmatpush1.bf16.msra.mxu0 0
        %1269 = vmatprep.subr.bf16.mxu0 0
        %1270 = vmatpush1.bf16.msra.mxu0 0
        %1271 = vmatprep.subr.bf16.mxu0 0
        %1272 = vmatpush1.bf16.msra.mxu0 0
        %1273 = vmatprep.subr.bf16.mxu0 0
        %1274 = vmatpush1.bf16.msra.mxu0 0
        %1275 = vmatprep.subr.bf16.mxu0 0
        %1276 = vmatpush1.bf16.msra.mxu0 0
        %1277 = vmatprep.subr.bf16.mxu0 0
        %1278 = vmatpush1.bf16.msra.mxu0 0
        %1279 = vmatprep.subr.bf16.mxu0 0
        %1280 = vmatpush1.bf16.msra.mxu0 0
        %1281 = vmatprep.subr.bf16.mxu0 0
        %1282 = vmatpush1.bf16.msra.mxu0 0
        %1283 = vmatprep.subr.bf16.mxu0 0
        %1284 = vmatpush1.bf16.msra.mxu0 0
        %1285 = vmatprep.subr.bf16.mxu0 0
        %1286 = vmatpush1.bf16.msra.mxu0 0
        %1287 = vmatprep.mubr.bf16.mxu0 0
        %1288 = vmatmul.mubr.bf16.gmra.mrb[0].mxu0 %v1250
        %v1289 = vpop.f32.mrb[0].mxu0
        %v1290 = vadd.f32 0.0, %v1289
        %v1291 = vpop.f32.mrb[0].mxu0
        %v1292 = vpop.f32.mrb[0].mxu0
        %v1293 = vpop.f32.mrb[0].mxu0
        %1294 = vdwg.mxu0
        %1295 = vrot.lane.b32.xlu0 %v1073, 112
        %v1296 = vpop.permute.xlu0 %1295
        %1297 = vrot.lane.b32.xlu0 %v1074, 112
        %v1298 = vpop.permute.xlu0 %1297
        %v1300 = vsel %vm1075, %v1296, 0
        %v1303 = vsel %vm1075, %v1298, 0
        %1305 = vmatprep.subr.bf16.mxu0 0
        %1306 = vmatpush1.bf16.xpose.msra.mxu0 %v1303
        %1307 = vmatprep.subr.bf16.mxu0 0
        %1308 = vmatpush1.bf16.xpose.msra.mxu0 0
        %1309 = vmatprep.subr.bf16.mxu0 0
        %1310 = vmatpush1.bf16.xpose.msra.mxu0 0
        %1311 = vmatprep.subr.bf16.mxu0 0
        %1312 = vmatpush1.bf16.xpose.msra.mxu0 0
        %1313 = vmatprep.subr.bf16.mxu0 0
        %1314 = vmatpush1.bf16.xpose.msra.mxu0 0
        %1315 = vmatprep.subr.bf16.mxu0 0
        %1316 = vmatpush1.bf16.xpose.msra.mxu0 0
        %1317 = vmatprep.subr.bf16.mxu0 0
        %1318 = vmatpush1.bf16.xpose.msra.mxu0 0
        %1319 = vmatprep.subr.bf16.mxu0 0
        %1320 = vmatpush1.bf16.xpose.msra.mxu0 0
        %1321 = vmatprep.subr.bf16.mxu0 0
        %1322 = vmatpush1.bf16.xpose.msra.mxu0 0
        %1323 = vmatprep.subr.bf16.mxu0 0
        %1324 = vmatpush1.bf16.xpose.msra.mxu0 0
        %1325 = vmatprep.subr.bf16.mxu0 0
        %1326 = vmatpush1.bf16.xpose.msra.mxu0 0
        %1327 = vmatprep.subr.bf16.mxu0 0
        %1328 = vmatpush1.bf16.xpose.msra.mxu0 0
        %1329 = vmatprep.subr.bf16.mxu0 0
        %1330 = vmatpush1.bf16.xpose.msra.mxu0 0
        %1331 = vmatprep.subr.bf16.mxu0 0
        %1332 = vmatpush1.bf16.xpose.msra.mxu0 0
        %1333 = vmatprep.subr.bf16.mxu0 0
        %1334 = vmatpush1.bf16.xpose.msra.mxu0 0
        %1335 = vmatprep.subr.bf16.mxu0 0
        %1336 = vmatpush1.bf16.xpose.msra.mxu0 0
        %1337 = vmatprep.mubr.bf16.mxu0 0
        %1338 = vmatmul.mubr.bf16.gmra.mrb[0].mxu0 %v1300
        %v1339 = vpop.f32.mrb[0].mxu0
        %v1340 = vadd.f32 %v898, %v1339
        %v1341 = vpop.f32.mrb[0].mxu0
        %v1342 = vpop.f32.mrb[0].mxu0
        %v1343 = vpop.f32.mrb[0].mxu0
        %1344 = vdwg.mxu0
        %v1345 = vsel %vm1075, %v1340, -inf
        %1346 = vmax.xlane.f32.xlu0 %v1345
        %v1347 = vpop.xlane.xlu0 %1346
        %v1348 = vsub.f32 %v1340, %v1347
        %v1349 = vmul.f32 %v1348, 1.442695
        %v1350 = vpow.pop %v1349
        %v1351 = vsel %vm1075, %v1350, 0.0
        %1352 = vadd.xlane.f32.xlu0 %v1351
        %v1353 = vpop.xlane.xlu0 %1352
        %v1354 = vrcp.pop %v1353
        %v1355 = vmul.f32 %v1350, %v1354
        %v1356 = vpack.c.bf16 %v1355, %v1355
        %1357 = vrot.lane.b32.xlu0 %v1074, 80
        %v1358 = vpop.permute.xlu0 %1357
        %v1360 = vsel %vm1075, %v1356, 0
        %v1363 = vsel %vm1140, %v1358, 0
        %1365 = vmatprep.subr.bf16.mxu0 0
        %1366 = vmatpush1.bf16.msra.mxu0 %v1363
        %1367 = vmatprep.subr.bf16.mxu0 0
        %1368 = vmatpush1.bf16.msra.mxu0 0
        %1369 = vmatprep.subr.bf16.mxu0 0
        %1370 = vmatpush1.bf16.msra.mxu0 0
        %1371 = vmatprep.subr.bf16.mxu0 0
        %1372 = vmatpush1.bf16.msra.mxu0 0
        %1373 = vmatprep.subr.bf16.mxu0 0
        %1374 = vmatpush1.bf16.msra.mxu0 0
        %1375 = vmatprep.subr.bf16.mxu0 0
        %1376 = vmatpush1.bf16.msra.mxu0 0
        %1377 = vmatprep.subr.bf16.mxu0 0
        %1378 = vmatpush1.bf16.msra.mxu0 0
        %1379 = vmatprep.subr.bf16.mxu0 0
        %1380 = vmatpush1.bf16.msra.mxu0 0
        %1381 = vmatprep.subr.bf16.mxu0 0
        %1382 = vmatpush1.bf16.msra.mxu0 0
        %1383 = vmatprep.subr.bf16.mxu0 0
        %1384 = vmatpush1.bf16.msra.mxu0 0
        %1385 = vmatprep.subr.bf16.mxu0 0
        %1386 = vmatpush1.bf16.msra.mxu0 0
        %1387 = vmatprep.subr.bf16.mxu0 0
        %1388 = vmatpush1.bf16.msra.mxu0 0
        %1389 = vmatprep.subr.bf16.mxu0 0
        %1390 = vmatpush1.bf16.msra.mxu0 0
        %1391 = vmatprep.subr.bf16.mxu0 0
        %1392 = vmatpush1.bf16.msra.mxu0 0
        %1393 = vmatprep.subr.bf16.mxu0 0
        %1394 = vmatpush1.bf16.msra.mxu0 0
        %1395 = vmatprep.subr.bf16.mxu0 0
        %1396 = vmatpush1.bf16.msra.mxu0 0
        %1397 = vmatprep.mubr.bf16.mxu0 0
        %1398 = vmatmul.mubr.bf16.gmra.mrb[0].mxu0 %v1360
        %v1399 = vpop.f32.mrb[0].mxu0
        %v1400 = vadd.f32 0.0, %v1399
        %v1401 = vpop.f32.mrb[0].mxu0
        %v1402 = vpop.f32.mrb[0].mxu0
        %v1403 = vpop.f32.mrb[0].mxu0
        %1404 = vdwg.mxu0
        %1405 = vrot.lane.b32.xlu0 %v1073, 104
        %v1406 = vpop.permute.xlu0 %1405
        %1407 = vrot.lane.b32.xlu0 %v1074, 104
        %v1408 = vpop.permute.xlu0 %1407
        %v1410 = vsel %vm1075, %v1406, 0
        %v1413 = vsel %vm1075, %v1408, 0
        %1415 = vmatprep.subr.bf16.mxu0 0
        %1416 = vmatpush1.bf16.xpose.msra.mxu0 %v1413
        %1417 = vmatprep.subr.bf16.mxu0 0
        %1418 = vmatpush1.bf16.xpose.msra.mxu0 0
        %1419 = vmatprep.subr.bf16.mxu0 0
        %1420 = vmatpush1.bf16.xpose.msra.mxu0 0
        %1421 = vmatprep.subr.bf16.mxu0 0
        %1422 = vmatpush1.bf16.xpose.msra.mxu0 0
        %1423 = vmatprep.subr.bf16.mxu0 0
        %1424 = vmatpush1.bf16.xpose.msra.mxu0 0
        %1425 = vmatprep.subr.bf16.mxu0 0
        %1426 = vmatpush1.bf16.xpose.msra.mxu0 0
        %1427 = vmatprep.subr.bf16.mxu0 0
        %1428 = vmatpush1.bf16.xpose.msra.mxu0 0
        %1429 = vmatprep.subr.bf16.mxu0 0
        %1430 = vmatpush1.bf16.xpose.msra.mxu0 0
        %1431 = vmatprep.subr.bf16.mxu0 0
        %1432 = vmatpush1.bf16.xpose.msra.mxu0 0
        %1433 = vmatprep.subr.bf16.mxu0 0
        %1434 = vmatpush1.bf16.xpose.msra.mxu0 0
        %1435 = vmatprep.subr.bf16.mxu0 0
        %1436 = vmatpush1.bf16.xpose.msra.mxu0 0
        %1437 = vmatprep.subr.bf16.mxu0 0
        %1438 = vmatpush1.bf16.xpose.msra.mxu0 0
        %1439 = vmatprep.subr.bf16.mxu0 0
        %1440 = vmatpush1.bf16.xpose.msra.mxu0 0
        %1441 = vmatprep.subr.bf16.mxu0 0
        %1442 = vmatpush1.bf16.xpose.msra.mxu0 0
        %1443 = vmatprep.subr.bf16.mxu0 0
        %1444 = vmatpush1.bf16.xpose.msra.mxu0 0
        %1445 = vmatprep.subr.bf16.mxu0 0
        %1446 = vmatpush1.bf16.xpose.msra.mxu0 0
        %1447 = vmatprep.mubr.bf16.mxu0 0
        %1448 = vmatmul.mubr.bf16.gmra.mrb[0].mxu0 %v1410
        %v1449 = vpop.f32.mrb[0].mxu0
        %v1450 = vadd.f32 %v898, %v1449
        %v1451 = vpop.f32.mrb[0].mxu0
        %v1452 = vpop.f32.mrb[0].mxu0
        %v1453 = vpop.f32.mrb[0].mxu0
        %1454 = vdwg.mxu0
        %v1455 = vsel %vm1075, %v1450, -inf
        %1456 = vmax.xlane.f32.xlu0 %v1455
        %v1457 = vpop.xlane.xlu0 %1456
        %v1458 = vsub.f32 %v1450, %v1457
        %v1459 = vmul.f32 %v1458, 1.442695
        %v1460 = vpow.pop %v1459
        %v1461 = vsel %vm1075, %v1460, 0.0
        %1462 = vadd.xlane.f32.xlu0 %v1461
        %v1463 = vpop.xlane.xlu0 %1462
        %v1464 = vrcp.pop %v1463
        %v1465 = vmul.f32 %v1460, %v1464
        %v1466 = vpack.c.bf16 %v1465, %v1465
        %1467 = vrot.lane.b32.xlu0 %v1074, 72
        %v1468 = vpop.permute.xlu0 %1467
        %v1470 = vsel %vm1075, %v1466, 0
        %v1473 = vsel %vm1140, %v1468, 0
        %1475 = vmatprep.subr.bf16.mxu0 0
        %1476 = vmatpush1.bf16.msra.mxu0 %v1473
        %1477 = vmatprep.subr.bf16.mxu0 0
        %1478 = vmatpush1.bf16.msra.mxu0 0
        %1479 = vmatprep.subr.bf16.mxu0 0
        %1480 = vmatpush1.bf16.msra.mxu0 0
        %1481 = vmatprep.subr.bf16.mxu0 0
        %1482 = vmatpush1.bf16.msra.mxu0 0
        %1483 = vmatprep.subr.bf16.mxu0 0
        %1484 = vmatpush1.bf16.msra.mxu0 0
        %1485 = vmatprep.subr.bf16.mxu0 0
        %1486 = vmatpush1.bf16.msra.mxu0 0
        %1487 = vmatprep.subr.bf16.mxu0 0
        %1488 = vmatpush1.bf16.msra.mxu0 0
        %1489 = vmatprep.subr.bf16.mxu0 0
        %1490 = vmatpush1.bf16.msra.mxu0 0
        %1491 = vmatprep.subr.bf16.mxu0 0
        %1492 = vmatpush1.bf16.msra.mxu0 0
        %1493 = vmatprep.subr.bf16.mxu0 0
        %1494 = vmatpush1.bf16.msra.mxu0 0
        %1495 = vmatprep.subr.bf16.mxu0 0
        %1496 = vmatpush1.bf16.msra.mxu0 0
        %1497 = vmatprep.subr.bf16.mxu0 0
        %1498 = vmatpush1.bf16.msra.mxu0 0
        %1499 = vmatprep.subr.bf16.mxu0 0
        %1500 = vmatpush1.bf16.msra.mxu0 0
        %1501 = vmatprep.subr.bf16.mxu0 0
        %1502 = vmatpush1.bf16.msra.mxu0 0
        %1503 = vmatprep.subr.bf16.mxu0 0
        %1504 = vmatpush1.bf16.msra.mxu0 0
        %1505 = vmatprep.subr.bf16.mxu0 0
        %1506 = vmatpush1.bf16.msra.mxu0 0
        %1507 = vmatprep.mubr.bf16.mxu0 0
        %1508 = vmatmul.mubr.bf16.gmra.mrb[0].mxu0 %v1470
        %v1509 = vpop.f32.mrb[0].mxu0
        %v1510 = vadd.f32 0.0, %v1509
        %v1511 = vpop.f32.mrb[0].mxu0
        %v1512 = vpop.f32.mrb[0].mxu0
        %v1513 = vpop.f32.mrb[0].mxu0
        %1514 = vdwg.mxu0
        %1516 = vrot.lane.b32.xlu0 %v1290, 8
        %v1517 = vpop.permute.xlu0 %1516
        %1520 = vrot.lane.b32.xlu0 %v1400, 16
        %v1521 = vpop.permute.xlu0 %1520
        %1524 = vrot.lane.b32.xlu0 %v1510, 24
        %v1525 = vpop.permute.xlu0 %1524
        %v1527 = vsel %vm1075, %v1179, %v1517
        %vm1528 = vcmask 130048
        %v1529 = vsel %vm1528, %v1527, %v1521
        %vm1530 = vcmask 195584
        %v1531 = vsel %vm1530, %v1529, %v1525
        %v1532 = vpack.c.bf16 %v1531, %v1531
        %v1533 = vlaneseq
        %v1534 = vshrl.u32 %v1533, 7
        %v1535 = vsub.s32 7, %v1534
        %v1536 = vrot.slane %v882, %v1535
        %v1541 = vunpack.c.l.b16 %v952
        %v1542 = vunpack.c.l.b16 %v953
        %v1543 = vunpack.c.l.b16 %v954
        %v1544 = vunpack.c.l.b16 %v955
        %v1545 = vpack.c.b16 %v1542, %v1541
        %v1546 = vpack.c.b16 %v1544, %v1543
        %v1550 = vsel %vm908, %v1532, 0
        %1552 = vmatprep.subr.bf16.mxu0 0
        %1553 = vmatpush1.bf16.msra.mxu0 %v1545
        %1554 = vmatprep.subr.bf16.mxu0 0
        %1555 = vmatpush1.bf16.msra.mxu0 %v1546
        %1556 = vmatprep.subr.bf16.mxu0 0
        %1557 = vmatpush1.bf16.msra.mxu0 0
        %1558 = vmatprep.subr.bf16.mxu0 0
        %1559 = vmatpush1.bf16.msra.mxu0 0
        %1560 = vmatprep.subr.bf16.mxu0 0
        %1561 = vmatpush1.bf16.msra.mxu0 0
        %1562 = vmatprep.subr.bf16.mxu0 0
        %1563 = vmatpush1.bf16.msra.mxu0 0
        %1564 = vmatprep.subr.bf16.mxu0 0
        %1565 = vmatpush1.bf16.msra.mxu0 0
        %1566 = vmatprep.subr.bf16.mxu0 0
        %1567 = vmatpush1.bf16.msra.mxu0 0
        %1568 = vmatprep.subr.bf16.mxu0 0
        %1569 = vmatpush1.bf16.msra.mxu0 0
        %1570 = vmatprep.subr.bf16.mxu0 0
        %1571 = vmatpush1.bf16.msra.mxu0 0
        %1572 = vmatprep.subr.bf16.mxu0 0
        %1573 = vmatpush1.bf16.msra.mxu0 0
        %1574 = vmatprep.subr.bf16.mxu0 0
        %1575 = vmatpush1.bf16.msra.mxu0 0
        %1576 = vmatprep.subr.bf16.mxu0 0
        %1577 = vmatpush1.bf16.msra.mxu0 0
        %1578 = vmatprep.subr.bf16.mxu0 0
        %1579 = vmatpush1.bf16.msra.mxu0 0
        %1580 = vmatprep.subr.bf16.mxu0 0
        %1581 = vmatpush1.bf16.msra.mxu0 0
        %1582 = vmatprep.subr.bf16.mxu0 0
        %1583 = vmatpush1.bf16.msra.mxu0 0
        %1584 = vmatprep.mubr.bf16.mxu0 0
        %1585 = vmatmul.mubr.bf16.gmra.mrb[0].mxu0 %v1550
        %v1586 = vpop.f32.mrb[0].mxu0
        %v1587 = vadd.f32 %v1536, %v1586
        %v1588 = vpop.f32.mrb[0].mxu0
        %v1589 = vpop.f32.mrb[0].mxu0
        %v1590 = vpop.f32.mrb[0].mxu0
        %1591 = vdwg.mxu0
        %v1592 = vadd.f32 %v1587, %v880
        %v1593 = vsel %vm908, %v1592, 0.0
        %1594 = vadd.xlane.f32.xlu0 %v1593
        %v1595 = vpop.xlane.xlu0 %1594
        %v1596 = vmul.f32 %v1595, %v912
        %v1597 = vsub.f32 %v1592, %v1596
        %v1598 = vmul.f32 %v1597, %v1597
        %v1599 = vsel %vm908, %v1598, 0.0
        %1600 = vadd.xlane.f32.xlu0 %v1599
        %v1601 = vpop.xlane.xlu0 %1600
        %v1602 = vmul.f32 %v1601, %v919
        %v1603 = vlaneseq
        %v1604 = vshrl.u32 %v1603, 7
        %v1605 = vsub.s32 2, %v1604
        %v1606 = vrot.slane %v882, %v1605
        %v1607 = vmul.f32 %v1606, %v1597
        %v1608 = vrsqrt.pop %v1602
        %v1609 = vmul.f32 %v1602, %v1608
        %vm1610 = vcmp.eq.f32.partialorder %v1602, inf
        %v1611 = vsel %vm1610, %v1602, %v1609
        %vm1612 = vcmp.eq.f32.partialorder %v1602, 0.0
        %v1613 = vand.u32 %v1602, 2147483648
        %v1614 = vsel %vm1612, %v1613, %v1611
        %v1615 = vadd.f32 %v1614, 1e-06
        %v1616 = vrcp.pop %v1615
        %v1617 = vmul.f32 %v1607, %v1616
        %v1618 = vlaneseq
        %v1619 = vshrl.u32 %v1618, 7
        %v1620 = vsub.s32 3, %v1619
        %v1621 = vrot.slane %v882, %v1620
        %v1622 = vadd.f32 %v1617, %v1621
        %v1623 = vpack.c.bf16 %v1622, %v1622
        %v1624 = vld [vmem:[#allocation14] sm:$0xf]
        %v1625 = vld [vmem:[#allocation14 + $0x4] sm:$0xf]
        %v1626 = vld [vmem:[#allocation14 + $0x8] sm:$0xf]
        %v1627 = vld [vmem:[#allocation14 + $0xc] sm:$0xf]
        %v1628 = vld [vmem:[#allocation16] sm:$0xf]
        %v1629 = vld [vmem:[#allocation16 + $0x4] sm:$0xf]
        %v1630 = vld [vmem:[#allocation16 + $0x8] sm:$0xf]
        %v1631 = vld [vmem:[#allocation16 + $0xc] sm:$0xf]
        %v1632 = vld [vmem:[#allocation22] sm:$0x1]
        %v1633 = vld [vmem:[#allocation17] sm:$0xf]
        %v1634 = vld [vmem:[#allocation17 + $0x4] sm:$0xf]
        %v1635 = vld [vmem:[#allocation17 + $0x8] sm:$0xf]
        %v1636 = vld [vmem:[#allocation17 + $0xc] sm:$0xf]
        %v1637 = vlaneseq
        %v1638 = vshrl.u32 %v1637, 7
        %v1639 = vsub.s32 0, %v1638
        %v1640 = vrot.slane %v883, %v1639
        %v1645 = vunpack.c.l.b16 %v1624
        %v1646 = vunpack.c.l.b16 %v1625
        %v1647 = vunpack.c.l.b16 %v1626
        %v1648 = vunpack.c.l.b16 %v1627
        %v1649 = vpack.c.b16 %v1646, %v1645
        %v1650 = vpack.c.b16 %v1648, %v1647
        %v1654 = vsel %vm908, %v1623, 0
        %1656 = vmatprep.subr.bf16.mxu0 0
        %1657 = vmatpush1.bf16.msra.mxu0 %v1649
        %1658 = vmatprep.subr.bf16.mxu0 0
        %1659 = vmatpush1.bf16.msra.mxu0 %v1650
        %1660 = vmatprep.subr.bf16.mxu0 0
        %1661 = vmatpush1.bf16.msra.mxu0 0
        %1662 = vmatprep.subr.bf16.mxu0 0
        %1663 = vmatpush1.bf16.msra.mxu0 0
        %1664 = vmatprep.subr.bf16.mxu0 0
        %1665 = vmatpush1.bf16.msra.mxu0 0
        %1666 = vmatprep.subr.bf16.mxu0 0
        %1667 = vmatpush1.bf16.msra.mxu0 0
        %1668 = vmatprep.subr.bf16.mxu0 0
        %1669 = vmatpush1.bf16.msra.mxu0 0
        %1670 = vmatprep.subr.bf16.mxu0 0
        %1671 = vmatpush1.bf16.msra.mxu0 0
        %1672 = vmatprep.subr.bf16.mxu0 0
        %1673 = vmatpush1.bf16.msra.mxu0 0
        %1674 = vmatprep.subr.bf16.mxu0 0
        %1675 = vmatpush1.bf16.msra.mxu0 0
        %1676 = vmatprep.subr.bf16.mxu0 0
        %1677 = vmatpush1.bf16.msra.mxu0 0
        %1678 = vmatprep.subr.bf16.mxu0 0
        %1679 = vmatpush1.bf16.msra.mxu0 0
        %1680 = vmatprep.subr.bf16.mxu0 0
        %1681 = vmatpush1.bf16.msra.mxu0 0
        %1682 = vmatprep.subr.bf16.mxu0 0
        %1683 = vmatpush1.bf16.msra.mxu0 0
        %1684 = vmatprep.subr.bf16.mxu0 0
        %1685 = vmatpush1.bf16.msra.mxu0 0
        %1686 = vmatprep.subr.bf16.mxu0 0
        %1687 = vmatpush1.bf16.msra.mxu0 0
        %1688 = vmatprep.mubr.bf16.mxu0 0
        %1689 = vmatmul.mubr.bf16.gmra.mrb[0].mxu0 %v1654
        %v1690 = vpop.f32.mrb[0].mxu0
        %v1691 = vadd.f32 %v1640, %v1690
        %v1692 = vpop.f32.mrb[0].mxu0
        %v1693 = vpop.f32.mrb[0].mxu0
        %v1694 = vpop.f32.mrb[0].mxu0
        %1695 = vdwg.mxu0
        %v1697 = vlaneseq
        %v1698 = vshrl.u32 %v1697, 7
        %v1699 = vsub.s32 0, %v1698
        %v1700 = vrot.slane %v1632, %v1699
        %v1706 = vunpack.c.l.b16 %v1628
        %v1707 = vunpack.c.l.b16 %v1629
        %v1708 = vunpack.c.l.b16 %v1630
        %v1709 = vunpack.c.l.b16 %v1631
        %v1710 = vpack.c.b16 %v1707, %v1706
        %v1711 = vpack.c.b16 %v1709, %v1708
        %v1715 = vsel %vm908, %v881, 0
        %1717 = vmatprep.subr.bf16.mxu0 0
        %1718 = vmatpush1.bf16.msra.mxu0 %v1710
        %1719 = vmatprep.subr.bf16.mxu0 0
        %1720 = vmatpush1.bf16.msra.mxu0 %v1711
        %1721 = vmatprep.subr.bf16.mxu0 0
        %1722 = vmatpush1.bf16.msra.mxu0 0
        %1723 = vmatprep.subr.bf16.mxu0 0
        %1724 = vmatpush1.bf16.msra.mxu0 0
        %1725 = vmatprep.subr.bf16.mxu0 0
        %1726 = vmatpush1.bf16.msra.mxu0 0
        %1727 = vmatprep.subr.bf16.mxu0 0
        %1728 = vmatpush1.bf16.msra.mxu0 0
        %1729 = vmatprep.subr.bf16.mxu0 0
        %1730 = vmatpush1.bf16.msra.mxu0 0
        %1731 = vmatprep.subr.bf16.mxu0 0
        %1732 = vmatpush1.bf16.msra.mxu0 0
        %1733 = vmatprep.subr.bf16.mxu0 0
        %1734 = vmatpush1.bf16.msra.mxu0 0
        %1735 = vmatprep.subr.bf16.mxu0 0
        %1736 = vmatpush1.bf16.msra.mxu0 0
        %1737 = vmatprep.subr.bf16.mxu0 0
        %1738 = vmatpush1.bf16.msra.mxu0 0
        %1739 = vmatprep.subr.bf16.mxu0 0
        %1740 = vmatpush1.bf16.msra.mxu0 0
        %1741 = vmatprep.subr.bf16.mxu0 0
        %1742 = vmatpush1.bf16.msra.mxu0 0
        %1743 = vmatprep.subr.bf16.mxu0 0
        %1744 = vmatpush1.bf16.msra.mxu0 0
        %1745 = vmatprep.subr.bf16.mxu0 0
        %1746 = vmatpush1.bf16.msra.mxu0 0
        %1747 = vmatprep.subr.bf16.mxu0 0
        %1748 = vmatpush1.bf16.msra.mxu0 0
        %1749 = vmatprep.mubr.bf16.mxu0 0
        %1750 = vmatmul.mubr.bf16.gmra.mrb[0].mxu0 %v1715
        %v1751 = vpop.f32.mrb[0].mxu0
        %v1752 = vadd.f32 %v1700, %v1751
        %v1753 = vpop.f32.mrb[0].mxu0
        %v1754 = vpop.f32.mrb[0].mxu0
        %v1755 = vpop.f32.mrb[0].mxu0
        %1756 = vdwg.mxu0
        %v1757 = vpack.c.bf16 %v1691, %v1691
        %v1758 = vpack.c.bf16 %v1752, %v1752
        %v1760 = vsel %vm1075, %v1757, 0
        %v1763 = vsel %vm1075, %v1758, 0
        %1765 = vmatprep.subr.bf16.mxu0 0
        %1766 = vmatpush1.bf16.xpose.msra.mxu0 %v1763
        %1767 = vmatprep.subr.bf16.mxu0 0
        %1768 = vmatpush1.bf16.xpose.msra.mxu0 0
        %1769 = vmatprep.subr.bf16.mxu0 0
        %1770 = vmatpush1.bf16.xpose.msra.mxu0 0
        %1771 = vmatprep.subr.bf16.mxu0 0
        %1772 = vmatpush1.bf16.xpose.msra.mxu0 0
        %1773 = vmatprep.subr.bf16.mxu0 0
        %1774 = vmatpush1.bf16.xpose.msra.mxu0 0
        %1775 = vmatprep.subr.bf16.mxu0 0
        %1776 = vmatpush1.bf16.xpose.msra.mxu0 0
        %1777 = vmatprep.subr.bf16.mxu0 0
        %1778 = vmatpush1.bf16.xpose.msra.mxu0 0
        %1779 = vmatprep.subr.bf16.mxu0 0
        %1780 = vmatpush1.bf16.xpose.msra.mxu0 0
        %1781 = vmatprep.subr.bf16.mxu0 0
        %1782 = vmatpush1.bf16.xpose.msra.mxu0 0
        %1783 = vmatprep.subr.bf16.mxu0 0
        %1784 = vmatpush1.bf16.xpose.msra.mxu0 0
        %1785 = vmatprep.subr.bf16.mxu0 0
        %1786 = vmatpush1.bf16.xpose.msra.mxu0 0
        %1787 = vmatprep.subr.bf16.mxu0 0
        %1788 = vmatpush1.bf16.xpose.msra.mxu0 0
        %1789 = vmatprep.subr.bf16.mxu0 0
        %1790 = vmatpush1.bf16.xpose.msra.mxu0 0
        %1791 = vmatprep.subr.bf16.mxu0 0
        %1792 = vmatpush1.bf16.xpose.msra.mxu0 0
        %1793 = vmatprep.subr.bf16.mxu0 0
        %1794 = vmatpush1.bf16.xpose.msra.mxu0 0
        %1795 = vmatprep.subr.bf16.mxu0 0
        %1796 = vmatpush1.bf16.xpose.msra.mxu0 0
        %1797 = vmatprep.mubr.bf16.mxu0 0
        %1798 = vmatmul.mubr.bf16.gmra.mrb[0].mxu0 %v1760
        %v1799 = vpop.f32.mrb[0].mxu0
        %v1800 = vadd.f32 %v906, %v1799
        %v1801 = vpop.f32.mrb[0].mxu0
        %v1802 = vpop.f32.mrb[0].mxu0
        %v1803 = vpop.f32.mrb[0].mxu0
        %1804 = vdwg.mxu0
        %v1805 = vsel %vm1075, %v1800, -inf
        %1806 = vmax.xlane.f32.xlu0 %v1805
        %v1807 = vpop.xlane.xlu0 %1806
        %v1808 = vsub.f32 %v1800, %v1807
        %v1809 = vmul.f32 %v1808, 1.442695
        %v1810 = vpow.pop %v1809
        %v1811 = vsel %vm1075, %v1810, 0.0
        %1812 = vadd.xlane.f32.xlu0 %v1811
        %v1813 = vpop.xlane.xlu0 %1812
        %v1814 = vrcp.pop %v1813
        %v1815 = vmul.f32 %v1810, %v1814
        %v1816 = vpack.c.bf16 %v1815, %v1815
        %1818 = vrot.lane.b32.xlu0 %v1758, 96
        %v1819 = vpop.permute.xlu0 %1818
        %v1821 = vsel %vm1075, %v1816, 0
        %v1824 = vsel %vm1140, %v1819, 0
        %1826 = vmatprep.subr.bf16.mxu0 0
        %1827 = vmatpush1.bf16.msra.mxu0 %v1824
        %1828 = vmatprep.subr.bf16.mxu0 0
        %1829 = vmatpush1.bf16.msra.mxu0 0
        %1830 = vmatprep.subr.bf16.mxu0 0
        %1831 = vmatpush1.bf16.msra.mxu0 0
        %1832 = vmatprep.subr.bf16.mxu0 0
        %1833 = vmatpush1.bf16.msra.mxu0 0
        %1834 = vmatprep.subr.bf16.mxu0 0
        %1835 = vmatpush1.bf16.msra.mxu0 0
        %1836 = vmatprep.subr.bf16.mxu0 0
        %1837 = vmatpush1.bf16.msra.mxu0 0
        %1838 = vmatprep.subr.bf16.mxu0 0
        %1839 = vmatpush1.bf16.msra.mxu0 0
        %1840 = vmatprep.subr.bf16.mxu0 0
        %1841 = vmatpush1.bf16.msra.mxu0 0
        %1842 = vmatprep.subr.bf16.mxu0 0
        %1843 = vmatpush1.bf16.msra.mxu0 0
        %1844 = vmatprep.subr.bf16.mxu0 0
        %1845 = vmatpush1.bf16.msra.mxu0 0
        %1846 = vmatprep.subr.bf16.mxu0 0
        %1847 = vmatpush1.bf16.msra.mxu0 0
        %1848 = vmatprep.subr.bf16.mxu0 0
        %1849 = vmatpush1.bf16.msra.mxu0 0
        %1850 = vmatprep.subr.bf16.mxu0 0
        %1851 = vmatpush1.bf16.msra.mxu0 0
        %1852 = vmatprep.subr.bf16.mxu0 0
        %1853 = vmatpush1.bf16.msra.mxu0 0
        %1854 = vmatprep.subr.bf16.mxu0 0
        %1855 = vmatpush1.bf16.msra.mxu0 0
        %1856 = vmatprep.subr.bf16.mxu0 0
        %1857 = vmatpush1.bf16.msra.mxu0 0
        %1858 = vmatprep.mubr.bf16.mxu0 0
        %1859 = vmatmul.mubr.bf16.gmra.mrb[0].mxu0 %v1821
        %v1860 = vpop.f32.mrb[0].mxu0
        %v1861 = vadd.f32 0.0, %v1860
        %v1862 = vpop.f32.mrb[0].mxu0
        %v1863 = vpop.f32.mrb[0].mxu0
        %v1864 = vpop.f32.mrb[0].mxu0
        %1865 = vdwg.mxu0
        %1867 = vrot.lane.b32.xlu0 %v1757, 120
        %v1868 = vpop.permute.xlu0 %1867
        %1869 = vrot.lane.b32.xlu0 %v1758, 120
        %v1870 = vpop.permute.xlu0 %1869
        %v1872 = vsel %vm1075, %v1868, 0
        %v1875 = vsel %vm1075, %v1870, 0
        %1877 = vmatprep.subr.bf16.mxu0 0
        %1878 = vmatpush1.bf16.xpose.msra.mxu0 %v1875
        %1879 = vmatprep.subr.bf16.mxu0 0
        %1880 = vmatpush1.bf16.xpose.msra.mxu0 0
        %1881 = vmatprep.subr.bf16.mxu0 0
        %1882 = vmatpush1.bf16.xpose.msra.mxu0 0
        %1883 = vmatprep.subr.bf16.mxu0 0
        %1884 = vmatpush1.bf16.xpose.msra.mxu0 0
        %1885 = vmatprep.subr.bf16.mxu0 0
        %1886 = vmatpush1.bf16.xpose.msra.mxu0 0
        %1887 = vmatprep.subr.bf16.mxu0 0
        %1888 = vmatpush1.bf16.xpose.msra.mxu0 0
        %1889 = vmatprep.subr.bf16.mxu0 0
        %1890 = vmatpush1.bf16.xpose.msra.mxu0 0
        %1891 = vmatprep.subr.bf16.mxu0 0
        %1892 = vmatpush1.bf16.xpose.msra.mxu0 0
        %1893 = vmatprep.subr.bf16.mxu0 0
        %1894 = vmatpush1.bf16.xpose.msra.mxu0 0
        %1895 = vmatprep.subr.bf16.mxu0 0
        %1896 = vmatpush1.bf16.xpose.msra.mxu0 0
        %1897 = vmatprep.subr.bf16.mxu0 0
        %1898 = vmatpush1.bf16.xpose.msra.mxu0 0
        %1899 = vmatprep.subr.bf16.mxu0 0
        %1900 = vmatpush1.bf16.xpose.msra.mxu0 0
        %1901 = vmatprep.subr.bf16.mxu0 0
        %1902 = vmatpush1.bf16.xpose.msra.mxu0 0
        %1903 = vmatprep.subr.bf16.mxu0 0
        %1904 = vmatpush1.bf16.xpose.msra.mxu0 0
        %1905 = vmatprep.subr.bf16.mxu0 0
        %1906 = vmatpush1.bf16.xpose.msra.mxu0 0
        %1907 = vmatprep.subr.bf16.mxu0 0
        %1908 = vmatpush1.bf16.xpose.msra.mxu0 0
        %1909 = vmatprep.mubr.bf16.mxu0 0
        %1910 = vmatmul.mubr.bf16.gmra.mrb[0].mxu0 %v1872
        %v1911 = vpop.f32.mrb[0].mxu0
        %v1912 = vadd.f32 %v906, %v1911
        %v1913 = vpop.f32.mrb[0].mxu0
        %v1914 = vpop.f32.mrb[0].mxu0
        %v1915 = vpop.f32.mrb[0].mxu0
        %1916 = vdwg.mxu0
        %v1917 = vsel %vm1075, %v1912, -inf
        %1918 = vmax.xlane.f32.xlu0 %v1917
        %v1919 = vpop.xlane.xlu0 %1918
        %v1920 = vsub.f32 %v1912, %v1919
        %v1921 = vmul.f32 %v1920, 1.442695
        %v1922 = vpow.pop %v1921
        %v1923 = vsel %vm1075, %v1922, 0.0
        %1924 = vadd.xlane.f32.xlu0 %v1923
        %v1925 = vpop.xlane.xlu0 %1924
        %v1926 = vrcp.pop %v1925
        %v1927 = vmul.f32 %v1922, %v1926
        %v1928 = vpack.c.bf16 %v1927, %v1927
        %1929 = vrot.lane.b32.xlu0 %v1758, 88
        %v1930 = vpop.permute.xlu0 %1929
        %v1932 = vsel %vm1075, %v1928, 0
        %v1935 = vsel %vm1140, %v1930, 0
        %1937 = vmatprep.subr.bf16.mxu0 0
        %1938 = vmatpush1.bf16.msra.mxu0 %v1935
        %1939 = vmatprep.subr.bf16.mxu0 0
        %1940 = vmatpush1.bf16.msra.mxu0 0
        %1941 = vmatprep.subr.bf16.mxu0 0
        %1942 = vmatpush1.bf16.msra.mxu0 0
        %1943 = vmatprep.subr.bf16.mxu0 0
        %1944 = vmatpush1.bf16.msra.mxu0 0
        %1945 = vmatprep.subr.bf16.mxu0 0
        %1946 = vmatpush1.bf16.msra.mxu0 0
        %1947 = vmatprep.subr.bf16.mxu0 0
        %1948 = vmatpush1.bf16.msra.mxu0 0
        %1949 = vmatprep.subr.bf16.mxu0 0
        %1950 = vmatpush1.bf16.msra.mxu0 0
        %1951 = vmatprep.subr.bf16.mxu0 0
        %1952 = vmatpush1.bf16.msra.mxu0 0
        %1953 = vmatprep.subr.bf16.mxu0 0
        %1954 = vmatpush1.bf16.msra.mxu0 0
        %1955 = vmatprep.subr.bf16.mxu0 0
        %1956 = vmatpush1.bf16.msra.mxu0 0
        %1957 = vmatprep.subr.bf16.mxu0 0
        %1958 = vmatpush1.bf16.msra.mxu0 0
        %1959 = vmatprep.subr.bf16.mxu0 0
        %1960 = vmatpush1.bf16.msra.mxu0 0
        %1961 = vmatprep.subr.bf16.mxu0 0
        %1962 = vmatpush1.bf16.msra.mxu0 0
        %1963 = vmatprep.subr.bf16.mxu0 0
        %1964 = vmatpush1.bf16.msra.mxu0 0
        %1965 = vmatprep.subr.bf16.mxu0 0
        %1966 = vmatpush1.bf16.msra.mxu0 0
        %1967 = vmatprep.subr.bf16.mxu0 0
        %1968 = vmatpush1.bf16.msra.mxu0 0
        %1969 = vmatprep.mubr.bf16.mxu0 0
        %1970 = vmatmul.mubr.bf16.gmra.mrb[0].mxu0 %v1932
        %v1971 = vpop.f32.mrb[0].mxu0
        %v1972 = vadd.f32 0.0, %v1971
        %v1973 = vpop.f32.mrb[0].mxu0
        %v1974 = vpop.f32.mrb[0].mxu0
        %v1975 = vpop.f32.mrb[0].mxu0
        %1976 = vdwg.mxu0
        %1977 = vrot.lane.b32.xlu0 %v1757, 112
        %v1978 = vpop.permute.xlu0 %1977
        %1979 = vrot.lane.b32.xlu0 %v1758, 112
        %v1980 = vpop.permute.xlu0 %1979
        %v1982 = vsel %vm1075, %v1978, 0
        %v1985 = vsel %vm1075, %v1980, 0
        %1987 = vmatprep.subr.bf16.mxu0 0
        %1988 = vmatpush1.bf16.xpose.msra.mxu0 %v1985
        %1989 = vmatprep.subr.bf16.mxu0 0
        %1990 = vmatpush1.bf16.xpose.msra.mxu0 0
        %1991 = vmatprep.subr.bf16.mxu0 0
        %1992 = vmatpush1.bf16.xpose.msra.mxu0 0
        %1993 = vmatprep.subr.bf16.mxu0 0
        %1994 = vmatpush1.bf16.xpose.msra.mxu0 0
        %1995 = vmatprep.subr.bf16.mxu0 0
        %1996 = vmatpush1.bf16.xpose.msra.mxu0 0
        %1997 = vmatprep.subr.bf16.mxu0 0
        %1998 = vmatpush1.bf16.xpose.msra.mxu0 0
        %1999 = vmatprep.subr.bf16.mxu0 0
        %2000 = vmatpush1.bf16.xpose.msra.mxu0 0
        %2001 = vmatprep.subr.bf16.mxu0 0
        %2002 = vmatpush1.bf16.xpose.msra.mxu0 0
        %2003 = vmatprep.subr.bf16.mxu0 0
        %2004 = vmatpush1.bf16.xpose.msra.mxu0 0
        %2005 = vmatprep.subr.bf16.mxu0 0
        %2006 = vmatpush1.bf16.xpose.msra.mxu0 0
        %2007 = vmatprep.subr.bf16.mxu0 0
        %2008 = vmatpush1.bf16.xpose.msra.mxu0 0
        %2009 = vmatprep.subr.bf16.mxu0 0
        %2010 = vmatpush1.bf16.xpose.msra.mxu0 0
        %2011 = vmatprep.subr.bf16.mxu0 0
        %2012 = vmatpush1.bf16.xpose.msra.mxu0 0
        %2013 = vmatprep.subr.bf16.mxu0 0
        %2014 = vmatpush1.bf16.xpose.msra.mxu0 0
        %2015 = vmatprep.subr.bf16.mxu0 0
        %2016 = vmatpush1.bf16.xpose.msra.mxu0 0
        %2017 = vmatprep.subr.bf16.mxu0 0
        %2018 = vmatpush1.bf16.xpose.msra.mxu0 0
        %2019 = vmatprep.mubr.bf16.mxu0 0
        %2020 = vmatmul.mubr.bf16.gmra.mrb[0].mxu0 %v1982
        %v2021 = vpop.f32.mrb[0].mxu0
        %v2022 = vadd.f32 %v906, %v2021
        %v2023 = vpop.f32.mrb[0].mxu0
        %v2024 = vpop.f32.mrb[0].mxu0
        %v2025 = vpop.f32.mrb[0].mxu0
        %2026 = vdwg.mxu0
        %v2027 = vsel %vm1075, %v2022, -inf
        %2028 = vmax.xlane.f32.xlu0 %v2027
        %v2029 = vpop.xlane.xlu0 %2028
        %v2030 = vsub.f32 %v2022, %v2029
        %v2031 = vmul.f32 %v2030, 1.442695
        %v2032 = vpow.pop %v2031
        %v2033 = vsel %vm1075, %v2032, 0.0
        %2034 = vadd.xlane.f32.xlu0 %v2033
        %v2035 = vpop.xlane.xlu0 %2034
        %v2036 = vrcp.pop %v2035
        %v2037 = vmul.f32 %v2032, %v2036
        %v2038 = vpack.c.bf16 %v2037, %v2037
        %2039 = vrot.lane.b32.xlu0 %v1758, 80
        %v2040 = vpop.permute.xlu0 %2039
        %v2042 = vsel %vm1075, %v2038, 0
        %v2045 = vsel %vm1140, %v2040, 0
        %2047 = vmatprep.subr.bf16.mxu0 0
        %2048 = vmatpush1.bf16.msra.mxu0 %v2045
        %2049 = vmatprep.subr.bf16.mxu0 0
        %2050 = vmatpush1.bf16.msra.mxu0 0
        %2051 = vmatprep.subr.bf16.mxu0 0
        %2052 = vmatpush1.bf16.msra.mxu0 0
        %2053 = vmatprep.subr.bf16.mxu0 0
        %2054 = vmatpush1.bf16.msra.mxu0 0
        %2055 = vmatprep.subr.bf16.mxu0 0
        %2056 = vmatpush1.bf16.msra.mxu0 0
        %2057 = vmatprep.subr.bf16.mxu0 0
        %2058 = vmatpush1.bf16.msra.mxu0 0
        %2059 = vmatprep.subr.bf16.mxu0 0
        %2060 = vmatpush1.bf16.msra.mxu0 0
        %2061 = vmatprep.subr.bf16.mxu0 0
        %2062 = vmatpush1.bf16.msra.mxu0 0
        %2063 = vmatprep.subr.bf16.mxu0 0
        %2064 = vmatpush1.bf16.msra.mxu0 0
        %2065 = vmatprep.subr.bf16.mxu0 0
        %2066 = vmatpush1.bf16.msra.mxu0 0
        %2067 = vmatprep.subr.bf16.mxu0 0
        %2068 = vmatpush1.bf16.msra.mxu0 0
        %2069 = vmatprep.subr.bf16.mxu0 0
        %2070 = vmatpush1.bf16.msra.mxu0 0
        %2071 = vmatprep.subr.bf16.mxu0 0
        %2072 = vmatpush1.bf16.msra.mxu0 0
        %2073 = vmatprep.subr.bf16.mxu0 0
        %2074 = vmatpush1.bf16.msra.mxu0 0
        %2075 = vmatprep.subr.bf16.mxu0 0
        %2076 = vmatpush1.bf16.msra.mxu0 0
        %2077 = vmatprep.subr.bf16.mxu0 0
        %2078 = vmatpush1.bf16.msra.mxu0 0
        %2079 = vmatprep.mubr.bf16.mxu0 0
        %2080 = vmatmul.mubr.bf16.gmra.mrb[0].mxu0 %v2042
        %v2081 = vpop.f32.mrb[0].mxu0
        %v2082 = vadd.f32 0.0, %v2081
        %v2083 = vpop.f32.mrb[0].mxu0
        %v2084 = vpop.f32.mrb[0].mxu0
        %v2085 = vpop.f32.mrb[0].mxu0
        %2086 = vdwg.mxu0
        %2087 = vrot.lane.b32.xlu0 %v1757, 104
        %v2088 = vpop.permute.xlu0 %2087
        %2089 = vrot.lane.b32.xlu0 %v1758, 104
        %v2090 = vpop.permute.xlu0 %2089
        %v2092 = vsel %vm1075, %v2088, 0
        %v2095 = vsel %vm1075, %v2090, 0
        %2097 = vmatprep.subr.bf16.mxu0 0
        %2098 = vmatpush1.bf16.xpose.msra.mxu0 %v2095
        %2099 = vmatprep.subr.bf16.mxu0 0
        %2100 = vmatpush1.bf16.xpose.msra.mxu0 0
        %2101 = vmatprep.subr.bf16.mxu0 0
        %2102 = vmatpush1.bf16.xpose.msra.mxu0 0
        %2103 = vmatprep.subr.bf16.mxu0 0
        %2104 = vmatpush1.bf16.xpose.msra.mxu0 0
        %2105 = vmatprep.subr.bf16.mxu0 0
        %2106 = vmatpush1.bf16.xpose.msra.mxu0 0
        %2107 = vmatprep.subr.bf16.mxu0 0
        %2108 = vmatpush1.bf16.xpose.msra.mxu0 0
        %2109 = vmatprep.subr.bf16.mxu0 0
        %2110 = vmatpush1.bf16.xpose.msra.mxu0 0
        %2111 = vmatprep.subr.bf16.mxu0 0
        %2112 = vmatpush1.bf16.xpose.msra.mxu0 0
        %2113 = vmatprep.subr.bf16.mxu0 0
        %2114 = vmatpush1.bf16.xpose.msra.mxu0 0
        %2115 = vmatprep.subr.bf16.mxu0 0
        %2116 = vmatpush1.bf16.xpose.msra.mxu0 0
        %2117 = vmatprep.subr.bf16.mxu0 0
        %2118 = vmatpush1.bf16.xpose.msra.mxu0 0
        %2119 = vmatprep.subr.bf16.mxu0 0
        %2120 = vmatpush1.bf16.xpose.msra.mxu0 0
        %2121 = vmatprep.subr.bf16.mxu0 0
        %2122 = vmatpush1.bf16.xpose.msra.mxu0 0
        %2123 = vmatprep.subr.bf16.mxu0 0
        %2124 = vmatpush1.bf16.xpose.msra.mxu0 0
        %2125 = vmatprep.subr.bf16.mxu0 0
        %2126 = vmatpush1.bf16.xpose.msra.mxu0 0
        %2127 = vmatprep.subr.bf16.mxu0 0
        %2128 = vmatpush1.bf16.xpose.msra.mxu0 0
        %2129 = vmatprep.mubr.bf16.mxu0 0
        %2130 = vmatmul.mubr.bf16.gmra.mrb[0].mxu0 %v2092
        %v2131 = vpop.f32.mrb[0].mxu0
        %v2132 = vadd.f32 %v906, %v2131
        %v2133 = vpop.f32.mrb[0].mxu0
        %v2134 = vpop.f32.mrb[0].mxu0
        %v2135 = vpop.f32.mrb[0].mxu0
        %2136 = vdwg.mxu0
        %v2137 = vsel %vm1075, %v2132, -inf
        %2138 = vmax.xlane.f32.xlu0 %v2137
        %v2139 = vpop.xlane.xlu0 %2138
        %v2140 = vsub.f32 %v2132, %v2139
        %v2141 = vmul.f32 %v2140, 1.442695
        %v2142 = vpow.pop %v2141
        %v2143 = vsel %vm1075, %v2142, 0.0
        %2144 = vadd.xlane.f32.xlu0 %v2143
        %v2145 = vpop.xlane.xlu0 %2144
        %v2146 = vrcp.pop %v2145
        %v2147 = vmul.f32 %v2142, %v2146
        %v2148 = vpack.c.bf16 %v2147, %v2147
        %2149 = vrot.lane.b32.xlu0 %v1758, 72
        %v2150 = vpop.permute.xlu0 %2149
        %v2152 = vsel %vm1075, %v2148, 0
        %v2155 = vsel %vm1140, %v2150, 0
        %2157 = vmatprep.subr.bf16.mxu0 0
        %2158 = vmatpush1.bf16.msra.mxu0 %v2155
        %2159 = vmatprep.subr.bf16.mxu0 0
        %2160 = vmatpush1.bf16.msra.mxu0 0
        %2161 = vmatprep.subr.bf16.mxu0 0
        %2162 = vmatpush1.bf16.msra.mxu0 0
        %2163 = vmatprep.subr.bf16.mxu0 0
        %2164 = vmatpush1.bf16.msra.mxu0 0
        %2165 = vmatprep.subr.bf16.mxu0 0
        %2166 = vmatpush1.bf16.msra.mxu0 0
        %2167 = vmatprep.subr.bf16.mxu0 0
        %2168 = vmatpush1.bf16.msra.mxu0 0
        %2169 = vmatprep.subr.bf16.mxu0 0
        %2170 = vmatpush1.bf16.msra.mxu0 0
        %2171 = vmatprep.subr.bf16.mxu0 0
        %2172 = vmatpush1.bf16.msra.mxu0 0
        %2173 = vmatprep.subr.bf16.mxu0 0
        %2174 = vmatpush1.bf16.msra.mxu0 0
        %2175 = vmatprep.subr.bf16.mxu0 0
        %2176 = vmatpush1.bf16.msra.mxu0 0
        %2177 = vmatprep.subr.bf16.mxu0 0
        %2178 = vmatpush1.bf16.msra.mxu0 0
        %2179 = vmatprep.subr.bf16.mxu0 0
        %2180 = vmatpush1.bf16.msra.mxu0 0
        %2181 = vmatprep.subr.bf16.mxu0 0
        %2182 = vmatpush1.bf16.msra.mxu0 0
        %2183 = vmatprep.subr.bf16.mxu0 0
        %2184 = vmatpush1.bf16.msra.mxu0 0
        %2185 = vmatprep.subr.bf16.mxu0 0
        %2186 = vmatpush1.bf16.msra.mxu0 0
        %2187 = vmatprep.subr.bf16.mxu0 0
        %2188 = vmatpush1.bf16.msra.mxu0 0
        %2189 = vmatprep.mubr.bf16.mxu0 0
        %2190 = vmatmul.mubr.bf16.gmra.mrb[0].mxu0 %v2152
        %v2191 = vpop.f32.mrb[0].mxu0
        %v2192 = vadd.f32 0.0, %v2191
        %v2193 = vpop.f32.mrb[0].mxu0
        %v2194 = vpop.f32.mrb[0].mxu0
        %v2195 = vpop.f32.mrb[0].mxu0
        %2196 = vdwg.mxu0
        %2198 = vrot.lane.b32.xlu0 %v1972, 8
        %v2199 = vpop.permute.xlu0 %2198
        %2202 = vrot.lane.b32.xlu0 %v2082, 16
        %v2203 = vpop.permute.xlu0 %2202
        %2206 = vrot.lane.b32.xlu0 %v2192, 24
        %v2207 = vpop.permute.xlu0 %2206
        %v2209 = vsel %vm1075, %v1861, %v2199
        %v2210 = vsel %vm1528, %v2209, %v2203
        %v2211 = vsel %vm1530, %v2210, %v2207
        %v2212 = vpack.c.bf16 %v2211, %v2211
        %v2213 = vlaneseq
        %v2214 = vshrl.u32 %v2213, 7
        %v2215 = vsub.s32 1, %v2214
        %v2216 = vrot.slane %v883, %v2215
        %v2221 = vunpack.c.l.b16 %v1633
        %v2222 = vunpack.c.l.b16 %v1634
        %v2223 = vunpack.c.l.b16 %v1635
        %v2224 = vunpack.c.l.b16 %v1636
        %v2225 = vpack.c.b16 %v2222, %v2221
        %v2226 = vpack.c.b16 %v2224, %v2223
        %v2230 = vsel %vm908, %v2212, 0
        %2232 = vmatprep.subr.bf16.mxu0 0
        %2233 = vmatpush1.bf16.msra.mxu0 %v2225
        %2234 = vmatprep.subr.bf16.mxu0 0
        %2235 = vmatpush1.bf16.msra.mxu0 %v2226
        %2236 = vmatprep.subr.bf16.mxu0 0
        %2237 = vmatpush1.bf16.msra.mxu0 0
        %2238 = vmatprep.subr.bf16.mxu0 0
        %2239 = vmatpush1.bf16.msra.mxu0 0
        %2240 = vmatprep.subr.bf16.mxu0 0
        %2241 = vmatpush1.bf16.msra.mxu0 0
        %2242 = vmatprep.subr.bf16.mxu0 0
        %2243 = vmatpush1.bf16.msra.mxu0 0
        %2244 = vmatprep.subr.bf16.mxu0 0
        %2245 = vmatpush1.bf16.msra.mxu0 0
        %2246 = vmatprep.subr.bf16.mxu0 0
        %2247 = vmatpush1.bf16.msra.mxu0 0
        %2248 = vmatprep.subr.bf16.mxu0 0
        %2249 = vmatpush1.bf16.msra.mxu0 0
        %2250 = vmatprep.subr.bf16.mxu0 0
        %2251 = vmatpush1.bf16.msra.mxu0 0
        %2252 = vmatprep.subr.bf16.mxu0 0
        %2253 = vmatpush1.bf16.msra.mxu0 0
        %2254 = vmatprep.subr.bf16.mxu0 0
        %2255 = vmatpush1.bf16.msra.mxu0 0
        %2256 = vmatprep.subr.bf16.mxu0 0
        %2257 = vmatpush1.bf16.msra.mxu0 0
        %2258 = vmatprep.subr.bf16.mxu0 0
        %2259 = vmatpush1.bf16.msra.mxu0 0
        %2260 = vmatprep.subr.bf16.mxu0 0
        %2261 = vmatpush1.bf16.msra.mxu0 0
        %2262 = vmatprep.subr.bf16.mxu0 0
        %2263 = vmatpush1.bf16.msra.mxu0 0
        %2264 = vmatprep.mubr.bf16.mxu0 0
        %2265 = vmatmul.mubr.bf16.gmra.mrb[0].mxu0 %v2230
        %v2266 = vpop.f32.mrb[0].mxu0
        %v2267 = vadd.f32 %v2216, %v2266
        %v2268 = vpop.f32.mrb[0].mxu0
        %v2269 = vpop.f32.mrb[0].mxu0
        %v2270 = vpop.f32.mrb[0].mxu0
        %2271 = vdwg.mxu0
        %2272 = vst.msk [vmem:[%s871] sm:$0xff] %vm1075, %v1815
        %v2273 = vadd.f32 %v2267, %v1592
        %v2274 = vsel %vm908, %v2273, 0.0
        %2275 = vadd.xlane.f32.xlu0 %v2274
        %v2276 = vpop.xlane.xlu0 %2275
        %v2277 = vmul.f32 %v2276, %v912
        %v2278 = vsub.f32 %v2273, %v2277
        %v2279 = vmul.f32 %v2278, %v2278
        %v2280 = vsel %vm908, %v2279, 0.0
        %2281 = vadd.xlane.f32.xlu0 %v2280
        %v2282 = vpop.xlane.xlu0 %2281
        %v2283 = vmul.f32 %v2282, %v919
        %v2284 = vlaneseq
        %v2285 = vshrl.u32 %v2284, 7
        %v2286 = vsub.s32 4, %v2285
        %v2287 = vrot.slane %v882, %v2286
        %v2288 = vmul.f32 %v2287, %v2278
        %v2289 = vrsqrt.pop %v2283
        %v2290 = vmul.f32 %v2283, %v2289
        %vm2291 = vcmp.eq.f32.partialorder %v2283, inf
        %v2292 = vsel %vm2291, %v2283, %v2290
        %vm2293 = vcmp.eq.f32.partialorder %v2283, 0.0
        %v2294 = vand.u32 %v2283, 2147483648
        %v2295 = vsel %vm2293, %v2294, %v2292
        %v2296 = vadd.f32 %v2295, 1e-06
        %v2297 = vrcp.pop %v2296
        %v2298 = vmul.f32 %v2288, %v2297
        %v2299 = vlaneseq
        %v2300 = vshrl.u32 %v2299, 7
        %v2301 = vsub.s32 5, %v2300
        %v2302 = vrot.slane %v882, %v2301
        %v2303 = vadd.f32 %v2298, %v2302
        %v2304 = vpack.c.bf16 %v2303, %v2303
        %v2305 = vld [vmem:[#allocation23] sm:$0xf]
        %v2306 = vld [vmem:[#allocation23 + $0x4] sm:$0xf]
        %v2307 = vld [vmem:[#allocation23 + $0x8] sm:$0xf]
        %v2308 = vld [vmem:[#allocation23 + $0xc] sm:$0xf]
        %v2309 = vld [vmem:[#allocation25] sm:$0x1]
        %v2311 = vlaneseq
        %v2312 = vshrl.u32 %v2311, 7
        %v2313 = vsub.s32 0, %v2312
        %v2314 = vrot.slane %v2309, %v2313
        %v2320 = vunpack.c.l.b16 %v2305
        %v2321 = vunpack.c.l.b16 %v2306
        %v2322 = vunpack.c.l.b16 %v2307
        %v2323 = vunpack.c.l.b16 %v2308
        %v2324 = vpack.c.b16 %v2321, %v2320
        %v2325 = vpack.c.b16 %v2323, %v2322
        %v2329 = vsel %vm908, %v2304, 0
        %2331 = vmatprep.subr.bf16.mxu0 0
        %2332 = vmatpush1.bf16.msra.mxu0 %v2324
        %2333 = vmatprep.subr.bf16.mxu0 0
        %2334 = vmatpush1.bf16.msra.mxu0 %v2325
        %2335 = vmatprep.subr.bf16.mxu0 0
        %2336 = vmatpush1.bf16.msra.mxu0 0
        %2337 = vmatprep.subr.bf16.mxu0 0
        %2338 = vmatpush1.bf16.msra.mxu0 0
        %2339 = vmatprep.subr.bf16.mxu0 0
        %2340 = vmatpush1.bf16.msra.mxu0 0
        %2341 = vmatprep.subr.bf16.mxu0 0
        %2342 = vmatpush1.bf16.msra.mxu0 0
        %2343 = vmatprep.subr.bf16.mxu0 0
        %2344 = vmatpush1.bf16.msra.mxu0 0
        %2345 = vmatprep.subr.bf16.mxu0 0
        %2346 = vmatpush1.bf16.msra.mxu0 0
        %2347 = vmatprep.subr.bf16.mxu0 0
        %2348 = vmatpush1.bf16.msra.mxu0 0
        %2349 = vmatprep.subr.bf16.mxu0 0
        %2350 = vmatpush1.bf16.msra.mxu0 0
        %2351 = vmatprep.subr.bf16.mxu0 0
        %2352 = vmatpush1.bf16.msra.mxu0 0
        %2353 = vmatprep.subr.bf16.mxu0 0
        %2354 = vmatpush1.bf16.msra.mxu0 0
        %2355 = vmatprep.subr.bf16.mxu0 0
        %2356 = vmatpush1.bf16.msra.mxu0 0
        %2357 = vmatprep.subr.bf16.mxu0 0
        %2358 = vmatpush1.bf16.msra.mxu0 0
        %2359 = vmatprep.subr.bf16.mxu0 0
        %2360 = vmatpush1.bf16.msra.mxu0 0
        %2361 = vmatprep.subr.bf16.mxu0 0
        %2362 = vmatpush1.bf16.msra.mxu0 0
        %2363 = vmatprep.mubr.bf16.mxu0 0
        %2364 = vmatmul.mubr.bf16.gmra.mrb[0].mxu0 %v2329
        %v2365 = vpop.f32.mrb[0].mxu0
        %v2366 = vadd.f32 %v2314, %v2365
        %v2367 = vpop.f32.mrb[0].mxu0
        %v2368 = vpop.f32.mrb[0].mxu0
        %v2369 = vpop.f32.mrb[0].mxu0
        %2370 = vdwg.mxu0
        %v2371 = vmax.f32 %v2366, 0.0
        %v2372 = vpack.c.bf16 %v2371, %v2371
        %v2373 = vld [vmem:[#allocation26] sm:$0xf]
        %v2374 = vld [vmem:[#allocation26 + $0x4] sm:$0xf]
        %v2375 = vld [vmem:[#allocation26 + $0x8] sm:$0xf]
        %v2376 = vld [vmem:[#allocation26 + $0xc] sm:$0xf]
        %v2377 = vld [vmem:[#allocation26 + $0x10] sm:$0xf]
        %v2378 = vld [vmem:[#allocation26 + $0x14] sm:$0xf]
        %v2379 = vld [vmem:[#allocation26 + $0x18] sm:$0xf]
        %v2380 = vld [vmem:[#allocation26 + $0x1c] sm:$0xf]
        %v2381 = vlaneseq
        %v2382 = vshrl.u32 %v2381, 7
        %v2383 = vsub.s32 2, %v2382
        %v2384 = vrot.slane %v883, %v2383
        %v2393 = vunpack.c.l.b16 %v2373
        %v2394 = vunpack.c.l.b16 %v2374
        %v2395 = vunpack.c.l.b16 %v2375
        %v2396 = vunpack.c.l.b16 %v2376
        %v2397 = vunpack.c.l.b16 %v2377
        %v2398 = vunpack.c.l.b16 %v2378
        %v2399 = vunpack.c.l.b16 %v2379
        %v2400 = vunpack.c.l.b16 %v2380
        %v2401 = vpack.c.b16 %v2394, %v2393
        %v2402 = vpack.c.b16 %v2396, %v2395
        %v2403 = vpack.c.b16 %v2398, %v2397
        %v2404 = vpack.c.b16 %v2400, %v2399
        %vm2409 = vcmask 523264
        %v2411 = vsel %vm2409, %v2372, 0
        %2413 = vmatprep.subr.bf16.mxu0 0
        %2414 = vmatpush1.bf16.msra.mxu0 %v2401
        %2415 = vmatprep.subr.bf16.mxu0 0
        %2416 = vmatpush1.bf16.msra.mxu0 %v2402
        %2417 = vmatprep.subr.bf16.mxu0 0
        %2418 = vmatpush1.bf16.msra.mxu0 %v2403
        %2419 = vmatprep.subr.bf16.mxu0 0
        %2420 = vmatpush1.bf16.msra.mxu0 %v2404
        %2421 = vmatprep.subr.bf16.mxu0 0
        %2422 = vmatpush1.bf16.msra.mxu0 0
        %2423 = vmatprep.subr.bf16.mxu0 0
        %2424 = vmatpush1.bf16.msra.mxu0 0
        %2425 = vmatprep.subr.bf16.mxu0 0
        %2426 = vmatpush1.bf16.msra.mxu0 0
        %2427 = vmatprep.subr.bf16.mxu0 0
        %2428 = vmatpush1.bf16.msra.mxu0 0
        %2429 = vmatprep.subr.bf16.mxu0 0
        %2430 = vmatpush1.bf16.msra.mxu0 0
        %2431 = vmatprep.subr.bf16.mxu0 0
        %2432 = vmatpush1.bf16.msra.mxu0 0
        %2433 = vmatprep.subr.bf16.mxu0 0
        %2434 = vmatpush1.bf16.msra.mxu0 0
        %2435 = vmatprep.subr.bf16.mxu0 0
        %2436 = vmatpush1.bf16.msra.mxu0 0
        %2437 = vmatprep.subr.bf16.mxu0 0
        %2438 = vmatpush1.bf16.msra.mxu0 0
        %2439 = vmatprep.subr.bf16.mxu0 0
        %2440 = vmatpush1.bf16.msra.mxu0 0
        %2441 = vmatprep.subr.bf16.mxu0 0
        %2442 = vmatpush1.bf16.msra.mxu0 0
        %2443 = vmatprep.subr.bf16.mxu0 0
        %2444 = vmatpush1.bf16.msra.mxu0 0
        %2445 = vmatprep.mubr.bf16.mxu0 0
        %2446 = vmatmul.mubr.bf16.gmra.mrb[0].mxu0 %v2411
        %v2447 = vpop.f32.mrb[0].mxu0
        %v2448 = vadd.f32 %v2384, %v2447
        %v2449 = vpop.f32.mrb[0].mxu0
        %v2450 = vpop.f32.mrb[0].mxu0
        %v2451 = vpop.f32.mrb[0].mxu0
        %2452 = vdwg.mxu0
        %v2453 = vadd.f32 %v2448, %v2273
        %2454 = vst.msk [vmem:[%s864] sm:$0xff] %vm908, %v2453
        %s2455 = sand.u32 %s415, 1
        %s2456 = scalar_lea.sflag [#allocation4], %s2455
        %s2457 = sand.u32 %s415, 1
        %s2458 = smul.addr %s2457, 8
        %s2459 = scalar_lea.vmem [#allocation28], %s2458
        %s2460 = sand.u32 %s51, 1
        %s2461 = scalar_lea.sflag [#allocation30], %s2460
        %s2462 = sand.u32 %s441, 1
        %s2463 = smul.addr %s2462, 8
        %s2464 = scalar_lea.vmem [#allocation29], %s2463
        %s2465 = sand.u32 %s51, 1
        %s2466 = scalar_lea.sflag [#allocation30], %s2465
        %s2467 = sand.u32 %s467, 1
        %s2468 = smul.addr %s2467, 8
        %s2469 = scalar_lea.vmem [#allocation31], %s2468
        // Predicated region
        $region149: #{tpu_custom_call.1} parent=83 // pred_check
          %p2470 = pneg %p425
        $region150: #{tpu_custom_call.1} parent=83 // pred_check_branch
          %2472 = sbr.rel (%p2470) target = $region152
        $region151: #{tpu_custom_call.1} parent=83 // pred_region
          %s2474 = ssub.s32 128, 128
          %2475 = vsyncadd %s2456, %s2474
          %s2476 = smul.addr %s51, 128
          %s2477 = scalar_lea.hbm %s16, %s2476
          %s2479 = sshll.u32 %s2459, 4
          %s2480 = int_to_ptr.vmem [resolvable:$true] %s2479
          %2482 = dma.vmem_to_hbm [thread:$0]  %s2480, 128, %s2477, %s2456
        $region152: #{tpu_custom_call.1} parent=83 // pred_fallthru
          _
        // Predicated region
        $region153: #{tpu_custom_call.1} parent=83 // pred_check
          %p2483 = pneg %p451
        $region154: #{tpu_custom_call.1} parent=83 // pred_check_branch
          %2485 = sbr.rel (%p2483) target = $region156
        $region155: #{tpu_custom_call.1} parent=83 // pred_region
          %s2487 = ssub.s32 128, 128
          %2488 = vsyncadd %s2461, %s2487
          %s2489 = smul.addr %s51, 128
          %s2490 = scalar_lea.hbm %s17, %s2489
          %s2492 = sshll.u32 %s2464, 4
          %s2493 = int_to_ptr.vmem [resolvable:$true] %s2492
          %2495 = dma.vmem_to_hbm [thread:$0]  %s2493, 128, %s2490, %s2461
        $region156: #{tpu_custom_call.1} parent=83 // pred_fallthru
          _
        // Predicated region
        $region157: #{tpu_custom_call.1} parent=83 // pred_check
          %p2496 = pneg %p477
        $region158: #{tpu_custom_call.1} parent=83 // pred_check_branch
          %2498 = sbr.rel (%p2496) target = $region160
        $region159: #{tpu_custom_call.1} parent=83 // pred_region
          %s2500 = ssub.s32 128, 128
          %2501 = vsyncadd %s2466, %s2500
          %s2502 = smul.addr %s51, 128
          %s2503 = scalar_lea.hbm %s18, %s2502
          %s2505 = sshll.u32 %s2469, 4
          %s2506 = int_to_ptr.vmem [resolvable:$true] %s2505
          %2508 = dma.vmem_to_hbm [thread:$0]  %s2506, 128, %s2503, %s2466
        $region160: #{tpu_custom_call.1} parent=83 // pred_fallthru
          _
      $region84: #{tpu_custom_call.1} parent=5 // pred_fallthru
        _
      %p2509 = scmp.le.s32.totalorder 2, %s46
      // Predicated region
      $region161: #{tpu_custom_call.1} parent=5 // pred_check
        %p2510 = pneg %p2509
      $region162: #{tpu_custom_call.1} parent=5 // pred_check_branch
        %2512 = sbr.rel (%p2510) target = $region164
      $region163: #{tpu_custom_call.1} parent=5 // pred_region
        %s2513 = ssub.s32 %s46, 2
        // Predicated region
        $region165: #{tpu_custom_call.1} parent=163 // pred_check
          %p2514 = pneg %p431
        $region166: #{tpu_custom_call.1} parent=163 // pred_check_branch
          %2516 = sbr.rel (%p2514) target = $region168
        $region167: #{tpu_custom_call.1} parent=163 // pred_region
          %s2517 = sand.u32 %s416, 1
          %s2518 = scalar_lea.sflag [#allocation4], %s2517
          %s2519 = sand.u32 %s416, 1
          %s2520 = smul.addr %s2519, 8
          %s2521 = scalar_lea.vmem [#allocation28], %s2520
          %2522 = dma.done %s2518, 128
        $region168: #{tpu_custom_call.1} parent=163 // pred_fallthru
          _
        // Predicated region
        $region169: #{tpu_custom_call.1} parent=163 // pred_check
          %p2523 = pneg %p457
        $region170: #{tpu_custom_call.1} parent=163 // pred_check_branch
          %2525 = sbr.rel (%p2523) target = $region172
        $region171: #{tpu_custom_call.1} parent=163 // pred_region
          %s2526 = sand.u32 %s52, 1
          %s2527 = scalar_lea.sflag [#allocation30], %s2526
          %s2528 = sand.u32 %s442, 1
          %s2529 = smul.addr %s2528, 8
          %s2530 = scalar_lea.vmem [#allocation29], %s2529
          %2531 = dma.done %s2527, 128
        $region172: #{tpu_custom_call.1} parent=163 // pred_fallthru
          _
        // Predicated region
        $region173: #{tpu_custom_call.1} parent=163 // pred_check
          %p2532 = pneg %p483
        $region174: #{tpu_custom_call.1} parent=163 // pred_check_branch
          %2534 = sbr.rel (%p2532) target = $region176
        $region175: #{tpu_custom_call.1} parent=163 // pred_region
          %s2535 = sand.u32 %s52, 1
          %s2536 = scalar_lea.sflag [#allocation30], %s2535
          %s2537 = sand.u32 %s468, 1
          %s2538 = smul.addr %s2537, 8
          %s2539 = scalar_lea.vmem [#allocation31], %s2538
          %2540 = dma.done %s2536, 128
        $region176: #{tpu_custom_call.1} parent=163 // pred_fallthru
          _
      $region164: #{tpu_custom_call.1} parent=5 // pred_fallthru
        _
    $region6: #{tpu_custom_call.1} parent=1 // loop_footer
      %s50 = sadd.s32 1, %s46
    $region7: #{tpu_custom_call.1} parent=1 // loop_footer_branch
      %45 = sbr.rel target = $region3
    $region8: #{tpu_custom_call.1} parent=1 // loop_exit
      _
    %2541 = vsyncpa [#allocation3], 1
    %s2542 = scalar_lea.sflag [#allocation3], 1
    %2543 = vsyncpa %s2542, 1
    %2544 = vsyncpa [#allocation6], 1
    %s2545 = scalar_lea.sflag [#allocation6], 1
    %2546 = vsyncpa %s2545, 1
    %2547 = vsyncpa [#allocation9], 1
    %s2548 = scalar_lea.sflag [#allocation9], 1
    %2549 = vsyncpa %s2548, 1
    %2550 = vsyncpa [#allocation12], 1
    %2551 = vsyncpa [#allocation15], 1
    %2552 = vsyncpa [#allocation18], 1
    %2553 = vsyncpa [#allocation21], 1
    %2554 = vsyncpa [#allocation24], 1
    %2555 = vsyncpa [#allocation27], 1
    %2556 = vsyncpa [#allocation4], 1
    %s2557 = scalar_lea.sflag [#allocation4], 1
    %2558 = vsyncpa %s2557, 1
    %2559 = vsyncpa [#allocation30], 1
    %s2560 = scalar_lea.sflag [#allocation30], 1
    %2561 = vsyncpa %s2560, 1

</llo_original>
